<compile_context>
chip_gen: v7x
topology: tpu7x:2x2x1
jax: 0.10.0
libtpu: 0.0.40
codegen_flags: <defaults>
</compile_context>

<pallas_src>
import functools
import math

import numpy as np
import jax
import jax.numpy as jnp
from jax.experimental import pallas as pl
from jax.experimental.pallas import tpu as pltpu

LEAKY_SLOPE = 0.2
BN_EPS = 1e-5


def _leaky(v):
    return jnp.where(v >= 0.0, v, LEAKY_SLOPE * v)


# ----------------------------------------------------------------------------
# In-kernel building blocks
# ----------------------------------------------------------------------------
def _conv_layer(read_row, zp_out_ref, w_ref, b_ref, sel_ref, Ho, Wo, Co):
    """One stride-2 3x3 conv (+ folded BN) + LeakyReLU, entirely in VMEM.

    read_row(i) -> (4*Ci, Wo+1): padded space-to-depth row i of this layer's
    input (row 0 / lane 0 are the zero pads, sublanes ordered (p, q, ci)).
    Writes zp_out_ref (Ho//2+1, 4*Co, Wo//2+1): the padded s2d layout of this
    layer's output, i.e. exactly what the next layer's read_row expects.
    """
    S = Wo
    S2 = S // 2
    zp_out_ref[0] = jnp.zeros((4 * Co, S2 + 1), jnp.float32)  # top zero-pad row

    def body(r2, carry):
        # output rows 2*r2 and 2*r2+1 share the middle s2d input row.
        ra = read_row(2 * r2)          # di=0 of out-row 2*r2
        rb = read_row(2 * r2 + 1)      # di=1 of out-row 2*r2, di=0 of 2*r2+1
        rc = read_row(2 * r2 + 2)      # di=1 of out-row 2*r2+1
        pieces = []
        for top, bot in ((ra, rb), (rb, rc)):
            # concatenated-K im2col: (16*Ci, Wo), K ordered (di, dj, p, q, ci)
            A = jnp.concatenate(
                [top[:, 0:S], top[:, 1:S + 1], bot[:, 0:S], bot[:, 1:S + 1]],
                axis=0)
            o = jnp.dot(w_ref[...], A, preferred_element_type=jnp.float32)
            o = _leaky(o + b_ref[...])                        # (Co, Wo)
            # column-parity de-interleave + left zero-pad via one 0/1 matmul
            res = jnp.dot(o, sel_ref[...], preferred_element_type=jnp.float32)
            pieces.append(res[:, :S2 + 1])                    # q' = 0
            pieces.append(res[:, S2 + 1:])                    # q' = 1
        zp_out_ref[1 + r2] = jnp.concatenate(pieces, axis=0)  # (4*Co, S2+1)
        return carry

    jax.lax.fori_loop(0, Ho // 2, body, 0)


def fused_kernel(layer_dims, *refs):
    x_ref = refs[0]                       # (1, 129, 16, 129) padded s2d input
    cw = refs[1:7]                        # conv weights (Co, 16*Ci)
    cb = refs[7:13]                       # folded BN bias  (Co, 1)
    sel = refs[13:18]                     # parity-selection matrices, layers 1-5
    fw1_ref, fb1_ref, fw2_ref, fb2_ref = refs[18:22]
    o_ref = refs[22]                      # (1, 8, 128) output block
    zps = refs[23:28]                     # VMEM scratch: layer 1..5 outputs

    readers = [lambda i: x_ref[0, i]]
    for zp in zps:
        readers.append(lambda i, _z=zp: _z[i])

    # ---- conv layers 1..5 ---------------------------------------------------
    for l, (Ho, Wo, Co) in enumerate(layer_dims):
        _conv_layer(readers[l], zps[l], cw[l], cb[l], sel[l], Ho, Wo, Co)

    # ---- conv layer 6 fused with the classifier head ------------------------
    h = fb1_ref[...]                      # (128, 1)  fc1 bias (padded 100->128)
    for ho in range(4):                   # 4 output rows, statically unrolled
        ra = readers[5](ho)
        rb = readers[5](ho + 1)
        A = jnp.concatenate([ra[:, 0:4], ra[:, 1:5], rb[:, 0:4], rb[:, 1:5]],
                            axis=0)                            # (512, 4)
        o6 = jnp.dot(cw[5][...], A, preferred_element_type=jnp.float32)
        o6 = _leaky(o6 + cb[5][...])                           # (64, 4)
        for wo in range(4):
            contrib = jnp.dot(fw1_ref[ho * 4 + wo], o6,
                              preferred_element_type=jnp.float32)   # (128, 4)
            h = h + contrib[:, wo:wo + 1]
    h = _leaky(h)
    z = jnp.sum(h * fw2_ref[...], axis=0, keepdims=True) + fb2_ref[...]  # (1,1)
    prob = 1.0 / (1.0 + jnp.exp(-z))                           # Sigmoid
    o_ref[0] = jnp.broadcast_to(prob, (8, 128))                # lane-dense store


# ----------------------------------------------------------------------------
# Trace-time parameter preparation
# ----------------------------------------------------------------------------
DMAP = ((0, 1), (1, 0), (1, 1))        # 3x3 kernel offset -> (block shift, parity)


def make_conv_weight(Wf, ci_pad):
    # (Co, Ci, 3, 3) -> (Co, 16*ci_pad), K ordered (di, dj, p, q, ci)
    Co, Ci = Wf.shape[0], Wf.shape[1]
    Whw = jnp.transpose(Wf, (2, 3, 1, 0))                      # (3, 3, Ci, Co)
    W6 = jnp.zeros((2, 2, 2, 2, ci_pad, Co), jnp.float32)
    for kh in range(3):
        di, p = DMAP[kh]
        for kw in range(3):
            dj, q = DMAP[kw]
            W6 = W6.at[di, dj, p, q, :Ci].set(Whw[kh, kw])
    return jnp.transpose(W6, (5, 0, 1, 2, 3, 4)).reshape(Co, 16 * ci_pad)


def make_sel(S):
    # (S, 2*(S//2+1)) 0/1 matrix: column q*(S//2+1)+1+s' selects lane 2*s'+q.
    # Columns 0 and S//2+1 stay zero = the next layer's left zero-pad column.
    S2 = S // 2
    sel = np.zeros((S, 2 * (S2 + 1)), np.float32)
    for q in range(2):
        for s2 in range(S2):
            sel[2 * s2 + q, q * (S2 + 1) + 1 + s2] = 1.0
    return jnp.asarray(sel)


def build_fused_params(conv_w, bn, fc1_w, fc1_b, fc2_w, fc2_b, ndf):
    cw, cb = [], []
    for i, W in enumerate(conv_w):
        if i == 0:                                             # no BN, no bias
            Wf = W
            bias = jnp.zeros((W.shape[0],), jnp.float32)
        else:                                                  # fold eval-mode BN
            g, b, m, v = bn[i - 1]
            s = g / jnp.sqrt(v + BN_EPS)
            Wf = W * s[:, None, None, None]
            bias = b - m * s
        ci_pad = 4 if i == 0 else W.shape[1]                   # pad RGB 3 -> 4
        cw.append(make_conv_weight(Wf, ci_pad))
        cb.append(bias.reshape(-1, 1))
    sels = [make_sel(S) for S in (128, 64, 32, 16, 8)]

    c6 = 8 * ndf
    # PyTorch NCHW flatten: feature index = c*16 + (ho*4 + wo)
    w1r = fc1_w.reshape(100, c6, 16)                           # [j, c, s]
    fw1 = jnp.pad(jnp.transpose(w1r, (2, 0, 1)), ((0, 0), (0, 28), (0, 0)))
    fb1 = jnp.pad(fc1_b, (0, 28)).reshape(128, 1)
    fw2 = jnp.pad(fc2_w, ((0, 0), (0, 28))).reshape(128, 1)
    fb2 = fc2_b.reshape(1, 1)
    return dict(cw=cw, cb=cb, sel=sels, fw1=fw1, fb1=fb1, fw2=fw2, fb2=fb2)


def prep_input(x_nchw):
    # NCHW image -> padded space-to-depth, channels-on-sublanes layout:
    # zp[n, 1+r, (p*2+q)*4 + c, 1+s] = x[n, c, 2r+p, 2s+q]   (c padded 3 -> 4)
    N, C, H, W = x_nchw.shape
    r = x_nchw.reshape(N, C, H // 2, 2, W // 2, 2)
    r = jnp.transpose(r, (0, 2, 3, 5, 1, 4))                   # (N, R, p, q, C, S)
    r = jnp.pad(r, ((0, 0),) * 4 + ((0, 4 - C), (0, 0)))
    r = r.reshape(N, H // 2, 16, W // 2)
    return jnp.pad(r, ((0, 0), (1, 0), (0, 0), (1, 0)))        # (N, R+1, 16, S+1)


def _const_index_map(ndim):
    return lambda n: (0,) * ndim


# ----------------------------------------------------------------------------
# Forward pass (single fused Pallas call)
# ----------------------------------------------------------------------------
def discriminator_forward(x_nchw, P):
    N, C, H, W = x_nchw.shape
    assert C == 3 and H == 256 and W == 256, "classifier expects a 4x4 final map"
    ndf = P["cw"][0].shape[0]
    zp0 = prep_input(x_nchw)                                   # (N, 129, 16, 129)

    layer_dims = [(H // 2, W // 2, ndf), (H // 4, W // 4, 2 * ndf),
                  (H // 8, W // 8, 2 * ndf), (H // 16, W // 16, 4 * ndf),
                  (H // 32, W // 32, 4 * ndf)]
    scratch = [pltpu.VMEM((Ho // 2 + 1, 4 * Co, Wo // 2 + 1), jnp.float32)
               for Ho, Wo, Co in layer_dims]

    inputs = ([zp0] + list(P["cw"]) + list(P["cb"]) + list(P["sel"])
              + [P["fw1"], P["fb1"], P["fw2"], P["fb2"]])
    in_specs = [pl.BlockSpec((1,) + zp0.shape[1:], lambda n: (n, 0, 0, 0))]
    for a in inputs[1:]:
        in_specs.append(pl.BlockSpec(a.shape, _const_index_map(a.ndim)))

    out = pl.pallas_call(
        functools.partial(fused_kernel, layer_dims),
        out_shape=jax.ShapeDtypeStruct((N, 8, 128), jnp.float32),
        grid=(N,),
        in_specs=in_specs,
        out_specs=pl.BlockSpec((1, 8, 128), lambda n: (n, 0, 0)),
        scratch_shapes=scratch,
        compiler_params=pltpu.CompilerParams(
            dimension_semantics=("parallel",)),
    )(*inputs)
    return out[:, 0, :1]


# ----------------------------------------------------------------------------
# Pure-JAX reference (same semantics as the PyTorch module, eval-mode BN)
# ----------------------------------------------------------------------------
def reference_forward(x, conv_w, bn, fc1_w, fc1_b, fc2_w, fc2_b):
    y = x
    for i in range(6):
        y = jax.lax.conv_general_dilated(
            y, conv_w[i], window_strides=(2, 2), padding=((1, 1), (1, 1)),
            dimension_numbers=("NCHW", "OIHW", "NCHW"))
        if i > 0:
            g, b, m, v = bn[i - 1]
            s = g / jnp.sqrt(v + BN_EPS)
            y = y * s[None, :, None, None] + (b - m * s)[None, :, None, None]
        y = jnp.where(y >= 0.0, y, LEAKY_SLOPE * y)
    f = y.reshape(y.shape[0], -1)                              # NCHW flatten
    h = f @ fc1_w.T + fc1_b
    h = jnp.where(h >= 0.0, h, LEAKY_SLOPE * h)
    z = h @ fc2_w.T + fc2_b
    return 1.0 / (1.0 + jnp.exp(-z))


# ----------------------------------------------------------------------------
if __name__ == "__main__":
    ndf = 8
    input_channel = 3
    N = 2
    HW = 256          # 6 stride-2 convs -> 4x4 map, as required by the classifier

    key = jax.random.PRNGKey(0)
    kit = iter(list(jax.random.split(key, 40)))

    chans = [(input_channel, ndf), (ndf, 2 * ndf), (2 * ndf, 2 * ndf),
             (2 * ndf, 4 * ndf), (4 * ndf, 4 * ndf), (4 * ndf, 8 * ndf)]

    conv_w = []
    for ci, co in chans:
        bound = math.sqrt(6.0 / (9.0 * ci))                    # keeps activations O(1)
        conv_w.append(jax.random.uniform(next(kit), (co, ci, 3, 3),
                                         jnp.float32, -bound, bound))

    bn = []
    for _, co in chans[1:]:
        g = 1.0 + 0.1 * jax.random.normal(next(kit), (co,), jnp.float32)
        b = 0.1 * jax.random.normal(next(kit), (co,), jnp.float32)
        m = 0.1 * jax.random.normal(next(kit), (co,), jnp.float32)
        v = jax.random.uniform(next(kit), (co,), jnp.float32, 0.5, 1.5)
        bn.append((g, b, m, v))

    feat = 8 * ndf * 4 * 4
    fb = 1.0 / math.sqrt(feat)
    fc1_w = jax.random.uniform(next(kit), (100, feat), jnp.float32, -fb, fb)
    fc1_b = jax.random.uniform(next(kit), (100,), jnp.float32, -fb, fb)
    fc2_w = jax.random.uniform(next(kit), (1, 100), jnp.float32, -0.1, 0.1)
    fc2_b = jax.random.uniform(next(kit), (1,), jnp.float32, -0.1, 0.1)

    x = jax.random.normal(next(kit), (N, input_channel, HW, HW), jnp.float32)

    fused = build_fused_params(conv_w, bn, fc1_w, fc1_b, fc2_w, fc2_b, ndf)

    fwd = jax.jit(discriminator_forward)
    out = jax.block_until_ready(fwd(x, fused))
    assert out.shape == (N, 1)

    ref = jax.block_until_ready(
        reference_forward(x, conv_w, bn, fc1_w, fc1_b, fc2_w, fc2_b))
    np.testing.assert_allclose(np.asarray(out), np.asarray(ref),
                               rtol=2e-4, atol=2e-4)

    print("KERNEL_OK")
</pallas_src>

<mosaic_0001>
module attributes {stable_mosaic.version = 11 : i64} {
  func.func @fused_kernel(%arg0: i32, %arg1: memref<1x129x16x129xf32, #tpu.memory_space<vmem>>, %arg2: memref<8x64xf32, #tpu.memory_space<vmem>>, %arg3: memref<16x128xf32, #tpu.memory_space<vmem>>, %arg4: memref<16x256xf32, #tpu.memory_space<vmem>>, %arg5: memref<32x256xf32, #tpu.memory_space<vmem>>, %arg6: memref<32x512xf32, #tpu.memory_space<vmem>>, %arg7: memref<64x512xf32, #tpu.memory_space<vmem>>, %arg8: memref<8x1xf32, #tpu.memory_space<vmem>>, %arg9: memref<16x1xf32, #tpu.memory_space<vmem>>, %arg10: memref<16x1xf32, #tpu.memory_space<vmem>>, %arg11: memref<32x1xf32, #tpu.memory_space<vmem>>, %arg12: memref<32x1xf32, #tpu.memory_space<vmem>>, %arg13: memref<64x1xf32, #tpu.memory_space<vmem>>, %arg14: memref<128x130xf32, #tpu.memory_space<vmem>>, %arg15: memref<64x66xf32, #tpu.memory_space<vmem>>, %arg16: memref<32x34xf32, #tpu.memory_space<vmem>>, %arg17: memref<16x18xf32, #tpu.memory_space<vmem>>, %arg18: memref<8x10xf32, #tpu.memory_space<vmem>>, %arg19: memref<16x128x64xf32, #tpu.memory_space<vmem>>, %arg20: memref<128x1xf32, #tpu.memory_space<vmem>>, %arg21: memref<128x1xf32, #tpu.memory_space<vmem>>, %arg22: memref<1x1xf32, #tpu.memory_space<vmem>>, %arg23: memref<1x8x128xf32, #tpu.memory_space<vmem>>, %arg24: memref<65x32x65xf32, #tpu.memory_space<vmem>>, %arg25: memref<33x64x33xf32, #tpu.memory_space<vmem>>, %arg26: memref<17x64x17xf32, #tpu.memory_space<vmem>>, %arg27: memref<9x128x9xf32, #tpu.memory_space<vmem>>, %arg28: memref<5x128x5xf32, #tpu.memory_space<vmem>>) attributes {dimension_semantics = [#tpu.dimension_semantics<parallel>], iteration_bounds = array<i64: 2>, scalar_prefetch = 0 : i64, scratch_operands = 5 : i64, tpu.core_type = #tpu.core_type<tc>, window_params = [{transform_indices = @transform_0, window_bounds = array<i64: 1, 129, 16, 129>}, {pipeline_mode = #tpu.pipeline_mode<synchronous>, transform_indices = @transform_1, window_bounds = array<i64: 8, 64>}, {pipeline_mode = #tpu.pipeline_mode<synchronous>, transform_indices = @transform_2, window_bounds = array<i64: 16, 128>}, {pipeline_mode = #tpu.pipeline_mode<synchronous>, transform_indices = @transform_3, window_bounds = array<i64: 16, 256>}, {pipeline_mode = #tpu.pipeline_mode<synchronous>, transform_indices = @transform_4, window_bounds = array<i64: 32, 256>}, {pipeline_mode = #tpu.pipeline_mode<synchronous>, transform_indices = @transform_5, window_bounds = array<i64: 32, 512>}, {pipeline_mode = #tpu.pipeline_mode<synchronous>, transform_indices = @transform_6, window_bounds = array<i64: 64, 512>}, {pipeline_mode = #tpu.pipeline_mode<synchronous>, transform_indices = @transform_7, window_bounds = array<i64: 8, 1>}, {pipeline_mode = #tpu.pipeline_mode<synchronous>, transform_indices = @transform_8, window_bounds = array<i64: 16, 1>}, {pipeline_mode = #tpu.pipeline_mode<synchronous>, transform_indices = @transform_9, window_bounds = array<i64: 16, 1>}, {pipeline_mode = #tpu.pipeline_mode<synchronous>, transform_indices = @transform_10, window_bounds = array<i64: 32, 1>}, {pipeline_mode = #tpu.pipeline_mode<synchronous>, transform_indices = @transform_11, window_bounds = array<i64: 32, 1>}, {pipeline_mode = #tpu.pipeline_mode<synchronous>, transform_indices = @transform_12, window_bounds = array<i64: 64, 1>}, {pipeline_mode = #tpu.pipeline_mode<synchronous>, transform_indices = @transform_13, window_bounds = array<i64: 128, 130>}, {pipeline_mode = #tpu.pipeline_mode<synchronous>, transform_indices = @transform_14, window_bounds = array<i64: 64, 66>}, {pipeline_mode = #tpu.pipeline_mode<synchronous>, transform_indices = @transform_15, window_bounds = array<i64: 32, 34>}, {pipeline_mode = #tpu.pipeline_mode<synchronous>, transform_indices = @transform_16, window_bounds = array<i64: 16, 18>}, {pipeline_mode = #tpu.pipeline_mode<synchronous>, transform_indices = @transform_17, window_bounds = array<i64: 8, 10>}, {pipeline_mode = #tpu.pipeline_mode<synchronous>, transform_indices = @transform_18, window_bounds = array<i64: 16, 128, 64>}, {pipeline_mode = #tpu.pipeline_mode<synchronous>, transform_indices = @transform_19, window_bounds = array<i64: 128, 1>}, {pipeline_mode = #tpu.pipeline_mode<synchronous>, transform_indices = @transform_20, window_bounds = array<i64: 128, 1>}, {pipeline_mode = #tpu.pipeline_mode<synchronous>, transform_indices = @transform_21, window_bounds = array<i64: 1, 1>}, {transform_indices = @transform_22, window_bounds = array<i64: 1, 8, 128>}]} {
    %cst = arith.constant 0.000000e+00 : f32
    %0 = vector.broadcast %cst : f32 to vector<32x65xf32>
    %c0 = arith.constant 0 : index
    %c0_0 = arith.constant 0 : index
    %c0_1 = arith.constant 0 : index
    %1 = vector.load %arg24[%c0, %c0_0, %c0_1] : memref<65x32x65xf32, #tpu.memory_space<vmem>>, vector<1x32x65xf32>
    %2 = vector.shape_cast %1 : vector<1x32x65xf32> to vector<32x65xf32>
    %3 = vector.shape_cast %0 : vector<32x65xf32> to vector<1x32x65xf32>
    tpu.vector_store %arg24[%c0, %c0_0, %c0_1], %3 {strides = array<i32>} : memref<65x32x65xf32, #tpu.memory_space<vmem>>, vector<1x32x65xf32>,
    %c0_i32 = arith.constant 0 : i32
    %c64_i32 = arith.constant 64 : i32
    %4 = arith.addi %c0_i32, %c64_i32 : i32
    %c1_i32 = arith.constant 1 : i32
    scf.for %arg29 = %c0_i32 to %4 step %c1_i32  : i32 {
      %c2_i32 = arith.constant 2 : i32
      %205 = arith.muli %c2_i32, %arg29 : i32
      %c0_147 = arith.constant 0 : index
      %206 = arith.index_cast %205 : i32 to index
      %c0_148 = arith.constant 0 : index
      %c0_149 = arith.constant 0 : index
      %207 = vector.load %arg1[%c0_147, %206, %c0_148, %c0_149] : memref<1x129x16x129xf32, #tpu.memory_space<vmem>>, vector<1x1x16x129xf32>
      %208 = vector.shape_cast %207 : vector<1x1x16x129xf32> to vector<16x129xf32>
      %c2_i32_150 = arith.constant 2 : i32
      %209 = arith.muli %c2_i32_150, %arg29 : i32
      %c1_i32_151 = arith.constant 1 : i32
      %210 = arith.addi %209, %c1_i32_151 : i32
      %c0_152 = arith.constant 0 : index
      %211 = arith.index_cast %210 : i32 to index
      %c0_153 = arith.constant 0 : index
      %c0_154 = arith.constant 0 : index
      %212 = vector.load %arg1[%c0_152, %211, %c0_153, %c0_154] : memref<1x129x16x129xf32, #tpu.memory_space<vmem>>, vector<1x1x16x129xf32>
      %213 = vector.shape_cast %212 : vector<1x1x16x129xf32> to vector<16x129xf32>
      %c2_i32_155 = arith.constant 2 : i32
      %214 = arith.muli %c2_i32_155, %arg29 : i32
      %c2_i32_156 = arith.constant 2 : i32
      %215 = arith.addi %214, %c2_i32_156 : i32
      %c0_157 = arith.constant 0 : index
      %216 = arith.index_cast %215 : i32 to index
      %c0_158 = arith.constant 0 : index
      %c0_159 = arith.constant 0 : index
      %217 = vector.load %arg1[%c0_157, %216, %c0_158, %c0_159] : memref<1x129x16x129xf32, #tpu.memory_space<vmem>>, vector<1x1x16x129xf32>
      %218 = vector.shape_cast %217 : vector<1x1x16x129xf32> to vector<16x129xf32>
      %219 = vector.extract_strided_slice %208 {offsets = [0, 0], sizes = [16, 128], strides = [1, 1]} : vector<16x129xf32> to vector<16x128xf32>
      %220 = vector.extract_strided_slice %208 {offsets = [0, 1], sizes = [16, 128], strides = [1, 1]} : vector<16x129xf32> to vector<16x128xf32>
      %221 = vector.extract_strided_slice %213 {offsets = [0, 0], sizes = [16, 128], strides = [1, 1]} : vector<16x129xf32> to vector<16x128xf32>
      %222 = vector.extract_strided_slice %213 {offsets = [0, 1], sizes = [16, 128], strides = [1, 1]} : vector<16x129xf32> to vector<16x128xf32>
      %223 = tpu.concatenate %219, %220, %221, %222 in 0 : vector<16x128xf32>, vector<16x128xf32>, vector<16x128xf32>, vector<16x128xf32> -> vector<64x128xf32>
      %c0_160 = arith.constant 0 : index
      %c0_161 = arith.constant 0 : index
      %224 = vector.load %arg2[%c0_160, %c0_161] : memref<8x64xf32, #tpu.memory_space<vmem>>, vector<8x64xf32>
      %cst_162 = arith.constant dense<0.000000e+00> : vector<8x128xf32>
      %225 = tpu.matmul %224, %223, %cst_162 {dimension_numbers = #tpu.dot_dimension_numbers<[1], [0], [0], [1], [0, 0, 1, 1], [], []>} : vector<8x64xf32>, vector<64x128xf32>, vector<8x128xf32> -> vector<8x128xf32>
      %c0_163 = arith.constant 0 : index
      %c0_164 = arith.constant 0 : index
      %226 = vector.load %arg8[%c0_163, %c0_164] : memref<8x1xf32, #tpu.memory_space<vmem>>, vector<8x1xf32>
      %227 = vector.broadcast %226 : vector<8x1xf32> to vector<8x128xf32>
      %228 = arith.addf %225, %227 : vector<8x128xf32>
      %cst_165 = arith.constant 0.000000e+00 : f32
      %229 = vector.broadcast %cst_165 : f32 to vector<8x128xf32>
      %230 = arith.cmpf oge, %228, %229 : vector<8x128xf32>
      %cst_166 = arith.constant 2.000000e-01 : f32
      %231 = vector.broadcast %cst_166 : f32 to vector<8x128xf32>
      %232 = arith.mulf %231, %228 : vector<8x128xf32>
      %233 = arith.select %230, %228, %232 : vector<8x128xi1>, vector<8x128xf32>
      %c0_167 = arith.constant 0 : index
      %c0_168 = arith.constant 0 : index
      %234 = vector.load %arg14[%c0_167, %c0_168] : memref<128x130xf32, #tpu.memory_space<vmem>>, vector<128x130xf32>
      %cst_169 = arith.constant dense<0.000000e+00> : vector<8x130xf32>
      %235 = tpu.matmul %233, %234, %cst_169 {dimension_numbers = #tpu.dot_dimension_numbers<[1], [0], [0], [1], [0, 0, 1, 1], [], []>} : vector<8x128xf32>, vector<128x130xf32>, vector<8x130xf32> -> vector<8x130xf32>
      %236 = vector.extract_strided_slice %235 {offsets = [0, 0], sizes = [8, 65], strides = [1, 1]} : vector<8x130xf32> to vector<8x65xf32>
      %237 = vector.extract_strided_slice %235 {offsets = [0, 65], sizes = [8, 65], strides = [1, 1]} : vector<8x130xf32> to vector<8x65xf32>
      %238 = vector.extract_strided_slice %213 {offsets = [0, 0], sizes = [16, 128], strides = [1, 1]} : vector<16x129xf32> to vector<16x128xf32>
      %239 = vector.extract_strided_slice %213 {offsets = [0, 1], sizes = [16, 128], strides = [1, 1]} : vector<16x129xf32> to vector<16x128xf32>
      %240 = vector.extract_strided_slice %218 {offsets = [0, 0], sizes = [16, 128], strides = [1, 1]} : vector<16x129xf32> to vector<16x128xf32>
      %241 = vector.extract_strided_slice %218 {offsets = [0, 1], sizes = [16, 128], strides = [1, 1]} : vector<16x129xf32> to vector<16x128xf32>
      %242 = tpu.concatenate %238, %239, %240, %241 in 0 : vector<16x128xf32>, vector<16x128xf32>, vector<16x128xf32>, vector<16x128xf32> -> vector<64x128xf32>
      %c0_170 = arith.constant 0 : index
      %c0_171 = arith.constant 0 : index
      %243 = vector.load %arg2[%c0_170, %c0_171] : memref<8x64xf32, #tpu.memory_space<vmem>>, vector<8x64xf32>
      %cst_172 = arith.constant dense<0.000000e+00> : vector<8x128xf32>
      %244 = tpu.matmul %243, %242, %cst_172 {dimension_numbers = #tpu.dot_dimension_numbers<[1], [0], [0], [1], [0, 0, 1, 1], [], []>} : vector<8x64xf32>, vector<64x128xf32>, vector<8x128xf32> -> vector<8x128xf32>
      %c0_173 = arith.constant 0 : index
      %c0_174 = arith.constant 0 : index
      %245 = vector.load %arg8[%c0_173, %c0_174] : memref<8x1xf32, #tpu.memory_space<vmem>>, vector<8x1xf32>
      %246 = vector.broadcast %245 : vector<8x1xf32> to vector<8x128xf32>
      %247 = arith.addf %244, %246 : vector<8x128xf32>
      %cst_175 = arith.constant 0.000000e+00 : f32
      %248 = vector.broadcast %cst_175 : f32 to vector<8x128xf32>
      %249 = arith.cmpf oge, %247, %248 : vector<8x128xf32>
      %cst_176 = arith.constant 2.000000e-01 : f32
      %250 = vector.broadcast %cst_176 : f32 to vector<8x128xf32>
      %251 = arith.mulf %250, %247 : vector<8x128xf32>
      %252 = arith.select %249, %247, %251 : vector<8x128xi1>, vector<8x128xf32>
      %c0_177 = arith.constant 0 : index
      %c0_178 = arith.constant 0 : index
      %253 = vector.load %arg14[%c0_177, %c0_178] : memref<128x130xf32, #tpu.memory_space<vmem>>, vector<128x130xf32>
      %cst_179 = arith.constant dense<0.000000e+00> : vector<8x130xf32>
      %254 = tpu.matmul %252, %253, %cst_179 {dimension_numbers = #tpu.dot_dimension_numbers<[1], [0], [0], [1], [0, 0, 1, 1], [], []>} : vector<8x128xf32>, vector<128x130xf32>, vector<8x130xf32> -> vector<8x130xf32>
      %255 = vector.extract_strided_slice %254 {offsets = [0, 0], sizes = [8, 65], strides = [1, 1]} : vector<8x130xf32> to vector<8x65xf32>
      %256 = vector.extract_strided_slice %254 {offsets = [0, 65], sizes = [8, 65], strides = [1, 1]} : vector<8x130xf32> to vector<8x65xf32>
      %257 = tpu.concatenate %236, %237, %255, %256 in 0 : vector<8x65xf32>, vector<8x65xf32>, vector<8x65xf32>, vector<8x65xf32> -> vector<32x65xf32>
      %c1_i32_180 = arith.constant 1 : i32
      %258 = arith.addi %c1_i32_180, %arg29 : i32
      %259 = arith.index_cast %258 : i32 to index
      %c0_181 = arith.constant 0 : index
      %c0_182 = arith.constant 0 : index
      %260 = vector.load %arg24[%259, %c0_181, %c0_182] : memref<65x32x65xf32, #tpu.memory_space<vmem>>, vector<1x32x65xf32>
      %261 = vector.shape_cast %260 : vector<1x32x65xf32> to vector<32x65xf32>
      %262 = vector.shape_cast %257 : vector<32x65xf32> to vector<1x32x65xf32>
      tpu.vector_store %arg24[%259, %c0_181, %c0_182], %262 {strides = array<i32>} : memref<65x32x65xf32, #tpu.memory_space<vmem>>, vector<1x32x65xf32>,
    }
    %c64_i32_2 = arith.constant 64 : i32
    %cst_3 = arith.constant 0.000000e+00 : f32
    %5 = vector.broadcast %cst_3 : f32 to vector<64x33xf32>
    %c0_4 = arith.constant 0 : index
    %c0_5 = arith.constant 0 : index
    %c0_6 = arith.constant 0 : index
    %6 = vector.load %arg25[%c0_4, %c0_5, %c0_6] : memref<33x64x33xf32, #tpu.memory_space<vmem>>, vector<1x64x33xf32>
    %7 = vector.shape_cast %6 : vector<1x64x33xf32> to vector<64x33xf32>
    %8 = vector.shape_cast %5 : vector<64x33xf32> to vector<1x64x33xf32>
    tpu.vector_store %arg25[%c0_4, %c0_5, %c0_6], %8 {strides = array<i32>} : memref<33x64x33xf32, #tpu.memory_space<vmem>>, vector<1x64x33xf32>,
    %c0_i32_7 = arith.constant 0 : i32
    %c32_i32 = arith.constant 32 : i32
    %9 = arith.addi %c0_i32_7, %c32_i32 : i32
    %c1_i32_8 = arith.constant 1 : i32
    scf.for %arg29 = %c0_i32_7 to %9 step %c1_i32_8  : i32 {
      %c2_i32 = arith.constant 2 : i32
      %205 = arith.muli %c2_i32, %arg29 : i32
      %206 = arith.index_cast %205 : i32 to index
      %c0_147 = arith.constant 0 : index
      %c0_148 = arith.constant 0 : index
      %207 = vector.load %arg24[%206, %c0_147, %c0_148] : memref<65x32x65xf32, #tpu.memory_space<vmem>>, vector<1x32x65xf32>
      %208 = vector.shape_cast %207 : vector<1x32x65xf32> to vector<32x65xf32>
      %c2_i32_149 = arith.constant 2 : i32
      %209 = arith.muli %c2_i32_149, %arg29 : i32
      %c1_i32_150 = arith.constant 1 : i32
      %210 = arith.addi %209, %c1_i32_150 : i32
      %211 = arith.index_cast %210 : i32 to index
      %c0_151 = arith.constant 0 : index
      %c0_152 = arith.constant 0 : index
      %212 = vector.load %arg24[%211, %c0_151, %c0_152] : memref<65x32x65xf32, #tpu.memory_space<vmem>>, vector<1x32x65xf32>
      %213 = vector.shape_cast %212 : vector<1x32x65xf32> to vector<32x65xf32>
      %c2_i32_153 = arith.constant 2 : i32
      %214 = arith.muli %c2_i32_153, %arg29 : i32
      %c2_i32_154 = arith.constant 2 : i32
      %215 = arith.addi %214, %c2_i32_154 : i32
      %216 = arith.index_cast %215 : i32 to index
      %c0_155 = arith.constant 0 : index
      %c0_156 = arith.constant 0 : index
      %217 = vector.load %arg24[%216, %c0_155, %c0_156] : memref<65x32x65xf32, #tpu.memory_space<vmem>>, vector<1x32x65xf32>
      %218 = vector.shape_cast %217 : vector<1x32x65xf32> to vector<32x65xf32>
      %219 = vector.extract_strided_slice %208 {offsets = [0, 0], sizes = [32, 64], strides = [1, 1]} : vector<32x65xf32> to vector<32x64xf32>
      %220 = vector.extract_strided_slice %208 {offsets = [0, 1], sizes = [32, 64], strides = [1, 1]} : vector<32x65xf32> to vector<32x64xf32>
      %221 = vector.extract_strided_slice %213 {offsets = [0, 0], sizes = [32, 64], strides = [1, 1]} : vector<32x65xf32> to vector<32x64xf32>
      %222 = vector.extract_strided_slice %213 {offsets = [0, 1], sizes = [32, 64], strides = [1, 1]} : vector<32x65xf32> to vector<32x64xf32>
      %223 = tpu.concatenate %219, %220, %221, %222 in 0 : vector<32x64xf32>, vector<32x64xf32>, vector<32x64xf32>, vector<32x64xf32> -> vector<128x64xf32>
      %c0_157 = arith.constant 0 : index
      %c0_158 = arith.constant 0 : index
      %224 = vector.load %arg3[%c0_157, %c0_158] : memref<16x128xf32, #tpu.memory_space<vmem>>, vector<16x128xf32>
      %cst_159 = arith.constant dense<0.000000e+00> : vector<16x64xf32>
      %225 = tpu.matmul %224, %223, %cst_159 {dimension_numbers = #tpu.dot_dimension_numbers<[1], [0], [0], [1], [0, 0, 1, 1], [], []>} : vector<16x128xf32>, vector<128x64xf32>, vector<16x64xf32> -> vector<16x64xf32>
      %c0_160 = arith.constant 0 : index
      %c0_161 = arith.constant 0 : index
      %226 = vector.load %arg9[%c0_160, %c0_161] : memref<16x1xf32, #tpu.memory_space<vmem>>, vector<16x1xf32>
      %227 = vector.broadcast %226 : vector<16x1xf32> to vector<16x64xf32>
      %228 = arith.addf %225, %227 : vector<16x64xf32>
      %cst_162 = arith.constant 0.000000e+00 : f32
      %229 = vector.broadcast %cst_162 : f32 to vector<16x64xf32>
      %230 = arith.cmpf oge, %228, %229 : vector<16x64xf32>
      %cst_163 = arith.constant 2.000000e-01 : f32
      %231 = vector.broadcast %cst_163 : f32 to vector<16x64xf32>
      %232 = arith.mulf %231, %228 : vector<16x64xf32>
      %233 = arith.select %230, %228, %232 : vector<16x64xi1>, vector<16x64xf32>
      %c0_164 = arith.constant 0 : index
      %c0_165 = arith.constant 0 : index
      %234 = vector.load %arg15[%c0_164, %c0_165] : memref<64x66xf32, #tpu.memory_space<vmem>>, vector<64x66xf32>
      %cst_166 = arith.constant dense<0.000000e+00> : vector<16x66xf32>
      %235 = tpu.matmul %233, %234, %cst_166 {dimension_numbers = #tpu.dot_dimension_numbers<[1], [0], [0], [1], [0, 0, 1, 1], [], []>} : vector<16x64xf32>, vector<64x66xf32>, vector<16x66xf32> -> vector<16x66xf32>
      %236 = vector.extract_strided_slice %235 {offsets = [0, 0], sizes = [16, 33], strides = [1, 1]} : vector<16x66xf32> to vector<16x33xf32>
      %237 = vector.extract_strided_slice %235 {offsets = [0, 33], sizes = [16, 33], strides = [1, 1]} : vector<16x66xf32> to vector<16x33xf32>
      %238 = vector.extract_strided_slice %213 {offsets = [0, 0], sizes = [32, 64], strides = [1, 1]} : vector<32x65xf32> to vector<32x64xf32>
      %239 = vector.extract_strided_slice %213 {offsets = [0, 1], sizes = [32, 64], strides = [1, 1]} : vector<32x65xf32> to vector<32x64xf32>
      %240 = vector.extract_strided_slice %218 {offsets = [0, 0], sizes = [32, 64], strides = [1, 1]} : vector<32x65xf32> to vector<32x64xf32>
      %241 = vector.extract_strided_slice %218 {offsets = [0, 1], sizes = [32, 64], strides = [1, 1]} : vector<32x65xf32> to vector<32x64xf32>
      %242 = tpu.concatenate %238, %239, %240, %241 in 0 : vector<32x64xf32>, vector<32x64xf32>, vector<32x64xf32>, vector<32x64xf32> -> vector<128x64xf32>
      %c0_167 = arith.constant 0 : index
      %c0_168 = arith.constant 0 : index
      %243 = vector.load %arg3[%c0_167, %c0_168] : memref<16x128xf32, #tpu.memory_space<vmem>>, vector<16x128xf32>
      %cst_169 = arith.constant dense<0.000000e+00> : vector<16x64xf32>
      %244 = tpu.matmul %243, %242, %cst_169 {dimension_numbers = #tpu.dot_dimension_numbers<[1], [0], [0], [1], [0, 0, 1, 1], [], []>} : vector<16x128xf32>, vector<128x64xf32>, vector<16x64xf32> -> vector<16x64xf32>
      %c0_170 = arith.constant 0 : index
      %c0_171 = arith.constant 0 : index
      %245 = vector.load %arg9[%c0_170, %c0_171] : memref<16x1xf32, #tpu.memory_space<vmem>>, vector<16x1xf32>
      %246 = vector.broadcast %245 : vector<16x1xf32> to vector<16x64xf32>
      %247 = arith.addf %244, %246 : vector<16x64xf32>
      %cst_172 = arith.constant 0.000000e+00 : f32
      %248 = vector.broadcast %cst_172 : f32 to vector<16x64xf32>
      %249 = arith.cmpf oge, %247, %248 : vector<16x64xf32>
      %cst_173 = arith.constant 2.000000e-01 : f32
      %250 = vector.broadcast %cst_173 : f32 to vector<16x64xf32>
      %251 = arith.mulf %250, %247 : vector<16x64xf32>
      %252 = arith.select %249, %247, %251 : vector<16x64xi1>, vector<16x64xf32>
      %c0_174 = arith.constant 0 : index
      %c0_175 = arith.constant 0 : index
      %253 = vector.load %arg15[%c0_174, %c0_175] : memref<64x66xf32, #tpu.memory_space<vmem>>, vector<64x66xf32>
      %cst_176 = arith.constant dense<0.000000e+00> : vector<16x66xf32>
      %254 = tpu.matmul %252, %253, %cst_176 {dimension_numbers = #tpu.dot_dimension_numbers<[1], [0], [0], [1], [0, 0, 1, 1], [], []>} : vector<16x64xf32>, vector<64x66xf32>, vector<16x66xf32> -> vector<16x66xf32>
      %255 = vector.extract_strided_slice %254 {offsets = [0, 0], sizes = [16, 33], strides = [1, 1]} : vector<16x66xf32> to vector<16x33xf32>
      %256 = vector.extract_strided_slice %254 {offsets = [0, 33], sizes = [16, 33], strides = [1, 1]} : vector<16x66xf32> to vector<16x33xf32>
      %257 = tpu.concatenate %236, %237, %255, %256 in 0 : vector<16x33xf32>, vector<16x33xf32>, vector<16x33xf32>, vector<16x33xf32> -> vector<64x33xf32>
      %c1_i32_177 = arith.constant 1 : i32
      %258 = arith.addi %c1_i32_177, %arg29 : i32
      %259 = arith.index_cast %258 : i32 to index
      %c0_178 = arith.constant 0 : index
      %c0_179 = arith.constant 0 : index
      %260 = vector.load %arg25[%259, %c0_178, %c0_179] : memref<33x64x33xf32, #tpu.memory_space<vmem>>, vector<1x64x33xf32>
      %261 = vector.shape_cast %260 : vector<1x64x33xf32> to vector<64x33xf32>
      %262 = vector.shape_cast %257 : vector<64x33xf32> to vector<1x64x33xf32>
      tpu.vector_store %arg25[%259, %c0_178, %c0_179], %262 {strides = array<i32>} : memref<33x64x33xf32, #tpu.memory_space<vmem>>, vector<1x64x33xf32>,
    }
    %c32_i32_9 = arith.constant 32 : i32
    %cst_10 = arith.constant 0.000000e+00 : f32
    %10 = vector.broadcast %cst_10 : f32 to vector<64x17xf32>
    %c0_11 = arith.constant 0 : index
    %c0_12 = arith.constant 0 : index
    %c0_13 = arith.constant 0 : index
    %11 = vector.load %arg26[%c0_11, %c0_12, %c0_13] : memref<17x64x17xf32, #tpu.memory_space<vmem>>, vector<1x64x17xf32>
    %12 = vector.shape_cast %11 : vector<1x64x17xf32> to vector<64x17xf32>
    %13 = vector.shape_cast %10 : vector<64x17xf32> to vector<1x64x17xf32>
    tpu.vector_store %arg26[%c0_11, %c0_12, %c0_13], %13 {strides = array<i32>} : memref<17x64x17xf32, #tpu.memory_space<vmem>>, vector<1x64x17xf32>,
    %c0_i32_14 = arith.constant 0 : i32
    %c16_i32 = arith.constant 16 : i32
    %14 = arith.addi %c0_i32_14, %c16_i32 : i32
    %c1_i32_15 = arith.constant 1 : i32
    scf.for %arg29 = %c0_i32_14 to %14 step %c1_i32_15  : i32 {
      %c2_i32 = arith.constant 2 : i32
      %205 = arith.muli %c2_i32, %arg29 : i32
      %206 = arith.index_cast %205 : i32 to index
      %c0_147 = arith.constant 0 : index
      %c0_148 = arith.constant 0 : index
      %207 = vector.load %arg25[%206, %c0_147, %c0_148] : memref<33x64x33xf32, #tpu.memory_space<vmem>>, vector<1x64x33xf32>
      %208 = vector.shape_cast %207 : vector<1x64x33xf32> to vector<64x33xf32>
      %c2_i32_149 = arith.constant 2 : i32
      %209 = arith.muli %c2_i32_149, %arg29 : i32
      %c1_i32_150 = arith.constant 1 : i32
      %210 = arith.addi %209, %c1_i32_150 : i32
      %211 = arith.index_cast %210 : i32 to index
      %c0_151 = arith.constant 0 : index
      %c0_152 = arith.constant 0 : index
      %212 = vector.load %arg25[%211, %c0_151, %c0_152] : memref<33x64x33xf32, #tpu.memory_space<vmem>>, vector<1x64x33xf32>
      %213 = vector.shape_cast %212 : vector<1x64x33xf32> to vector<64x33xf32>
      %c2_i32_153 = arith.constant 2 : i32
      %214 = arith.muli %c2_i32_153, %arg29 : i32
      %c2_i32_154 = arith.constant 2 : i32
      %215 = arith.addi %214, %c2_i32_154 : i32
      %216 = arith.index_cast %215 : i32 to index
      %c0_155 = arith.constant 0 : index
      %c0_156 = arith.constant 0 : index
      %217 = vector.load %arg25[%216, %c0_155, %c0_156] : memref<33x64x33xf32, #tpu.memory_space<vmem>>, vector<1x64x33xf32>
      %218 = vector.shape_cast %217 : vector<1x64x33xf32> to vector<64x33xf32>
      %219 = vector.extract_strided_slice %208 {offsets = [0, 0], sizes = [64, 32], strides = [1, 1]} : vector<64x33xf32> to vector<64x32xf32>
      %220 = vector.extract_strided_slice %208 {offsets = [0, 1], sizes = [64, 32], strides = [1, 1]} : vector<64x33xf32> to vector<64x32xf32>
      %221 = vector.extract_strided_slice %213 {offsets = [0, 0], sizes = [64, 32], strides = [1, 1]} : vector<64x33xf32> to vector<64x32xf32>
      %222 = vector.extract_strided_slice %213 {offsets = [0, 1], sizes = [64, 32], strides = [1, 1]} : vector<64x33xf32> to vector<64x32xf32>
      %223 = tpu.concatenate %219, %220, %221, %222 in 0 : vector<64x32xf32>, vector<64x32xf32>, vector<64x32xf32>, vector<64x32xf32> -> vector<256x32xf32>
      %c0_157 = arith.constant 0 : index
      %c0_158 = arith.constant 0 : index
      %224 = vector.load %arg4[%c0_157, %c0_158] : memref<16x256xf32, #tpu.memory_space<vmem>>, vector<16x256xf32>
      %cst_159 = arith.constant dense<0.000000e+00> : vector<16x32xf32>
      %225 = tpu.matmul %224, %223, %cst_159 {dimension_numbers = #tpu.dot_dimension_numbers<[1], [0], [0], [1], [0, 0, 1, 1], [], []>} : vector<16x256xf32>, vector<256x32xf32>, vector<16x32xf32> -> vector<16x32xf32>
      %c0_160 = arith.constant 0 : index
      %c0_161 = arith.constant 0 : index
      %226 = vector.load %arg10[%c0_160, %c0_161] : memref<16x1xf32, #tpu.memory_space<vmem>>, vector<16x1xf32>
      %227 = vector.broadcast %226 : vector<16x1xf32> to vector<16x32xf32>
      %228 = arith.addf %225, %227 : vector<16x32xf32>
      %cst_162 = arith.constant 0.000000e+00 : f32
      %229 = vector.broadcast %cst_162 : f32 to vector<16x32xf32>
      %230 = arith.cmpf oge, %228, %229 : vector<16x32xf32>
      %cst_163 = arith.constant 2.000000e-01 : f32
      %231 = vector.broadcast %cst_163 : f32 to vector<16x32xf32>
      %232 = arith.mulf %231, %228 : vector<16x32xf32>
      %233 = arith.select %230, %228, %232 : vector<16x32xi1>, vector<16x32xf32>
      %c0_164 = arith.constant 0 : index
      %c0_165 = arith.constant 0 : index
      %234 = vector.load %arg16[%c0_164, %c0_165] : memref<32x34xf32, #tpu.memory_space<vmem>>, vector<32x34xf32>
      %cst_166 = arith.constant dense<0.000000e+00> : vector<16x34xf32>
      %235 = tpu.matmul %233, %234, %cst_166 {dimension_numbers = #tpu.dot_dimension_numbers<[1], [0], [0], [1], [0, 0, 1, 1], [], []>} : vector<16x32xf32>, vector<32x34xf32>, vector<16x34xf32> -> vector<16x34xf32>
      %236 = vector.extract_strided_slice %235 {offsets = [0, 0], sizes = [16, 17], strides = [1, 1]} : vector<16x34xf32> to vector<16x17xf32>
      %237 = vector.extract_strided_slice %235 {offsets = [0, 17], sizes = [16, 17], strides = [1, 1]} : vector<16x34xf32> to vector<16x17xf32>
      %238 = vector.extract_strided_slice %213 {offsets = [0, 0], sizes = [64, 32], strides = [1, 1]} : vector<64x33xf32> to vector<64x32xf32>
      %239 = vector.extract_strided_slice %213 {offsets = [0, 1], sizes = [64, 32], strides = [1, 1]} : vector<64x33xf32> to vector<64x32xf32>
      %240 = vector.extract_strided_slice %218 {offsets = [0, 0], sizes = [64, 32], strides = [1, 1]} : vector<64x33xf32> to vector<64x32xf32>
      %241 = vector.extract_strided_slice %218 {offsets = [0, 1], sizes = [64, 32], strides = [1, 1]} : vector<64x33xf32> to vector<64x32xf32>
      %242 = tpu.concatenate %238, %239, %240, %241 in 0 : vector<64x32xf32>, vector<64x32xf32>, vector<64x32xf32>, vector<64x32xf32> -> vector<256x32xf32>
      %c0_167 = arith.constant 0 : index
      %c0_168 = arith.constant 0 : index
      %243 = vector.load %arg4[%c0_167, %c0_168] : memref<16x256xf32, #tpu.memory_space<vmem>>, vector<16x256xf32>
      %cst_169 = arith.constant dense<0.000000e+00> : vector<16x32xf32>
      %244 = tpu.matmul %243, %242, %cst_169 {dimension_numbers = #tpu.dot_dimension_numbers<[1], [0], [0], [1], [0, 0, 1, 1], [], []>} : vector<16x256xf32>, vector<256x32xf32>, vector<16x32xf32> -> vector<16x32xf32>
      %c0_170 = arith.constant 0 : index
      %c0_171 = arith.constant 0 : index
      %245 = vector.load %arg10[%c0_170, %c0_171] : memref<16x1xf32, #tpu.memory_space<vmem>>, vector<16x1xf32>
      %246 = vector.broadcast %245 : vector<16x1xf32> to vector<16x32xf32>
      %247 = arith.addf %244, %246 : vector<16x32xf32>
      %cst_172 = arith.constant 0.000000e+00 : f32
      %248 = vector.broadcast %cst_172 : f32 to vector<16x32xf32>
      %249 = arith.cmpf oge, %247, %248 : vector<16x32xf32>
      %cst_173 = arith.constant 2.000000e-01 : f32
      %250 = vector.broadcast %cst_173 : f32 to vector<16x32xf32>
      %251 = arith.mulf %250, %247 : vector<16x32xf32>
      %252 = arith.select %249, %247, %251 : vector<16x32xi1>, vector<16x32xf32>
      %c0_174 = arith.constant 0 : index
      %c0_175 = arith.constant 0 : index
      %253 = vector.load %arg16[%c0_174, %c0_175] : memref<32x34xf32, #tpu.memory_space<vmem>>, vector<32x34xf32>
      %cst_176 = arith.constant dense<0.000000e+00> : vector<16x34xf32>
      %254 = tpu.matmul %252, %253, %cst_176 {dimension_numbers = #tpu.dot_dimension_numbers<[1], [0], [0], [1], [0, 0, 1, 1], [], []>} : vector<16x32xf32>, vector<32x34xf32>, vector<16x34xf32> -> vector<16x34xf32>
      %255 = vector.extract_strided_slice %254 {offsets = [0, 0], sizes = [16, 17], strides = [1, 1]} : vector<16x34xf32> to vector<16x17xf32>
      %256 = vector.extract_strided_slice %254 {offsets = [0, 17], sizes = [16, 17], strides = [1, 1]} : vector<16x34xf32> to vector<16x17xf32>
      %257 = tpu.concatenate %236, %237, %255, %256 in 0 : vector<16x17xf32>, vector<16x17xf32>, vector<16x17xf32>, vector<16x17xf32> -> vector<64x17xf32>
      %c1_i32_177 = arith.constant 1 : i32
      %258 = arith.addi %c1_i32_177, %arg29 : i32
      %259 = arith.index_cast %258 : i32 to index
      %c0_178 = arith.constant 0 : index
      %c0_179 = arith.constant 0 : index
      %260 = vector.load %arg26[%259, %c0_178, %c0_179] : memref<17x64x17xf32, #tpu.memory_space<vmem>>, vector<1x64x17xf32>
      %261 = vector.shape_cast %260 : vector<1x64x17xf32> to vector<64x17xf32>
      %262 = vector.shape_cast %257 : vector<64x17xf32> to vector<1x64x17xf32>
      tpu.vector_store %arg26[%259, %c0_178, %c0_179], %262 {strides = array<i32>} : memref<17x64x17xf32, #tpu.memory_space<vmem>>, vector<1x64x17xf32>,
    }
    %c16_i32_16 = arith.constant 16 : i32
    %cst_17 = arith.constant 0.000000e+00 : f32
    %15 = vector.broadcast %cst_17 : f32 to vector<128x9xf32>
    %c0_18 = arith.constant 0 : index
    %c0_19 = arith.constant 0 : index
    %c0_20 = arith.constant 0 : index
    %16 = vector.load %arg27[%c0_18, %c0_19, %c0_20] : memref<9x128x9xf32, #tpu.memory_space<vmem>>, vector<1x128x9xf32>
    %17 = vector.shape_cast %16 : vector<1x128x9xf32> to vector<128x9xf32>
    %18 = vector.shape_cast %15 : vector<128x9xf32> to vector<1x128x9xf32>
    tpu.vector_store %arg27[%c0_18, %c0_19, %c0_20], %18 {strides = array<i32>} : memref<9x128x9xf32, #tpu.memory_space<vmem>>, vector<1x128x9xf32>,
    %c0_i32_21 = arith.constant 0 : i32
    %c8_i32 = arith.constant 8 : i32
    %19 = arith.addi %c0_i32_21, %c8_i32 : i32
    %c1_i32_22 = arith.constant 1 : i32
    scf.for %arg29 = %c0_i32_21 to %19 step %c1_i32_22  : i32 {
      %c2_i32 = arith.constant 2 : i32
      %205 = arith.muli %c2_i32, %arg29 : i32
      %206 = arith.index_cast %205 : i32 to index
      %c0_147 = arith.constant 0 : index
      %c0_148 = arith.constant 0 : index
      %207 = vector.load %arg26[%206, %c0_147, %c0_148] : memref<17x64x17xf32, #tpu.memory_space<vmem>>, vector<1x64x17xf32>
      %208 = vector.shape_cast %207 : vector<1x64x17xf32> to vector<64x17xf32>
      %c2_i32_149 = arith.constant 2 : i32
      %209 = arith.muli %c2_i32_149, %arg29 : i32
      %c1_i32_150 = arith.constant 1 : i32
      %210 = arith.addi %209, %c1_i32_150 : i32
      %211 = arith.index_cast %210 : i32 to index
      %c0_151 = arith.constant 0 : index
      %c0_152 = arith.constant 0 : index
      %212 = vector.load %arg26[%211, %c0_151, %c0_152] : memref<17x64x17xf32, #tpu.memory_space<vmem>>, vector<1x64x17xf32>
      %213 = vector.shape_cast %212 : vector<1x64x17xf32> to vector<64x17xf32>
      %c2_i32_153 = arith.constant 2 : i32
      %214 = arith.muli %c2_i32_153, %arg29 : i32
      %c2_i32_154 = arith.constant 2 : i32
      %215 = arith.addi %214, %c2_i32_154 : i32
      %216 = arith.index_cast %215 : i32 to index
      %c0_155 = arith.constant 0 : index
      %c0_156 = arith.constant 0 : index
      %217 = vector.load %arg26[%216, %c0_155, %c0_156] : memref<17x64x17xf32, #tpu.memory_space<vmem>>, vector<1x64x17xf32>
      %218 = vector.shape_cast %217 : vector<1x64x17xf32> to vector<64x17xf32>
      %219 = vector.extract_strided_slice %208 {offsets = [0, 0], sizes = [64, 16], strides = [1, 1]} : vector<64x17xf32> to vector<64x16xf32>
      %220 = vector.extract_strided_slice %208 {offsets = [0, 1], sizes = [64, 16], strides = [1, 1]} : vector<64x17xf32> to vector<64x16xf32>
      %221 = vector.extract_strided_slice %213 {offsets = [0, 0], sizes = [64, 16], strides = [1, 1]} : vector<64x17xf32> to vector<64x16xf32>
      %222 = vector.extract_strided_slice %213 {offsets = [0, 1], sizes = [64, 16], strides = [1, 1]} : vector<64x17xf32> to vector<64x16xf32>
      %223 = tpu.concatenate %219, %220, %221, %222 in 0 : vector<64x16xf32>, vector<64x16xf32>, vector<64x16xf32>, vector<64x16xf32> -> vector<256x16xf32>
      %c0_157 = arith.constant 0 : index
      %c0_158 = arith.constant 0 : index
      %224 = vector.load %arg5[%c0_157, %c0_158] : memref<32x256xf32, #tpu.memory_space<vmem>>, vector<32x256xf32>
      %cst_159 = arith.constant dense<0.000000e+00> : vector<32x16xf32>
      %225 = tpu.matmul %224, %223, %cst_159 {dimension_numbers = #tpu.dot_dimension_numbers<[1], [0], [0], [1], [0, 0, 1, 1], [], []>} : vector<32x256xf32>, vector<256x16xf32>, vector<32x16xf32> -> vector<32x16xf32>
      %c0_160 = arith.constant 0 : index
      %c0_161 = arith.constant 0 : index
      %226 = vector.load %arg11[%c0_160, %c0_161] : memref<32x1xf32, #tpu.memory_space<vmem>>, vector<32x1xf32>
      %227 = vector.broadcast %226 : vector<32x1xf32> to vector<32x16xf32>
      %228 = arith.addf %225, %227 : vector<32x16xf32>
      %cst_162 = arith.constant 0.000000e+00 : f32
      %229 = vector.broadcast %cst_162 : f32 to vector<32x16xf32>
      %230 = arith.cmpf oge, %228, %229 : vector<32x16xf32>
      %cst_163 = arith.constant 2.000000e-01 : f32
      %231 = vector.broadcast %cst_163 : f32 to vector<32x16xf32>
      %232 = arith.mulf %231, %228 : vector<32x16xf32>
      %233 = arith.select %230, %228, %232 : vector<32x16xi1>, vector<32x16xf32>
      %c0_164 = arith.constant 0 : index
      %c0_165 = arith.constant 0 : index
      %234 = vector.load %arg17[%c0_164, %c0_165] : memref<16x18xf32, #tpu.memory_space<vmem>>, vector<16x18xf32>
      %cst_166 = arith.constant dense<0.000000e+00> : vector<32x18xf32>
      %235 = tpu.matmul %233, %234, %cst_166 {dimension_numbers = #tpu.dot_dimension_numbers<[1], [0], [0], [1], [0, 0, 1, 1], [], []>} : vector<32x16xf32>, vector<16x18xf32>, vector<32x18xf32> -> vector<32x18xf32>
      %236 = vector.extract_strided_slice %235 {offsets = [0, 0], sizes = [32, 9], strides = [1, 1]} : vector<32x18xf32> to vector<32x9xf32>
      %237 = vector.extract_strided_slice %235 {offsets = [0, 9], sizes = [32, 9], strides = [1, 1]} : vector<32x18xf32> to vector<32x9xf32>
      %238 = vector.extract_strided_slice %213 {offsets = [0, 0], sizes = [64, 16], strides = [1, 1]} : vector<64x17xf32> to vector<64x16xf32>
      %239 = vector.extract_strided_slice %213 {offsets = [0, 1], sizes = [64, 16], strides = [1, 1]} : vector<64x17xf32> to vector<64x16xf32>
      %240 = vector.extract_strided_slice %218 {offsets = [0, 0], sizes = [64, 16], strides = [1, 1]} : vector<64x17xf32> to vector<64x16xf32>
      %241 = vector.extract_strided_slice %218 {offsets = [0, 1], sizes = [64, 16], strides = [1, 1]} : vector<64x17xf32> to vector<64x16xf32>
      %242 = tpu.concatenate %238, %239, %240, %241 in 0 : vector<64x16xf32>, vector<64x16xf32>, vector<64x16xf32>, vector<64x16xf32> -> vector<256x16xf32>
      %c0_167 = arith.constant 0 : index
      %c0_168 = arith.constant 0 : index
      %243 = vector.load %arg5[%c0_167, %c0_168] : memref<32x256xf32, #tpu.memory_space<vmem>>, vector<32x256xf32>
      %cst_169 = arith.constant dense<0.000000e+00> : vector<32x16xf32>
      %244 = tpu.matmul %243, %242, %cst_169 {dimension_numbers = #tpu.dot_dimension_numbers<[1], [0], [0], [1], [0, 0, 1, 1], [], []>} : vector<32x256xf32>, vector<256x16xf32>, vector<32x16xf32> -> vector<32x16xf32>
      %c0_170 = arith.constant 0 : index
      %c0_171 = arith.constant 0 : index
      %245 = vector.load %arg11[%c0_170, %c0_171] : memref<32x1xf32, #tpu.memory_space<vmem>>, vector<32x1xf32>
      %246 = vector.broadcast %245 : vector<32x1xf32> to vector<32x16xf32>
      %247 = arith.addf %244, %246 : vector<32x16xf32>
      %cst_172 = arith.constant 0.000000e+00 : f32
      %248 = vector.broadcast %cst_172 : f32 to vector<32x16xf32>
      %249 = arith.cmpf oge, %247, %248 : vector<32x16xf32>
      %cst_173 = arith.constant 2.000000e-01 : f32
      %250 = vector.broadcast %cst_173 : f32 to vector<32x16xf32>
      %251 = arith.mulf %250, %247 : vector<32x16xf32>
      %252 = arith.select %249, %247, %251 : vector<32x16xi1>, vector<32x16xf32>
      %c0_174 = arith.constant 0 : index
      %c0_175 = arith.constant 0 : index
      %253 = vector.load %arg17[%c0_174, %c0_175] : memref<16x18xf32, #tpu.memory_space<vmem>>, vector<16x18xf32>
      %cst_176 = arith.constant dense<0.000000e+00> : vector<32x18xf32>
      %254 = tpu.matmul %252, %253, %cst_176 {dimension_numbers = #tpu.dot_dimension_numbers<[1], [0], [0], [1], [0, 0, 1, 1], [], []>} : vector<32x16xf32>, vector<16x18xf32>, vector<32x18xf32> -> vector<32x18xf32>
      %255 = vector.extract_strided_slice %254 {offsets = [0, 0], sizes = [32, 9], strides = [1, 1]} : vector<32x18xf32> to vector<32x9xf32>
      %256 = vector.extract_strided_slice %254 {offsets = [0, 9], sizes = [32, 9], strides = [1, 1]} : vector<32x18xf32> to vector<32x9xf32>
      %257 = tpu.concatenate %236, %237, %255, %256 in 0 : vector<32x9xf32>, vector<32x9xf32>, vector<32x9xf32>, vector<32x9xf32> -> vector<128x9xf32>
      %c1_i32_177 = arith.constant 1 : i32
      %258 = arith.addi %c1_i32_177, %arg29 : i32
      %259 = arith.index_cast %258 : i32 to index
      %c0_178 = arith.constant 0 : index
      %c0_179 = arith.constant 0 : index
      %260 = vector.load %arg27[%259, %c0_178, %c0_179] : memref<9x128x9xf32, #tpu.memory_space<vmem>>, vector<1x128x9xf32>
      %261 = vector.shape_cast %260 : vector<1x128x9xf32> to vector<128x9xf32>
      %262 = vector.shape_cast %257 : vector<128x9xf32> to vector<1x128x9xf32>
      tpu.vector_store %arg27[%259, %c0_178, %c0_179], %262 {strides = array<i32>} : memref<9x128x9xf32, #tpu.memory_space<vmem>>, vector<1x128x9xf32>,
    }
    %c8_i32_23 = arith.constant 8 : i32
    %cst_24 = arith.constant 0.000000e+00 : f32
    %20 = vector.broadcast %cst_24 : f32 to vector<128x5xf32>
    %c0_25 = arith.constant 0 : index
    %c0_26 = arith.constant 0 : index
    %c0_27 = arith.constant 0 : index
    %21 = vector.load %arg28[%c0_25, %c0_26, %c0_27] : memref<5x128x5xf32, #tpu.memory_space<vmem>>, vector<1x128x5xf32>
    %22 = vector.shape_cast %21 : vector<1x128x5xf32> to vector<128x5xf32>
    %23 = vector.shape_cast %20 : vector<128x5xf32> to vector<1x128x5xf32>
    tpu.vector_store %arg28[%c0_25, %c0_26, %c0_27], %23 {strides = array<i32>} : memref<5x128x5xf32, #tpu.memory_space<vmem>>, vector<1x128x5xf32>,
    %c0_i32_28 = arith.constant 0 : i32
    %c4_i32 = arith.constant 4 : i32
    %24 = arith.addi %c0_i32_28, %c4_i32 : i32
    %c1_i32_29 = arith.constant 1 : i32
    scf.for %arg29 = %c0_i32_28 to %24 step %c1_i32_29  : i32 {
      %c2_i32 = arith.constant 2 : i32
      %205 = arith.muli %c2_i32, %arg29 : i32
      %206 = arith.index_cast %205 : i32 to index
      %c0_147 = arith.constant 0 : index
      %c0_148 = arith.constant 0 : index
      %207 = vector.load %arg27[%206, %c0_147, %c0_148] : memref<9x128x9xf32, #tpu.memory_space<vmem>>, vector<1x128x9xf32>
      %208 = vector.shape_cast %207 : vector<1x128x9xf32> to vector<128x9xf32>
      %c2_i32_149 = arith.constant 2 : i32
      %209 = arith.muli %c2_i32_149, %arg29 : i32
      %c1_i32_150 = arith.constant 1 : i32
      %210 = arith.addi %209, %c1_i32_150 : i32
      %211 = arith.index_cast %210 : i32 to index
      %c0_151 = arith.constant 0 : index
      %c0_152 = arith.constant 0 : index
      %212 = vector.load %arg27[%211, %c0_151, %c0_152] : memref<9x128x9xf32, #tpu.memory_space<vmem>>, vector<1x128x9xf32>
      %213 = vector.shape_cast %212 : vector<1x128x9xf32> to vector<128x9xf32>
      %c2_i32_153 = arith.constant 2 : i32
      %214 = arith.muli %c2_i32_153, %arg29 : i32
      %c2_i32_154 = arith.constant 2 : i32
      %215 = arith.addi %214, %c2_i32_154 : i32
      %216 = arith.index_cast %215 : i32 to index
      %c0_155 = arith.constant 0 : index
      %c0_156 = arith.constant 0 : index
      %217 = vector.load %arg27[%216, %c0_155, %c0_156] : memref<9x128x9xf32, #tpu.memory_space<vmem>>, vector<1x128x9xf32>
      %218 = vector.shape_cast %217 : vector<1x128x9xf32> to vector<128x9xf32>
      %219 = vector.extract_strided_slice %208 {offsets = [0, 0], sizes = [128, 8], strides = [1, 1]} : vector<128x9xf32> to vector<128x8xf32>
      %220 = vector.extract_strided_slice %208 {offsets = [0, 1], sizes = [128, 8], strides = [1, 1]} : vector<128x9xf32> to vector<128x8xf32>
      %221 = vector.extract_strided_slice %213 {offsets = [0, 0], sizes = [128, 8], strides = [1, 1]} : vector<128x9xf32> to vector<128x8xf32>
      %222 = vector.extract_strided_slice %213 {offsets = [0, 1], sizes = [128, 8], strides = [1, 1]} : vector<128x9xf32> to vector<128x8xf32>
      %223 = tpu.concatenate %219, %220, %221, %222 in 0 : vector<128x8xf32>, vector<128x8xf32>, vector<128x8xf32>, vector<128x8xf32> -> vector<512x8xf32>
      %c0_157 = arith.constant 0 : index
      %c0_158 = arith.constant 0 : index
      %224 = vector.load %arg6[%c0_157, %c0_158] : memref<32x512xf32, #tpu.memory_space<vmem>>, vector<32x512xf32>
      %cst_159 = arith.constant dense<0.000000e+00> : vector<32x8xf32>
      %225 = tpu.matmul %224, %223, %cst_159 {dimension_numbers = #tpu.dot_dimension_numbers<[1], [0], [0], [1], [0, 0, 1, 1], [], []>} : vector<32x512xf32>, vector<512x8xf32>, vector<32x8xf32> -> vector<32x8xf32>
      %c0_160 = arith.constant 0 : index
      %c0_161 = arith.constant 0 : index
      %226 = vector.load %arg12[%c0_160, %c0_161] : memref<32x1xf32, #tpu.memory_space<vmem>>, vector<32x1xf32>
      %227 = vector.broadcast %226 : vector<32x1xf32> to vector<32x8xf32>
      %228 = arith.addf %225, %227 : vector<32x8xf32>
      %cst_162 = arith.constant 0.000000e+00 : f32
      %229 = vector.broadcast %cst_162 : f32 to vector<32x8xf32>
      %230 = arith.cmpf oge, %228, %229 : vector<32x8xf32>
      %cst_163 = arith.constant 2.000000e-01 : f32
      %231 = vector.broadcast %cst_163 : f32 to vector<32x8xf32>
      %232 = arith.mulf %231, %228 : vector<32x8xf32>
      %233 = arith.select %230, %228, %232 : vector<32x8xi1>, vector<32x8xf32>
      %c0_164 = arith.constant 0 : index
      %c0_165 = arith.constant 0 : index
      %234 = vector.load %arg18[%c0_164, %c0_165] : memref<8x10xf32, #tpu.memory_space<vmem>>, vector<8x10xf32>
      %cst_166 = arith.constant dense<0.000000e+00> : vector<32x10xf32>
      %235 = tpu.matmul %233, %234, %cst_166 {dimension_numbers = #tpu.dot_dimension_numbers<[1], [0], [0], [1], [0, 0, 1, 1], [], []>} : vector<32x8xf32>, vector<8x10xf32>, vector<32x10xf32> -> vector<32x10xf32>
      %236 = vector.extract_strided_slice %235 {offsets = [0, 0], sizes = [32, 5], strides = [1, 1]} : vector<32x10xf32> to vector<32x5xf32>
      %237 = vector.extract_strided_slice %235 {offsets = [0, 5], sizes = [32, 5], strides = [1, 1]} : vector<32x10xf32> to vector<32x5xf32>
      %238 = vector.extract_strided_slice %213 {offsets = [0, 0], sizes = [128, 8], strides = [1, 1]} : vector<128x9xf32> to vector<128x8xf32>
      %239 = vector.extract_strided_slice %213 {offsets = [0, 1], sizes = [128, 8], strides = [1, 1]} : vector<128x9xf32> to vector<128x8xf32>
      %240 = vector.extract_strided_slice %218 {offsets = [0, 0], sizes = [128, 8], strides = [1, 1]} : vector<128x9xf32> to vector<128x8xf32>
      %241 = vector.extract_strided_slice %218 {offsets = [0, 1], sizes = [128, 8], strides = [1, 1]} : vector<128x9xf32> to vector<128x8xf32>
      %242 = tpu.concatenate %238, %239, %240, %241 in 0 : vector<128x8xf32>, vector<128x8xf32>, vector<128x8xf32>, vector<128x8xf32> -> vector<512x8xf32>
      %c0_167 = arith.constant 0 : index
      %c0_168 = arith.constant 0 : index
      %243 = vector.load %arg6[%c0_167, %c0_168] : memref<32x512xf32, #tpu.memory_space<vmem>>, vector<32x512xf32>
      %cst_169 = arith.constant dense<0.000000e+00> : vector<32x8xf32>
      %244 = tpu.matmul %243, %242, %cst_169 {dimension_numbers = #tpu.dot_dimension_numbers<[1], [0], [0], [1], [0, 0, 1, 1], [], []>} : vector<32x512xf32>, vector<512x8xf32>, vector<32x8xf32> -> vector<32x8xf32>
      %c0_170 = arith.constant 0 : index
      %c0_171 = arith.constant 0 : index
      %245 = vector.load %arg12[%c0_170, %c0_171] : memref<32x1xf32, #tpu.memory_space<vmem>>, vector<32x1xf32>
      %246 = vector.broadcast %245 : vector<32x1xf32> to vector<32x8xf32>
      %247 = arith.addf %244, %246 : vector<32x8xf32>
      %cst_172 = arith.constant 0.000000e+00 : f32
      %248 = vector.broadcast %cst_172 : f32 to vector<32x8xf32>
      %249 = arith.cmpf oge, %247, %248 : vector<32x8xf32>
      %cst_173 = arith.constant 2.000000e-01 : f32
      %250 = vector.broadcast %cst_173 : f32 to vector<32x8xf32>
      %251 = arith.mulf %250, %247 : vector<32x8xf32>
      %252 = arith.select %249, %247, %251 : vector<32x8xi1>, vector<32x8xf32>
      %c0_174 = arith.constant 0 : index
      %c0_175 = arith.constant 0 : index
      %253 = vector.load %arg18[%c0_174, %c0_175] : memref<8x10xf32, #tpu.memory_space<vmem>>, vector<8x10xf32>
      %cst_176 = arith.constant dense<0.000000e+00> : vector<32x10xf32>
      %254 = tpu.matmul %252, %253, %cst_176 {dimension_numbers = #tpu.dot_dimension_numbers<[1], [0], [0], [1], [0, 0, 1, 1], [], []>} : vector<32x8xf32>, vector<8x10xf32>, vector<32x10xf32> -> vector<32x10xf32>
      %255 = vector.extract_strided_slice %254 {offsets = [0, 0], sizes = [32, 5], strides = [1, 1]} : vector<32x10xf32> to vector<32x5xf32>
      %256 = vector.extract_strided_slice %254 {offsets = [0, 5], sizes = [32, 5], strides = [1, 1]} : vector<32x10xf32> to vector<32x5xf32>
      %257 = tpu.concatenate %236, %237, %255, %256 in 0 : vector<32x5xf32>, vector<32x5xf32>, vector<32x5xf32>, vector<32x5xf32> -> vector<128x5xf32>
      %c1_i32_177 = arith.constant 1 : i32
      %258 = arith.addi %c1_i32_177, %arg29 : i32
      %259 = arith.index_cast %258 : i32 to index
      %c0_178 = arith.constant 0 : index
      %c0_179 = arith.constant 0 : index
      %260 = vector.load %arg28[%259, %c0_178, %c0_179] : memref<5x128x5xf32, #tpu.memory_space<vmem>>, vector<1x128x5xf32>
      %261 = vector.shape_cast %260 : vector<1x128x5xf32> to vector<128x5xf32>
      %262 = vector.shape_cast %257 : vector<128x5xf32> to vector<1x128x5xf32>
      tpu.vector_store %arg28[%259, %c0_178, %c0_179], %262 {strides = array<i32>} : memref<5x128x5xf32, #tpu.memory_space<vmem>>, vector<1x128x5xf32>,
    }
    %c4_i32_30 = arith.constant 4 : i32
    %c0_31 = arith.constant 0 : index
    %c0_32 = arith.constant 0 : index
    %25 = vector.load %arg20[%c0_31, %c0_32] : memref<128x1xf32, #tpu.memory_space<vmem>>, vector<128x1xf32>
    %c0_33 = arith.constant 0 : index
    %c0_34 = arith.constant 0 : index
    %c0_35 = arith.constant 0 : index
    %26 = vector.load %arg28[%c0_33, %c0_34, %c0_35] : memref<5x128x5xf32, #tpu.memory_space<vmem>>, vector<1x128x5xf32>
    %27 = vector.shape_cast %26 : vector<1x128x5xf32> to vector<128x5xf32>
    %c1 = arith.constant 1 : index
    %c0_36 = arith.constant 0 : index
    %c0_37 = arith.constant 0 : index
    %28 = vector.load %arg28[%c1, %c0_36, %c0_37] : memref<5x128x5xf32, #tpu.memory_space<vmem>>, vector<1x128x5xf32>
    %29 = vector.shape_cast %28 : vector<1x128x5xf32> to vector<128x5xf32>
    %30 = vector.extract_strided_slice %27 {offsets = [0, 0], sizes = [128, 4], strides = [1, 1]} : vector<128x5xf32> to vector<128x4xf32>
    %31 = vector.extract_strided_slice %27 {offsets = [0, 1], sizes = [128, 4], strides = [1, 1]} : vector<128x5xf32> to vector<128x4xf32>
    %32 = vector.extract_strided_slice %29 {offsets = [0, 0], sizes = [128, 4], strides = [1, 1]} : vector<128x5xf32> to vector<128x4xf32>
    %33 = vector.extract_strided_slice %29 {offsets = [0, 1], sizes = [128, 4], strides = [1, 1]} : vector<128x5xf32> to vector<128x4xf32>
    %34 = tpu.concatenate %30, %31, %32, %33 in 0 : vector<128x4xf32>, vector<128x4xf32>, vector<128x4xf32>, vector<128x4xf32> -> vector<512x4xf32>
    %c0_38 = arith.constant 0 : index
    %c0_39 = arith.constant 0 : index
    %35 = vector.load %arg7[%c0_38, %c0_39] : memref<64x512xf32, #tpu.memory_space<vmem>>, vector<64x512xf32>
    %cst_40 = arith.constant dense<0.000000e+00> : vector<64x4xf32>
    %36 = tpu.matmul %35, %34, %cst_40 {dimension_numbers = #tpu.dot_dimension_numbers<[1], [0], [0], [1], [0, 0, 1, 1], [], []>} : vector<64x512xf32>, vector<512x4xf32>, vector<64x4xf32> -> vector<64x4xf32>
    %c0_41 = arith.constant 0 : index
    %c0_42 = arith.constant 0 : index
    %37 = vector.load %arg13[%c0_41, %c0_42] : memref<64x1xf32, #tpu.memory_space<vmem>>, vector<64x1xf32>
    %38 = vector.broadcast %37 : vector<64x1xf32> to vector<64x4xf32>
    %39 = arith.addf %36, %38 : vector<64x4xf32>
    %cst_43 = arith.constant 0.000000e+00 : f32
    %40 = vector.broadcast %cst_43 : f32 to vector<64x4xf32>
    %41 = arith.cmpf oge, %39, %40 : vector<64x4xf32>
    %cst_44 = arith.constant 2.000000e-01 : f32
    %42 = vector.broadcast %cst_44 : f32 to vector<64x4xf32>
    %43 = arith.mulf %42, %39 : vector<64x4xf32>
    %44 = arith.select %41, %39, %43 : vector<64x4xi1>, vector<64x4xf32>
    %c0_45 = arith.constant 0 : index
    %c0_46 = arith.constant 0 : index
    %c0_47 = arith.constant 0 : index
    %45 = vector.load %arg19[%c0_45, %c0_46, %c0_47] : memref<16x128x64xf32, #tpu.memory_space<vmem>>, vector<1x128x64xf32>
    %46 = vector.shape_cast %45 : vector<1x128x64xf32> to vector<128x64xf32>
    %cst_48 = arith.constant dense<0.000000e+00> : vector<128x4xf32>
    %47 = tpu.matmul %46, %44, %cst_48 {dimension_numbers = #tpu.dot_dimension_numbers<[1], [0], [0], [1], [0, 0, 1, 1], [], []>} : vector<128x64xf32>, vector<64x4xf32>, vector<128x4xf32> -> vector<128x4xf32>
    %48 = vector.extract_strided_slice %47 {offsets = [0, 0], sizes = [128, 1], strides = [1, 1]} : vector<128x4xf32> to vector<128x1xf32>
    %49 = arith.addf %25, %48 : vector<128x1xf32>
    %c1_49 = arith.constant 1 : index
    %c0_50 = arith.constant 0 : index
    %c0_51 = arith.constant 0 : index
    %50 = vector.load %arg19[%c1_49, %c0_50, %c0_51] : memref<16x128x64xf32, #tpu.memory_space<vmem>>, vector<1x128x64xf32>
    %51 = vector.shape_cast %50 : vector<1x128x64xf32> to vector<128x64xf32>
    %cst_52 = arith.constant dense<0.000000e+00> : vector<128x4xf32>
    %52 = tpu.matmul %51, %44, %cst_52 {dimension_numbers = #tpu.dot_dimension_numbers<[1], [0], [0], [1], [0, 0, 1, 1], [], []>} : vector<128x64xf32>, vector<64x4xf32>, vector<128x4xf32> -> vector<128x4xf32>
    %53 = vector.extract_strided_slice %52 {offsets = [0, 1], sizes = [128, 1], strides = [1, 1]} : vector<128x4xf32> to vector<128x1xf32>
    %54 = arith.addf %49, %53 : vector<128x1xf32>
    %c2 = arith.constant 2 : index
    %c0_53 = arith.constant 0 : index
    %c0_54 = arith.constant 0 : index
    %55 = vector.load %arg19[%c2, %c0_53, %c0_54] : memref<16x128x64xf32, #tpu.memory_space<vmem>>, vector<1x128x64xf32>
    %56 = vector.shape_cast %55 : vector<1x128x64xf32> to vector<128x64xf32>
    %cst_55 = arith.constant dense<0.000000e+00> : vector<128x4xf32>
    %57 = tpu.matmul %56, %44, %cst_55 {dimension_numbers = #tpu.dot_dimension_numbers<[1], [0], [0], [1], [0, 0, 1, 1], [], []>} : vector<128x64xf32>, vector<64x4xf32>, vector<128x4xf32> -> vector<128x4xf32>
    %58 = vector.extract_strided_slice %57 {offsets = [0, 2], sizes = [128, 1], strides = [1, 1]} : vector<128x4xf32> to vector<128x1xf32>
    %59 = arith.addf %54, %58 : vector<128x1xf32>
    %c3 = arith.constant 3 : index
    %c0_56 = arith.constant 0 : index
    %c0_57 = arith.constant 0 : index
    %60 = vector.load %arg19[%c3, %c0_56, %c0_57] : memref<16x128x64xf32, #tpu.memory_space<vmem>>, vector<1x128x64xf32>
    %61 = vector.shape_cast %60 : vector<1x128x64xf32> to vector<128x64xf32>
    %cst_58 = arith.constant dense<0.000000e+00> : vector<128x4xf32>
    %62 = tpu.matmul %61, %44, %cst_58 {dimension_numbers = #tpu.dot_dimension_numbers<[1], [0], [0], [1], [0, 0, 1, 1], [], []>} : vector<128x64xf32>, vector<64x4xf32>, vector<128x4xf32> -> vector<128x4xf32>
    %63 = vector.extract_strided_slice %62 {offsets = [0, 3], sizes = [128, 1], strides = [1, 1]} : vector<128x4xf32> to vector<128x1xf32>
    %64 = arith.addf %59, %63 : vector<128x1xf32>
    %c1_59 = arith.constant 1 : index
    %c0_60 = arith.constant 0 : index
    %c0_61 = arith.constant 0 : index
    %65 = vector.load %arg28[%c1_59, %c0_60, %c0_61] : memref<5x128x5xf32, #tpu.memory_space<vmem>>, vector<1x128x5xf32>
    %66 = vector.shape_cast %65 : vector<1x128x5xf32> to vector<128x5xf32>
    %c2_62 = arith.constant 2 : index
    %c0_63 = arith.constant 0 : index
    %c0_64 = arith.constant 0 : index
    %67 = vector.load %arg28[%c2_62, %c0_63, %c0_64] : memref<5x128x5xf32, #tpu.memory_space<vmem>>, vector<1x128x5xf32>
    %68 = vector.shape_cast %67 : vector<1x128x5xf32> to vector<128x5xf32>
    %69 = vector.extract_strided_slice %66 {offsets = [0, 0], sizes = [128, 4], strides = [1, 1]} : vector<128x5xf32> to vector<128x4xf32>
    %70 = vector.extract_strided_slice %66 {offsets = [0, 1], sizes = [128, 4], strides = [1, 1]} : vector<128x5xf32> to vector<128x4xf32>
    %71 = vector.extract_strided_slice %68 {offsets = [0, 0], sizes = [128, 4], strides = [1, 1]} : vector<128x5xf32> to vector<128x4xf32>
    %72 = vector.extract_strided_slice %68 {offsets = [0, 1], sizes = [128, 4], strides = [1, 1]} : vector<128x5xf32> to vector<128x4xf32>
    %73 = tpu.concatenate %69, %70, %71, %72 in 0 : vector<128x4xf32>, vector<128x4xf32>, vector<128x4xf32>, vector<128x4xf32> -> vector<512x4xf32>
    %c0_65 = arith.constant 0 : index
    %c0_66 = arith.constant 0 : index
    %74 = vector.load %arg7[%c0_65, %c0_66] : memref<64x512xf32, #tpu.memory_space<vmem>>, vector<64x512xf32>
    %cst_67 = arith.constant dense<0.000000e+00> : vector<64x4xf32>
    %75 = tpu.matmul %74, %73, %cst_67 {dimension_numbers = #tpu.dot_dimension_numbers<[1], [0], [0], [1], [0, 0, 1, 1], [], []>} : vector<64x512xf32>, vector<512x4xf32>, vector<64x4xf32> -> vector<64x4xf32>
    %c0_68 = arith.constant 0 : index
    %c0_69 = arith.constant 0 : index
    %76 = vector.load %arg13[%c0_68, %c0_69] : memref<64x1xf32, #tpu.memory_space<vmem>>, vector<64x1xf32>
    %77 = vector.broadcast %76 : vector<64x1xf32> to vector<64x4xf32>
    %78 = arith.addf %75, %77 : vector<64x4xf32>
    %cst_70 = arith.constant 0.000000e+00 : f32
    %79 = vector.broadcast %cst_70 : f32 to vector<64x4xf32>
    %80 = arith.cmpf oge, %78, %79 : vector<64x4xf32>
    %cst_71 = arith.constant 2.000000e-01 : f32
    %81 = vector.broadcast %cst_71 : f32 to vector<64x4xf32>
    %82 = arith.mulf %81, %78 : vector<64x4xf32>
    %83 = arith.select %80, %78, %82 : vector<64x4xi1>, vector<64x4xf32>
    %c4 = arith.constant 4 : index
    %c0_72 = arith.constant 0 : index
    %c0_73 = arith.constant 0 : index
    %84 = vector.load %arg19[%c4, %c0_72, %c0_73] : memref<16x128x64xf32, #tpu.memory_space<vmem>>, vector<1x128x64xf32>
    %85 = vector.shape_cast %84 : vector<1x128x64xf32> to vector<128x64xf32>
    %cst_74 = arith.constant dense<0.000000e+00> : vector<128x4xf32>
    %86 = tpu.matmul %85, %83, %cst_74 {dimension_numbers = #tpu.dot_dimension_numbers<[1], [0], [0], [1], [0, 0, 1, 1], [], []>} : vector<128x64xf32>, vector<64x4xf32>, vector<128x4xf32> -> vector<128x4xf32>
    %87 = vector.extract_strided_slice %86 {offsets = [0, 0], sizes = [128, 1], strides = [1, 1]} : vector<128x4xf32> to vector<128x1xf32>
    %88 = arith.addf %64, %87 : vector<128x1xf32>
    %c5 = arith.constant 5 : index
    %c0_75 = arith.constant 0 : index
    %c0_76 = arith.constant 0 : index
    %89 = vector.load %arg19[%c5, %c0_75, %c0_76] : memref<16x128x64xf32, #tpu.memory_space<vmem>>, vector<1x128x64xf32>
    %90 = vector.shape_cast %89 : vector<1x128x64xf32> to vector<128x64xf32>
    %cst_77 = arith.constant dense<0.000000e+00> : vector<128x4xf32>
    %91 = tpu.matmul %90, %83, %cst_77 {dimension_numbers = #tpu.dot_dimension_numbers<[1], [0], [0], [1], [0, 0, 1, 1], [], []>} : vector<128x64xf32>, vector<64x4xf32>, vector<128x4xf32> -> vector<128x4xf32>
    %92 = vector.extract_strided_slice %91 {offsets = [0, 1], sizes = [128, 1], strides = [1, 1]} : vector<128x4xf32> to vector<128x1xf32>
    %93 = arith.addf %88, %92 : vector<128x1xf32>
    %c6 = arith.constant 6 : index
    %c0_78 = arith.constant 0 : index
    %c0_79 = arith.constant 0 : index
    %94 = vector.load %arg19[%c6, %c0_78, %c0_79] : memref<16x128x64xf32, #tpu.memory_space<vmem>>, vector<1x128x64xf32>
    %95 = vector.shape_cast %94 : vector<1x128x64xf32> to vector<128x64xf32>
    %cst_80 = arith.constant dense<0.000000e+00> : vector<128x4xf32>
    %96 = tpu.matmul %95, %83, %cst_80 {dimension_numbers = #tpu.dot_dimension_numbers<[1], [0], [0], [1], [0, 0, 1, 1], [], []>} : vector<128x64xf32>, vector<64x4xf32>, vector<128x4xf32> -> vector<128x4xf32>
    %97 = vector.extract_strided_slice %96 {offsets = [0, 2], sizes = [128, 1], strides = [1, 1]} : vector<128x4xf32> to vector<128x1xf32>
    %98 = arith.addf %93, %97 : vector<128x1xf32>
    %c7 = arith.constant 7 : index
    %c0_81 = arith.constant 0 : index
    %c0_82 = arith.constant 0 : index
    %99 = vector.load %arg19[%c7, %c0_81, %c0_82] : memref<16x128x64xf32, #tpu.memory_space<vmem>>, vector<1x128x64xf32>
    %100 = vector.shape_cast %99 : vector<1x128x64xf32> to vector<128x64xf32>
    %cst_83 = arith.constant dense<0.000000e+00> : vector<128x4xf32>
    %101 = tpu.matmul %100, %83, %cst_83 {dimension_numbers = #tpu.dot_dimension_numbers<[1], [0], [0], [1], [0, 0, 1, 1], [], []>} : vector<128x64xf32>, vector<64x4xf32>, vector<128x4xf32> -> vector<128x4xf32>
    %102 = vector.extract_strided_slice %101 {offsets = [0, 3], sizes = [128, 1], strides = [1, 1]} : vector<128x4xf32> to vector<128x1xf32>
    %103 = arith.addf %98, %102 : vector<128x1xf32>
    %c2_84 = arith.constant 2 : index
    %c0_85 = arith.constant 0 : index
    %c0_86 = arith.constant 0 : index
    %104 = vector.load %arg28[%c2_84, %c0_85, %c0_86] : memref<5x128x5xf32, #tpu.memory_space<vmem>>, vector<1x128x5xf32>
    %105 = vector.shape_cast %104 : vector<1x128x5xf32> to vector<128x5xf32>
    %c3_87 = arith.constant 3 : index
    %c0_88 = arith.constant 0 : index
    %c0_89 = arith.constant 0 : index
    %106 = vector.load %arg28[%c3_87, %c0_88, %c0_89] : memref<5x128x5xf32, #tpu.memory_space<vmem>>, vector<1x128x5xf32>
    %107 = vector.shape_cast %106 : vector<1x128x5xf32> to vector<128x5xf32>
    %108 = vector.extract_strided_slice %105 {offsets = [0, 0], sizes = [128, 4], strides = [1, 1]} : vector<128x5xf32> to vector<128x4xf32>
    %109 = vector.extract_strided_slice %105 {offsets = [0, 1], sizes = [128, 4], strides = [1, 1]} : vector<128x5xf32> to vector<128x4xf32>
    %110 = vector.extract_strided_slice %107 {offsets = [0, 0], sizes = [128, 4], strides = [1, 1]} : vector<128x5xf32> to vector<128x4xf32>
    %111 = vector.extract_strided_slice %107 {offsets = [0, 1], sizes = [128, 4], strides = [1, 1]} : vector<128x5xf32> to vector<128x4xf32>
    %112 = tpu.concatenate %108, %109, %110, %111 in 0 : vector<128x4xf32>, vector<128x4xf32>, vector<128x4xf32>, vector<128x4xf32> -> vector<512x4xf32>
    %c0_90 = arith.constant 0 : index
    %c0_91 = arith.constant 0 : index
    %113 = vector.load %arg7[%c0_90, %c0_91] : memref<64x512xf32, #tpu.memory_space<vmem>>, vector<64x512xf32>
    %cst_92 = arith.constant dense<0.000000e+00> : vector<64x4xf32>
    %114 = tpu.matmul %113, %112, %cst_92 {dimension_numbers = #tpu.dot_dimension_numbers<[1], [0], [0], [1], [0, 0, 1, 1], [], []>} : vector<64x512xf32>, vector<512x4xf32>, vector<64x4xf32> -> vector<64x4xf32>
    %c0_93 = arith.constant 0 : index
    %c0_94 = arith.constant 0 : index
    %115 = vector.load %arg13[%c0_93, %c0_94] : memref<64x1xf32, #tpu.memory_space<vmem>>, vector<64x1xf32>
    %116 = vector.broadcast %115 : vector<64x1xf32> to vector<64x4xf32>
    %117 = arith.addf %114, %116 : vector<64x4xf32>
    %cst_95 = arith.constant 0.000000e+00 : f32
    %118 = vector.broadcast %cst_95 : f32 to vector<64x4xf32>
    %119 = arith.cmpf oge, %117, %118 : vector<64x4xf32>
    %cst_96 = arith.constant 2.000000e-01 : f32
    %120 = vector.broadcast %cst_96 : f32 to vector<64x4xf32>
    %121 = arith.mulf %120, %117 : vector<64x4xf32>
    %122 = arith.select %119, %117, %121 : vector<64x4xi1>, vector<64x4xf32>
    %c8 = arith.constant 8 : index
    %c0_97 = arith.constant 0 : index
    %c0_98 = arith.constant 0 : index
    %123 = vector.load %arg19[%c8, %c0_97, %c0_98] : memref<16x128x64xf32, #tpu.memory_space<vmem>>, vector<1x128x64xf32>
    %124 = vector.shape_cast %123 : vector<1x128x64xf32> to vector<128x64xf32>
    %cst_99 = arith.constant dense<0.000000e+00> : vector<128x4xf32>
    %125 = tpu.matmul %124, %122, %cst_99 {dimension_numbers = #tpu.dot_dimension_numbers<[1], [0], [0], [1], [0, 0, 1, 1], [], []>} : vector<128x64xf32>, vector<64x4xf32>, vector<128x4xf32> -> vector<128x4xf32>
    %126 = vector.extract_strided_slice %125 {offsets = [0, 0], sizes = [128, 1], strides = [1, 1]} : vector<128x4xf32> to vector<128x1xf32>
    %127 = arith.addf %103, %126 : vector<128x1xf32>
    %c9 = arith.constant 9 : index
    %c0_100 = arith.constant 0 : index
    %c0_101 = arith.constant 0 : index
    %128 = vector.load %arg19[%c9, %c0_100, %c0_101] : memref<16x128x64xf32, #tpu.memory_space<vmem>>, vector<1x128x64xf32>
    %129 = vector.shape_cast %128 : vector<1x128x64xf32> to vector<128x64xf32>
    %cst_102 = arith.constant dense<0.000000e+00> : vector<128x4xf32>
    %130 = tpu.matmul %129, %122, %cst_102 {dimension_numbers = #tpu.dot_dimension_numbers<[1], [0], [0], [1], [0, 0, 1, 1], [], []>} : vector<128x64xf32>, vector<64x4xf32>, vector<128x4xf32> -> vector<128x4xf32>
    %131 = vector.extract_strided_slice %130 {offsets = [0, 1], sizes = [128, 1], strides = [1, 1]} : vector<128x4xf32> to vector<128x1xf32>
    %132 = arith.addf %127, %131 : vector<128x1xf32>
    %c10 = arith.constant 10 : index
    %c0_103 = arith.constant 0 : index
    %c0_104 = arith.constant 0 : index
    %133 = vector.load %arg19[%c10, %c0_103, %c0_104] : memref<16x128x64xf32, #tpu.memory_space<vmem>>, vector<1x128x64xf32>
    %134 = vector.shape_cast %133 : vector<1x128x64xf32> to vector<128x64xf32>
    %cst_105 = arith.constant dense<0.000000e+00> : vector<128x4xf32>
    %135 = tpu.matmul %134, %122, %cst_105 {dimension_numbers = #tpu.dot_dimension_numbers<[1], [0], [0], [1], [0, 0, 1, 1], [], []>} : vector<128x64xf32>, vector<64x4xf32>, vector<128x4xf32> -> vector<128x4xf32>
    %136 = vector.extract_strided_slice %135 {offsets = [0, 2], sizes = [128, 1], strides = [1, 1]} : vector<128x4xf32> to vector<128x1xf32>
    %137 = arith.addf %132, %136 : vector<128x1xf32>
    %c11 = arith.constant 11 : index
    %c0_106 = arith.constant 0 : index
    %c0_107 = arith.constant 0 : index
    %138 = vector.load %arg19[%c11, %c0_106, %c0_107] : memref<16x128x64xf32, #tpu.memory_space<vmem>>, vector<1x128x64xf32>
    %139 = vector.shape_cast %138 : vector<1x128x64xf32> to vector<128x64xf32>
    %cst_108 = arith.constant dense<0.000000e+00> : vector<128x4xf32>
    %140 = tpu.matmul %139, %122, %cst_108 {dimension_numbers = #tpu.dot_dimension_numbers<[1], [0], [0], [1], [0, 0, 1, 1], [], []>} : vector<128x64xf32>, vector<64x4xf32>, vector<128x4xf32> -> vector<128x4xf32>
    %141 = vector.extract_strided_slice %140 {offsets = [0, 3], sizes = [128, 1], strides = [1, 1]} : vector<128x4xf32> to vector<128x1xf32>
    %142 = arith.addf %137, %141 : vector<128x1xf32>
    %c3_109 = arith.constant 3 : index
    %c0_110 = arith.constant 0 : index
    %c0_111 = arith.constant 0 : index
    %143 = vector.load %arg28[%c3_109, %c0_110, %c0_111] : memref<5x128x5xf32, #tpu.memory_space<vmem>>, vector<1x128x5xf32>
    %144 = vector.shape_cast %143 : vector<1x128x5xf32> to vector<128x5xf32>
    %c4_112 = arith.constant 4 : index
    %c0_113 = arith.constant 0 : index
    %c0_114 = arith.constant 0 : index
    %145 = vector.load %arg28[%c4_112, %c0_113, %c0_114] : memref<5x128x5xf32, #tpu.memory_space<vmem>>, vector<1x128x5xf32>
    %146 = vector.shape_cast %145 : vector<1x128x5xf32> to vector<128x5xf32>
    %147 = vector.extract_strided_slice %144 {offsets = [0, 0], sizes = [128, 4], strides = [1, 1]} : vector<128x5xf32> to vector<128x4xf32>
    %148 = vector.extract_strided_slice %144 {offsets = [0, 1], sizes = [128, 4], strides = [1, 1]} : vector<128x5xf32> to vector<128x4xf32>
    %149 = vector.extract_strided_slice %146 {offsets = [0, 0], sizes = [128, 4], strides = [1, 1]} : vector<128x5xf32> to vector<128x4xf32>
    %150 = vector.extract_strided_slice %146 {offsets = [0, 1], sizes = [128, 4], strides = [1, 1]} : vector<128x5xf32> to vector<128x4xf32>
    %151 = tpu.concatenate %147, %148, %149, %150 in 0 : vector<128x4xf32>, vector<128x4xf32>, vector<128x4xf32>, vector<128x4xf32> -> vector<512x4xf32>
    %c0_115 = arith.constant 0 : index
    %c0_116 = arith.constant 0 : index
    %152 = vector.load %arg7[%c0_115, %c0_116] : memref<64x512xf32, #tpu.memory_space<vmem>>, vector<64x512xf32>
    %cst_117 = arith.constant dense<0.000000e+00> : vector<64x4xf32>
    %153 = tpu.matmul %152, %151, %cst_117 {dimension_numbers = #tpu.dot_dimension_numbers<[1], [0], [0], [1], [0, 0, 1, 1], [], []>} : vector<64x512xf32>, vector<512x4xf32>, vector<64x4xf32> -> vector<64x4xf32>
    %c0_118 = arith.constant 0 : index
    %c0_119 = arith.constant 0 : index
    %154 = vector.load %arg13[%c0_118, %c0_119] : memref<64x1xf32, #tpu.memory_space<vmem>>, vector<64x1xf32>
    %155 = vector.broadcast %154 : vector<64x1xf32> to vector<64x4xf32>
    %156 = arith.addf %153, %155 : vector<64x4xf32>
    %cst_120 = arith.constant 0.000000e+00 : f32
    %157 = vector.broadcast %cst_120 : f32 to vector<64x4xf32>
    %158 = arith.cmpf oge, %156, %157 : vector<64x4xf32>
    %cst_121 = arith.constant 2.000000e-01 : f32
    %159 = vector.broadcast %cst_121 : f32 to vector<64x4xf32>
    %160 = arith.mulf %159, %156 : vector<64x4xf32>
    %161 = arith.select %158, %156, %160 : vector<64x4xi1>, vector<64x4xf32>
    %c12 = arith.constant 12 : index
    %c0_122 = arith.constant 0 : index
    %c0_123 = arith.constant 0 : index
    %162 = vector.load %arg19[%c12, %c0_122, %c0_123] : memref<16x128x64xf32, #tpu.memory_space<vmem>>, vector<1x128x64xf32>
    %163 = vector.shape_cast %162 : vector<1x128x64xf32> to vector<128x64xf32>
    %cst_124 = arith.constant dense<0.000000e+00> : vector<128x4xf32>
    %164 = tpu.matmul %163, %161, %cst_124 {dimension_numbers = #tpu.dot_dimension_numbers<[1], [0], [0], [1], [0, 0, 1, 1], [], []>} : vector<128x64xf32>, vector<64x4xf32>, vector<128x4xf32> -> vector<128x4xf32>
    %165 = vector.extract_strided_slice %164 {offsets = [0, 0], sizes = [128, 1], strides = [1, 1]} : vector<128x4xf32> to vector<128x1xf32>
    %166 = arith.addf %142, %165 : vector<128x1xf32>
    %c13 = arith.constant 13 : index
    %c0_125 = arith.constant 0 : index
    %c0_126 = arith.constant 0 : index
    %167 = vector.load %arg19[%c13, %c0_125, %c0_126] : memref<16x128x64xf32, #tpu.memory_space<vmem>>, vector<1x128x64xf32>
    %168 = vector.shape_cast %167 : vector<1x128x64xf32> to vector<128x64xf32>
    %cst_127 = arith.constant dense<0.000000e+00> : vector<128x4xf32>
    %169 = tpu.matmul %168, %161, %cst_127 {dimension_numbers = #tpu.dot_dimension_numbers<[1], [0], [0], [1], [0, 0, 1, 1], [], []>} : vector<128x64xf32>, vector<64x4xf32>, vector<128x4xf32> -> vector<128x4xf32>
    %170 = vector.extract_strided_slice %169 {offsets = [0, 1], sizes = [128, 1], strides = [1, 1]} : vector<128x4xf32> to vector<128x1xf32>
    %171 = arith.addf %166, %170 : vector<128x1xf32>
    %c14 = arith.constant 14 : index
    %c0_128 = arith.constant 0 : index
    %c0_129 = arith.constant 0 : index
    %172 = vector.load %arg19[%c14, %c0_128, %c0_129] : memref<16x128x64xf32, #tpu.memory_space<vmem>>, vector<1x128x64xf32>
    %173 = vector.shape_cast %172 : vector<1x128x64xf32> to vector<128x64xf32>
    %cst_130 = arith.constant dense<0.000000e+00> : vector<128x4xf32>
    %174 = tpu.matmul %173, %161, %cst_130 {dimension_numbers = #tpu.dot_dimension_numbers<[1], [0], [0], [1], [0, 0, 1, 1], [], []>} : vector<128x64xf32>, vector<64x4xf32>, vector<128x4xf32> -> vector<128x4xf32>
    %175 = vector.extract_strided_slice %174 {offsets = [0, 2], sizes = [128, 1], strides = [1, 1]} : vector<128x4xf32> to vector<128x1xf32>
    %176 = arith.addf %171, %175 : vector<128x1xf32>
    %c15 = arith.constant 15 : index
    %c0_131 = arith.constant 0 : index
    %c0_132 = arith.constant 0 : index
    %177 = vector.load %arg19[%c15, %c0_131, %c0_132] : memref<16x128x64xf32, #tpu.memory_space<vmem>>, vector<1x128x64xf32>
    %178 = vector.shape_cast %177 : vector<1x128x64xf32> to vector<128x64xf32>
    %cst_133 = arith.constant dense<0.000000e+00> : vector<128x4xf32>
    %179 = tpu.matmul %178, %161, %cst_133 {dimension_numbers = #tpu.dot_dimension_numbers<[1], [0], [0], [1], [0, 0, 1, 1], [], []>} : vector<128x64xf32>, vector<64x4xf32>, vector<128x4xf32> -> vector<128x4xf32>
    %180 = vector.extract_strided_slice %179 {offsets = [0, 3], sizes = [128, 1], strides = [1, 1]} : vector<128x4xf32> to vector<128x1xf32>
    %181 = arith.addf %176, %180 : vector<128x1xf32>
    %cst_134 = arith.constant 0.000000e+00 : f32
    %182 = vector.broadcast %cst_134 : f32 to vector<128x1xf32>
    %183 = arith.cmpf oge, %181, %182 : vector<128x1xf32>
    %cst_135 = arith.constant 2.000000e-01 : f32
    %184 = vector.broadcast %cst_135 : f32 to vector<128x1xf32>
    %185 = arith.mulf %184, %181 : vector<128x1xf32>
    %186 = arith.select %183, %181, %185 : vector<128x1xi1>, vector<128x1xf32>
    %c0_136 = arith.constant 0 : index
    %c0_137 = arith.constant 0 : index
    %187 = vector.load %arg21[%c0_136, %c0_137] : memref<128x1xf32, #tpu.memory_space<vmem>>, vector<128x1xf32>
    %188 = arith.mulf %186, %187 : vector<128x1xf32>
    %cst_138 = arith.constant dense<0.000000e+00> : vector<1xf32>
    %189 = vector.multi_reduction <add>, %188, %cst_138 [0] : vector<128x1xf32> to vector<1xf32>
    %190 = vector.shape_cast %189 : vector<1xf32> to vector<1x1xf32>
    %c0_139 = arith.constant 0 : index
    %c0_140 = arith.constant 0 : index
    %191 = vector.load %arg22[%c0_139, %c0_140] : memref<1x1xf32, #tpu.memory_space<vmem>>, vector<1x1xf32>
    %192 = arith.addf %190, %191 : vector<1x1xf32>
    %cst_141 = arith.constant 0.000000e+00 : f32
    %193 = vector.broadcast %cst_141 : f32 to vector<1x1xf32>
    %194 = arith.subf %193, %192 : vector<1x1xf32>
    %195 = math.exp %194 : vector<1x1xf32>
    %cst_142 = arith.constant 1.000000e+00 : f32
    %196 = vector.broadcast %cst_142 : f32 to vector<1x1xf32>
    %197 = arith.addf %196, %195 : vector<1x1xf32>
    %cst_143 = arith.constant 1.000000e+00 : f32
    %198 = vector.broadcast %cst_143 : f32 to vector<1x1xf32>
    %199 = arith.divf %198, %197 : vector<1x1xf32>
    %200 = vector.shape_cast %199 : vector<1x1xf32> to vector<1x1xf32>
    %201 = vector.broadcast %200 : vector<1x1xf32> to vector<8x128xf32>
    %c0_144 = arith.constant 0 : index
    %c0_145 = arith.constant 0 : index
    %c0_146 = arith.constant 0 : index
    %202 = vector.load %arg23[%c0_144, %c0_145, %c0_146] : memref<1x8x128xf32, #tpu.memory_space<vmem>>, vector<1x8x128xf32>
    %203 = vector.shape_cast %202 : vector<1x8x128xf32> to vector<8x128xf32>
    %204 = vector.shape_cast %201 : vector<8x128xf32> to vector<1x8x128xf32>
    tpu.vector_store %arg23[%c0_144, %c0_145, %c0_146], %204 {strides = array<i32>} : memref<1x8x128xf32, #tpu.memory_space<vmem>>, vector<1x8x128xf32>,
    return
  }
  func.func @transform_0(%arg0: i32) -> (i32, i32, i32, i32) {
    %c0_i32 = arith.constant 0 : i32
    %c0_i32_0 = arith.constant 0 : i32
    %c0_i32_1 = arith.constant 0 : i32
    %c0_i32_2 = arith.constant 0 : i32
    return %arg0, %c0_i32, %c0_i32_0, %c0_i32_1 : i32, i32, i32, i32
  }
  func.func @transform_1(%arg0: i32) -> (i32, i32) {
    %c0_i32 = arith.constant 0 : i32
    %c0_i32_0 = arith.constant 0 : i32
    %c0_i32_1 = arith.constant 0 : i32
    return %c0_i32, %c0_i32_0 : i32, i32
  }
  func.func @transform_2(%arg0: i32) -> (i32, i32) {
    %c0_i32 = arith.constant 0 : i32
    %c0_i32_0 = arith.constant 0 : i32
    %c0_i32_1 = arith.constant 0 : i32
    return %c0_i32, %c0_i32_0 : i32, i32
  }
  func.func @transform_3(%arg0: i32) -> (i32, i32) {
    %c0_i32 = arith.constant 0 : i32
    %c0_i32_0 = arith.constant 0 : i32
    %c0_i32_1 = arith.constant 0 : i32
    return %c0_i32, %c0_i32_0 : i32, i32
  }
  func.func @transform_4(%arg0: i32) -> (i32, i32) {
    %c0_i32 = arith.constant 0 : i32
    %c0_i32_0 = arith.constant 0 : i32
    %c0_i32_1 = arith.constant 0 : i32
    return %c0_i32, %c0_i32_0 : i32, i32
  }
  func.func @transform_5(%arg0: i32) -> (i32, i32) {
    %c0_i32 = arith.constant 0 : i32
    %c0_i32_0 = arith.constant 0 : i32
    %c0_i32_1 = arith.constant 0 : i32
    return %c0_i32, %c0_i32_0 : i32, i32
  }
  func.func @transform_6(%arg0: i32) -> (i32, i32) {
    %c0_i32 = arith.constant 0 : i32
    %c0_i32_0 = arith.constant 0 : i32
    %c0_i32_1 = arith.constant 0 : i32
    return %c0_i32, %c0_i32_0 : i32, i32
  }
  func.func @transform_7(%arg0: i32) -> (i32, i32) {
    %c0_i32 = arith.constant 0 : i32
    %c0_i32_0 = arith.constant 0 : i32
    %c0_i32_1 = arith.constant 0 : i32
    return %c0_i32, %c0_i32_0 : i32, i32
  }
  func.func @transform_8(%arg0: i32) -> (i32, i32) {
    %c0_i32 = arith.constant 0 : i32
    %c0_i32_0 = arith.constant 0 : i32
    %c0_i32_1 = arith.constant 0 : i32
    return %c0_i32, %c0_i32_0 : i32, i32
  }
  func.func @transform_9(%arg0: i32) -> (i32, i32) {
    %c0_i32 = arith.constant 0 : i32
    %c0_i32_0 = arith.constant 0 : i32
    %c0_i32_1 = arith.constant 0 : i32
    return %c0_i32, %c0_i32_0 : i32, i32
  }
  func.func @transform_10(%arg0: i32) -> (i32, i32) {
    %c0_i32 = arith.constant 0 : i32
    %c0_i32_0 = arith.constant 0 : i32
    %c0_i32_1 = arith.constant 0 : i32
    return %c0_i32, %c0_i32_0 : i32, i32
  }
  func.func @transform_11(%arg0: i32) -> (i32, i32) {
    %c0_i32 = arith.constant 0 : i32
    %c0_i32_0 = arith.constant 0 : i32
    %c0_i32_1 = arith.constant 0 : i32
    return %c0_i32, %c0_i32_0 : i32, i32
  }
  func.func @transform_12(%arg0: i32) -> (i32, i32) {
    %c0_i32 = arith.constant 0 : i32
    %c0_i32_0 = arith.constant 0 : i32
    %c0_i32_1 = arith.constant 0 : i32
    return %c0_i32, %c0_i32_0 : i32, i32
  }
  func.func @transform_13(%arg0: i32) -> (i32, i32) {
    %c0_i32 = arith.constant 0 : i32
    %c0_i32_0 = arith.constant 0 : i32
    %c0_i32_1 = arith.constant 0 : i32
    return %c0_i32, %c0_i32_0 : i32, i32
  }
  func.func @transform_14(%arg0: i32) -> (i32, i32) {
    %c0_i32 = arith.constant 0 : i32
    %c0_i32_0 = arith.constant 0 : i32
    %c0_i32_1 = arith.constant 0 : i32
    return %c0_i32, %c0_i32_0 : i32, i32
  }
  func.func @transform_15(%arg0: i32) -> (i32, i32) {
    %c0_i32 = arith.constant 0 : i32
    %c0_i32_0 = arith.constant 0 : i32
    %c0_i32_1 = arith.constant 0 : i32
    return %c0_i32, %c0_i32_0 : i32, i32
  }
  func.func @transform_16(%arg0: i32) -> (i32, i32) {
    %c0_i32 = arith.constant 0 : i32
    %c0_i32_0 = arith.constant 0 : i32
    %c0_i32_1 = arith.constant 0 : i32
    return %c0_i32, %c0_i32_0 : i32, i32
  }
  func.func @transform_17(%arg0: i32) -> (i32, i32) {
    %c0_i32 = arith.constant 0 : i32
    %c0_i32_0 = arith.constant 0 : i32
    %c0_i32_1 = arith.constant 0 : i32
    return %c0_i32, %c0_i32_0 : i32, i32
  }
  func.func @transform_18(%arg0: i32) -> (i32, i32, i32) {
    %c0_i32 = arith.constant 0 : i32
    %c0_i32_0 = arith.constant 0 : i32
    %c0_i32_1 = arith.constant 0 : i32
    %c0_i32_2 = arith.constant 0 : i32
    return %c0_i32, %c0_i32_0, %c0_i32_1 : i32, i32, i32
  }
  func.func @transform_19(%arg0: i32) -> (i32, i32) {
    %c0_i32 = arith.constant 0 : i32
    %c0_i32_0 = arith.constant 0 : i32
    %c0_i32_1 = arith.constant 0 : i32
    return %c0_i32, %c0_i32_0 : i32, i32
  }
  func.func @transform_20(%arg0: i32) -> (i32, i32) {
    %c0_i32 = arith.constant 0 : i32
    %c0_i32_0 = arith.constant 0 : i32
    %c0_i32_1 = arith.constant 0 : i32
    return %c0_i32, %c0_i32_0 : i32, i32
  }
  func.func @transform_21(%arg0: i32) -> (i32, i32) {
    %c0_i32 = arith.constant 0 : i32
    %c0_i32_0 = arith.constant 0 : i32
    %c0_i32_1 = arith.constant 0 : i32
    return %c0_i32, %c0_i32_0 : i32, i32
  }
  func.func @transform_22(%arg0: i32) -> (i32, i32, i32) {
    %c0_i32 = arith.constant 0 : i32
    %c0_i32_0 = arith.constant 0 : i32
    %c0_i32_1 = arith.constant 0 : i32
    return %arg0, %c0_i32, %c0_i32_0 : i32, i32, i32
  }
}

</mosaic_0001>

<llo_original>
// kernel: discriminator_forward.1
$region0: #{discriminator_forward.1}
  #allocation0 [shape = 'u32[]', space=smem, size = 0x4, offset = 0x4, fixed_abs, tag = 'smem constant byte address 0x4 - core index']
  #allocation1 [shape = 'u32[144,128]{1,0:T(1,128)}', space=vmem, size = 0x12000, scoped, tag = 'internal scratch']
  #allocation2 [shape = 'f32[65,32,65]{2,1,0:T(8,128)}', space=vmem, size = 0x104000, scoped, tag = 'scratch operand']
  #allocation3 [shape = 'f32[33,64,33]{2,1,0:T(8,128)}', space=vmem, size = 0x108000, scoped, tag = 'scratch operand']
  #allocation4 [shape = 'f32[17,64,17]{2,1,0:T(8,128)}', space=vmem, size = 0x88000, scoped, tag = 'scratch operand']
  #allocation5 [shape = 'f32[9,128,9]{2,1,0:T(8,128)}', space=vmem, size = 0x90000, scoped, tag = 'scratch operand']
  #allocation6 [shape = 'f32[5,128,5]{2,1,0:T(8,128)}', space=vmem, size = 0x50000, scoped, tag = 'scratch operand']
  #allocation7 [shape = 'f32[1,1]{1,0:T(1,128)S(1)}', space=vmem, size = 0x200, scoped, tag = 'scoped memory for discriminator_forward.1']
  %s0 = inlined_call_operand.vmem [shape: f32[2,129,16,129], index: 0, kind: input, shape index: {}]
  %s1 = inlined_call_operand.vmem [shape: f32[8,64], index: 1, kind: input, shape index: {}]
  %s2 = inlined_call_operand.vmem [shape: f32[16,128], index: 2, kind: input, shape index: {}]
  %s3 = inlined_call_operand.vmem [shape: f32[16,256], index: 3, kind: input, shape index: {}]
  %s4 = inlined_call_operand.vmem [shape: f32[32,256], index: 4, kind: input, shape index: {}]
  %s5 = inlined_call_operand.vmem [shape: f32[32,512], index: 5, kind: input, shape index: {}]
  %s6 = inlined_call_operand.vmem [shape: f32[64,512], index: 6, kind: input, shape index: {}]
  %s7 = inlined_call_operand.vmem [shape: f32[8,1], index: 7, kind: input, shape index: {}]
  %s8 = inlined_call_operand.vmem [shape: f32[16,1], index: 8, kind: input, shape index: {}]
  %s9 = inlined_call_operand.vmem [shape: f32[16,1], index: 9, kind: input, shape index: {}]
  %s10 = inlined_call_operand.vmem [shape: f32[32,1], index: 10, kind: input, shape index: {}]
  %s11 = inlined_call_operand.vmem [shape: f32[32,1], index: 11, kind: input, shape index: {}]
  %s12 = inlined_call_operand.vmem [shape: f32[64,1], index: 12, kind: input, shape index: {}]
  %s13 = inlined_call_operand.vmem [shape: f32[128,130], index: 13, kind: input, shape index: {}]
  %s14 = inlined_call_operand.vmem [shape: f32[64,66], index: 14, kind: input, shape index: {}]
  %s15 = inlined_call_operand.vmem [shape: f32[32,34], index: 15, kind: input, shape index: {}]
  %s16 = inlined_call_operand.vmem [shape: f32[16,18], index: 16, kind: input, shape index: {}]
  %s17 = inlined_call_operand.vmem [shape: f32[8,10], index: 17, kind: input, shape index: {}]
  %s18 = inlined_call_operand.vmem [shape: f32[16,128,64], index: 18, kind: input, shape index: {}]
  %s19 = inlined_call_operand.vmem [shape: f32[128,1], index: 19, kind: input, shape index: {}]
  %s20 = inlined_call_operand.vmem [shape: f32[128,1], index: 20, kind: input, shape index: {}]
  %s21 = inlined_call_operand.<no memory space> [shape: f32[1,1], index: 21, kind: input, shape index: {}]
  %s22 = inlined_call_operand.vmem [shape: f32[2,8,128], index: 22, kind: output, shape index: {}]
  %s23 = sld [smem:[#allocation0]]
  $region156: #{discriminator_forward.1} parent=0
    _
  %s25 = ssub.s32 1, %s23
  %s26 = scalar_select 0, %s25, %s23
  %v27 = vstv %s21
  %28 = vst [vmem:[#allocation7] sm:$0x1] %v27
  loop: start=0, step=1, limit=4
  $region2: #{discriminator_forward.1} parent=0 // loop_pre_header
    _
  $region3: #{discriminator_forward.1} parent=0 // loop_header
    %s30 = sphi 0, %s34
    %p31 = scmp.ge.s32.totalorder %s30, 4
    %s40 = sphi 0, %s42
    %s43 = sphi 0, %s40
    %s44 = sphi 0, %s43
    %s60 = sphi 0, %s44
    %s64 = sphi 0, %s64
    %s66 = sphi 0, %s64
    %s67 = sphi 0, %s66
    %s81 = sphi 0, %s67
    %s85 = sphi 0, %s85
    %s87 = sphi 0, %s85
    %s88 = sphi 0, %s87
    %s102 = sphi 0, %s88
    %s106 = sphi 0, %s106
    %s108 = sphi 0, %s106
    %s109 = sphi 0, %s108
    %s123 = sphi 0, %s109
    %s127 = sphi 0, %s127
    %s129 = sphi 0, %s127
    %s130 = sphi 0, %s129
    %s144 = sphi 0, %s130
    %s148 = sphi 0, %s148
    %s150 = sphi 0, %s148
    %s151 = sphi 0, %s150
    %s165 = sphi 0, %s151
    %s169 = sphi 0, %s169
    %s171 = sphi 0, %s169
    %s172 = sphi 0, %s171
    %s186 = sphi 0, %s172
    %s190 = sphi 0, %s190
    %s192 = sphi 0, %s190
    %s193 = sphi 0, %s192
    %s207 = sphi 0, %s193
    %s211 = sphi 0, %s211
    %s213 = sphi 0, %s211
    %s214 = sphi 0, %s213
    %s228 = sphi 0, %s214
    %s232 = sphi 0, %s232
    %s234 = sphi 0, %s232
    %s235 = sphi 0, %s234
    %s249 = sphi 0, %s235
    %s253 = sphi 0, %s253
    %s255 = sphi 0, %s253
    %s256 = sphi 0, %s255
    %s270 = sphi 0, %s256
    %s274 = sphi 0, %s274
    %s276 = sphi 0, %s274
    %s277 = sphi 0, %s276
    %s291 = sphi 0, %s277
    %s295 = sphi 0, %s295
    %s297 = sphi 0, %s295
    %s298 = sphi 0, %s297
    %s312 = sphi 0, %s298
    %s316 = sphi 0, %s316
    %s318 = sphi 0, %s316
    %s319 = sphi 0, %s318
    %s333 = sphi 0, %s319
    %s337 = sphi 0, %s337
    %s339 = sphi 0, %s337
    %s340 = sphi 0, %s339
    %s354 = sphi 0, %s340
    %s358 = sphi 0, %s358
    %s360 = sphi 0, %s358
    %s361 = sphi 0, %s360
    %s375 = sphi 0, %s361
    %s379 = sphi 0, %s379
    %s381 = sphi 0, %s379
    %s382 = sphi 0, %s381
    %s396 = sphi 0, %s382
    %s400 = sphi 0, %s400
    %s402 = sphi 0, %s400
    %s403 = sphi 0, %s402
    %s417 = sphi 0, %s403
    %s421 = sphi 0, %s421
    %s423 = sphi 0, %s421
    %s424 = sphi 0, %s423
    %s438 = sphi 0, %s424
    %s442 = sphi 0, %s442
    %s444 = sphi 0, %s442
    %s445 = sphi 0, %s444
    %s459 = sphi 0, %s445
    %s463 = sphi 0, %s463
    %s465 = sphi 0, %s463
    %s466 = sphi 0, %s465
    %s480 = sphi 0, %s466
    %s484 = sphi 0, %s484
    %s486 = sphi 0, %s484
    %s487 = sphi 0, %s486
    %s501 = sphi 0, %s487
    %s507 = sphi 0, %s509
    %s510 = sphi 0, %s507
    %s511 = sphi 0, %s510
    %s527 = sphi 0, %s511
  $region4: #{discriminator_forward.1} parent=0 // loop_header_branch
    %33 = sbr.rel (%p31) target = $region8
  $region5: #{discriminator_forward.1} parent=0 // loop_body
    %s35 = ssub.s32 %s30, 1
    %s36 = ssub.s32 %s30, 2
    %s37 = sadd.s32 %s30, 1
    %s38 = ssub.s32 %s30, %s37
    %p39 = scmp.eq.s32.totalorder %s38, 0
    %s41 = sadd.s32 %s40, 1
    %s42 = scalar_select %p39, %s40, %s41
    %p45 = pneg %p39
    %p46 = scmp.eq.s32.totalorder %s30, 1
    %p47 = por %p45, %p46
    %p48 = scmp.ne.s32.totalorder %s40, %s43
    %p49 = scmp.eq.s32.totalorder %s30, 0
    %p50 = por %p48, %p49
    %p51 = scmp.ne.s32.totalorder %s40, %s43
    %p52 = scmp.eq.s32.totalorder %s35, 1
    %p53 = por %p51, %p52
    %p54 = scmp.ne.s32.totalorder %s43, %s44
    %p55 = scmp.eq.s32.totalorder %s35, 0
    %p56 = por %p54, %p55
    %p57 = scmp.ne.s32.totalorder %s43, %s44
    %p58 = scmp.eq.s32.totalorder %s36, 1
    %p59 = por %p57, %p58
    %p61 = scmp.ne.s32.totalorder %s44, %s60
    %p62 = scmp.eq.s32.totalorder %s36, 0
    %p63 = por %p61, %p62
    %s65 = sadd.s32 %s64, 1
    %p68 = scmp.eq.s32.totalorder %s30, 1
    %p69 = scmp.ne.s32.totalorder %s64, %s66
    %p70 = scmp.eq.s32.totalorder %s30, 0
    %p71 = por %p69, %p70
    %p72 = scmp.ne.s32.totalorder %s64, %s66
    %p73 = scmp.eq.s32.totalorder %s35, 1
    %p74 = por %p72, %p73
    %p75 = scmp.ne.s32.totalorder %s66, %s67
    %p76 = scmp.eq.s32.totalorder %s35, 0
    %p77 = por %p75, %p76
    %p78 = scmp.ne.s32.totalorder %s66, %s67
    %p79 = scmp.eq.s32.totalorder %s36, 1
    %p80 = por %p78, %p79
    %p82 = scmp.ne.s32.totalorder %s67, %s81
    %p83 = scmp.eq.s32.totalorder %s36, 0
    %p84 = por %p82, %p83
    %s86 = sadd.s32 %s85, 1
    %p89 = scmp.eq.s32.totalorder %s30, 1
    %p90 = scmp.ne.s32.totalorder %s85, %s87
    %p91 = scmp.eq.s32.totalorder %s30, 0
    %p92 = por %p90, %p91
    %p93 = scmp.ne.s32.totalorder %s85, %s87
    %p94 = scmp.eq.s32.totalorder %s35, 1
    %p95 = por %p93, %p94
    %p96 = scmp.ne.s32.totalorder %s87, %s88
    %p97 = scmp.eq.s32.totalorder %s35, 0
    %p98 = por %p96, %p97
    %p99 = scmp.ne.s32.totalorder %s87, %s88
    %p100 = scmp.eq.s32.totalorder %s36, 1
    %p101 = por %p99, %p100
    %p103 = scmp.ne.s32.totalorder %s88, %s102
    %p104 = scmp.eq.s32.totalorder %s36, 0
    %p105 = por %p103, %p104
    %s107 = sadd.s32 %s106, 1
    %p110 = scmp.eq.s32.totalorder %s30, 1
    %p111 = scmp.ne.s32.totalorder %s106, %s108
    %p112 = scmp.eq.s32.totalorder %s30, 0
    %p113 = por %p111, %p112
    %p114 = scmp.ne.s32.totalorder %s106, %s108
    %p115 = scmp.eq.s32.totalorder %s35, 1
    %p116 = por %p114, %p115
    %p117 = scmp.ne.s32.totalorder %s108, %s109
    %p118 = scmp.eq.s32.totalorder %s35, 0
    %p119 = por %p117, %p118
    %p120 = scmp.ne.s32.totalorder %s108, %s109
    %p121 = scmp.eq.s32.totalorder %s36, 1
    %p122 = por %p120, %p121
    %p124 = scmp.ne.s32.totalorder %s109, %s123
    %p125 = scmp.eq.s32.totalorder %s36, 0
    %p126 = por %p124, %p125
    %s128 = sadd.s32 %s127, 1
    %p131 = scmp.eq.s32.totalorder %s30, 1
    %p132 = scmp.ne.s32.totalorder %s127, %s129
    %p133 = scmp.eq.s32.totalorder %s30, 0
    %p134 = por %p132, %p133
    %p135 = scmp.ne.s32.totalorder %s127, %s129
    %p136 = scmp.eq.s32.totalorder %s35, 1
    %p137 = por %p135, %p136
    %p138 = scmp.ne.s32.totalorder %s129, %s130
    %p139 = scmp.eq.s32.totalorder %s35, 0
    %p140 = por %p138, %p139
    %p141 = scmp.ne.s32.totalorder %s129, %s130
    %p142 = scmp.eq.s32.totalorder %s36, 1
    %p143 = por %p141, %p142
    %p145 = scmp.ne.s32.totalorder %s130, %s144
    %p146 = scmp.eq.s32.totalorder %s36, 0
    %p147 = por %p145, %p146
    %s149 = sadd.s32 %s148, 1
    %p152 = scmp.eq.s32.totalorder %s30, 1
    %p153 = scmp.ne.s32.totalorder %s148, %s150
    %p154 = scmp.eq.s32.totalorder %s30, 0
    %p155 = por %p153, %p154
    %p156 = scmp.ne.s32.totalorder %s148, %s150
    %p157 = scmp.eq.s32.totalorder %s35, 1
    %p158 = por %p156, %p157
    %p159 = scmp.ne.s32.totalorder %s150, %s151
    %p160 = scmp.eq.s32.totalorder %s35, 0
    %p161 = por %p159, %p160
    %p162 = scmp.ne.s32.totalorder %s150, %s151
    %p163 = scmp.eq.s32.totalorder %s36, 1
    %p164 = por %p162, %p163
    %p166 = scmp.ne.s32.totalorder %s151, %s165
    %p167 = scmp.eq.s32.totalorder %s36, 0
    %p168 = por %p166, %p167
    %s170 = sadd.s32 %s169, 1
    %p173 = scmp.eq.s32.totalorder %s30, 1
    %p174 = scmp.ne.s32.totalorder %s169, %s171
    %p175 = scmp.eq.s32.totalorder %s30, 0
    %p176 = por %p174, %p175
    %p177 = scmp.ne.s32.totalorder %s169, %s171
    %p178 = scmp.eq.s32.totalorder %s35, 1
    %p179 = por %p177, %p178
    %p180 = scmp.ne.s32.totalorder %s171, %s172
    %p181 = scmp.eq.s32.totalorder %s35, 0
    %p182 = por %p180, %p181
    %p183 = scmp.ne.s32.totalorder %s171, %s172
    %p184 = scmp.eq.s32.totalorder %s36, 1
    %p185 = por %p183, %p184
    %p187 = scmp.ne.s32.totalorder %s172, %s186
    %p188 = scmp.eq.s32.totalorder %s36, 0
    %p189 = por %p187, %p188
    %s191 = sadd.s32 %s190, 1
    %p194 = scmp.eq.s32.totalorder %s30, 1
    %p195 = scmp.ne.s32.totalorder %s190, %s192
    %p196 = scmp.eq.s32.totalorder %s30, 0
    %p197 = por %p195, %p196
    %p198 = scmp.ne.s32.totalorder %s190, %s192
    %p199 = scmp.eq.s32.totalorder %s35, 1
    %p200 = por %p198, %p199
    %p201 = scmp.ne.s32.totalorder %s192, %s193
    %p202 = scmp.eq.s32.totalorder %s35, 0
    %p203 = por %p201, %p202
    %p204 = scmp.ne.s32.totalorder %s192, %s193
    %p205 = scmp.eq.s32.totalorder %s36, 1
    %p206 = por %p204, %p205
    %p208 = scmp.ne.s32.totalorder %s193, %s207
    %p209 = scmp.eq.s32.totalorder %s36, 0
    %p210 = por %p208, %p209
    %s212 = sadd.s32 %s211, 1
    %p215 = scmp.eq.s32.totalorder %s30, 1
    %p216 = scmp.ne.s32.totalorder %s211, %s213
    %p217 = scmp.eq.s32.totalorder %s30, 0
    %p218 = por %p216, %p217
    %p219 = scmp.ne.s32.totalorder %s211, %s213
    %p220 = scmp.eq.s32.totalorder %s35, 1
    %p221 = por %p219, %p220
    %p222 = scmp.ne.s32.totalorder %s213, %s214
    %p223 = scmp.eq.s32.totalorder %s35, 0
    %p224 = por %p222, %p223
    %p225 = scmp.ne.s32.totalorder %s213, %s214
    %p226 = scmp.eq.s32.totalorder %s36, 1
    %p227 = por %p225, %p226
    %p229 = scmp.ne.s32.totalorder %s214, %s228
    %p230 = scmp.eq.s32.totalorder %s36, 0
    %p231 = por %p229, %p230
    %s233 = sadd.s32 %s232, 1
    %p236 = scmp.eq.s32.totalorder %s30, 1
    %p237 = scmp.ne.s32.totalorder %s232, %s234
    %p238 = scmp.eq.s32.totalorder %s30, 0
    %p239 = por %p237, %p238
    %p240 = scmp.ne.s32.totalorder %s232, %s234
    %p241 = scmp.eq.s32.totalorder %s35, 1
    %p242 = por %p240, %p241
    %p243 = scmp.ne.s32.totalorder %s234, %s235
    %p244 = scmp.eq.s32.totalorder %s35, 0
    %p245 = por %p243, %p244
    %p246 = scmp.ne.s32.totalorder %s234, %s235
    %p247 = scmp.eq.s32.totalorder %s36, 1
    %p248 = por %p246, %p247
    %p250 = scmp.ne.s32.totalorder %s235, %s249
    %p251 = scmp.eq.s32.totalorder %s36, 0
    %p252 = por %p250, %p251
    %s254 = sadd.s32 %s253, 1
    %p257 = scmp.eq.s32.totalorder %s30, 1
    %p258 = scmp.ne.s32.totalorder %s253, %s255
    %p259 = scmp.eq.s32.totalorder %s30, 0
    %p260 = por %p258, %p259
    %p261 = scmp.ne.s32.totalorder %s253, %s255
    %p262 = scmp.eq.s32.totalorder %s35, 1
    %p263 = por %p261, %p262
    %p264 = scmp.ne.s32.totalorder %s255, %s256
    %p265 = scmp.eq.s32.totalorder %s35, 0
    %p266 = por %p264, %p265
    %p267 = scmp.ne.s32.totalorder %s255, %s256
    %p268 = scmp.eq.s32.totalorder %s36, 1
    %p269 = por %p267, %p268
    %p271 = scmp.ne.s32.totalorder %s256, %s270
    %p272 = scmp.eq.s32.totalorder %s36, 0
    %p273 = por %p271, %p272
    %s275 = sadd.s32 %s274, 1
    %p278 = scmp.eq.s32.totalorder %s30, 1
    %p279 = scmp.ne.s32.totalorder %s274, %s276
    %p280 = scmp.eq.s32.totalorder %s30, 0
    %p281 = por %p279, %p280
    %p282 = scmp.ne.s32.totalorder %s274, %s276
    %p283 = scmp.eq.s32.totalorder %s35, 1
    %p284 = por %p282, %p283
    %p285 = scmp.ne.s32.totalorder %s276, %s277
    %p286 = scmp.eq.s32.totalorder %s35, 0
    %p287 = por %p285, %p286
    %p288 = scmp.ne.s32.totalorder %s276, %s277
    %p289 = scmp.eq.s32.totalorder %s36, 1
    %p290 = por %p288, %p289
    %p292 = scmp.ne.s32.totalorder %s277, %s291
    %p293 = scmp.eq.s32.totalorder %s36, 0
    %p294 = por %p292, %p293
    %s296 = sadd.s32 %s295, 1
    %p299 = scmp.eq.s32.totalorder %s30, 1
    %p300 = scmp.ne.s32.totalorder %s295, %s297
    %p301 = scmp.eq.s32.totalorder %s30, 0
    %p302 = por %p300, %p301
    %p303 = scmp.ne.s32.totalorder %s295, %s297
    %p304 = scmp.eq.s32.totalorder %s35, 1
    %p305 = por %p303, %p304
    %p306 = scmp.ne.s32.totalorder %s297, %s298
    %p307 = scmp.eq.s32.totalorder %s35, 0
    %p308 = por %p306, %p307
    %p309 = scmp.ne.s32.totalorder %s297, %s298
    %p310 = scmp.eq.s32.totalorder %s36, 1
    %p311 = por %p309, %p310
    %p313 = scmp.ne.s32.totalorder %s298, %s312
    %p314 = scmp.eq.s32.totalorder %s36, 0
    %p315 = por %p313, %p314
    %s317 = sadd.s32 %s316, 1
    %p320 = scmp.eq.s32.totalorder %s30, 1
    %p321 = scmp.ne.s32.totalorder %s316, %s318
    %p322 = scmp.eq.s32.totalorder %s30, 0
    %p323 = por %p321, %p322
    %p324 = scmp.ne.s32.totalorder %s316, %s318
    %p325 = scmp.eq.s32.totalorder %s35, 1
    %p326 = por %p324, %p325
    %p327 = scmp.ne.s32.totalorder %s318, %s319
    %p328 = scmp.eq.s32.totalorder %s35, 0
    %p329 = por %p327, %p328
    %p330 = scmp.ne.s32.totalorder %s318, %s319
    %p331 = scmp.eq.s32.totalorder %s36, 1
    %p332 = por %p330, %p331
    %p334 = scmp.ne.s32.totalorder %s319, %s333
    %p335 = scmp.eq.s32.totalorder %s36, 0
    %p336 = por %p334, %p335
    %s338 = sadd.s32 %s337, 1
    %p341 = scmp.eq.s32.totalorder %s30, 1
    %p342 = scmp.ne.s32.totalorder %s337, %s339
    %p343 = scmp.eq.s32.totalorder %s30, 0
    %p344 = por %p342, %p343
    %p345 = scmp.ne.s32.totalorder %s337, %s339
    %p346 = scmp.eq.s32.totalorder %s35, 1
    %p347 = por %p345, %p346
    %p348 = scmp.ne.s32.totalorder %s339, %s340
    %p349 = scmp.eq.s32.totalorder %s35, 0
    %p350 = por %p348, %p349
    %p351 = scmp.ne.s32.totalorder %s339, %s340
    %p352 = scmp.eq.s32.totalorder %s36, 1
    %p353 = por %p351, %p352
    %p355 = scmp.ne.s32.totalorder %s340, %s354
    %p356 = scmp.eq.s32.totalorder %s36, 0
    %p357 = por %p355, %p356
    %s359 = sadd.s32 %s358, 1
    %p362 = scmp.eq.s32.totalorder %s30, 1
    %p363 = scmp.ne.s32.totalorder %s358, %s360
    %p364 = scmp.eq.s32.totalorder %s30, 0
    %p365 = por %p363, %p364
    %p366 = scmp.ne.s32.totalorder %s358, %s360
    %p367 = scmp.eq.s32.totalorder %s35, 1
    %p368 = por %p366, %p367
    %p369 = scmp.ne.s32.totalorder %s360, %s361
    %p370 = scmp.eq.s32.totalorder %s35, 0
    %p371 = por %p369, %p370
    %p372 = scmp.ne.s32.totalorder %s360, %s361
    %p373 = scmp.eq.s32.totalorder %s36, 1
    %p374 = por %p372, %p373
    %p376 = scmp.ne.s32.totalorder %s361, %s375
    %p377 = scmp.eq.s32.totalorder %s36, 0
    %p378 = por %p376, %p377
    %s380 = sadd.s32 %s379, 1
    %p383 = scmp.eq.s32.totalorder %s30, 1
    %p384 = scmp.ne.s32.totalorder %s379, %s381
    %p385 = scmp.eq.s32.totalorder %s30, 0
    %p386 = por %p384, %p385
    %p387 = scmp.ne.s32.totalorder %s379, %s381
    %p388 = scmp.eq.s32.totalorder %s35, 1
    %p389 = por %p387, %p388
    %p390 = scmp.ne.s32.totalorder %s381, %s382
    %p391 = scmp.eq.s32.totalorder %s35, 0
    %p392 = por %p390, %p391
    %p393 = scmp.ne.s32.totalorder %s381, %s382
    %p394 = scmp.eq.s32.totalorder %s36, 1
    %p395 = por %p393, %p394
    %p397 = scmp.ne.s32.totalorder %s382, %s396
    %p398 = scmp.eq.s32.totalorder %s36, 0
    %p399 = por %p397, %p398
    %s401 = sadd.s32 %s400, 1
    %p404 = scmp.eq.s32.totalorder %s30, 1
    %p405 = scmp.ne.s32.totalorder %s400, %s402
    %p406 = scmp.eq.s32.totalorder %s30, 0
    %p407 = por %p405, %p406
    %p408 = scmp.ne.s32.totalorder %s400, %s402
    %p409 = scmp.eq.s32.totalorder %s35, 1
    %p410 = por %p408, %p409
    %p411 = scmp.ne.s32.totalorder %s402, %s403
    %p412 = scmp.eq.s32.totalorder %s35, 0
    %p413 = por %p411, %p412
    %p414 = scmp.ne.s32.totalorder %s402, %s403
    %p415 = scmp.eq.s32.totalorder %s36, 1
    %p416 = por %p414, %p415
    %p418 = scmp.ne.s32.totalorder %s403, %s417
    %p419 = scmp.eq.s32.totalorder %s36, 0
    %p420 = por %p418, %p419
    %s422 = sadd.s32 %s421, 1
    %p425 = scmp.eq.s32.totalorder %s30, 1
    %p426 = scmp.ne.s32.totalorder %s421, %s423
    %p427 = scmp.eq.s32.totalorder %s30, 0
    %p428 = por %p426, %p427
    %p429 = scmp.ne.s32.totalorder %s421, %s423
    %p430 = scmp.eq.s32.totalorder %s35, 1
    %p431 = por %p429, %p430
    %p432 = scmp.ne.s32.totalorder %s423, %s424
    %p433 = scmp.eq.s32.totalorder %s35, 0
    %p434 = por %p432, %p433
    %p435 = scmp.ne.s32.totalorder %s423, %s424
    %p436 = scmp.eq.s32.totalorder %s36, 1
    %p437 = por %p435, %p436
    %p439 = scmp.ne.s32.totalorder %s424, %s438
    %p440 = scmp.eq.s32.totalorder %s36, 0
    %p441 = por %p439, %p440
    %s443 = sadd.s32 %s442, 1
    %p446 = scmp.eq.s32.totalorder %s30, 1
    %p447 = scmp.ne.s32.totalorder %s442, %s444
    %p448 = scmp.eq.s32.totalorder %s30, 0
    %p449 = por %p447, %p448
    %p450 = scmp.ne.s32.totalorder %s442, %s444
    %p451 = scmp.eq.s32.totalorder %s35, 1
    %p452 = por %p450, %p451
    %p453 = scmp.ne.s32.totalorder %s444, %s445
    %p454 = scmp.eq.s32.totalorder %s35, 0
    %p455 = por %p453, %p454
    %p456 = scmp.ne.s32.totalorder %s444, %s445
    %p457 = scmp.eq.s32.totalorder %s36, 1
    %p458 = por %p456, %p457
    %p460 = scmp.ne.s32.totalorder %s445, %s459
    %p461 = scmp.eq.s32.totalorder %s36, 0
    %p462 = por %p460, %p461
    %s464 = sadd.s32 %s463, 1
    %p467 = scmp.eq.s32.totalorder %s30, 1
    %p468 = scmp.ne.s32.totalorder %s463, %s465
    %p469 = scmp.eq.s32.totalorder %s30, 0
    %p470 = por %p468, %p469
    %p471 = scmp.ne.s32.totalorder %s463, %s465
    %p472 = scmp.eq.s32.totalorder %s35, 1
    %p473 = por %p471, %p472
    %p474 = scmp.ne.s32.totalorder %s465, %s466
    %p475 = scmp.eq.s32.totalorder %s35, 0
    %p476 = por %p474, %p475
    %p477 = scmp.ne.s32.totalorder %s465, %s466
    %p478 = scmp.eq.s32.totalorder %s36, 1
    %p479 = por %p477, %p478
    %p481 = scmp.ne.s32.totalorder %s466, %s480
    %p482 = scmp.eq.s32.totalorder %s36, 0
    %p483 = por %p481, %p482
    %s485 = sadd.s32 %s484, 1
    %p488 = scmp.eq.s32.totalorder %s30, 1
    %p489 = scmp.ne.s32.totalorder %s484, %s486
    %p490 = scmp.eq.s32.totalorder %s30, 0
    %p491 = por %p489, %p490
    %p492 = scmp.ne.s32.totalorder %s484, %s486
    %p493 = scmp.eq.s32.totalorder %s35, 1
    %p494 = por %p492, %p493
    %p495 = scmp.ne.s32.totalorder %s486, %s487
    %p496 = scmp.eq.s32.totalorder %s35, 0
    %p497 = por %p495, %p496
    %p498 = scmp.ne.s32.totalorder %s486, %s487
    %p499 = scmp.eq.s32.totalorder %s36, 1
    %p500 = por %p498, %p499
    %p502 = scmp.ne.s32.totalorder %s487, %s501
    %p503 = scmp.eq.s32.totalorder %s36, 0
    %p504 = por %p502, %p503
    %s505 = ssub.s32 %s30, %s37
    %p506 = scmp.eq.s32.totalorder %s505, 0
    %s508 = sadd.s32 %s507, 1
    %s509 = scalar_select %p506, %s507, %s508
    %p512 = pneg %p506
    %p513 = scmp.eq.s32.totalorder %s30, 1
    %p514 = por %p512, %p513
    %p515 = scmp.ne.s32.totalorder %s507, %s510
    %p516 = scmp.eq.s32.totalorder %s30, 0
    %p517 = por %p515, %p516
    %p518 = scmp.ne.s32.totalorder %s507, %s510
    %p519 = scmp.eq.s32.totalorder %s35, 1
    %p520 = por %p518, %p519
    %p521 = scmp.ne.s32.totalorder %s510, %s511
    %p522 = scmp.eq.s32.totalorder %s35, 0
    %p523 = por %p521, %p522
    %p524 = scmp.ne.s32.totalorder %s510, %s511
    %p525 = scmp.eq.s32.totalorder %s36, 1
    %p526 = por %p524, %p525
    %p528 = scmp.ne.s32.totalorder %s511, %s527
    %p529 = scmp.eq.s32.totalorder %s36, 0
    %p530 = por %p528, %p529
    %p531 = scmp.le.s32.totalorder 1, %s30
    %p532 = scmp.lt.s32.totalorder %s30, 3
    %p533 = pnand %p531, %p532
    %p534 = pneg %p533
    // Predicated region
    $region9: #{discriminator_forward.1} parent=5 // pred_check
      _
    $region10: #{discriminator_forward.1} parent=5 // pred_check_branch
      %536 = sbr.rel (%p533) target = $region12
    $region11: #{discriminator_forward.1} parent=5 // pred_region
      %s537 = ssub.s32 %s30, 1
      // Predicated region
      $region13: #{discriminator_forward.1} parent=11 // pred_check
        %p538 = pneg %p77
      $region14: #{discriminator_forward.1} parent=11 // pred_check_branch
        %540 = sbr.rel (%p538) target = $region16
      $region15: #{discriminator_forward.1} parent=11 // pred_region
        _
      $region16: #{discriminator_forward.1} parent=11 // pred_fallthru
        _
      // Predicated region
      $region17: #{discriminator_forward.1} parent=11 // pred_check
        %p541 = pneg %p98
      $region18: #{discriminator_forward.1} parent=11 // pred_check_branch
        %543 = sbr.rel (%p541) target = $region20
      $region19: #{discriminator_forward.1} parent=11 // pred_region
        _
      $region20: #{discriminator_forward.1} parent=11 // pred_fallthru
        _
      // Predicated region
      $region21: #{discriminator_forward.1} parent=11 // pred_check
        %p544 = pneg %p119
      $region22: #{discriminator_forward.1} parent=11 // pred_check_branch
        %546 = sbr.rel (%p544) target = $region24
      $region23: #{discriminator_forward.1} parent=11 // pred_region
        _
      $region24: #{discriminator_forward.1} parent=11 // pred_fallthru
        _
      // Predicated region
      $region25: #{discriminator_forward.1} parent=11 // pred_check
        %p547 = pneg %p140
      $region26: #{discriminator_forward.1} parent=11 // pred_check_branch
        %549 = sbr.rel (%p547) target = $region28
      $region27: #{discriminator_forward.1} parent=11 // pred_region
        _
      $region28: #{discriminator_forward.1} parent=11 // pred_fallthru
        _
      // Predicated region
      $region29: #{discriminator_forward.1} parent=11 // pred_check
        %p550 = pneg %p161
      $region30: #{discriminator_forward.1} parent=11 // pred_check_branch
        %552 = sbr.rel (%p550) target = $region32
      $region31: #{discriminator_forward.1} parent=11 // pred_region
        _
      $region32: #{discriminator_forward.1} parent=11 // pred_fallthru
        _
      // Predicated region
      $region33: #{discriminator_forward.1} parent=11 // pred_check
        %p553 = pneg %p182
      $region34: #{discriminator_forward.1} parent=11 // pred_check_branch
        %555 = sbr.rel (%p553) target = $region36
      $region35: #{discriminator_forward.1} parent=11 // pred_region
        _
      $region36: #{discriminator_forward.1} parent=11 // pred_fallthru
        _
      // Predicated region
      $region37: #{discriminator_forward.1} parent=11 // pred_check
        %p556 = pneg %p203
      $region38: #{discriminator_forward.1} parent=11 // pred_check_branch
        %558 = sbr.rel (%p556) target = $region40
      $region39: #{discriminator_forward.1} parent=11 // pred_region
        _
      $region40: #{discriminator_forward.1} parent=11 // pred_fallthru
        _
      // Predicated region
      $region41: #{discriminator_forward.1} parent=11 // pred_check
        %p559 = pneg %p224
      $region42: #{discriminator_forward.1} parent=11 // pred_check_branch
        %561 = sbr.rel (%p559) target = $region44
      $region43: #{discriminator_forward.1} parent=11 // pred_region
        _
      $region44: #{discriminator_forward.1} parent=11 // pred_fallthru
        _
      // Predicated region
      $region45: #{discriminator_forward.1} parent=11 // pred_check
        %p562 = pneg %p245
      $region46: #{discriminator_forward.1} parent=11 // pred_check_branch
        %564 = sbr.rel (%p562) target = $region48
      $region47: #{discriminator_forward.1} parent=11 // pred_region
        _
      $region48: #{discriminator_forward.1} parent=11 // pred_fallthru
        _
      // Predicated region
      $region49: #{discriminator_forward.1} parent=11 // pred_check
        %p565 = pneg %p266
      $region50: #{discriminator_forward.1} parent=11 // pred_check_branch
        %567 = sbr.rel (%p565) target = $region52
      $region51: #{discriminator_forward.1} parent=11 // pred_region
        _
      $region52: #{discriminator_forward.1} parent=11 // pred_fallthru
        _
      // Predicated region
      $region53: #{discriminator_forward.1} parent=11 // pred_check
        %p568 = pneg %p287
      $region54: #{discriminator_forward.1} parent=11 // pred_check_branch
        %570 = sbr.rel (%p568) target = $region56
      $region55: #{discriminator_forward.1} parent=11 // pred_region
        _
      $region56: #{discriminator_forward.1} parent=11 // pred_fallthru
        _
      // Predicated region
      $region57: #{discriminator_forward.1} parent=11 // pred_check
        %p571 = pneg %p308
      $region58: #{discriminator_forward.1} parent=11 // pred_check_branch
        %573 = sbr.rel (%p571) target = $region60
      $region59: #{discriminator_forward.1} parent=11 // pred_region
        _
      $region60: #{discriminator_forward.1} parent=11 // pred_fallthru
        _
      // Predicated region
      $region61: #{discriminator_forward.1} parent=11 // pred_check
        %p574 = pneg %p329
      $region62: #{discriminator_forward.1} parent=11 // pred_check_branch
        %576 = sbr.rel (%p574) target = $region64
      $region63: #{discriminator_forward.1} parent=11 // pred_region
        _
      $region64: #{discriminator_forward.1} parent=11 // pred_fallthru
        _
      // Predicated region
      $region65: #{discriminator_forward.1} parent=11 // pred_check
        %p577 = pneg %p350
      $region66: #{discriminator_forward.1} parent=11 // pred_check_branch
        %579 = sbr.rel (%p577) target = $region68
      $region67: #{discriminator_forward.1} parent=11 // pred_region
        _
      $region68: #{discriminator_forward.1} parent=11 // pred_fallthru
        _
      // Predicated region
      $region69: #{discriminator_forward.1} parent=11 // pred_check
        %p580 = pneg %p371
      $region70: #{discriminator_forward.1} parent=11 // pred_check_branch
        %582 = sbr.rel (%p580) target = $region72
      $region71: #{discriminator_forward.1} parent=11 // pred_region
        _
      $region72: #{discriminator_forward.1} parent=11 // pred_fallthru
        _
      // Predicated region
      $region73: #{discriminator_forward.1} parent=11 // pred_check
        %p583 = pneg %p392
      $region74: #{discriminator_forward.1} parent=11 // pred_check_branch
        %585 = sbr.rel (%p583) target = $region76
      $region75: #{discriminator_forward.1} parent=11 // pred_region
        _
      $region76: #{discriminator_forward.1} parent=11 // pred_fallthru
        _
      // Predicated region
      $region77: #{discriminator_forward.1} parent=11 // pred_check
        %p586 = pneg %p413
      $region78: #{discriminator_forward.1} parent=11 // pred_check_branch
        %588 = sbr.rel (%p586) target = $region80
      $region79: #{discriminator_forward.1} parent=11 // pred_region
        _
      $region80: #{discriminator_forward.1} parent=11 // pred_fallthru
        _
      // Predicated region
      $region81: #{discriminator_forward.1} parent=11 // pred_check
        %p589 = pneg %p434
      $region82: #{discriminator_forward.1} parent=11 // pred_check_branch
        %591 = sbr.rel (%p589) target = $region84
      $region83: #{discriminator_forward.1} parent=11 // pred_region
        _
      $region84: #{discriminator_forward.1} parent=11 // pred_fallthru
        _
      // Predicated region
      $region85: #{discriminator_forward.1} parent=11 // pred_check
        %p592 = pneg %p455
      $region86: #{discriminator_forward.1} parent=11 // pred_check_branch
        %594 = sbr.rel (%p592) target = $region88
      $region87: #{discriminator_forward.1} parent=11 // pred_region
        _
      $region88: #{discriminator_forward.1} parent=11 // pred_fallthru
        _
      // Predicated region
      $region89: #{discriminator_forward.1} parent=11 // pred_check
        %p595 = pneg %p476
      $region90: #{discriminator_forward.1} parent=11 // pred_check_branch
        %597 = sbr.rel (%p595) target = $region92
      $region91: #{discriminator_forward.1} parent=11 // pred_region
        _
      $region92: #{discriminator_forward.1} parent=11 // pred_fallthru
        _
      // Predicated region
      $region93: #{discriminator_forward.1} parent=11 // pred_check
        %p598 = pneg %p497
      $region94: #{discriminator_forward.1} parent=11 // pred_check_branch
        %600 = sbr.rel (%p598) target = $region96
      $region95: #{discriminator_forward.1} parent=11 // pred_region
        _
      $region96: #{discriminator_forward.1} parent=11 // pred_fallthru
        _
    $region12: #{discriminator_forward.1} parent=5 // pred_fallthru
      _
    %p601 = scmp.lt.s32.totalorder %s30, 2
    // Predicated region
    $region97: #{discriminator_forward.1} parent=5 // pred_check
      %p602 = pneg %p601
    $region98: #{discriminator_forward.1} parent=5 // pred_check_branch
      %604 = sbr.rel (%p602) target = $region100
    $region99: #{discriminator_forward.1} parent=5 // pred_region
      // Predicated region
      $region101: #{discriminator_forward.1} parent=99 // pred_check
        %p605 = pneg %p50
      $region102: #{discriminator_forward.1} parent=99 // pred_check_branch
        %607 = sbr.rel (%p605) target = $region104
      $region103: #{discriminator_forward.1} parent=99 // pred_region
        %p608 = scmp.lt.s32.totalorder %s30, 1
        %s609 = scalar_select %p608, %s30, 1
        %s610 = smul.addr %s609, 516
        %s611 = smul.addr %s610, 8
        %s612 = scalar_lea.vmem %s0, %s611
      $region104: #{discriminator_forward.1} parent=99 // pred_fallthru
        _
    $region100: #{discriminator_forward.1} parent=5 // pred_fallthru
      _
    %p613 = scmp.le.s32.totalorder 1, %s30
    %p614 = scmp.lt.s32.totalorder %s30, 3
    %p615 = pnand %p613, %p614
    %p616 = pneg %p615
    // Predicated region
    $region105: #{discriminator_forward.1} parent=5 // pred_check
      _
    $region106: #{discriminator_forward.1} parent=5 // pred_check_branch
      %618 = sbr.rel (%p615) target = $region108
    $region107: #{discriminator_forward.1} parent=5 // pred_region
      %s619 = ssub.s32 %s30, 1
      %p620 = scmp.lt.s32.totalorder %s35, 1
      %s621 = scalar_select %p620, %s35, 1
      %s622 = smul.addr %s621, 516
      %s623 = smul.addr %s622, 8
      %s624 = scalar_lea.vmem %s0, %s623
      %p625 = pneg %p56
      %p626 = pneg %p53
      %p627 = pneg %p77
      %p628 = pneg %p74
      %p629 = pneg %p98
      %p630 = pneg %p95
      %p631 = pneg %p119
      %p632 = pneg %p116
      %p633 = pneg %p140
      %p634 = pneg %p137
      %p635 = pneg %p161
      %p636 = pneg %p158
      %p637 = pneg %p182
      %p638 = pneg %p179
      %p639 = pneg %p203
      %p640 = pneg %p200
      %p641 = pneg %p224
      %p642 = pneg %p221
      %p643 = pneg %p245
      %p644 = pneg %p242
      %p645 = pneg %p266
      %p646 = pneg %p263
      %p647 = pneg %p287
      %p648 = pneg %p284
      %p649 = pneg %p308
      %p650 = pneg %p305
      %p651 = pneg %p329
      %p652 = pneg %p326
      %p653 = pneg %p350
      %p654 = pneg %p347
      %p655 = pneg %p371
      %p656 = pneg %p368
      %p657 = pneg %p392
      %p658 = pneg %p389
      %p659 = pneg %p413
      %p660 = pneg %p410
      %p661 = pneg %p434
      %p662 = pneg %p431
      %p663 = pneg %p455
      %p664 = pneg %p452
      %p665 = pneg %p476
      %p666 = pneg %p473
      %p667 = pneg %p497
      %p668 = pneg %p494
      %p669 = pneg %p523
      %p670 = pneg %p520
      %p671 = scmp.lt.s32.totalorder %s35, 1
      %s672 = scalar_select %p671, %s35, 1
      %s673 = smul.addr %s672, 8
      %s674 = scalar_lea.vmem %s22, %s673
      %p675 = scmp.lt.s32.totalorder %s35, 1
      %s676 = scalar_select %p675, %s35, 1
      %s677 = smul.addr %s676, 516
      %s678 = smul.addr %s677, 8
      %s679 = scalar_lea.vmem %s0, %s678
      %p680 = scmp.lt.s32.totalorder %s35, 1
      %s681 = scalar_select %p680, %s35, 1
      %s682 = smul.addr %s681, 8
      %s683 = scalar_lea.vmem %s22, %s682
      %vm684 = vcmask 531456
      %685 = vst.msk [vmem:[#allocation2] sm:$0xff] %vm684, 0.0
      %686 = vst.msk [vmem:[#allocation2 + $0x8] sm:$0xff] %vm684, 0.0
      %687 = vst.msk [vmem:[#allocation2 + $0x10] sm:$0xff] %vm684, 0.0
      %688 = vst.msk [vmem:[#allocation2 + $0x18] sm:$0xff] %vm684, 0.0
      loop: start=0, step=1, limit=64
      $region109: #{discriminator_forward.1} parent=107 // loop_pre_header
        _
      $region110: #{discriminator_forward.1} parent=107 // loop_header
        %s690 = sphi 0, %s694
        %p691 = scmp.ge.s32.totalorder %s690, 64
      $region111: #{discriminator_forward.1} parent=107 // loop_header_branch
        %693 = sbr.rel (%p691) target = $region115
      $region112: #{discriminator_forward.1} parent=107 // loop_body
        %s695 = smul.u32 %s690, 2
        %s696 = smul.u32 %s695, 4
        %s697 = smul.addr %s696, 8
        %s698 = scalar_lea.vmem %s679, %s697
        %v699 = vld [vmem:[%s698] sm:$0xff]
        %v700 = vld [vmem:[%s698 + $0x8] sm:$0xff]
        %v701 = vld [vmem:[%s698 + $0x10] sm:$0xff]
        %v702 = vld [vmem:[%s698 + $0x18] sm:$0xff]
        %s703 = sadd.s32 %s695, 1
        %s704 = smul.u32 %s703, 4
        %s705 = smul.addr %s704, 8
        %s706 = scalar_lea.vmem %s679, %s705
        %v707 = vld [vmem:[%s706] sm:$0xff]
        %v708 = vld [vmem:[%s706 + $0x8] sm:$0xff]
        %v709 = vld [vmem:[%s706 + $0x10] sm:$0xff]
        %v710 = vld [vmem:[%s706 + $0x18] sm:$0xff]
        %s711 = sadd.s32 %s695, 2
        %s712 = smul.u32 %s711, 4
        %s713 = smul.addr %s712, 8
        %s714 = scalar_lea.vmem %s679, %s713
        %v715 = vld [vmem:[%s714] sm:$0xff]
        %v716 = vld [vmem:[%s714 + $0x8] sm:$0xff]
        %v717 = vld [vmem:[%s714 + $0x10] sm:$0xff]
        %v718 = vld [vmem:[%s714 + $0x18] sm:$0xff]
        %723 = vrot.lane.b32.xlu0 %v699, 127
        %v724 = vpop.permute.xlu0 %723
        %725 = vrot.lane.b32.xlu0 %v700, 127
        %v726 = vpop.permute.xlu0 %725
        %727 = vrot.lane.b32.xlu0 %v701, 127
        %v728 = vpop.permute.xlu0 %727
        %729 = vrot.lane.b32.xlu0 %v702, 127
        %v730 = vpop.permute.xlu0 %729
        %vm731 = vcmask 1039360
        %v732 = vsel %vm731, %v724, %v726
        %v733 = vsel %vm731, %v728, %v730
        %740 = vrot.lane.b32.xlu0 %v707, 127
        %v741 = vpop.permute.xlu0 %740
        %742 = vrot.lane.b32.xlu0 %v708, 127
        %v743 = vpop.permute.xlu0 %742
        %744 = vrot.lane.b32.xlu0 %v709, 127
        %v745 = vpop.permute.xlu0 %744
        %746 = vrot.lane.b32.xlu0 %v710, 127
        %v747 = vpop.permute.xlu0 %746
        %v748 = vsel %vm731, %v741, %v743
        %v749 = vsel %vm731, %v745, %v747
        %v752 = vld [vmem:[%s1] sm:$0xff]
        %v753 = vld [vmem:[%s7] sm:$0xff]
        %755 = vset.pattern.permute.xlu0 0
        %756 = vperm.xlu0 %755, %v753
        %v757 = vpop.permute.xlu0 %756
        %vm759 = vcmask 523264
        %v761 = vsel %vm759, %v752, 0
        %763 = vmatprep.subr.mxu0 0.0
        %764 = vmatpush1.msra.mxu0 %v699
        %765 = vmatprep.subr.mxu0 0.0
        %766 = vmatpush1.msra.mxu0 %v701
        %767 = vmatprep.subr.mxu0 0.0
        %768 = vmatpush1.msra.mxu0 %v732
        %769 = vmatprep.subr.mxu0 0.0
        %770 = vmatpush1.msra.mxu0 %v733
        %771 = vmatprep.subr.mxu0 0.0
        %772 = vmatpush1.msra.mxu0 %v707
        %773 = vmatprep.subr.mxu0 0.0
        %774 = vmatpush1.msra.mxu0 %v709
        %775 = vmatprep.subr.mxu0 0.0
        %776 = vmatpush1.msra.mxu0 %v748
        %777 = vmatprep.subr.mxu0 0.0
        %778 = vmatpush1.msra.mxu0 %v749
        %779 = vmatprep.subr.mxu0 0.0
        %780 = vmatpush1.msra.mxu0 0.0
        %781 = vmatprep.subr.mxu0 0.0
        %782 = vmatpush1.msra.mxu0 0.0
        %783 = vmatprep.subr.mxu0 0.0
        %784 = vmatpush1.msra.mxu0 0.0
        %785 = vmatprep.subr.mxu0 0.0
        %786 = vmatpush1.msra.mxu0 0.0
        %787 = vmatprep.subr.mxu0 0.0
        %788 = vmatpush1.msra.mxu0 0.0
        %789 = vmatprep.subr.mxu0 0.0
        %790 = vmatpush1.msra.mxu0 0.0
        %791 = vmatprep.subr.mxu0 0.0
        %792 = vmatpush1.msra.mxu0 0.0
        %793 = vmatprep.subr.mxu0 0.0
        %794 = vmatpush1.msra.mxu0 0.0
        %795 = vmatprep.subr.mxu0 0.0
        %796 = vmatpush1.msra.mxu0 0.0
        %797 = vmatprep.subr.mxu0 0.0
        %798 = vmatpush1.msra.mxu0 0.0
        %799 = vmatprep.subr.mxu0 0.0
        %800 = vmatpush1.msra.mxu0 0.0
        %801 = vmatprep.subr.mxu0 0.0
        %802 = vmatpush1.msra.mxu0 0.0
        %803 = vmatprep.subr.mxu0 0.0
        %804 = vmatpush1.msra.mxu0 0.0
        %805 = vmatprep.subr.mxu0 0.0
        %806 = vmatpush1.msra.mxu0 0.0
        %807 = vmatprep.subr.mxu0 0.0
        %808 = vmatpush1.msra.mxu0 0.0
        %809 = vmatprep.subr.mxu0 0.0
        %810 = vmatpush1.msra.mxu0 0.0
        %811 = vmatprep.subr.mxu0 0.0
        %812 = vmatpush1.msra.mxu0 0.0
        %813 = vmatprep.subr.mxu0 0.0
        %814 = vmatpush1.msra.mxu0 0.0
        %815 = vmatprep.subr.mxu0 0.0
        %816 = vmatpush1.msra.mxu0 0.0
        %817 = vmatprep.subr.mxu0 0.0
        %818 = vmatpush1.msra.mxu0 0.0
        %819 = vmatprep.subr.mxu0 0.0
        %820 = vmatpush1.msra.mxu0 0.0
        %821 = vmatprep.subr.mxu0 0.0
        %822 = vmatpush1.msra.mxu0 0.0
        %823 = vmatprep.subr.mxu0 0.0
        %824 = vmatpush1.msra.mxu0 0.0
        %825 = vmatprep.subr.mxu0 0.0
        %826 = vmatpush1.msra.mxu0 0.0
        %827 = vmatprep.mubr.f32.mxu0 0.0
        %828 = vmatmul.mubr.f32.gmra.mrb[0].mxu0 %v761
        %v829 = vpop.f32.mrb[0].mxu0
        %v830 = vadd.f32 %v757, %v829
        %v831 = vpop.f32.mrb[0].mxu0
        %832 = vdwg.mxu0
        %vm833 = vcmp.ge.f32.partialorder %v830, 0.0
        %v834 = vmul.f32 %v830, 0.2
        %v835 = vsel %vm833, %v830, %v834
        %v836 = vld [vmem:[%s13] sm:$0xff]
        %v837 = vld [vmem:[%s13 + $0x8] sm:$0xff]
        %v838 = vld [vmem:[%s13 + $0x10] sm:$0xff]
        %v839 = vld [vmem:[%s13 + $0x18] sm:$0xff]
        %v840 = vld [vmem:[%s13 + $0x20] sm:$0xff]
        %v841 = vld [vmem:[%s13 + $0x28] sm:$0xff]
        %v842 = vld [vmem:[%s13 + $0x30] sm:$0xff]
        %v843 = vld [vmem:[%s13 + $0x38] sm:$0xff]
        %v844 = vld [vmem:[%s13 + $0x40] sm:$0xff]
        %v845 = vld [vmem:[%s13 + $0x48] sm:$0xff]
        %v846 = vld [vmem:[%s13 + $0x50] sm:$0xff]
        %v847 = vld [vmem:[%s13 + $0x58] sm:$0xff]
        %v848 = vld [vmem:[%s13 + $0x60] sm:$0xff]
        %v849 = vld [vmem:[%s13 + $0x68] sm:$0xff]
        %v850 = vld [vmem:[%s13 + $0x70] sm:$0xff]
        %v851 = vld [vmem:[%s13 + $0x78] sm:$0xff]
        %v852 = vld [vmem:[%s13 + $0x80] sm:$0xff]
        %v853 = vld [vmem:[%s13 + $0x88] sm:$0xff]
        %v854 = vld [vmem:[%s13 + $0x90] sm:$0xff]
        %v855 = vld [vmem:[%s13 + $0x98] sm:$0xff]
        %v856 = vld [vmem:[%s13 + $0xa0] sm:$0xff]
        %v857 = vld [vmem:[%s13 + $0xa8] sm:$0xff]
        %v858 = vld [vmem:[%s13 + $0xb0] sm:$0xff]
        %v859 = vld [vmem:[%s13 + $0xb8] sm:$0xff]
        %v860 = vld [vmem:[%s13 + $0xc0] sm:$0xff]
        %v861 = vld [vmem:[%s13 + $0xc8] sm:$0xff]
        %v862 = vld [vmem:[%s13 + $0xd0] sm:$0xff]
        %v863 = vld [vmem:[%s13 + $0xd8] sm:$0xff]
        %v864 = vld [vmem:[%s13 + $0xe0] sm:$0xff]
        %v865 = vld [vmem:[%s13 + $0xe8] sm:$0xff]
        %v866 = vld [vmem:[%s13 + $0xf0] sm:$0xff]
        %v867 = vld [vmem:[%s13 + $0xf8] sm:$0xff]
        %868 = vmatprep.subr.mxu0 %v837
        %869 = vmatpush1.msra.mxu0 %v836
        %870 = vmatprep.subr.mxu0 %v839
        %871 = vmatpush1.msra.mxu0 %v838
        %872 = vmatprep.subr.mxu0 %v841
        %873 = vmatpush1.msra.mxu0 %v840
        %874 = vmatprep.subr.mxu0 %v843
        %875 = vmatpush1.msra.mxu0 %v842
        %876 = vmatprep.subr.mxu0 %v845
        %877 = vmatpush1.msra.mxu0 %v844
        %878 = vmatprep.subr.mxu0 %v847
        %879 = vmatpush1.msra.mxu0 %v846
        %880 = vmatprep.subr.mxu0 %v849
        %881 = vmatpush1.msra.mxu0 %v848
        %882 = vmatprep.subr.mxu0 %v851
        %883 = vmatpush1.msra.mxu0 %v850
        %884 = vmatprep.subr.mxu0 %v853
        %885 = vmatpush1.msra.mxu0 %v852
        %886 = vmatprep.subr.mxu0 %v855
        %887 = vmatpush1.msra.mxu0 %v854
        %888 = vmatprep.subr.mxu0 %v857
        %889 = vmatpush1.msra.mxu0 %v856
        %890 = vmatprep.subr.mxu0 %v859
        %891 = vmatpush1.msra.mxu0 %v858
        %892 = vmatprep.subr.mxu0 %v861
        %893 = vmatpush1.msra.mxu0 %v860
        %894 = vmatprep.subr.mxu0 %v863
        %895 = vmatpush1.msra.mxu0 %v862
        %896 = vmatprep.subr.mxu0 %v865
        %897 = vmatpush1.msra.mxu0 %v864
        %898 = vmatprep.subr.mxu0 %v867
        %899 = vmatpush1.msra.mxu0 %v866
        %900 = vmatprep.subr.mxu0 0.0
        %901 = vmatpush1.msra.mxu0 0.0
        %902 = vmatprep.subr.mxu0 0.0
        %903 = vmatpush1.msra.mxu0 0.0
        %904 = vmatprep.subr.mxu0 0.0
        %905 = vmatpush1.msra.mxu0 0.0
        %906 = vmatprep.subr.mxu0 0.0
        %907 = vmatpush1.msra.mxu0 0.0
        %908 = vmatprep.subr.mxu0 0.0
        %909 = vmatpush1.msra.mxu0 0.0
        %910 = vmatprep.subr.mxu0 0.0
        %911 = vmatpush1.msra.mxu0 0.0
        %912 = vmatprep.subr.mxu0 0.0
        %913 = vmatpush1.msra.mxu0 0.0
        %914 = vmatprep.subr.mxu0 0.0
        %915 = vmatpush1.msra.mxu0 0.0
        %916 = vmatprep.subr.mxu0 0.0
        %917 = vmatpush1.msra.mxu0 0.0
        %918 = vmatprep.subr.mxu0 0.0
        %919 = vmatpush1.msra.mxu0 0.0
        %920 = vmatprep.subr.mxu0 0.0
        %921 = vmatpush1.msra.mxu0 0.0
        %922 = vmatprep.subr.mxu0 0.0
        %923 = vmatpush1.msra.mxu0 0.0
        %924 = vmatprep.subr.mxu0 0.0
        %925 = vmatpush1.msra.mxu0 0.0
        %926 = vmatprep.subr.mxu0 0.0
        %927 = vmatpush1.msra.mxu0 0.0
        %928 = vmatprep.subr.mxu0 0.0
        %929 = vmatpush1.msra.mxu0 0.0
        %930 = vmatprep.subr.mxu0 0.0
        %931 = vmatpush1.msra.mxu0 0.0
        %932 = vmatprep.mubr.f32.mxu0 0.0
        %933 = vmatmul.mubr.f32.gmra.mrb[0].mxu0 %v835
        %v934 = vpop.f32.mrb[0].mxu0
        %v935 = vadd.f32 0.0, %v934
        %v936 = vpop.f32.mrb[0].mxu0
        %v937 = vadd.f32 0.0, %v936
        %938 = vdwg.mxu0
        %943 = vrot.lane.b32.xlu0 %v715, 127
        %v944 = vpop.permute.xlu0 %943
        %945 = vrot.lane.b32.xlu0 %v716, 127
        %v946 = vpop.permute.xlu0 %945
        %947 = vrot.lane.b32.xlu0 %v717, 127
        %v948 = vpop.permute.xlu0 %947
        %949 = vrot.lane.b32.xlu0 %v718, 127
        %v950 = vpop.permute.xlu0 %949
        %v951 = vsel %vm731, %v944, %v946
        %v952 = vsel %vm731, %v948, %v950
        %955 = vmatprep.subr.mxu0 0.0
        %956 = vmatpush1.msra.mxu0 %v707
        %957 = vmatprep.subr.mxu0 0.0
        %958 = vmatpush1.msra.mxu0 %v709
        %959 = vmatprep.subr.mxu0 0.0
        %960 = vmatpush1.msra.mxu0 %v748
        %961 = vmatprep.subr.mxu0 0.0
        %962 = vmatpush1.msra.mxu0 %v749
        %963 = vmatprep.subr.mxu0 0.0
        %964 = vmatpush1.msra.mxu0 %v715
        %965 = vmatprep.subr.mxu0 0.0
        %966 = vmatpush1.msra.mxu0 %v717
        %967 = vmatprep.subr.mxu0 0.0
        %968 = vmatpush1.msra.mxu0 %v951
        %969 = vmatprep.subr.mxu0 0.0
        %970 = vmatpush1.msra.mxu0 %v952
        %971 = vmatprep.subr.mxu0 0.0
        %972 = vmatpush1.msra.mxu0 0.0
        %973 = vmatprep.subr.mxu0 0.0
        %974 = vmatpush1.msra.mxu0 0.0
        %975 = vmatprep.subr.mxu0 0.0
        %976 = vmatpush1.msra.mxu0 0.0
        %977 = vmatprep.subr.mxu0 0.0
        %978 = vmatpush1.msra.mxu0 0.0
        %979 = vmatprep.subr.mxu0 0.0
        %980 = vmatpush1.msra.mxu0 0.0
        %981 = vmatprep.subr.mxu0 0.0
        %982 = vmatpush1.msra.mxu0 0.0
        %983 = vmatprep.subr.mxu0 0.0
        %984 = vmatpush1.msra.mxu0 0.0
        %985 = vmatprep.subr.mxu0 0.0
        %986 = vmatpush1.msra.mxu0 0.0
        %987 = vmatprep.subr.mxu0 0.0
        %988 = vmatpush1.msra.mxu0 0.0
        %989 = vmatprep.subr.mxu0 0.0
        %990 = vmatpush1.msra.mxu0 0.0
        %991 = vmatprep.subr.mxu0 0.0
        %992 = vmatpush1.msra.mxu0 0.0
        %993 = vmatprep.subr.mxu0 0.0
        %994 = vmatpush1.msra.mxu0 0.0
        %995 = vmatprep.subr.mxu0 0.0
        %996 = vmatpush1.msra.mxu0 0.0
        %997 = vmatprep.subr.mxu0 0.0
        %998 = vmatpush1.msra.mxu0 0.0
        %999 = vmatprep.subr.mxu0 0.0
        %1000 = vmatpush1.msra.mxu0 0.0
        %1001 = vmatprep.subr.mxu0 0.0
        %1002 = vmatpush1.msra.mxu0 0.0
        %1003 = vmatprep.subr.mxu0 0.0
        %1004 = vmatpush1.msra.mxu0 0.0
        %1005 = vmatprep.subr.mxu0 0.0
        %1006 = vmatpush1.msra.mxu0 0.0
        %1007 = vmatprep.subr.mxu0 0.0
        %1008 = vmatpush1.msra.mxu0 0.0
        %1009 = vmatprep.subr.mxu0 0.0
        %1010 = vmatpush1.msra.mxu0 0.0
        %1011 = vmatprep.subr.mxu0 0.0
        %1012 = vmatpush1.msra.mxu0 0.0
        %1013 = vmatprep.subr.mxu0 0.0
        %1014 = vmatpush1.msra.mxu0 0.0
        %1015 = vmatprep.subr.mxu0 0.0
        %1016 = vmatpush1.msra.mxu0 0.0
        %1017 = vmatprep.subr.mxu0 0.0
        %1018 = vmatpush1.msra.mxu0 0.0
        %1019 = vmatprep.mubr.f32.mxu0 0.0
        %1020 = vmatmul.mubr.f32.gmra.mrb[0].mxu0 %v761
        %v1021 = vpop.f32.mrb[0].mxu0
        %v1022 = vadd.f32 %v757, %v1021
        %v1023 = vpop.f32.mrb[0].mxu0
        %1024 = vdwg.mxu0
        %vm1025 = vcmp.ge.f32.partialorder %v1022, 0.0
        %v1026 = vmul.f32 %v1022, 0.2
        %v1027 = vsel %vm1025, %v1022, %v1026
        %1028 = vmatprep.subr.mxu0 %v837
        %1029 = vmatpush1.msra.mxu0 %v836
        %1030 = vmatprep.subr.mxu0 %v839
        %1031 = vmatpush1.msra.mxu0 %v838
        %1032 = vmatprep.subr.mxu0 %v841
        %1033 = vmatpush1.msra.mxu0 %v840
        %1034 = vmatprep.subr.mxu0 %v843
        %1035 = vmatpush1.msra.mxu0 %v842
        %1036 = vmatprep.subr.mxu0 %v845
        %1037 = vmatpush1.msra.mxu0 %v844
        %1038 = vmatprep.subr.mxu0 %v847
        %1039 = vmatpush1.msra.mxu0 %v846
        %1040 = vmatprep.subr.mxu0 %v849
        %1041 = vmatpush1.msra.mxu0 %v848
        %1042 = vmatprep.subr.mxu0 %v851
        %1043 = vmatpush1.msra.mxu0 %v850
        %1044 = vmatprep.subr.mxu0 %v853
        %1045 = vmatpush1.msra.mxu0 %v852
        %1046 = vmatprep.subr.mxu0 %v855
        %1047 = vmatpush1.msra.mxu0 %v854
        %1048 = vmatprep.subr.mxu0 %v857
        %1049 = vmatpush1.msra.mxu0 %v856
        %1050 = vmatprep.subr.mxu0 %v859
        %1051 = vmatpush1.msra.mxu0 %v858
        %1052 = vmatprep.subr.mxu0 %v861
        %1053 = vmatpush1.msra.mxu0 %v860
        %1054 = vmatprep.subr.mxu0 %v863
        %1055 = vmatpush1.msra.mxu0 %v862
        %1056 = vmatprep.subr.mxu0 %v865
        %1057 = vmatpush1.msra.mxu0 %v864
        %1058 = vmatprep.subr.mxu0 %v867
        %1059 = vmatpush1.msra.mxu0 %v866
        %1060 = vmatprep.subr.mxu0 0.0
        %1061 = vmatpush1.msra.mxu0 0.0
        %1062 = vmatprep.subr.mxu0 0.0
        %1063 = vmatpush1.msra.mxu0 0.0
        %1064 = vmatprep.subr.mxu0 0.0
        %1065 = vmatpush1.msra.mxu0 0.0
        %1066 = vmatprep.subr.mxu0 0.0
        %1067 = vmatpush1.msra.mxu0 0.0
        %1068 = vmatprep.subr.mxu0 0.0
        %1069 = vmatpush1.msra.mxu0 0.0
        %1070 = vmatprep.subr.mxu0 0.0
        %1071 = vmatpush1.msra.mxu0 0.0
        %1072 = vmatprep.subr.mxu0 0.0
        %1073 = vmatpush1.msra.mxu0 0.0
        %1074 = vmatprep.subr.mxu0 0.0
        %1075 = vmatpush1.msra.mxu0 0.0
        %1076 = vmatprep.subr.mxu0 0.0
        %1077 = vmatpush1.msra.mxu0 0.0
        %1078 = vmatprep.subr.mxu0 0.0
        %1079 = vmatpush1.msra.mxu0 0.0
        %1080 = vmatprep.subr.mxu0 0.0
        %1081 = vmatpush1.msra.mxu0 0.0
        %1082 = vmatprep.subr.mxu0 0.0
        %1083 = vmatpush1.msra.mxu0 0.0
        %1084 = vmatprep.subr.mxu0 0.0
        %1085 = vmatpush1.msra.mxu0 0.0
        %1086 = vmatprep.subr.mxu0 0.0
        %1087 = vmatpush1.msra.mxu0 0.0
        %1088 = vmatprep.subr.mxu0 0.0
        %1089 = vmatpush1.msra.mxu0 0.0
        %1090 = vmatprep.subr.mxu0 0.0
        %1091 = vmatpush1.msra.mxu0 0.0
        %1092 = vmatprep.mubr.f32.mxu0 0.0
        %1093 = vmatmul.mubr.f32.gmra.mrb[0].mxu0 %v1027
        %v1094 = vpop.f32.mrb[0].mxu0
        %v1095 = vadd.f32 0.0, %v1094
        %v1096 = vpop.f32.mrb[0].mxu0
        %v1097 = vadd.f32 0.0, %v1096
        %1098 = vdwg.mxu0
        %1101 = vrot.lane.b32.xlu0 %v935, 63
        %v1102 = vpop.permute.xlu0 %1101
        %1103 = vrot.lane.b32.xlu0 %v937, 63
        %v1104 = vpop.permute.xlu0 %1103
        %vm1105 = vcmask 515072
        %v1106 = vsel %vm1105, %v1102, %v1104
        %1110 = vrot.lane.b32.xlu0 %v1095, 63
        %v1111 = vpop.permute.xlu0 %1110
        %1112 = vrot.lane.b32.xlu0 %v1097, 63
        %v1113 = vpop.permute.xlu0 %1112
        %v1114 = vsel %vm1105, %v1111, %v1113
        %s1116 = sadd.s32 %s690, 1
        %s1117 = smul.u32 %s1116, 32
        %s1118 = scalar_lea.vmem [#allocation2], %s1117
        %1119 = vst.msk [vmem:[%s1118] sm:$0xff] %vm684, %v935
        %1120 = vst.msk [vmem:[%s1118 + $0x8] sm:$0xff] %vm684, %v1106
        %1121 = vst.msk [vmem:[%s1118 + $0x10] sm:$0xff] %vm684, %v1095
        %1122 = vst.msk [vmem:[%s1118 + $0x18] sm:$0xff] %vm684, %v1114
      $region113: #{discriminator_forward.1} parent=107 // loop_footer
        %s694 = sadd.s32 1, %s690
      $region114: #{discriminator_forward.1} parent=107 // loop_footer_branch
        %689 = sbr.rel target = $region110
      $region115: #{discriminator_forward.1} parent=107 // loop_exit
        _
      %vm1123 = vcmask 269312
      %1124 = vst.msk [vmem:[#allocation3] sm:$0xff] %vm1123, 0.0
      %1125 = vst.msk [vmem:[#allocation3 + $0x8] sm:$0xff] %vm1123, 0.0
      %1126 = vst.msk [vmem:[#allocation3 + $0x10] sm:$0xff] %vm1123, 0.0
      %1127 = vst.msk [vmem:[#allocation3 + $0x18] sm:$0xff] %vm1123, 0.0
      %1128 = vst.msk [vmem:[#allocation3 + $0x20] sm:$0xff] %vm1123, 0.0
      %1129 = vst.msk [vmem:[#allocation3 + $0x28] sm:$0xff] %vm1123, 0.0
      %1130 = vst.msk [vmem:[#allocation3 + $0x30] sm:$0xff] %vm1123, 0.0
      %1131 = vst.msk [vmem:[#allocation3 + $0x38] sm:$0xff] %vm1123, 0.0
      loop: start=0, step=1, limit=32
      $region116: #{discriminator_forward.1} parent=107 // loop_pre_header
        _
      $region117: #{discriminator_forward.1} parent=107 // loop_header
        %s1133 = sphi 0, %s1137
        %p1134 = scmp.ge.s32.totalorder %s1133, 32
      $region118: #{discriminator_forward.1} parent=107 // loop_header_branch
        %1136 = sbr.rel (%p1134) target = $region122
      $region119: #{discriminator_forward.1} parent=107 // loop_body
        %s1138 = smul.u32 %s1133, 2
        %s1139 = smul.u32 %s1138, 32
        %s1140 = scalar_lea.vmem [#allocation2], %s1139
        %v1141 = vld [vmem:[%s1140] sm:$0xff]
        %v1142 = vld [vmem:[%s1140 + $0x8] sm:$0xff]
        %v1143 = vld [vmem:[%s1140 + $0x10] sm:$0xff]
        %v1144 = vld [vmem:[%s1140 + $0x18] sm:$0xff]
        %s1145 = sadd.s32 %s1138, 1
        %s1146 = smul.u32 %s1145, 32
        %s1147 = scalar_lea.vmem [#allocation2], %s1146
        %v1148 = vld [vmem:[%s1147] sm:$0xff]
        %v1149 = vld [vmem:[%s1147 + $0x8] sm:$0xff]
        %v1150 = vld [vmem:[%s1147 + $0x10] sm:$0xff]
        %v1151 = vld [vmem:[%s1147 + $0x18] sm:$0xff]
        %s1152 = sadd.s32 %s1138, 2
        %s1153 = smul.u32 %s1152, 32
        %s1154 = scalar_lea.vmem [#allocation2], %s1153
        %v1155 = vld [vmem:[%s1154] sm:$0xff]
        %v1156 = vld [vmem:[%s1154 + $0x8] sm:$0xff]
        %v1157 = vld [vmem:[%s1154 + $0x10] sm:$0xff]
        %v1158 = vld [vmem:[%s1154 + $0x18] sm:$0xff]
        %1163 = vrot.lane.b32.xlu0 %v1141, 127
        %v1164 = vpop.permute.xlu0 %1163
        %1165 = vrot.lane.b32.xlu0 %v1142, 127
        %v1166 = vpop.permute.xlu0 %1165
        %1167 = vrot.lane.b32.xlu0 %v1143, 127
        %v1168 = vpop.permute.xlu0 %1167
        %1169 = vrot.lane.b32.xlu0 %v1144, 127
        %v1170 = vpop.permute.xlu0 %1169
        %1179 = vrot.lane.b32.xlu0 %v1148, 127
        %v1180 = vpop.permute.xlu0 %1179
        %1181 = vrot.lane.b32.xlu0 %v1149, 127
        %v1182 = vpop.permute.xlu0 %1181
        %1183 = vrot.lane.b32.xlu0 %v1150, 127
        %v1184 = vpop.permute.xlu0 %1183
        %1185 = vrot.lane.b32.xlu0 %v1151, 127
        %v1186 = vpop.permute.xlu0 %1185
        %v1191 = vld [vmem:[%s2] sm:$0xff]
        %v1192 = vld [vmem:[%s2 + $0x8] sm:$0xff]
        %v1193 = vld [vmem:[%s8] sm:$0xff]
        %v1194 = vld [vmem:[%s8 + $0x8] sm:$0xff]
        %1196 = vset.pattern.permute.xlu0 0
        %1197 = vperm.xlu0 %1196, %v1193
        %v1198 = vpop.permute.xlu0 %1197
        %1201 = vset.pattern.permute.xlu0 0
        %1202 = vperm.xlu0 %1201, %v1194
        %v1203 = vpop.permute.xlu0 %1202
        %1205 = vmatprep.subr.mxu0 0.0
        %1206 = vmatpush1.msra.mxu0 %v1141
        %1207 = vmatprep.subr.mxu0 0.0
        %1208 = vmatpush1.msra.mxu0 %v1142
        %1209 = vmatprep.subr.mxu0 0.0
        %1210 = vmatpush1.msra.mxu0 %v1143
        %1211 = vmatprep.subr.mxu0 0.0
        %1212 = vmatpush1.msra.mxu0 %v1144
        %1213 = vmatprep.subr.mxu0 0.0
        %1214 = vmatpush1.msra.mxu0 %v1164
        %1215 = vmatprep.subr.mxu0 0.0
        %1216 = vmatpush1.msra.mxu0 %v1166
        %1217 = vmatprep.subr.mxu0 0.0
        %1218 = vmatpush1.msra.mxu0 %v1168
        %1219 = vmatprep.subr.mxu0 0.0
        %1220 = vmatpush1.msra.mxu0 %v1170
        %1221 = vmatprep.subr.mxu0 0.0
        %1222 = vmatpush1.msra.mxu0 %v1148
        %1223 = vmatprep.subr.mxu0 0.0
        %1224 = vmatpush1.msra.mxu0 %v1149
        %1225 = vmatprep.subr.mxu0 0.0
        %1226 = vmatpush1.msra.mxu0 %v1150
        %1227 = vmatprep.subr.mxu0 0.0
        %1228 = vmatpush1.msra.mxu0 %v1151
        %1229 = vmatprep.subr.mxu0 0.0
        %1230 = vmatpush1.msra.mxu0 %v1180
        %1231 = vmatprep.subr.mxu0 0.0
        %1232 = vmatpush1.msra.mxu0 %v1182
        %1233 = vmatprep.subr.mxu0 0.0
        %1234 = vmatpush1.msra.mxu0 %v1184
        %1235 = vmatprep.subr.mxu0 0.0
        %1236 = vmatpush1.msra.mxu0 %v1186
        %1237 = vmatprep.subr.mxu0 0.0
        %1238 = vmatpush1.msra.mxu0 0.0
        %1239 = vmatprep.subr.mxu0 0.0
        %1240 = vmatpush1.msra.mxu0 0.0
        %1241 = vmatprep.subr.mxu0 0.0
        %1242 = vmatpush1.msra.mxu0 0.0
        %1243 = vmatprep.subr.mxu0 0.0
        %1244 = vmatpush1.msra.mxu0 0.0
        %1245 = vmatprep.subr.mxu0 0.0
        %1246 = vmatpush1.msra.mxu0 0.0
        %1247 = vmatprep.subr.mxu0 0.0
        %1248 = vmatpush1.msra.mxu0 0.0
        %1249 = vmatprep.subr.mxu0 0.0
        %1250 = vmatpush1.msra.mxu0 0.0
        %1251 = vmatprep.subr.mxu0 0.0
        %1252 = vmatpush1.msra.mxu0 0.0
        %1253 = vmatprep.subr.mxu0 0.0
        %1254 = vmatpush1.msra.mxu0 0.0
        %1255 = vmatprep.subr.mxu0 0.0
        %1256 = vmatpush1.msra.mxu0 0.0
        %1257 = vmatprep.subr.mxu0 0.0
        %1258 = vmatpush1.msra.mxu0 0.0
        %1259 = vmatprep.subr.mxu0 0.0
        %1260 = vmatpush1.msra.mxu0 0.0
        %1261 = vmatprep.subr.mxu0 0.0
        %1262 = vmatpush1.msra.mxu0 0.0
        %1263 = vmatprep.subr.mxu0 0.0
        %1264 = vmatpush1.msra.mxu0 0.0
        %1265 = vmatprep.subr.mxu0 0.0
        %1266 = vmatpush1.msra.mxu0 0.0
        %1267 = vmatprep.subr.mxu0 0.0
        %1268 = vmatpush1.msra.mxu0 0.0
        %1269 = vmatprep.mubr.f32.mxu0 0.0
        %1270 = vmatmul.mubr.f32.gmra.mrb[0].mxu0 %v1191
        %v1271 = vpop.f32.mrb[0].mxu0
        %v1272 = vadd.f32 %v1198, %v1271
        %v1273 = vpop.f32.mrb[0].mxu0
        %1274 = vmatprep.mubr.f32.mxu0 0.0
        %1275 = vmatmul.mubr.f32.gmra.mrb[0].mxu0 %v1192
        %v1276 = vpop.f32.mrb[0].mxu0
        %v1277 = vadd.f32 %v1203, %v1276
        %v1278 = vpop.f32.mrb[0].mxu0
        %1279 = vdwg.mxu0
        %vm1280 = vcmp.ge.f32.partialorder %v1272, 0.0
        %vm1281 = vcmp.ge.f32.partialorder %v1277, 0.0
        %v1282 = vmul.f32 %v1272, 0.2
        %v1283 = vmul.f32 %v1277, 0.2
        %v1284 = vsel %vm1280, %v1272, %v1282
        %v1285 = vsel %vm1281, %v1277, %v1283
        %v1286 = vld [vmem:[%s14] sm:$0xff]
        %v1287 = vld [vmem:[%s14 + $0x8] sm:$0xff]
        %v1288 = vld [vmem:[%s14 + $0x10] sm:$0xff]
        %v1289 = vld [vmem:[%s14 + $0x18] sm:$0xff]
        %v1290 = vld [vmem:[%s14 + $0x20] sm:$0xff]
        %v1291 = vld [vmem:[%s14 + $0x28] sm:$0xff]
        %v1292 = vld [vmem:[%s14 + $0x30] sm:$0xff]
        %v1293 = vld [vmem:[%s14 + $0x38] sm:$0xff]
        %vm1294 = vcmask 523264
        %v1296 = vsel %vm1294, %v1284, 0
        %v1299 = vsel %vm1294, %v1285, 0
        %1301 = vmatprep.subr.mxu0 0.0
        %1302 = vmatpush1.msra.mxu0 %v1286
        %1303 = vmatprep.subr.mxu0 0.0
        %1304 = vmatpush1.msra.mxu0 %v1287
        %1305 = vmatprep.subr.mxu0 0.0
        %1306 = vmatpush1.msra.mxu0 %v1288
        %1307 = vmatprep.subr.mxu0 0.0
        %1308 = vmatpush1.msra.mxu0 %v1289
        %1309 = vmatprep.subr.mxu0 0.0
        %1310 = vmatpush1.msra.mxu0 %v1290
        %1311 = vmatprep.subr.mxu0 0.0
        %1312 = vmatpush1.msra.mxu0 %v1291
        %1313 = vmatprep.subr.mxu0 0.0
        %1314 = vmatpush1.msra.mxu0 %v1292
        %1315 = vmatprep.subr.mxu0 0.0
        %1316 = vmatpush1.msra.mxu0 %v1293
        %1317 = vmatprep.subr.mxu0 0.0
        %1318 = vmatpush1.msra.mxu0 0.0
        %1319 = vmatprep.subr.mxu0 0.0
        %1320 = vmatpush1.msra.mxu0 0.0
        %1321 = vmatprep.subr.mxu0 0.0
        %1322 = vmatpush1.msra.mxu0 0.0
        %1323 = vmatprep.subr.mxu0 0.0
        %1324 = vmatpush1.msra.mxu0 0.0
        %1325 = vmatprep.subr.mxu0 0.0
        %1326 = vmatpush1.msra.mxu0 0.0
        %1327 = vmatprep.subr.mxu0 0.0
        %1328 = vmatpush1.msra.mxu0 0.0
        %1329 = vmatprep.subr.mxu0 0.0
        %1330 = vmatpush1.msra.mxu0 0.0
        %1331 = vmatprep.subr.mxu0 0.0
        %1332 = vmatpush1.msra.mxu0 0.0
        %1333 = vmatprep.subr.mxu0 0.0
        %1334 = vmatpush1.msra.mxu0 0.0
        %1335 = vmatprep.subr.mxu0 0.0
        %1336 = vmatpush1.msra.mxu0 0.0
        %1337 = vmatprep.subr.mxu0 0.0
        %1338 = vmatpush1.msra.mxu0 0.0
        %1339 = vmatprep.subr.mxu0 0.0
        %1340 = vmatpush1.msra.mxu0 0.0
        %1341 = vmatprep.subr.mxu0 0.0
        %1342 = vmatpush1.msra.mxu0 0.0
        %1343 = vmatprep.subr.mxu0 0.0
        %1344 = vmatpush1.msra.mxu0 0.0
        %1345 = vmatprep.subr.mxu0 0.0
        %1346 = vmatpush1.msra.mxu0 0.0
        %1347 = vmatprep.subr.mxu0 0.0
        %1348 = vmatpush1.msra.mxu0 0.0
        %1349 = vmatprep.subr.mxu0 0.0
        %1350 = vmatpush1.msra.mxu0 0.0
        %1351 = vmatprep.subr.mxu0 0.0
        %1352 = vmatpush1.msra.mxu0 0.0
        %1353 = vmatprep.subr.mxu0 0.0
        %1354 = vmatpush1.msra.mxu0 0.0
        %1355 = vmatprep.subr.mxu0 0.0
        %1356 = vmatpush1.msra.mxu0 0.0
        %1357 = vmatprep.subr.mxu0 0.0
        %1358 = vmatpush1.msra.mxu0 0.0
        %1359 = vmatprep.subr.mxu0 0.0
        %1360 = vmatpush1.msra.mxu0 0.0
        %1361 = vmatprep.subr.mxu0 0.0
        %1362 = vmatpush1.msra.mxu0 0.0
        %1363 = vmatprep.subr.mxu0 0.0
        %1364 = vmatpush1.msra.mxu0 0.0
        %1365 = vmatprep.mubr.f32.mxu0 0.0
        %1366 = vmatmul.mubr.f32.gmra.mrb[0].mxu0 %v1296
        %v1367 = vpop.f32.mrb[0].mxu0
        %v1368 = vadd.f32 0.0, %v1367
        %v1369 = vpop.f32.mrb[0].mxu0
        %1370 = vmatprep.mubr.f32.mxu0 0.0
        %1371 = vmatmul.mubr.f32.gmra.mrb[0].mxu0 %v1299
        %v1372 = vpop.f32.mrb[0].mxu0
        %v1373 = vadd.f32 0.0, %v1372
        %v1374 = vpop.f32.mrb[0].mxu0
        %1375 = vdwg.mxu0
        %1380 = vrot.lane.b32.xlu0 %v1155, 127
        %v1381 = vpop.permute.xlu0 %1380
        %1382 = vrot.lane.b32.xlu0 %v1156, 127
        %v1383 = vpop.permute.xlu0 %1382
        %1384 = vrot.lane.b32.xlu0 %v1157, 127
        %v1385 = vpop.permute.xlu0 %1384
        %1386 = vrot.lane.b32.xlu0 %v1158, 127
        %v1387 = vpop.permute.xlu0 %1386
        %1392 = vmatprep.subr.mxu0 0.0
        %1393 = vmatpush1.msra.mxu0 %v1148
        %1394 = vmatprep.subr.mxu0 0.0
        %1395 = vmatpush1.msra.mxu0 %v1149
        %1396 = vmatprep.subr.mxu0 0.0
        %1397 = vmatpush1.msra.mxu0 %v1150
        %1398 = vmatprep.subr.mxu0 0.0
        %1399 = vmatpush1.msra.mxu0 %v1151
        %1400 = vmatprep.subr.mxu0 0.0
        %1401 = vmatpush1.msra.mxu0 %v1180
        %1402 = vmatprep.subr.mxu0 0.0
        %1403 = vmatpush1.msra.mxu0 %v1182
        %1404 = vmatprep.subr.mxu0 0.0
        %1405 = vmatpush1.msra.mxu0 %v1184
        %1406 = vmatprep.subr.mxu0 0.0
        %1407 = vmatpush1.msra.mxu0 %v1186
        %1408 = vmatprep.subr.mxu0 0.0
        %1409 = vmatpush1.msra.mxu0 %v1155
        %1410 = vmatprep.subr.mxu0 0.0
        %1411 = vmatpush1.msra.mxu0 %v1156
        %1412 = vmatprep.subr.mxu0 0.0
        %1413 = vmatpush1.msra.mxu0 %v1157
        %1414 = vmatprep.subr.mxu0 0.0
        %1415 = vmatpush1.msra.mxu0 %v1158
        %1416 = vmatprep.subr.mxu0 0.0
        %1417 = vmatpush1.msra.mxu0 %v1381
        %1418 = vmatprep.subr.mxu0 0.0
        %1419 = vmatpush1.msra.mxu0 %v1383
        %1420 = vmatprep.subr.mxu0 0.0
        %1421 = vmatpush1.msra.mxu0 %v1385
        %1422 = vmatprep.subr.mxu0 0.0
        %1423 = vmatpush1.msra.mxu0 %v1387
        %1424 = vmatprep.subr.mxu0 0.0
        %1425 = vmatpush1.msra.mxu0 0.0
        %1426 = vmatprep.subr.mxu0 0.0
        %1427 = vmatpush1.msra.mxu0 0.0
        %1428 = vmatprep.subr.mxu0 0.0
        %1429 = vmatpush1.msra.mxu0 0.0
        %1430 = vmatprep.subr.mxu0 0.0
        %1431 = vmatpush1.msra.mxu0 0.0
        %1432 = vmatprep.subr.mxu0 0.0
        %1433 = vmatpush1.msra.mxu0 0.0
        %1434 = vmatprep.subr.mxu0 0.0
        %1435 = vmatpush1.msra.mxu0 0.0
        %1436 = vmatprep.subr.mxu0 0.0
        %1437 = vmatpush1.msra.mxu0 0.0
        %1438 = vmatprep.subr.mxu0 0.0
        %1439 = vmatpush1.msra.mxu0 0.0
        %1440 = vmatprep.subr.mxu0 0.0
        %1441 = vmatpush1.msra.mxu0 0.0
        %1442 = vmatprep.subr.mxu0 0.0
        %1443 = vmatpush1.msra.mxu0 0.0
        %1444 = vmatprep.subr.mxu0 0.0
        %1445 = vmatpush1.msra.mxu0 0.0
        %1446 = vmatprep.subr.mxu0 0.0
        %1447 = vmatpush1.msra.mxu0 0.0
        %1448 = vmatprep.subr.mxu0 0.0
        %1449 = vmatpush1.msra.mxu0 0.0
        %1450 = vmatprep.subr.mxu0 0.0
        %1451 = vmatpush1.msra.mxu0 0.0
        %1452 = vmatprep.subr.mxu0 0.0
        %1453 = vmatpush1.msra.mxu0 0.0
        %1454 = vmatprep.subr.mxu0 0.0
        %1455 = vmatpush1.msra.mxu0 0.0
        %1456 = vmatprep.mubr.f32.mxu0 0.0
        %1457 = vmatmul.mubr.f32.gmra.mrb[0].mxu0 %v1191
        %v1458 = vpop.f32.mrb[0].mxu0
        %v1459 = vadd.f32 %v1198, %v1458
        %v1460 = vpop.f32.mrb[0].mxu0
        %1461 = vmatprep.mubr.f32.mxu0 0.0
        %1462 = vmatmul.mubr.f32.gmra.mrb[0].mxu0 %v1192
        %v1463 = vpop.f32.mrb[0].mxu0
        %v1464 = vadd.f32 %v1203, %v1463
        %v1465 = vpop.f32.mrb[0].mxu0
        %1466 = vdwg.mxu0
        %vm1467 = vcmp.ge.f32.partialorder %v1459, 0.0
        %vm1468 = vcmp.ge.f32.partialorder %v1464, 0.0
        %v1469 = vmul.f32 %v1459, 0.2
        %v1470 = vmul.f32 %v1464, 0.2
        %v1471 = vsel %vm1467, %v1459, %v1469
        %v1472 = vsel %vm1468, %v1464, %v1470
        %v1474 = vsel %vm1294, %v1471, 0
        %v1477 = vsel %vm1294, %v1472, 0
        %1479 = vmatprep.subr.mxu0 0.0
        %1480 = vmatpush1.msra.mxu0 %v1286
        %1481 = vmatprep.subr.mxu0 0.0
        %1482 = vmatpush1.msra.mxu0 %v1287
        %1483 = vmatprep.subr.mxu0 0.0
        %1484 = vmatpush1.msra.mxu0 %v1288
        %1485 = vmatprep.subr.mxu0 0.0
        %1486 = vmatpush1.msra.mxu0 %v1289
        %1487 = vmatprep.subr.mxu0 0.0
        %1488 = vmatpush1.msra.mxu0 %v1290
        %1489 = vmatprep.subr.mxu0 0.0
        %1490 = vmatpush1.msra.mxu0 %v1291
        %1491 = vmatprep.subr.mxu0 0.0
        %1492 = vmatpush1.msra.mxu0 %v1292
        %1493 = vmatprep.subr.mxu0 0.0
        %1494 = vmatpush1.msra.mxu0 %v1293
        %1495 = vmatprep.subr.mxu0 0.0
        %1496 = vmatpush1.msra.mxu0 0.0
        %1497 = vmatprep.subr.mxu0 0.0
        %1498 = vmatpush1.msra.mxu0 0.0
        %1499 = vmatprep.subr.mxu0 0.0
        %1500 = vmatpush1.msra.mxu0 0.0
        %1501 = vmatprep.subr.mxu0 0.0
        %1502 = vmatpush1.msra.mxu0 0.0
        %1503 = vmatprep.subr.mxu0 0.0
        %1504 = vmatpush1.msra.mxu0 0.0
        %1505 = vmatprep.subr.mxu0 0.0
        %1506 = vmatpush1.msra.mxu0 0.0
        %1507 = vmatprep.subr.mxu0 0.0
        %1508 = vmatpush1.msra.mxu0 0.0
        %1509 = vmatprep.subr.mxu0 0.0
        %1510 = vmatpush1.msra.mxu0 0.0
        %1511 = vmatprep.subr.mxu0 0.0
        %1512 = vmatpush1.msra.mxu0 0.0
        %1513 = vmatprep.subr.mxu0 0.0
        %1514 = vmatpush1.msra.mxu0 0.0
        %1515 = vmatprep.subr.mxu0 0.0
        %1516 = vmatpush1.msra.mxu0 0.0
        %1517 = vmatprep.subr.mxu0 0.0
        %1518 = vmatpush1.msra.mxu0 0.0
        %1519 = vmatprep.subr.mxu0 0.0
        %1520 = vmatpush1.msra.mxu0 0.0
        %1521 = vmatprep.subr.mxu0 0.0
        %1522 = vmatpush1.msra.mxu0 0.0
        %1523 = vmatprep.subr.mxu0 0.0
        %1524 = vmatpush1.msra.mxu0 0.0
        %1525 = vmatprep.subr.mxu0 0.0
        %1526 = vmatpush1.msra.mxu0 0.0
        %1527 = vmatprep.subr.mxu0 0.0
        %1528 = vmatpush1.msra.mxu0 0.0
        %1529 = vmatprep.subr.mxu0 0.0
        %1530 = vmatpush1.msra.mxu0 0.0
        %1531 = vmatprep.subr.mxu0 0.0
        %1532 = vmatpush1.msra.mxu0 0.0
        %1533 = vmatprep.subr.mxu0 0.0
        %1534 = vmatpush1.msra.mxu0 0.0
        %1535 = vmatprep.subr.mxu0 0.0
        %1536 = vmatpush1.msra.mxu0 0.0
        %1537 = vmatprep.subr.mxu0 0.0
        %1538 = vmatpush1.msra.mxu0 0.0
        %1539 = vmatprep.subr.mxu0 0.0
        %1540 = vmatpush1.msra.mxu0 0.0
        %1541 = vmatprep.subr.mxu0 0.0
        %1542 = vmatpush1.msra.mxu0 0.0
        %1543 = vmatprep.mubr.f32.mxu0 0.0
        %1544 = vmatmul.mubr.f32.gmra.mrb[0].mxu0 %v1474
        %v1545 = vpop.f32.mrb[0].mxu0
        %v1546 = vadd.f32 0.0, %v1545
        %v1547 = vpop.f32.mrb[0].mxu0
        %1548 = vmatprep.mubr.f32.mxu0 0.0
        %1549 = vmatmul.mubr.f32.gmra.mrb[0].mxu0 %v1477
        %v1550 = vpop.f32.mrb[0].mxu0
        %v1551 = vadd.f32 0.0, %v1550
        %v1552 = vpop.f32.mrb[0].mxu0
        %1553 = vdwg.mxu0
        %1556 = vrot.lane.b32.xlu0 %v1368, 95
        %v1557 = vpop.permute.xlu0 %1556
        %1558 = vrot.lane.b32.xlu0 %v1373, 95
        %v1559 = vpop.permute.xlu0 %1558
        %1564 = vrot.lane.b32.xlu0 %v1546, 95
        %v1565 = vpop.permute.xlu0 %1564
        %1566 = vrot.lane.b32.xlu0 %v1551, 95
        %v1567 = vpop.permute.xlu0 %1566
        %s1570 = sadd.s32 %s1133, 1
        %s1571 = smul.u32 %s1570, 64
        %s1572 = scalar_lea.vmem [#allocation3], %s1571
        %1573 = vst.msk [vmem:[%s1572] sm:$0xff] %vm1123, %v1368
        %1574 = vst.msk [vmem:[%s1572 + $0x8] sm:$0xff] %vm1123, %v1373
        %1575 = vst.msk [vmem:[%s1572 + $0x10] sm:$0xff] %vm1123, %v1557
        %1576 = vst.msk [vmem:[%s1572 + $0x18] sm:$0xff] %vm1123, %v1559
        %1577 = vst.msk [vmem:[%s1572 + $0x20] sm:$0xff] %vm1123, %v1546
        %1578 = vst.msk [vmem:[%s1572 + $0x28] sm:$0xff] %vm1123, %v1551
        %1579 = vst.msk [vmem:[%s1572 + $0x30] sm:$0xff] %vm1123, %v1565
        %1580 = vst.msk [vmem:[%s1572 + $0x38] sm:$0xff] %vm1123, %v1567
      $region120: #{discriminator_forward.1} parent=107 // loop_footer
        %s1137 = sadd.s32 1, %s1133
      $region121: #{discriminator_forward.1} parent=107 // loop_footer_branch
        %1132 = sbr.rel target = $region117
      $region122: #{discriminator_forward.1} parent=107 // loop_exit
        _
      %vm1581 = vcmask 138240
      %1582 = vst.msk [vmem:[#allocation4] sm:$0xff] %vm1581, 0.0
      %1583 = vst.msk [vmem:[#allocation4 + $0x8] sm:$0xff] %vm1581, 0.0
      %1584 = vst.msk [vmem:[#allocation4 + $0x10] sm:$0xff] %vm1581, 0.0
      %1585 = vst.msk [vmem:[#allocation4 + $0x18] sm:$0xff] %vm1581, 0.0
      %1586 = vst.msk [vmem:[#allocation4 + $0x20] sm:$0xff] %vm1581, 0.0
      %1587 = vst.msk [vmem:[#allocation4 + $0x28] sm:$0xff] %vm1581, 0.0
      %1588 = vst.msk [vmem:[#allocation4 + $0x30] sm:$0xff] %vm1581, 0.0
      %1589 = vst.msk [vmem:[#allocation4 + $0x38] sm:$0xff] %vm1581, 0.0
      loop: start=0, step=1, limit=16
      $region123: #{discriminator_forward.1} parent=107 // loop_pre_header
        _
      $region124: #{discriminator_forward.1} parent=107 // loop_header
        %s1591 = sphi 0, %s1595
        %p1592 = scmp.ge.s32.totalorder %s1591, 16
      $region125: #{discriminator_forward.1} parent=107 // loop_header_branch
        %1594 = sbr.rel (%p1592) target = $region129
      $region126: #{discriminator_forward.1} parent=107 // loop_body
        %s1596 = smul.u32 %s1591, 2
        %s1597 = smul.u32 %s1596, 64
        %s1598 = scalar_lea.vmem [#allocation3], %s1597
        %v1599 = vld [vmem:[%s1598] sm:$0xff]
        %v1600 = vld [vmem:[%s1598 + $0x8] sm:$0xff]
        %v1601 = vld [vmem:[%s1598 + $0x10] sm:$0xff]
        %v1602 = vld [vmem:[%s1598 + $0x18] sm:$0xff]
        %v1603 = vld [vmem:[%s1598 + $0x20] sm:$0xff]
        %v1604 = vld [vmem:[%s1598 + $0x28] sm:$0xff]
        %v1605 = vld [vmem:[%s1598 + $0x30] sm:$0xff]
        %v1606 = vld [vmem:[%s1598 + $0x38] sm:$0xff]
        %s1607 = sadd.s32 %s1596, 1
        %s1608 = smul.u32 %s1607, 64
        %s1609 = scalar_lea.vmem [#allocation3], %s1608
        %v1610 = vld [vmem:[%s1609] sm:$0xff]
        %v1611 = vld [vmem:[%s1609 + $0x8] sm:$0xff]
        %v1612 = vld [vmem:[%s1609 + $0x10] sm:$0xff]
        %v1613 = vld [vmem:[%s1609 + $0x18] sm:$0xff]
        %v1614 = vld [vmem:[%s1609 + $0x20] sm:$0xff]
        %v1615 = vld [vmem:[%s1609 + $0x28] sm:$0xff]
        %v1616 = vld [vmem:[%s1609 + $0x30] sm:$0xff]
        %v1617 = vld [vmem:[%s1609 + $0x38] sm:$0xff]
        %s1618 = sadd.s32 %s1596, 2
        %s1619 = smul.u32 %s1618, 64
        %s1620 = scalar_lea.vmem [#allocation3], %s1619
        %v1621 = vld [vmem:[%s1620] sm:$0xff]
        %v1622 = vld [vmem:[%s1620 + $0x8] sm:$0xff]
        %v1623 = vld [vmem:[%s1620 + $0x10] sm:$0xff]
        %v1624 = vld [vmem:[%s1620 + $0x18] sm:$0xff]
        %v1625 = vld [vmem:[%s1620 + $0x20] sm:$0xff]
        %v1626 = vld [vmem:[%s1620 + $0x28] sm:$0xff]
        %v1627 = vld [vmem:[%s1620 + $0x30] sm:$0xff]
        %v1628 = vld [vmem:[%s1620 + $0x38] sm:$0xff]
        %1637 = vrot.lane.b32.xlu0 %v1599, 127
        %v1638 = vpop.permute.xlu0 %1637
        %1639 = vrot.lane.b32.xlu0 %v1600, 127
        %v1640 = vpop.permute.xlu0 %1639
        %1641 = vrot.lane.b32.xlu0 %v1601, 127
        %v1642 = vpop.permute.xlu0 %1641
        %1643 = vrot.lane.b32.xlu0 %v1602, 127
        %v1644 = vpop.permute.xlu0 %1643
        %1645 = vrot.lane.b32.xlu0 %v1603, 127
        %v1646 = vpop.permute.xlu0 %1645
        %1647 = vrot.lane.b32.xlu0 %v1604, 127
        %v1648 = vpop.permute.xlu0 %1647
        %1649 = vrot.lane.b32.xlu0 %v1605, 127
        %v1650 = vpop.permute.xlu0 %1649
        %1651 = vrot.lane.b32.xlu0 %v1606, 127
        %v1652 = vpop.permute.xlu0 %1651
        %1669 = vrot.lane.b32.xlu0 %v1610, 127
        %v1670 = vpop.permute.xlu0 %1669
        %1671 = vrot.lane.b32.xlu0 %v1611, 127
        %v1672 = vpop.permute.xlu0 %1671
        %1673 = vrot.lane.b32.xlu0 %v1612, 127
        %v1674 = vpop.permute.xlu0 %1673
        %1675 = vrot.lane.b32.xlu0 %v1613, 127
        %v1676 = vpop.permute.xlu0 %1675
        %1677 = vrot.lane.b32.xlu0 %v1614, 127
        %v1678 = vpop.permute.xlu0 %1677
        %1679 = vrot.lane.b32.xlu0 %v1615, 127
        %v1680 = vpop.permute.xlu0 %1679
        %1681 = vrot.lane.b32.xlu0 %v1616, 127
        %v1682 = vpop.permute.xlu0 %1681
        %1683 = vrot.lane.b32.xlu0 %v1617, 127
        %v1684 = vpop.permute.xlu0 %1683
        %v1693 = vld [vmem:[%s3] sm:$0xff]
        %v1694 = vld [vmem:[%s3 + $0x8] sm:$0xff]
        %v1695 = vld [vmem:[%s3 + $0x10] sm:$0xff]
        %v1696 = vld [vmem:[%s3 + $0x18] sm:$0xff]
        %v1697 = vld [vmem:[%s9] sm:$0xff]
        %v1698 = vld [vmem:[%s9 + $0x8] sm:$0xff]
        %1700 = vset.pattern.permute.xlu0 0
        %1701 = vperm.xlu0 %1700, %v1697
        %v1702 = vpop.permute.xlu0 %1701
        %1705 = vset.pattern.permute.xlu0 0
        %1706 = vperm.xlu0 %1705, %v1698
        %v1707 = vpop.permute.xlu0 %1706
        %1709 = vmatprep.subr.mxu0 0.0
        %1710 = vmatpush1.msra.mxu0 %v1599
        %1711 = vmatprep.subr.mxu0 0.0
        %1712 = vmatpush1.msra.mxu0 %v1600
        %1713 = vmatprep.subr.mxu0 0.0
        %1714 = vmatpush1.msra.mxu0 %v1601
        %1715 = vmatprep.subr.mxu0 0.0
        %1716 = vmatpush1.msra.mxu0 %v1602
        %1717 = vmatprep.subr.mxu0 0.0
        %1718 = vmatpush1.msra.mxu0 %v1603
        %1719 = vmatprep.subr.mxu0 0.0
        %1720 = vmatpush1.msra.mxu0 %v1604
        %1721 = vmatprep.subr.mxu0 0.0
        %1722 = vmatpush1.msra.mxu0 %v1605
        %1723 = vmatprep.subr.mxu0 0.0
        %1724 = vmatpush1.msra.mxu0 %v1606
        %1725 = vmatprep.subr.mxu0 0.0
        %1726 = vmatpush1.msra.mxu0 %v1638
        %1727 = vmatprep.subr.mxu0 0.0
        %1728 = vmatpush1.msra.mxu0 %v1640
        %1729 = vmatprep.subr.mxu0 0.0
        %1730 = vmatpush1.msra.mxu0 %v1642
        %1731 = vmatprep.subr.mxu0 0.0
        %1732 = vmatpush1.msra.mxu0 %v1644
        %1733 = vmatprep.subr.mxu0 0.0
        %1734 = vmatpush1.msra.mxu0 %v1646
        %1735 = vmatprep.subr.mxu0 0.0
        %1736 = vmatpush1.msra.mxu0 %v1648
        %1737 = vmatprep.subr.mxu0 0.0
        %1738 = vmatpush1.msra.mxu0 %v1650
        %1739 = vmatprep.subr.mxu0 0.0
        %1740 = vmatpush1.msra.mxu0 %v1652
        %1741 = vmatprep.subr.mxu0 0.0
        %1742 = vmatpush1.msra.mxu0 %v1610
        %1743 = vmatprep.subr.mxu0 0.0
        %1744 = vmatpush1.msra.mxu0 %v1611
        %1745 = vmatprep.subr.mxu0 0.0
        %1746 = vmatpush1.msra.mxu0 %v1612
        %1747 = vmatprep.subr.mxu0 0.0
        %1748 = vmatpush1.msra.mxu0 %v1613
        %1749 = vmatprep.subr.mxu0 0.0
        %1750 = vmatpush1.msra.mxu0 %v1614
        %1751 = vmatprep.subr.mxu0 0.0
        %1752 = vmatpush1.msra.mxu0 %v1615
        %1753 = vmatprep.subr.mxu0 0.0
        %1754 = vmatpush1.msra.mxu0 %v1616
        %1755 = vmatprep.subr.mxu0 0.0
        %1756 = vmatpush1.msra.mxu0 %v1617
        %1757 = vmatprep.subr.mxu0 0.0
        %1758 = vmatpush1.msra.mxu0 %v1670
        %1759 = vmatprep.subr.mxu0 0.0
        %1760 = vmatpush1.msra.mxu0 %v1672
        %1761 = vmatprep.subr.mxu0 0.0
        %1762 = vmatpush1.msra.mxu0 %v1674
        %1763 = vmatprep.subr.mxu0 0.0
        %1764 = vmatpush1.msra.mxu0 %v1676
        %1765 = vmatprep.subr.mxu0 0.0
        %1766 = vmatpush1.msra.mxu0 %v1678
        %1767 = vmatprep.subr.mxu0 0.0
        %1768 = vmatpush1.msra.mxu0 %v1680
        %1769 = vmatprep.subr.mxu0 0.0
        %1770 = vmatpush1.msra.mxu0 %v1682
        %1771 = vmatprep.subr.mxu0 0.0
        %1772 = vmatpush1.msra.mxu0 %v1684
        %1773 = vmatprep.mubr.f32.mxu0 %v1694
        %1774 = vmatmul.mubr.f32.gmra.mrb[0].mxu0 %v1693
        %v1775 = vpop.f32.mrb[0].mxu0
        %v1776 = vadd.f32 %v1702, %v1775
        %v1777 = vpop.f32.mrb[0].mxu0
        %1778 = vmatprep.mubr.f32.mxu0 %v1696
        %1779 = vmatmul.mubr.f32.gmra.mrb[0].mxu0 %v1695
        %v1780 = vpop.f32.mrb[0].mxu0
        %v1781 = vadd.f32 %v1707, %v1780
        %v1782 = vpop.f32.mrb[0].mxu0
        %1783 = vdwg.mxu0
        %vm1784 = vcmp.ge.f32.partialorder %v1776, 0.0
        %vm1785 = vcmp.ge.f32.partialorder %v1781, 0.0
        %v1786 = vmul.f32 %v1776, 0.2
        %v1787 = vmul.f32 %v1781, 0.2
        %v1788 = vsel %vm1784, %v1776, %v1786
        %v1789 = vsel %vm1785, %v1781, %v1787
        %v1790 = vld [vmem:[%s15] sm:$0xff]
        %v1791 = vld [vmem:[%s15 + $0x8] sm:$0xff]
        %v1792 = vld [vmem:[%s15 + $0x10] sm:$0xff]
        %v1793 = vld [vmem:[%s15 + $0x18] sm:$0xff]
        %vm1794 = vcmask 261120
        %v1796 = vsel %vm1794, %v1788, 0
        %v1799 = vsel %vm1794, %v1789, 0
        %1801 = vmatprep.subr.mxu0 0.0
        %1802 = vmatpush1.msra.mxu0 %v1790
        %1803 = vmatprep.subr.mxu0 0.0
        %1804 = vmatpush1.msra.mxu0 %v1791
        %1805 = vmatprep.subr.mxu0 0.0
        %1806 = vmatpush1.msra.mxu0 %v1792
        %1807 = vmatprep.subr.mxu0 0.0
        %1808 = vmatpush1.msra.mxu0 %v1793
        %1809 = vmatprep.subr.mxu0 0.0
        %1810 = vmatpush1.msra.mxu0 0.0
        %1811 = vmatprep.subr.mxu0 0.0
        %1812 = vmatpush1.msra.mxu0 0.0
        %1813 = vmatprep.subr.mxu0 0.0
        %1814 = vmatpush1.msra.mxu0 0.0
        %1815 = vmatprep.subr.mxu0 0.0
        %1816 = vmatpush1.msra.mxu0 0.0
        %1817 = vmatprep.subr.mxu0 0.0
        %1818 = vmatpush1.msra.mxu0 0.0
        %1819 = vmatprep.subr.mxu0 0.0
        %1820 = vmatpush1.msra.mxu0 0.0
        %1821 = vmatprep.subr.mxu0 0.0
        %1822 = vmatpush1.msra.mxu0 0.0
        %1823 = vmatprep.subr.mxu0 0.0
        %1824 = vmatpush1.msra.mxu0 0.0
        %1825 = vmatprep.subr.mxu0 0.0
        %1826 = vmatpush1.msra.mxu0 0.0
        %1827 = vmatprep.subr.mxu0 0.0
        %1828 = vmatpush1.msra.mxu0 0.0
        %1829 = vmatprep.subr.mxu0 0.0
        %1830 = vmatpush1.msra.mxu0 0.0
        %1831 = vmatprep.subr.mxu0 0.0
        %1832 = vmatpush1.msra.mxu0 0.0
        %1833 = vmatprep.subr.mxu0 0.0
        %1834 = vmatpush1.msra.mxu0 0.0
        %1835 = vmatprep.subr.mxu0 0.0
        %1836 = vmatpush1.msra.mxu0 0.0
        %1837 = vmatprep.subr.mxu0 0.0
        %1838 = vmatpush1.msra.mxu0 0.0
        %1839 = vmatprep.subr.mxu0 0.0
        %1840 = vmatpush1.msra.mxu0 0.0
        %1841 = vmatprep.subr.mxu0 0.0
        %1842 = vmatpush1.msra.mxu0 0.0
        %1843 = vmatprep.subr.mxu0 0.0
        %1844 = vmatpush1.msra.mxu0 0.0
        %1845 = vmatprep.subr.mxu0 0.0
        %1846 = vmatpush1.msra.mxu0 0.0
        %1847 = vmatprep.subr.mxu0 0.0
        %1848 = vmatpush1.msra.mxu0 0.0
        %1849 = vmatprep.subr.mxu0 0.0
        %1850 = vmatpush1.msra.mxu0 0.0
        %1851 = vmatprep.subr.mxu0 0.0
        %1852 = vmatpush1.msra.mxu0 0.0
        %1853 = vmatprep.subr.mxu0 0.0
        %1854 = vmatpush1.msra.mxu0 0.0
        %1855 = vmatprep.subr.mxu0 0.0
        %1856 = vmatpush1.msra.mxu0 0.0
        %1857 = vmatprep.subr.mxu0 0.0
        %1858 = vmatpush1.msra.mxu0 0.0
        %1859 = vmatprep.subr.mxu0 0.0
        %1860 = vmatpush1.msra.mxu0 0.0
        %1861 = vmatprep.subr.mxu0 0.0
        %1862 = vmatpush1.msra.mxu0 0.0
        %1863 = vmatprep.subr.mxu0 0.0
        %1864 = vmatpush1.msra.mxu0 0.0
        %1865 = vmatprep.mubr.f32.mxu0 0.0
        %1866 = vmatmul.mubr.f32.gmra.mrb[0].mxu0 %v1796
        %v1867 = vpop.f32.mrb[0].mxu0
        %v1868 = vadd.f32 0.0, %v1867
        %v1869 = vpop.f32.mrb[0].mxu0
        %1870 = vmatprep.mubr.f32.mxu0 0.0
        %1871 = vmatmul.mubr.f32.gmra.mrb[0].mxu0 %v1799
        %v1872 = vpop.f32.mrb[0].mxu0
        %v1873 = vadd.f32 0.0, %v1872
        %v1874 = vpop.f32.mrb[0].mxu0
        %1875 = vdwg.mxu0
        %1884 = vrot.lane.b32.xlu0 %v1621, 127
        %v1885 = vpop.permute.xlu0 %1884
        %1886 = vrot.lane.b32.xlu0 %v1622, 127
        %v1887 = vpop.permute.xlu0 %1886
        %1888 = vrot.lane.b32.xlu0 %v1623, 127
        %v1889 = vpop.permute.xlu0 %1888
        %1890 = vrot.lane.b32.xlu0 %v1624, 127
        %v1891 = vpop.permute.xlu0 %1890
        %1892 = vrot.lane.b32.xlu0 %v1625, 127
        %v1893 = vpop.permute.xlu0 %1892
        %1894 = vrot.lane.b32.xlu0 %v1626, 127
        %v1895 = vpop.permute.xlu0 %1894
        %1896 = vrot.lane.b32.xlu0 %v1627, 127
        %v1897 = vpop.permute.xlu0 %1896
        %1898 = vrot.lane.b32.xlu0 %v1628, 127
        %v1899 = vpop.permute.xlu0 %1898
        %1908 = vmatprep.subr.mxu0 0.0
        %1909 = vmatpush1.msra.mxu0 %v1610
        %1910 = vmatprep.subr.mxu0 0.0
        %1911 = vmatpush1.msra.mxu0 %v1611
        %1912 = vmatprep.subr.mxu0 0.0
        %1913 = vmatpush1.msra.mxu0 %v1612
        %1914 = vmatprep.subr.mxu0 0.0
        %1915 = vmatpush1.msra.mxu0 %v1613
        %1916 = vmatprep.subr.mxu0 0.0
        %1917 = vmatpush1.msra.mxu0 %v1614
        %1918 = vmatprep.subr.mxu0 0.0
        %1919 = vmatpush1.msra.mxu0 %v1615
        %1920 = vmatprep.subr.mxu0 0.0
        %1921 = vmatpush1.msra.mxu0 %v1616
        %1922 = vmatprep.subr.mxu0 0.0
        %1923 = vmatpush1.msra.mxu0 %v1617
        %1924 = vmatprep.subr.mxu0 0.0
        %1925 = vmatpush1.msra.mxu0 %v1670
        %1926 = vmatprep.subr.mxu0 0.0
        %1927 = vmatpush1.msra.mxu0 %v1672
        %1928 = vmatprep.subr.mxu0 0.0
        %1929 = vmatpush1.msra.mxu0 %v1674
        %1930 = vmatprep.subr.mxu0 0.0
        %1931 = vmatpush1.msra.mxu0 %v1676
        %1932 = vmatprep.subr.mxu0 0.0
        %1933 = vmatpush1.msra.mxu0 %v1678
        %1934 = vmatprep.subr.mxu0 0.0
        %1935 = vmatpush1.msra.mxu0 %v1680
        %1936 = vmatprep.subr.mxu0 0.0
        %1937 = vmatpush1.msra.mxu0 %v1682
        %1938 = vmatprep.subr.mxu0 0.0
        %1939 = vmatpush1.msra.mxu0 %v1684
        %1940 = vmatprep.subr.mxu0 0.0
        %1941 = vmatpush1.msra.mxu0 %v1621
        %1942 = vmatprep.subr.mxu0 0.0
        %1943 = vmatpush1.msra.mxu0 %v1622
        %1944 = vmatprep.subr.mxu0 0.0
        %1945 = vmatpush1.msra.mxu0 %v1623
        %1946 = vmatprep.subr.mxu0 0.0
        %1947 = vmatpush1.msra.mxu0 %v1624
        %1948 = vmatprep.subr.mxu0 0.0
        %1949 = vmatpush1.msra.mxu0 %v1625
        %1950 = vmatprep.subr.mxu0 0.0
        %1951 = vmatpush1.msra.mxu0 %v1626
        %1952 = vmatprep.subr.mxu0 0.0
        %1953 = vmatpush1.msra.mxu0 %v1627
        %1954 = vmatprep.subr.mxu0 0.0
        %1955 = vmatpush1.msra.mxu0 %v1628
        %1956 = vmatprep.subr.mxu0 0.0
        %1957 = vmatpush1.msra.mxu0 %v1885
        %1958 = vmatprep.subr.mxu0 0.0
        %1959 = vmatpush1.msra.mxu0 %v1887
        %1960 = vmatprep.subr.mxu0 0.0
        %1961 = vmatpush1.msra.mxu0 %v1889
        %1962 = vmatprep.subr.mxu0 0.0
        %1963 = vmatpush1.msra.mxu0 %v1891
        %1964 = vmatprep.subr.mxu0 0.0
        %1965 = vmatpush1.msra.mxu0 %v1893
        %1966 = vmatprep.subr.mxu0 0.0
        %1967 = vmatpush1.msra.mxu0 %v1895
        %1968 = vmatprep.subr.mxu0 0.0
        %1969 = vmatpush1.msra.mxu0 %v1897
        %1970 = vmatprep.subr.mxu0 0.0
        %1971 = vmatpush1.msra.mxu0 %v1899
        %1972 = vmatprep.mubr.f32.mxu0 %v1694
        %1973 = vmatmul.mubr.f32.gmra.mrb[0].mxu0 %v1693
        %v1974 = vpop.f32.mrb[0].mxu0
        %v1975 = vadd.f32 %v1702, %v1974
        %v1976 = vpop.f32.mrb[0].mxu0
        %1977 = vmatprep.mubr.f32.mxu0 %v1696
        %1978 = vmatmul.mubr.f32.gmra.mrb[0].mxu0 %v1695
        %v1979 = vpop.f32.mrb[0].mxu0
        %v1980 = vadd.f32 %v1707, %v1979
        %v1981 = vpop.f32.mrb[0].mxu0
        %1982 = vdwg.mxu0
        %vm1983 = vcmp.ge.f32.partialorder %v1975, 0.0
        %vm1984 = vcmp.ge.f32.partialorder %v1980, 0.0
        %v1985 = vmul.f32 %v1975, 0.2
        %v1986 = vmul.f32 %v1980, 0.2
        %v1987 = vsel %vm1983, %v1975, %v1985
        %v1988 = vsel %vm1984, %v1980, %v1986
        %v1990 = vsel %vm1794, %v1987, 0
        %v1993 = vsel %vm1794, %v1988, 0
        %1995 = vmatprep.subr.mxu0 0.0
        %1996 = vmatpush1.msra.mxu0 %v1790
        %1997 = vmatprep.subr.mxu0 0.0
        %1998 = vmatpush1.msra.mxu0 %v1791
        %1999 = vmatprep.subr.mxu0 0.0
        %2000 = vmatpush1.msra.mxu0 %v1792
        %2001 = vmatprep.subr.mxu0 0.0
        %2002 = vmatpush1.msra.mxu0 %v1793
        %2003 = vmatprep.subr.mxu0 0.0
        %2004 = vmatpush1.msra.mxu0 0.0
        %2005 = vmatprep.subr.mxu0 0.0
        %2006 = vmatpush1.msra.mxu0 0.0
        %2007 = vmatprep.subr.mxu0 0.0
        %2008 = vmatpush1.msra.mxu0 0.0
        %2009 = vmatprep.subr.mxu0 0.0
        %2010 = vmatpush1.msra.mxu0 0.0
        %2011 = vmatprep.subr.mxu0 0.0
        %2012 = vmatpush1.msra.mxu0 0.0
        %2013 = vmatprep.subr.mxu0 0.0
        %2014 = vmatpush1.msra.mxu0 0.0
        %2015 = vmatprep.subr.mxu0 0.0
        %2016 = vmatpush1.msra.mxu0 0.0
        %2017 = vmatprep.subr.mxu0 0.0
        %2018 = vmatpush1.msra.mxu0 0.0
        %2019 = vmatprep.subr.mxu0 0.0
        %2020 = vmatpush1.msra.mxu0 0.0
        %2021 = vmatprep.subr.mxu0 0.0
        %2022 = vmatpush1.msra.mxu0 0.0
        %2023 = vmatprep.subr.mxu0 0.0
        %2024 = vmatpush1.msra.mxu0 0.0
        %2025 = vmatprep.subr.mxu0 0.0
        %2026 = vmatpush1.msra.mxu0 0.0
        %2027 = vmatprep.subr.mxu0 0.0
        %2028 = vmatpush1.msra.mxu0 0.0
        %2029 = vmatprep.subr.mxu0 0.0
        %2030 = vmatpush1.msra.mxu0 0.0
        %2031 = vmatprep.subr.mxu0 0.0
        %2032 = vmatpush1.msra.mxu0 0.0
        %2033 = vmatprep.subr.mxu0 0.0
        %2034 = vmatpush1.msra.mxu0 0.0
        %2035 = vmatprep.subr.mxu0 0.0
        %2036 = vmatpush1.msra.mxu0 0.0
        %2037 = vmatprep.subr.mxu0 0.0
        %2038 = vmatpush1.msra.mxu0 0.0
        %2039 = vmatprep.subr.mxu0 0.0
        %2040 = vmatpush1.msra.mxu0 0.0
        %2041 = vmatprep.subr.mxu0 0.0
        %2042 = vmatpush1.msra.mxu0 0.0
        %2043 = vmatprep.subr.mxu0 0.0
        %2044 = vmatpush1.msra.mxu0 0.0
        %2045 = vmatprep.subr.mxu0 0.0
        %2046 = vmatpush1.msra.mxu0 0.0
        %2047 = vmatprep.subr.mxu0 0.0
        %2048 = vmatpush1.msra.mxu0 0.0
        %2049 = vmatprep.subr.mxu0 0.0
        %2050 = vmatpush1.msra.mxu0 0.0
        %2051 = vmatprep.subr.mxu0 0.0
        %2052 = vmatpush1.msra.mxu0 0.0
        %2053 = vmatprep.subr.mxu0 0.0
        %2054 = vmatpush1.msra.mxu0 0.0
        %2055 = vmatprep.subr.mxu0 0.0
        %2056 = vmatpush1.msra.mxu0 0.0
        %2057 = vmatprep.subr.mxu0 0.0
        %2058 = vmatpush1.msra.mxu0 0.0
        %2059 = vmatprep.mubr.f32.mxu0 0.0
        %2060 = vmatmul.mubr.f32.gmra.mrb[0].mxu0 %v1990
        %v2061 = vpop.f32.mrb[0].mxu0
        %v2062 = vadd.f32 0.0, %v2061
        %v2063 = vpop.f32.mrb[0].mxu0
        %2064 = vmatprep.mubr.f32.mxu0 0.0
        %2065 = vmatmul.mubr.f32.gmra.mrb[0].mxu0 %v1993
        %v2066 = vpop.f32.mrb[0].mxu0
        %v2067 = vadd.f32 0.0, %v2066
        %v2068 = vpop.f32.mrb[0].mxu0
        %2069 = vdwg.mxu0
        %2072 = vrot.lane.b32.xlu0 %v1868, 111
        %v2073 = vpop.permute.xlu0 %2072
        %2074 = vrot.lane.b32.xlu0 %v1873, 111
        %v2075 = vpop.permute.xlu0 %2074
        %2080 = vrot.lane.b32.xlu0 %v2062, 111
        %v2081 = vpop.permute.xlu0 %2080
        %2082 = vrot.lane.b32.xlu0 %v2067, 111
        %v2083 = vpop.permute.xlu0 %2082
        %s2086 = sadd.s32 %s1591, 1
        %s2087 = smul.u32 %s2086, 64
        %s2088 = scalar_lea.vmem [#allocation4], %s2087
        %2089 = vst.msk [vmem:[%s2088] sm:$0xff] %vm1581, %v1868
        %2090 = vst.msk [vmem:[%s2088 + $0x8] sm:$0xff] %vm1581, %v1873
        %2091 = vst.msk [vmem:[%s2088 + $0x10] sm:$0xff] %vm1581, %v2073
        %2092 = vst.msk [vmem:[%s2088 + $0x18] sm:$0xff] %vm1581, %v2075
        %2093 = vst.msk [vmem:[%s2088 + $0x20] sm:$0xff] %vm1581, %v2062
        %2094 = vst.msk [vmem:[%s2088 + $0x28] sm:$0xff] %vm1581, %v2067
        %2095 = vst.msk [vmem:[%s2088 + $0x30] sm:$0xff] %vm1581, %v2081
        %2096 = vst.msk [vmem:[%s2088 + $0x38] sm:$0xff] %vm1581, %v2083
      $region127: #{discriminator_forward.1} parent=107 // loop_footer
        %s1595 = sadd.s32 1, %s1591
      $region128: #{discriminator_forward.1} parent=107 // loop_footer_branch
        %1590 = sbr.rel target = $region124
      $region129: #{discriminator_forward.1} parent=107 // loop_exit
        _
      %vm2097 = vcmask 72704
      %2098 = vst.msk [vmem:[#allocation5] sm:$0xff] %vm2097, 0.0
      %2099 = vst.msk [vmem:[#allocation5 + $0x8] sm:$0xff] %vm2097, 0.0
      %2100 = vst.msk [vmem:[#allocation5 + $0x10] sm:$0xff] %vm2097, 0.0
      %2101 = vst.msk [vmem:[#allocation5 + $0x18] sm:$0xff] %vm2097, 0.0
      %2102 = vst.msk [vmem:[#allocation5 + $0x20] sm:$0xff] %vm2097, 0.0
      %2103 = vst.msk [vmem:[#allocation5 + $0x28] sm:$0xff] %vm2097, 0.0
      %2104 = vst.msk [vmem:[#allocation5 + $0x30] sm:$0xff] %vm2097, 0.0
      %2105 = vst.msk [vmem:[#allocation5 + $0x38] sm:$0xff] %vm2097, 0.0
      %2106 = vst.msk [vmem:[#allocation5 + $0x40] sm:$0xff] %vm2097, 0.0
      %2107 = vst.msk [vmem:[#allocation5 + $0x48] sm:$0xff] %vm2097, 0.0
      %2108 = vst.msk [vmem:[#allocation5 + $0x50] sm:$0xff] %vm2097, 0.0
      %2109 = vst.msk [vmem:[#allocation5 + $0x58] sm:$0xff] %vm2097, 0.0
      %2110 = vst.msk [vmem:[#allocation5 + $0x60] sm:$0xff] %vm2097, 0.0
      %2111 = vst.msk [vmem:[#allocation5 + $0x68] sm:$0xff] %vm2097, 0.0
      %2112 = vst.msk [vmem:[#allocation5 + $0x70] sm:$0xff] %vm2097, 0.0
      %2113 = vst.msk [vmem:[#allocation5 + $0x78] sm:$0xff] %vm2097, 0.0
      loop: start=0, step=1, limit=8
      $region130: #{discriminator_forward.1} parent=107 // loop_pre_header
        _
      $region131: #{discriminator_forward.1} parent=107 // loop_header
        %s2115 = sphi 0, %s2119
        %p2116 = scmp.ge.s32.totalorder %s2115, 8
      $region132: #{discriminator_forward.1} parent=107 // loop_header_branch
        %2118 = sbr.rel (%p2116) target = $region136
      $region133: #{discriminator_forward.1} parent=107 // loop_body
        %s2120 = smul.u32 %s2115, 2
        %s2121 = smul.u32 %s2120, 64
        %s2122 = scalar_lea.vmem [#allocation4], %s2121
        %v2123 = vld [vmem:[%s2122] sm:$0xff]
        %v2124 = vld [vmem:[%s2122 + $0x8] sm:$0xff]
        %v2125 = vld [vmem:[%s2122 + $0x10] sm:$0xff]
        %v2126 = vld [vmem:[%s2122 + $0x18] sm:$0xff]
        %v2127 = vld [vmem:[%s2122 + $0x20] sm:$0xff]
        %v2128 = vld [vmem:[%s2122 + $0x28] sm:$0xff]
        %v2129 = vld [vmem:[%s2122 + $0x30] sm:$0xff]
        %v2130 = vld [vmem:[%s2122 + $0x38] sm:$0xff]
        %s2131 = sadd.s32 %s2120, 1
        %s2132 = smul.u32 %s2131, 64
        %s2133 = scalar_lea.vmem [#allocation4], %s2132
        %v2134 = vld [vmem:[%s2133] sm:$0xff]
        %v2135 = vld [vmem:[%s2133 + $0x8] sm:$0xff]
        %v2136 = vld [vmem:[%s2133 + $0x10] sm:$0xff]
        %v2137 = vld [vmem:[%s2133 + $0x18] sm:$0xff]
        %v2138 = vld [vmem:[%s2133 + $0x20] sm:$0xff]
        %v2139 = vld [vmem:[%s2133 + $0x28] sm:$0xff]
        %v2140 = vld [vmem:[%s2133 + $0x30] sm:$0xff]
        %v2141 = vld [vmem:[%s2133 + $0x38] sm:$0xff]
        %s2142 = sadd.s32 %s2120, 2
        %s2143 = smul.u32 %s2142, 64
        %s2144 = scalar_lea.vmem [#allocation4], %s2143
        %v2145 = vld [vmem:[%s2144] sm:$0xff]
        %v2146 = vld [vmem:[%s2144 + $0x8] sm:$0xff]
        %v2147 = vld [vmem:[%s2144 + $0x10] sm:$0xff]
        %v2148 = vld [vmem:[%s2144 + $0x18] sm:$0xff]
        %v2149 = vld [vmem:[%s2144 + $0x20] sm:$0xff]
        %v2150 = vld [vmem:[%s2144 + $0x28] sm:$0xff]
        %v2151 = vld [vmem:[%s2144 + $0x30] sm:$0xff]
        %v2152 = vld [vmem:[%s2144 + $0x38] sm:$0xff]
        %2161 = vrot.lane.b32.xlu0 %v2123, 127
        %v2162 = vpop.permute.xlu0 %2161
        %2163 = vrot.lane.b32.xlu0 %v2124, 127
        %v2164 = vpop.permute.xlu0 %2163
        %2165 = vrot.lane.b32.xlu0 %v2125, 127
        %v2166 = vpop.permute.xlu0 %2165
        %2167 = vrot.lane.b32.xlu0 %v2126, 127
        %v2168 = vpop.permute.xlu0 %2167
        %2169 = vrot.lane.b32.xlu0 %v2127, 127
        %v2170 = vpop.permute.xlu0 %2169
        %2171 = vrot.lane.b32.xlu0 %v2128, 127
        %v2172 = vpop.permute.xlu0 %2171
        %2173 = vrot.lane.b32.xlu0 %v2129, 127
        %v2174 = vpop.permute.xlu0 %2173
        %2175 = vrot.lane.b32.xlu0 %v2130, 127
        %v2176 = vpop.permute.xlu0 %2175
        %2193 = vrot.lane.b32.xlu0 %v2134, 127
        %v2194 = vpop.permute.xlu0 %2193
        %2195 = vrot.lane.b32.xlu0 %v2135, 127
        %v2196 = vpop.permute.xlu0 %2195
        %2197 = vrot.lane.b32.xlu0 %v2136, 127
        %v2198 = vpop.permute.xlu0 %2197
        %2199 = vrot.lane.b32.xlu0 %v2137, 127
        %v2200 = vpop.permute.xlu0 %2199
        %2201 = vrot.lane.b32.xlu0 %v2138, 127
        %v2202 = vpop.permute.xlu0 %2201
        %2203 = vrot.lane.b32.xlu0 %v2139, 127
        %v2204 = vpop.permute.xlu0 %2203
        %2205 = vrot.lane.b32.xlu0 %v2140, 127
        %v2206 = vpop.permute.xlu0 %2205
        %2207 = vrot.lane.b32.xlu0 %v2141, 127
        %v2208 = vpop.permute.xlu0 %2207
        %v2217 = vld [vmem:[%s4] sm:$0xff]
        %v2218 = vld [vmem:[%s4 + $0x8] sm:$0xff]
        %v2219 = vld [vmem:[%s4 + $0x10] sm:$0xff]
        %v2220 = vld [vmem:[%s4 + $0x18] sm:$0xff]
        %v2221 = vld [vmem:[%s4 + $0x20] sm:$0xff]
        %v2222 = vld [vmem:[%s4 + $0x28] sm:$0xff]
        %v2223 = vld [vmem:[%s4 + $0x30] sm:$0xff]
        %v2224 = vld [vmem:[%s4 + $0x38] sm:$0xff]
        %v2225 = vld [vmem:[%s10] sm:$0xff]
        %v2226 = vld [vmem:[%s10 + $0x8] sm:$0xff]
        %v2227 = vld [vmem:[%s10 + $0x10] sm:$0xff]
        %v2228 = vld [vmem:[%s10 + $0x18] sm:$0xff]
        %2230 = vset.pattern.permute.xlu0 0
        %2231 = vperm.xlu0 %2230, %v2225
        %v2232 = vpop.permute.xlu0 %2231
        %2235 = vset.pattern.permute.xlu0 0
        %2236 = vperm.xlu0 %2235, %v2226
        %v2237 = vpop.permute.xlu0 %2236
        %2240 = vset.pattern.permute.xlu0 0
        %2241 = vperm.xlu0 %2240, %v2227
        %v2242 = vpop.permute.xlu0 %2241
        %2245 = vset.pattern.permute.xlu0 0
        %2246 = vperm.xlu0 %2245, %v2228
        %v2247 = vpop.permute.xlu0 %2246
        %2249 = vmatprep.subr.mxu0 0.0
        %2250 = vmatpush1.msra.mxu0 %v2123
        %2251 = vmatprep.subr.mxu0 0.0
        %2252 = vmatpush1.msra.mxu0 %v2124
        %2253 = vmatprep.subr.mxu0 0.0
        %2254 = vmatpush1.msra.mxu0 %v2125
        %2255 = vmatprep.subr.mxu0 0.0
        %2256 = vmatpush1.msra.mxu0 %v2126
        %2257 = vmatprep.subr.mxu0 0.0
        %2258 = vmatpush1.msra.mxu0 %v2127
        %2259 = vmatprep.subr.mxu0 0.0
        %2260 = vmatpush1.msra.mxu0 %v2128
        %2261 = vmatprep.subr.mxu0 0.0
        %2262 = vmatpush1.msra.mxu0 %v2129
        %2263 = vmatprep.subr.mxu0 0.0
        %2264 = vmatpush1.msra.mxu0 %v2130
        %2265 = vmatprep.subr.mxu0 0.0
        %2266 = vmatpush1.msra.mxu0 %v2162
        %2267 = vmatprep.subr.mxu0 0.0
        %2268 = vmatpush1.msra.mxu0 %v2164
        %2269 = vmatprep.subr.mxu0 0.0
        %2270 = vmatpush1.msra.mxu0 %v2166
        %2271 = vmatprep.subr.mxu0 0.0
        %2272 = vmatpush1.msra.mxu0 %v2168
        %2273 = vmatprep.subr.mxu0 0.0
        %2274 = vmatpush1.msra.mxu0 %v2170
        %2275 = vmatprep.subr.mxu0 0.0
        %2276 = vmatpush1.msra.mxu0 %v2172
        %2277 = vmatprep.subr.mxu0 0.0
        %2278 = vmatpush1.msra.mxu0 %v2174
        %2279 = vmatprep.subr.mxu0 0.0
        %2280 = vmatpush1.msra.mxu0 %v2176
        %2281 = vmatprep.subr.mxu0 0.0
        %2282 = vmatpush1.msra.mxu0 %v2134
        %2283 = vmatprep.subr.mxu0 0.0
        %2284 = vmatpush1.msra.mxu0 %v2135
        %2285 = vmatprep.subr.mxu0 0.0
        %2286 = vmatpush1.msra.mxu0 %v2136
        %2287 = vmatprep.subr.mxu0 0.0
        %2288 = vmatpush1.msra.mxu0 %v2137
        %2289 = vmatprep.subr.mxu0 0.0
        %2290 = vmatpush1.msra.mxu0 %v2138
        %2291 = vmatprep.subr.mxu0 0.0
        %2292 = vmatpush1.msra.mxu0 %v2139
        %2293 = vmatprep.subr.mxu0 0.0
        %2294 = vmatpush1.msra.mxu0 %v2140
        %2295 = vmatprep.subr.mxu0 0.0
        %2296 = vmatpush1.msra.mxu0 %v2141
        %2297 = vmatprep.subr.mxu0 0.0
        %2298 = vmatpush1.msra.mxu0 %v2194
        %2299 = vmatprep.subr.mxu0 0.0
        %2300 = vmatpush1.msra.mxu0 %v2196
        %2301 = vmatprep.subr.mxu0 0.0
        %2302 = vmatpush1.msra.mxu0 %v2198
        %2303 = vmatprep.subr.mxu0 0.0
        %2304 = vmatpush1.msra.mxu0 %v2200
        %2305 = vmatprep.subr.mxu0 0.0
        %2306 = vmatpush1.msra.mxu0 %v2202
        %2307 = vmatprep.subr.mxu0 0.0
        %2308 = vmatpush1.msra.mxu0 %v2204
        %2309 = vmatprep.subr.mxu0 0.0
        %2310 = vmatpush1.msra.mxu0 %v2206
        %2311 = vmatprep.subr.mxu0 0.0
        %2312 = vmatpush1.msra.mxu0 %v2208
        %2313 = vmatprep.mubr.f32.mxu0 %v2218
        %2314 = vmatmul.mubr.f32.gmra.mrb[0].mxu0 %v2217
        %v2315 = vpop.f32.mrb[0].mxu0
        %v2316 = vadd.f32 %v2232, %v2315
        %v2317 = vpop.f32.mrb[0].mxu0
        %2318 = vmatprep.mubr.f32.mxu0 %v2220
        %2319 = vmatmul.mubr.f32.gmra.mrb[0].mxu0 %v2219
        %v2320 = vpop.f32.mrb[0].mxu0
        %v2321 = vadd.f32 %v2237, %v2320
        %v2322 = vpop.f32.mrb[0].mxu0
        %2323 = vmatprep.mubr.f32.mxu0 %v2222
        %2324 = vmatmul.mubr.f32.gmra.mrb[0].mxu0 %v2221
        %v2325 = vpop.f32.mrb[0].mxu0
        %v2326 = vadd.f32 %v2242, %v2325
        %v2327 = vpop.f32.mrb[0].mxu0
        %2328 = vmatprep.mubr.f32.mxu0 %v2224
        %2329 = vmatmul.mubr.f32.gmra.mrb[0].mxu0 %v2223
        %v2330 = vpop.f32.mrb[0].mxu0
        %v2331 = vadd.f32 %v2247, %v2330
        %v2332 = vpop.f32.mrb[0].mxu0
        %2333 = vdwg.mxu0
        %vm2334 = vcmp.ge.f32.partialorder %v2316, 0.0
        %vm2335 = vcmp.ge.f32.partialorder %v2321, 0.0
        %vm2336 = vcmp.ge.f32.partialorder %v2326, 0.0
        %vm2337 = vcmp.ge.f32.partialorder %v2331, 0.0
        %v2338 = vmul.f32 %v2316, 0.2
        %v2339 = vmul.f32 %v2321, 0.2
        %v2340 = vmul.f32 %v2326, 0.2
        %v2341 = vmul.f32 %v2331, 0.2
        %v2342 = vsel %vm2334, %v2316, %v2338
        %v2343 = vsel %vm2335, %v2321, %v2339
        %v2344 = vsel %vm2336, %v2326, %v2340
        %v2345 = vsel %vm2337, %v2331, %v2341
        %v2346 = vld [vmem:[%s16] sm:$0xff]
        %v2347 = vld [vmem:[%s16 + $0x8] sm:$0xff]
        %vm2348 = vcmask 130048
        %v2350 = vsel %vm2348, %v2342, 0
        %v2353 = vsel %vm2348, %v2343, 0
        %v2356 = vsel %vm2348, %v2344, 0
        %v2359 = vsel %vm2348, %v2345, 0
        %2361 = vmatprep.subr.mxu0 0.0
        %2362 = vmatpush1.msra.mxu0 %v2346
        %2363 = vmatprep.subr.mxu0 0.0
        %2364 = vmatpush1.msra.mxu0 %v2347
        %2365 = vmatprep.subr.mxu0 0.0
        %2366 = vmatpush1.msra.mxu0 0.0
        %2367 = vmatprep.subr.mxu0 0.0
        %2368 = vmatpush1.msra.mxu0 0.0
        %2369 = vmatprep.subr.mxu0 0.0
        %2370 = vmatpush1.msra.mxu0 0.0
        %2371 = vmatprep.subr.mxu0 0.0
        %2372 = vmatpush1.msra.mxu0 0.0
        %2373 = vmatprep.subr.mxu0 0.0
        %2374 = vmatpush1.msra.mxu0 0.0
        %2375 = vmatprep.subr.mxu0 0.0
        %2376 = vmatpush1.msra.mxu0 0.0
        %2377 = vmatprep.subr.mxu0 0.0
        %2378 = vmatpush1.msra.mxu0 0.0
        %2379 = vmatprep.subr.mxu0 0.0
        %2380 = vmatpush1.msra.mxu0 0.0
        %2381 = vmatprep.subr.mxu0 0.0
        %2382 = vmatpush1.msra.mxu0 0.0
        %2383 = vmatprep.subr.mxu0 0.0
        %2384 = vmatpush1.msra.mxu0 0.0
        %2385 = vmatprep.subr.mxu0 0.0
        %2386 = vmatpush1.msra.mxu0 0.0
        %2387 = vmatprep.subr.mxu0 0.0
        %2388 = vmatpush1.msra.mxu0 0.0
        %2389 = vmatprep.subr.mxu0 0.0
        %2390 = vmatpush1.msra.mxu0 0.0
        %2391 = vmatprep.subr.mxu0 0.0
        %2392 = vmatpush1.msra.mxu0 0.0
        %2393 = vmatprep.subr.mxu0 0.0
        %2394 = vmatpush1.msra.mxu0 0.0
        %2395 = vmatprep.subr.mxu0 0.0
        %2396 = vmatpush1.msra.mxu0 0.0
        %2397 = vmatprep.subr.mxu0 0.0
        %2398 = vmatpush1.msra.mxu0 0.0
        %2399 = vmatprep.subr.mxu0 0.0
        %2400 = vmatpush1.msra.mxu0 0.0
        %2401 = vmatprep.subr.mxu0 0.0
        %2402 = vmatpush1.msra.mxu0 0.0
        %2403 = vmatprep.subr.mxu0 0.0
        %2404 = vmatpush1.msra.mxu0 0.0
        %2405 = vmatprep.subr.mxu0 0.0
        %2406 = vmatpush1.msra.mxu0 0.0
        %2407 = vmatprep.subr.mxu0 0.0
        %2408 = vmatpush1.msra.mxu0 0.0
        %2409 = vmatprep.subr.mxu0 0.0
        %2410 = vmatpush1.msra.mxu0 0.0
        %2411 = vmatprep.subr.mxu0 0.0
        %2412 = vmatpush1.msra.mxu0 0.0
        %2413 = vmatprep.subr.mxu0 0.0
        %2414 = vmatpush1.msra.mxu0 0.0
        %2415 = vmatprep.subr.mxu0 0.0
        %2416 = vmatpush1.msra.mxu0 0.0
        %2417 = vmatprep.subr.mxu0 0.0
        %2418 = vmatpush1.msra.mxu0 0.0
        %2419 = vmatprep.subr.mxu0 0.0
        %2420 = vmatpush1.msra.mxu0 0.0
        %2421 = vmatprep.subr.mxu0 0.0
        %2422 = vmatpush1.msra.mxu0 0.0
        %2423 = vmatprep.subr.mxu0 0.0
        %2424 = vmatpush1.msra.mxu0 0.0
        %2425 = vmatprep.mubr.f32.mxu0 0.0
        %2426 = vmatmul.mubr.f32.gmra.mrb[0].mxu0 %v2350
        %v2427 = vpop.f32.mrb[0].mxu0
        %v2428 = vadd.f32 0.0, %v2427
        %v2429 = vpop.f32.mrb[0].mxu0
        %2430 = vmatprep.mubr.f32.mxu0 0.0
        %2431 = vmatmul.mubr.f32.gmra.mrb[0].mxu0 %v2353
        %v2432 = vpop.f32.mrb[0].mxu0
        %v2433 = vadd.f32 0.0, %v2432
        %v2434 = vpop.f32.mrb[0].mxu0
        %2435 = vmatprep.mubr.f32.mxu0 0.0
        %2436 = vmatmul.mubr.f32.gmra.mrb[0].mxu0 %v2356
        %v2437 = vpop.f32.mrb[0].mxu0
        %v2438 = vadd.f32 0.0, %v2437
        %v2439 = vpop.f32.mrb[0].mxu0
        %2440 = vmatprep.mubr.f32.mxu0 0.0
        %2441 = vmatmul.mubr.f32.gmra.mrb[0].mxu0 %v2359
        %v2442 = vpop.f32.mrb[0].mxu0
        %v2443 = vadd.f32 0.0, %v2442
        %v2444 = vpop.f32.mrb[0].mxu0
        %2445 = vdwg.mxu0
        %2454 = vrot.lane.b32.xlu0 %v2145, 127
        %v2455 = vpop.permute.xlu0 %2454
        %2456 = vrot.lane.b32.xlu0 %v2146, 127
        %v2457 = vpop.permute.xlu0 %2456
        %2458 = vrot.lane.b32.xlu0 %v2147, 127
        %v2459 = vpop.permute.xlu0 %2458
        %2460 = vrot.lane.b32.xlu0 %v2148, 127
        %v2461 = vpop.permute.xlu0 %2460
        %2462 = vrot.lane.b32.xlu0 %v2149, 127
        %v2463 = vpop.permute.xlu0 %2462
        %2464 = vrot.lane.b32.xlu0 %v2150, 127
        %v2465 = vpop.permute.xlu0 %2464
        %2466 = vrot.lane.b32.xlu0 %v2151, 127
        %v2467 = vpop.permute.xlu0 %2466
        %2468 = vrot.lane.b32.xlu0 %v2152, 127
        %v2469 = vpop.permute.xlu0 %2468
        %2478 = vmatprep.subr.mxu0 0.0
        %2479 = vmatpush1.msra.mxu0 %v2134
        %2480 = vmatprep.subr.mxu0 0.0
        %2481 = vmatpush1.msra.mxu0 %v2135
        %2482 = vmatprep.subr.mxu0 0.0
        %2483 = vmatpush1.msra.mxu0 %v2136
        %2484 = vmatprep.subr.mxu0 0.0
        %2485 = vmatpush1.msra.mxu0 %v2137
        %2486 = vmatprep.subr.mxu0 0.0
        %2487 = vmatpush1.msra.mxu0 %v2138
        %2488 = vmatprep.subr.mxu0 0.0
        %2489 = vmatpush1.msra.mxu0 %v2139
        %2490 = vmatprep.subr.mxu0 0.0
        %2491 = vmatpush1.msra.mxu0 %v2140
        %2492 = vmatprep.subr.mxu0 0.0
        %2493 = vmatpush1.msra.mxu0 %v2141
        %2494 = vmatprep.subr.mxu0 0.0
        %2495 = vmatpush1.msra.mxu0 %v2194
        %2496 = vmatprep.subr.mxu0 0.0
        %2497 = vmatpush1.msra.mxu0 %v2196
        %2498 = vmatprep.subr.mxu0 0.0
        %2499 = vmatpush1.msra.mxu0 %v2198
        %2500 = vmatprep.subr.mxu0 0.0
        %2501 = vmatpush1.msra.mxu0 %v2200
        %2502 = vmatprep.subr.mxu0 0.0
        %2503 = vmatpush1.msra.mxu0 %v2202
        %2504 = vmatprep.subr.mxu0 0.0
        %2505 = vmatpush1.msra.mxu0 %v2204
        %2506 = vmatprep.subr.mxu0 0.0
        %2507 = vmatpush1.msra.mxu0 %v2206
        %2508 = vmatprep.subr.mxu0 0.0
        %2509 = vmatpush1.msra.mxu0 %v2208
        %2510 = vmatprep.subr.mxu0 0.0
        %2511 = vmatpush1.msra.mxu0 %v2145
        %2512 = vmatprep.subr.mxu0 0.0
        %2513 = vmatpush1.msra.mxu0 %v2146
        %2514 = vmatprep.subr.mxu0 0.0
        %2515 = vmatpush1.msra.mxu0 %v2147
        %2516 = vmatprep.subr.mxu0 0.0
        %2517 = vmatpush1.msra.mxu0 %v2148
        %2518 = vmatprep.subr.mxu0 0.0
        %2519 = vmatpush1.msra.mxu0 %v2149
        %2520 = vmatprep.subr.mxu0 0.0
        %2521 = vmatpush1.msra.mxu0 %v2150
        %2522 = vmatprep.subr.mxu0 0.0
        %2523 = vmatpush1.msra.mxu0 %v2151
        %2524 = vmatprep.subr.mxu0 0.0
        %2525 = vmatpush1.msra.mxu0 %v2152
        %2526 = vmatprep.subr.mxu0 0.0
        %2527 = vmatpush1.msra.mxu0 %v2455
        %2528 = vmatprep.subr.mxu0 0.0
        %2529 = vmatpush1.msra.mxu0 %v2457
        %2530 = vmatprep.subr.mxu0 0.0
        %2531 = vmatpush1.msra.mxu0 %v2459
        %2532 = vmatprep.subr.mxu0 0.0
        %2533 = vmatpush1.msra.mxu0 %v2461
        %2534 = vmatprep.subr.mxu0 0.0
        %2535 = vmatpush1.msra.mxu0 %v2463
        %2536 = vmatprep.subr.mxu0 0.0
        %2537 = vmatpush1.msra.mxu0 %v2465
        %2538 = vmatprep.subr.mxu0 0.0
        %2539 = vmatpush1.msra.mxu0 %v2467
        %2540 = vmatprep.subr.mxu0 0.0
        %2541 = vmatpush1.msra.mxu0 %v2469
        %2542 = vmatprep.mubr.f32.mxu0 %v2218
        %2543 = vmatmul.mubr.f32.gmra.mrb[0].mxu0 %v2217
        %v2544 = vpop.f32.mrb[0].mxu0
        %v2545 = vadd.f32 %v2232, %v2544
        %v2546 = vpop.f32.mrb[0].mxu0
        %2547 = vmatprep.mubr.f32.mxu0 %v2220
        %2548 = vmatmul.mubr.f32.gmra.mrb[0].mxu0 %v2219
        %v2549 = vpop.f32.mrb[0].mxu0
        %v2550 = vadd.f32 %v2237, %v2549
        %v2551 = vpop.f32.mrb[0].mxu0
        %2552 = vmatprep.mubr.f32.mxu0 %v2222
        %2553 = vmatmul.mubr.f32.gmra.mrb[0].mxu0 %v2221
        %v2554 = vpop.f32.mrb[0].mxu0
        %v2555 = vadd.f32 %v2242, %v2554
        %v2556 = vpop.f32.mrb[0].mxu0
        %2557 = vmatprep.mubr.f32.mxu0 %v2224
        %2558 = vmatmul.mubr.f32.gmra.mrb[0].mxu0 %v2223
        %v2559 = vpop.f32.mrb[0].mxu0
        %v2560 = vadd.f32 %v2247, %v2559
        %v2561 = vpop.f32.mrb[0].mxu0
        %2562 = vdwg.mxu0
        %vm2563 = vcmp.ge.f32.partialorder %v2545, 0.0
        %vm2564 = vcmp.ge.f32.partialorder %v2550, 0.0
        %vm2565 = vcmp.ge.f32.partialorder %v2555, 0.0
        %vm2566 = vcmp.ge.f32.partialorder %v2560, 0.0
        %v2567 = vmul.f32 %v2545, 0.2
        %v2568 = vmul.f32 %v2550, 0.2
        %v2569 = vmul.f32 %v2555, 0.2
        %v2570 = vmul.f32 %v2560, 0.2
        %v2571 = vsel %vm2563, %v2545, %v2567
        %v2572 = vsel %vm2564, %v2550, %v2568
        %v2573 = vsel %vm2565, %v2555, %v2569
        %v2574 = vsel %vm2566, %v2560, %v2570
        %v2576 = vsel %vm2348, %v2571, 0
        %v2579 = vsel %vm2348, %v2572, 0
        %v2582 = vsel %vm2348, %v2573, 0
        %v2585 = vsel %vm2348, %v2574, 0
        %2587 = vmatprep.subr.mxu0 0.0
        %2588 = vmatpush1.msra.mxu0 %v2346
        %2589 = vmatprep.subr.mxu0 0.0
        %2590 = vmatpush1.msra.mxu0 %v2347
        %2591 = vmatprep.subr.mxu0 0.0
        %2592 = vmatpush1.msra.mxu0 0.0
        %2593 = vmatprep.subr.mxu0 0.0
        %2594 = vmatpush1.msra.mxu0 0.0
        %2595 = vmatprep.subr.mxu0 0.0
        %2596 = vmatpush1.msra.mxu0 0.0
        %2597 = vmatprep.subr.mxu0 0.0
        %2598 = vmatpush1.msra.mxu0 0.0
        %2599 = vmatprep.subr.mxu0 0.0
        %2600 = vmatpush1.msra.mxu0 0.0
        %2601 = vmatprep.subr.mxu0 0.0
        %2602 = vmatpush1.msra.mxu0 0.0
        %2603 = vmatprep.subr.mxu0 0.0
        %2604 = vmatpush1.msra.mxu0 0.0
        %2605 = vmatprep.subr.mxu0 0.0
        %2606 = vmatpush1.msra.mxu0 0.0
        %2607 = vmatprep.subr.mxu0 0.0
        %2608 = vmatpush1.msra.mxu0 0.0
        %2609 = vmatprep.subr.mxu0 0.0
        %2610 = vmatpush1.msra.mxu0 0.0
        %2611 = vmatprep.subr.mxu0 0.0
        %2612 = vmatpush1.msra.mxu0 0.0
        %2613 = vmatprep.subr.mxu0 0.0
        %2614 = vmatpush1.msra.mxu0 0.0
        %2615 = vmatprep.subr.mxu0 0.0
        %2616 = vmatpush1.msra.mxu0 0.0
        %2617 = vmatprep.subr.mxu0 0.0
        %2618 = vmatpush1.msra.mxu0 0.0
        %2619 = vmatprep.subr.mxu0 0.0
        %2620 = vmatpush1.msra.mxu0 0.0
        %2621 = vmatprep.subr.mxu0 0.0
        %2622 = vmatpush1.msra.mxu0 0.0
        %2623 = vmatprep.subr.mxu0 0.0
        %2624 = vmatpush1.msra.mxu0 0.0
        %2625 = vmatprep.subr.mxu0 0.0
        %2626 = vmatpush1.msra.mxu0 0.0
        %2627 = vmatprep.subr.mxu0 0.0
        %2628 = vmatpush1.msra.mxu0 0.0
        %2629 = vmatprep.subr.mxu0 0.0
        %2630 = vmatpush1.msra.mxu0 0.0
        %2631 = vmatprep.subr.mxu0 0.0
        %2632 = vmatpush1.msra.mxu0 0.0
        %2633 = vmatprep.subr.mxu0 0.0
        %2634 = vmatpush1.msra.mxu0 0.0
        %2635 = vmatprep.subr.mxu0 0.0
        %2636 = vmatpush1.msra.mxu0 0.0
        %2637 = vmatprep.subr.mxu0 0.0
        %2638 = vmatpush1.msra.mxu0 0.0
        %2639 = vmatprep.subr.mxu0 0.0
        %2640 = vmatpush1.msra.mxu0 0.0
        %2641 = vmatprep.subr.mxu0 0.0
        %2642 = vmatpush1.msra.mxu0 0.0
        %2643 = vmatprep.subr.mxu0 0.0
        %2644 = vmatpush1.msra.mxu0 0.0
        %2645 = vmatprep.subr.mxu0 0.0
        %2646 = vmatpush1.msra.mxu0 0.0
        %2647 = vmatprep.subr.mxu0 0.0
        %2648 = vmatpush1.msra.mxu0 0.0
        %2649 = vmatprep.subr.mxu0 0.0
        %2650 = vmatpush1.msra.mxu0 0.0
        %2651 = vmatprep.mubr.f32.mxu0 0.0
        %2652 = vmatmul.mubr.f32.gmra.mrb[0].mxu0 %v2576
        %v2653 = vpop.f32.mrb[0].mxu0
        %v2654 = vadd.f32 0.0, %v2653
        %v2655 = vpop.f32.mrb[0].mxu0
        %2656 = vmatprep.mubr.f32.mxu0 0.0
        %2657 = vmatmul.mubr.f32.gmra.mrb[0].mxu0 %v2579
        %v2658 = vpop.f32.mrb[0].mxu0
        %v2659 = vadd.f32 0.0, %v2658
        %v2660 = vpop.f32.mrb[0].mxu0
        %2661 = vmatprep.mubr.f32.mxu0 0.0
        %2662 = vmatmul.mubr.f32.gmra.mrb[0].mxu0 %v2582
        %v2663 = vpop.f32.mrb[0].mxu0
        %v2664 = vadd.f32 0.0, %v2663
        %v2665 = vpop.f32.mrb[0].mxu0
        %2666 = vmatprep.mubr.f32.mxu0 0.0
        %2667 = vmatmul.mubr.f32.gmra.mrb[0].mxu0 %v2585
        %v2668 = vpop.f32.mrb[0].mxu0
        %v2669 = vadd.f32 0.0, %v2668
        %v2670 = vpop.f32.mrb[0].mxu0
        %2671 = vdwg.mxu0
        %2676 = vrot.lane.b32.xlu0 %v2428, 119
        %v2677 = vpop.permute.xlu0 %2676
        %2678 = vrot.lane.b32.xlu0 %v2433, 119
        %v2679 = vpop.permute.xlu0 %2678
        %2680 = vrot.lane.b32.xlu0 %v2438, 119
        %v2681 = vpop.permute.xlu0 %2680
        %2682 = vrot.lane.b32.xlu0 %v2443, 119
        %v2683 = vpop.permute.xlu0 %2682
        %2692 = vrot.lane.b32.xlu0 %v2654, 119
        %v2693 = vpop.permute.xlu0 %2692
        %2694 = vrot.lane.b32.xlu0 %v2659, 119
        %v2695 = vpop.permute.xlu0 %2694
        %2696 = vrot.lane.b32.xlu0 %v2664, 119
        %v2697 = vpop.permute.xlu0 %2696
        %2698 = vrot.lane.b32.xlu0 %v2669, 119
        %v2699 = vpop.permute.xlu0 %2698
        %s2704 = sadd.s32 %s2115, 1
        %s2705 = smul.u32 %s2704, 128
        %s2706 = scalar_lea.vmem [#allocation5], %s2705
        %2707 = vst.msk [vmem:[%s2706] sm:$0xff] %vm2097, %v2428
        %2708 = vst.msk [vmem:[%s2706 + $0x8] sm:$0xff] %vm2097, %v2433
        %2709 = vst.msk [vmem:[%s2706 + $0x10] sm:$0xff] %vm2097, %v2438
        %2710 = vst.msk [vmem:[%s2706 + $0x18] sm:$0xff] %vm2097, %v2443
        %2711 = vst.msk [vmem:[%s2706 + $0x20] sm:$0xff] %vm2097, %v2677
        %2712 = vst.msk [vmem:[%s2706 + $0x28] sm:$0xff] %vm2097, %v2679
        %2713 = vst.msk [vmem:[%s2706 + $0x30] sm:$0xff] %vm2097, %v2681
        %2714 = vst.msk [vmem:[%s2706 + $0x38] sm:$0xff] %vm2097, %v2683
        %2715 = vst.msk [vmem:[%s2706 + $0x40] sm:$0xff] %vm2097, %v2654
        %2716 = vst.msk [vmem:[%s2706 + $0x48] sm:$0xff] %vm2097, %v2659
        %2717 = vst.msk [vmem:[%s2706 + $0x50] sm:$0xff] %vm2097, %v2664
        %2718 = vst.msk [vmem:[%s2706 + $0x58] sm:$0xff] %vm2097, %v2669
        %2719 = vst.msk [vmem:[%s2706 + $0x60] sm:$0xff] %vm2097, %v2693
        %2720 = vst.msk [vmem:[%s2706 + $0x68] sm:$0xff] %vm2097, %v2695
        %2721 = vst.msk [vmem:[%s2706 + $0x70] sm:$0xff] %vm2097, %v2697
        %2722 = vst.msk [vmem:[%s2706 + $0x78] sm:$0xff] %vm2097, %v2699
      $region134: #{discriminator_forward.1} parent=107 // loop_footer
        %s2119 = sadd.s32 1, %s2115
      $region135: #{discriminator_forward.1} parent=107 // loop_footer_branch
        %2114 = sbr.rel target = $region131
      $region136: #{discriminator_forward.1} parent=107 // loop_exit
        _
      %vm2723 = vcmask 39936
      %2724 = vst.msk [vmem:[#allocation6] sm:$0xff] %vm2723, 0.0
      %2725 = vst.msk [vmem:[#allocation6 + $0x8] sm:$0xff] %vm2723, 0.0
      %2726 = vst.msk [vmem:[#allocation6 + $0x10] sm:$0xff] %vm2723, 0.0
      %2727 = vst.msk [vmem:[#allocation6 + $0x18] sm:$0xff] %vm2723, 0.0
      %2728 = vst.msk [vmem:[#allocation6 + $0x20] sm:$0xff] %vm2723, 0.0
      %2729 = vst.msk [vmem:[#allocation6 + $0x28] sm:$0xff] %vm2723, 0.0
      %2730 = vst.msk [vmem:[#allocation6 + $0x30] sm:$0xff] %vm2723, 0.0
      %2731 = vst.msk [vmem:[#allocation6 + $0x38] sm:$0xff] %vm2723, 0.0
      %2732 = vst.msk [vmem:[#allocation6 + $0x40] sm:$0xff] %vm2723, 0.0
      %2733 = vst.msk [vmem:[#allocation6 + $0x48] sm:$0xff] %vm2723, 0.0
      %2734 = vst.msk [vmem:[#allocation6 + $0x50] sm:$0xff] %vm2723, 0.0
      %2735 = vst.msk [vmem:[#allocation6 + $0x58] sm:$0xff] %vm2723, 0.0
      %2736 = vst.msk [vmem:[#allocation6 + $0x60] sm:$0xff] %vm2723, 0.0
      %2737 = vst.msk [vmem:[#allocation6 + $0x68] sm:$0xff] %vm2723, 0.0
      %2738 = vst.msk [vmem:[#allocation6 + $0x70] sm:$0xff] %vm2723, 0.0
      %2739 = vst.msk [vmem:[#allocation6 + $0x78] sm:$0xff] %vm2723, 0.0
      loop: start=0, step=1, limit=4
      $region137: #{discriminator_forward.1} parent=107 // loop_pre_header
        _
      $region138: #{discriminator_forward.1} parent=107 // loop_header
        %s2741 = sphi 0, %s2745
        %p2742 = scmp.ge.s32.totalorder %s2741, 4
      $region139: #{discriminator_forward.1} parent=107 // loop_header_branch
        %2744 = sbr.rel (%p2742) target = $region143
      $region140: #{discriminator_forward.1} parent=107 // loop_body
        %s2746 = smul.u32 %s2741, 2
        %s2747 = smul.u32 %s2746, 128
        %s2748 = scalar_lea.vmem [#allocation5], %s2747
        %v2749 = vld [vmem:[%s2748] sm:$0xff]
        %v2750 = vld [vmem:[%s2748 + $0x8] sm:$0xff]
        %v2751 = vld [vmem:[%s2748 + $0x10] sm:$0xff]
        %v2752 = vld [vmem:[%s2748 + $0x18] sm:$0xff]
        %v2753 = vld [vmem:[%s2748 + $0x20] sm:$0xff]
        %v2754 = vld [vmem:[%s2748 + $0x28] sm:$0xff]
        %v2755 = vld [vmem:[%s2748 + $0x30] sm:$0xff]
        %v2756 = vld [vmem:[%s2748 + $0x38] sm:$0xff]
        %v2757 = vld [vmem:[%s2748 + $0x40] sm:$0xff]
        %v2758 = vld [vmem:[%s2748 + $0x48] sm:$0xff]
        %v2759 = vld [vmem:[%s2748 + $0x50] sm:$0xff]
        %v2760 = vld [vmem:[%s2748 + $0x58] sm:$0xff]
        %v2761 = vld [vmem:[%s2748 + $0x60] sm:$0xff]
        %v2762 = vld [vmem:[%s2748 + $0x68] sm:$0xff]
        %v2763 = vld [vmem:[%s2748 + $0x70] sm:$0xff]
        %v2764 = vld [vmem:[%s2748 + $0x78] sm:$0xff]
        %s2765 = sadd.s32 %s2746, 1
        %s2766 = smul.u32 %s2765, 128
        %s2767 = scalar_lea.vmem [#allocation5], %s2766
        %v2768 = vld [vmem:[%s2767] sm:$0xff]
        %v2769 = vld [vmem:[%s2767 + $0x8] sm:$0xff]
        %v2770 = vld [vmem:[%s2767 + $0x10] sm:$0xff]
        %v2771 = vld [vmem:[%s2767 + $0x18] sm:$0xff]
        %v2772 = vld [vmem:[%s2767 + $0x20] sm:$0xff]
        %v2773 = vld [vmem:[%s2767 + $0x28] sm:$0xff]
        %v2774 = vld [vmem:[%s2767 + $0x30] sm:$0xff]
        %v2775 = vld [vmem:[%s2767 + $0x38] sm:$0xff]
        %v2776 = vld [vmem:[%s2767 + $0x40] sm:$0xff]
        %v2777 = vld [vmem:[%s2767 + $0x48] sm:$0xff]
        %v2778 = vld [vmem:[%s2767 + $0x50] sm:$0xff]
        %v2779 = vld [vmem:[%s2767 + $0x58] sm:$0xff]
        %v2780 = vld [vmem:[%s2767 + $0x60] sm:$0xff]
        %v2781 = vld [vmem:[%s2767 + $0x68] sm:$0xff]
        %v2782 = vld [vmem:[%s2767 + $0x70] sm:$0xff]
        %v2783 = vld [vmem:[%s2767 + $0x78] sm:$0xff]
        %s2784 = sadd.s32 %s2746, 2
        %s2785 = smul.u32 %s2784, 128
        %s2786 = scalar_lea.vmem [#allocation5], %s2785
        %v2787 = vld [vmem:[%s2786] sm:$0xff]
        %v2788 = vld [vmem:[%s2786 + $0x8] sm:$0xff]
        %v2789 = vld [vmem:[%s2786 + $0x10] sm:$0xff]
        %v2790 = vld [vmem:[%s2786 + $0x18] sm:$0xff]
        %v2791 = vld [vmem:[%s2786 + $0x20] sm:$0xff]
        %v2792 = vld [vmem:[%s2786 + $0x28] sm:$0xff]
        %v2793 = vld [vmem:[%s2786 + $0x30] sm:$0xff]
        %v2794 = vld [vmem:[%s2786 + $0x38] sm:$0xff]
        %v2795 = vld [vmem:[%s2786 + $0x40] sm:$0xff]
        %v2796 = vld [vmem:[%s2786 + $0x48] sm:$0xff]
        %v2797 = vld [vmem:[%s2786 + $0x50] sm:$0xff]
        %v2798 = vld [vmem:[%s2786 + $0x58] sm:$0xff]
        %v2799 = vld [vmem:[%s2786 + $0x60] sm:$0xff]
        %v2800 = vld [vmem:[%s2786 + $0x68] sm:$0xff]
        %v2801 = vld [vmem:[%s2786 + $0x70] sm:$0xff]
        %v2802 = vld [vmem:[%s2786 + $0x78] sm:$0xff]
        %2819 = vrot.lane.b32.xlu0 %v2749, 127
        %v2820 = vpop.permute.xlu0 %2819
        %2821 = vrot.lane.b32.xlu0 %v2750, 127
        %v2822 = vpop.permute.xlu0 %2821
        %2823 = vrot.lane.b32.xlu0 %v2751, 127
        %v2824 = vpop.permute.xlu0 %2823
        %2825 = vrot.lane.b32.xlu0 %v2752, 127
        %v2826 = vpop.permute.xlu0 %2825
        %2827 = vrot.lane.b32.xlu0 %v2753, 127
        %v2828 = vpop.permute.xlu0 %2827
        %2829 = vrot.lane.b32.xlu0 %v2754, 127
        %v2830 = vpop.permute.xlu0 %2829
        %2831 = vrot.lane.b32.xlu0 %v2755, 127
        %v2832 = vpop.permute.xlu0 %2831
        %2833 = vrot.lane.b32.xlu0 %v2756, 127
        %v2834 = vpop.permute.xlu0 %2833
        %2835 = vrot.lane.b32.xlu0 %v2757, 127
        %v2836 = vpop.permute.xlu0 %2835
        %2837 = vrot.lane.b32.xlu0 %v2758, 127
        %v2838 = vpop.permute.xlu0 %2837
        %2839 = vrot.lane.b32.xlu0 %v2759, 127
        %v2840 = vpop.permute.xlu0 %2839
        %2841 = vrot.lane.b32.xlu0 %v2760, 127
        %v2842 = vpop.permute.xlu0 %2841
        %2843 = vrot.lane.b32.xlu0 %v2761, 127
        %v2844 = vpop.permute.xlu0 %2843
        %2845 = vrot.lane.b32.xlu0 %v2762, 127
        %v2846 = vpop.permute.xlu0 %2845
        %2847 = vrot.lane.b32.xlu0 %v2763, 127
        %v2848 = vpop.permute.xlu0 %2847
        %2849 = vrot.lane.b32.xlu0 %v2764, 127
        %v2850 = vpop.permute.xlu0 %2849
        %2883 = vrot.lane.b32.xlu0 %v2768, 127
        %v2884 = vpop.permute.xlu0 %2883
        %2885 = vrot.lane.b32.xlu0 %v2769, 127
        %v2886 = vpop.permute.xlu0 %2885
        %2887 = vrot.lane.b32.xlu0 %v2770, 127
        %v2888 = vpop.permute.xlu0 %2887
        %2889 = vrot.lane.b32.xlu0 %v2771, 127
        %v2890 = vpop.permute.xlu0 %2889
        %2891 = vrot.lane.b32.xlu0 %v2772, 127
        %v2892 = vpop.permute.xlu0 %2891
        %2893 = vrot.lane.b32.xlu0 %v2773, 127
        %v2894 = vpop.permute.xlu0 %2893
        %2895 = vrot.lane.b32.xlu0 %v2774, 127
        %v2896 = vpop.permute.xlu0 %2895
        %2897 = vrot.lane.b32.xlu0 %v2775, 127
        %v2898 = vpop.permute.xlu0 %2897
        %2899 = vrot.lane.b32.xlu0 %v2776, 127
        %v2900 = vpop.permute.xlu0 %2899
        %2901 = vrot.lane.b32.xlu0 %v2777, 127
        %v2902 = vpop.permute.xlu0 %2901
        %2903 = vrot.lane.b32.xlu0 %v2778, 127
        %v2904 = vpop.permute.xlu0 %2903
        %2905 = vrot.lane.b32.xlu0 %v2779, 127
        %v2906 = vpop.permute.xlu0 %2905
        %2907 = vrot.lane.b32.xlu0 %v2780, 127
        %v2908 = vpop.permute.xlu0 %2907
        %2909 = vrot.lane.b32.xlu0 %v2781, 127
        %v2910 = vpop.permute.xlu0 %2909
        %2911 = vrot.lane.b32.xlu0 %v2782, 127
        %v2912 = vpop.permute.xlu0 %2911
        %2913 = vrot.lane.b32.xlu0 %v2783, 127
        %v2914 = vpop.permute.xlu0 %2913
        %v2931 = vld [vmem:[%s5] sm:$0xff]
        %v2932 = vld [vmem:[%s5 + $0x8] sm:$0xff]
        %v2933 = vld [vmem:[%s5 + $0x10] sm:$0xff]
        %v2934 = vld [vmem:[%s5 + $0x18] sm:$0xff]
        %v2935 = vld [vmem:[%s5 + $0x20] sm:$0xff]
        %v2936 = vld [vmem:[%s5 + $0x28] sm:$0xff]
        %v2937 = vld [vmem:[%s5 + $0x30] sm:$0xff]
        %v2938 = vld [vmem:[%s5 + $0x38] sm:$0xff]
        %v2939 = vld [vmem:[%s5 + $0x40] sm:$0xff]
        %v2940 = vld [vmem:[%s5 + $0x48] sm:$0xff]
        %v2941 = vld [vmem:[%s5 + $0x50] sm:$0xff]
        %v2942 = vld [vmem:[%s5 + $0x58] sm:$0xff]
        %v2943 = vld [vmem:[%s5 + $0x60] sm:$0xff]
        %v2944 = vld [vmem:[%s5 + $0x68] sm:$0xff]
        %v2945 = vld [vmem:[%s5 + $0x70] sm:$0xff]
        %v2946 = vld [vmem:[%s5 + $0x78] sm:$0xff]
        %v2947 = vld [vmem:[%s11] sm:$0xff]
        %v2948 = vld [vmem:[%s11 + $0x8] sm:$0xff]
        %v2949 = vld [vmem:[%s11 + $0x10] sm:$0xff]
        %v2950 = vld [vmem:[%s11 + $0x18] sm:$0xff]
        %2952 = vset.pattern.permute.xlu0 0
        %2953 = vperm.xlu0 %2952, %v2947
        %v2954 = vpop.permute.xlu0 %2953
        %2957 = vset.pattern.permute.xlu0 0
        %2958 = vperm.xlu0 %2957, %v2948
        %v2959 = vpop.permute.xlu0 %2958
        %2962 = vset.pattern.permute.xlu0 0
        %2963 = vperm.xlu0 %2962, %v2949
        %v2964 = vpop.permute.xlu0 %2963
        %2967 = vset.pattern.permute.xlu0 0
        %2968 = vperm.xlu0 %2967, %v2950
        %v2969 = vpop.permute.xlu0 %2968
        %2971 = vmatprep.subr.mxu0 0.0
        %2972 = vmatpush1.msra.mxu0 %v2749
        %2973 = vmatprep.subr.mxu0 0.0
        %2974 = vmatpush1.msra.mxu0 %v2750
        %2975 = vmatprep.subr.mxu0 0.0
        %2976 = vmatpush1.msra.mxu0 %v2751
        %2977 = vmatprep.subr.mxu0 0.0
        %2978 = vmatpush1.msra.mxu0 %v2752
        %2979 = vmatprep.subr.mxu0 0.0
        %2980 = vmatpush1.msra.mxu0 %v2753
        %2981 = vmatprep.subr.mxu0 0.0
        %2982 = vmatpush1.msra.mxu0 %v2754
        %2983 = vmatprep.subr.mxu0 0.0
        %2984 = vmatpush1.msra.mxu0 %v2755
        %2985 = vmatprep.subr.mxu0 0.0
        %2986 = vmatpush1.msra.mxu0 %v2756
        %2987 = vmatprep.subr.mxu0 0.0
        %2988 = vmatpush1.msra.mxu0 %v2757
        %2989 = vmatprep.subr.mxu0 0.0
        %2990 = vmatpush1.msra.mxu0 %v2758
        %2991 = vmatprep.subr.mxu0 0.0
        %2992 = vmatpush1.msra.mxu0 %v2759
        %2993 = vmatprep.subr.mxu0 0.0
        %2994 = vmatpush1.msra.mxu0 %v2760
        %2995 = vmatprep.subr.mxu0 0.0
        %2996 = vmatpush1.msra.mxu0 %v2761
        %2997 = vmatprep.subr.mxu0 0.0
        %2998 = vmatpush1.msra.mxu0 %v2762
        %2999 = vmatprep.subr.mxu0 0.0
        %3000 = vmatpush1.msra.mxu0 %v2763
        %3001 = vmatprep.subr.mxu0 0.0
        %3002 = vmatpush1.msra.mxu0 %v2764
        %3003 = vmatprep.subr.mxu0 0.0
        %3004 = vmatpush1.msra.mxu0 %v2820
        %3005 = vmatprep.subr.mxu0 0.0
        %3006 = vmatpush1.msra.mxu0 %v2822
        %3007 = vmatprep.subr.mxu0 0.0
        %3008 = vmatpush1.msra.mxu0 %v2824
        %3009 = vmatprep.subr.mxu0 0.0
        %3010 = vmatpush1.msra.mxu0 %v2826
        %3011 = vmatprep.subr.mxu0 0.0
        %3012 = vmatpush1.msra.mxu0 %v2828
        %3013 = vmatprep.subr.mxu0 0.0
        %3014 = vmatpush1.msra.mxu0 %v2830
        %3015 = vmatprep.subr.mxu0 0.0
        %3016 = vmatpush1.msra.mxu0 %v2832
        %3017 = vmatprep.subr.mxu0 0.0
        %3018 = vmatpush1.msra.mxu0 %v2834
        %3019 = vmatprep.subr.mxu0 0.0
        %3020 = vmatpush1.msra.mxu0 %v2836
        %3021 = vmatprep.subr.mxu0 0.0
        %3022 = vmatpush1.msra.mxu0 %v2838
        %3023 = vmatprep.subr.mxu0 0.0
        %3024 = vmatpush1.msra.mxu0 %v2840
        %3025 = vmatprep.subr.mxu0 0.0
        %3026 = vmatpush1.msra.mxu0 %v2842
        %3027 = vmatprep.subr.mxu0 0.0
        %3028 = vmatpush1.msra.mxu0 %v2844
        %3029 = vmatprep.subr.mxu0 0.0
        %3030 = vmatpush1.msra.mxu0 %v2846
        %3031 = vmatprep.subr.mxu0 0.0
        %3032 = vmatpush1.msra.mxu0 %v2848
        %3033 = vmatprep.subr.mxu0 0.0
        %3034 = vmatpush1.msra.mxu0 %v2850
        %3035 = vmatprep.mubr.f32.mxu0 %v2932
        %3036 = vmatmul.mubr.f32.gmra.mrb[0].mxu0 %v2931
        %v3037 = vpop.f32.mrb[0].mxu0
        %v3038 = vadd.f32 %v2954, %v3037
        %v3039 = vpop.f32.mrb[0].mxu0
        %3040 = vmatprep.mubr.f32.mxu0 %v2936
        %3041 = vmatmul.mubr.f32.gmra.mrb[0].mxu0 %v2935
        %v3042 = vpop.f32.mrb[0].mxu0
        %v3043 = vadd.f32 %v2959, %v3042
        %v3044 = vpop.f32.mrb[0].mxu0
        %3045 = vmatprep.mubr.f32.mxu0 %v2940
        %3046 = vmatmul.mubr.f32.gmra.mrb[0].mxu0 %v2939
        %v3047 = vpop.f32.mrb[0].mxu0
        %v3048 = vadd.f32 %v2964, %v3047
        %v3049 = vpop.f32.mrb[0].mxu0
        %3050 = vmatprep.mubr.f32.mxu0 %v2944
        %3051 = vmatmul.mubr.f32.gmra.mrb[0].mxu0 %v2943
        %v3052 = vpop.f32.mrb[0].mxu0
        %v3053 = vadd.f32 %v2969, %v3052
        %v3054 = vpop.f32.mrb[0].mxu0
        %3055 = vdwg.mxu0
        %3056 = vmatprep.subr.mxu0 0.0
        %3057 = vmatpush1.msra.mxu0 %v2768
        %3058 = vmatprep.subr.mxu0 0.0
        %3059 = vmatpush1.msra.mxu0 %v2769
        %3060 = vmatprep.subr.mxu0 0.0
        %3061 = vmatpush1.msra.mxu0 %v2770
        %3062 = vmatprep.subr.mxu0 0.0
        %3063 = vmatpush1.msra.mxu0 %v2771
        %3064 = vmatprep.subr.mxu0 0.0
        %3065 = vmatpush1.msra.mxu0 %v2772
        %3066 = vmatprep.subr.mxu0 0.0
        %3067 = vmatpush1.msra.mxu0 %v2773
        %3068 = vmatprep.subr.mxu0 0.0
        %3069 = vmatpush1.msra.mxu0 %v2774
        %3070 = vmatprep.subr.mxu0 0.0
        %3071 = vmatpush1.msra.mxu0 %v2775
        %3072 = vmatprep.subr.mxu0 0.0
        %3073 = vmatpush1.msra.mxu0 %v2776
        %3074 = vmatprep.subr.mxu0 0.0
        %3075 = vmatpush1.msra.mxu0 %v2777
        %3076 = vmatprep.subr.mxu0 0.0
        %3077 = vmatpush1.msra.mxu0 %v2778
        %3078 = vmatprep.subr.mxu0 0.0
        %3079 = vmatpush1.msra.mxu0 %v2779
        %3080 = vmatprep.subr.mxu0 0.0
        %3081 = vmatpush1.msra.mxu0 %v2780
        %3082 = vmatprep.subr.mxu0 0.0
        %3083 = vmatpush1.msra.mxu0 %v2781
        %3084 = vmatprep.subr.mxu0 0.0
        %3085 = vmatpush1.msra.mxu0 %v2782
        %3086 = vmatprep.subr.mxu0 0.0
        %3087 = vmatpush1.msra.mxu0 %v2783
        %3088 = vmatprep.subr.mxu0 0.0
        %3089 = vmatpush1.msra.mxu0 %v2884
        %3090 = vmatprep.subr.mxu0 0.0
        %3091 = vmatpush1.msra.mxu0 %v2886
        %3092 = vmatprep.subr.mxu0 0.0
        %3093 = vmatpush1.msra.mxu0 %v2888
        %3094 = vmatprep.subr.mxu0 0.0
        %3095 = vmatpush1.msra.mxu0 %v2890
        %3096 = vmatprep.subr.mxu0 0.0
        %3097 = vmatpush1.msra.mxu0 %v2892
        %3098 = vmatprep.subr.mxu0 0.0
        %3099 = vmatpush1.msra.mxu0 %v2894
        %3100 = vmatprep.subr.mxu0 0.0
        %3101 = vmatpush1.msra.mxu0 %v2896
        %3102 = vmatprep.subr.mxu0 0.0
        %3103 = vmatpush1.msra.mxu0 %v2898
        %3104 = vmatprep.subr.mxu0 0.0
        %3105 = vmatpush1.msra.mxu0 %v2900
        %3106 = vmatprep.subr.mxu0 0.0
        %3107 = vmatpush1.msra.mxu0 %v2902
        %3108 = vmatprep.subr.mxu0 0.0
        %3109 = vmatpush1.msra.mxu0 %v2904
        %3110 = vmatprep.subr.mxu0 0.0
        %3111 = vmatpush1.msra.mxu0 %v2906
        %3112 = vmatprep.subr.mxu0 0.0
        %3113 = vmatpush1.msra.mxu0 %v2908
        %3114 = vmatprep.subr.mxu0 0.0
        %3115 = vmatpush1.msra.mxu0 %v2910
        %3116 = vmatprep.subr.mxu0 0.0
        %3117 = vmatpush1.msra.mxu0 %v2912
        %3118 = vmatprep.subr.mxu0 0.0
        %3119 = vmatpush1.msra.mxu0 %v2914
        %3120 = vmatprep.mubr.f32.mxu0 %v2934
        %3121 = vmatmul.mubr.f32.gmra.mrb[0].mxu0 %v2933
        %v3122 = vpop.f32.mrb[0].mxu0
        %v3123 = vadd.f32 %v3038, %v3122
        %v3124 = vpop.f32.mrb[0].mxu0
        %3125 = vmatprep.mubr.f32.mxu0 %v2938
        %3126 = vmatmul.mubr.f32.gmra.mrb[0].mxu0 %v2937
        %v3127 = vpop.f32.mrb[0].mxu0
        %v3128 = vadd.f32 %v3043, %v3127
        %v3129 = vpop.f32.mrb[0].mxu0
        %3130 = vmatprep.mubr.f32.mxu0 %v2942
        %3131 = vmatmul.mubr.f32.gmra.mrb[0].mxu0 %v2941
        %v3132 = vpop.f32.mrb[0].mxu0
        %v3133 = vadd.f32 %v3048, %v3132
        %v3134 = vpop.f32.mrb[0].mxu0
        %3135 = vmatprep.mubr.f32.mxu0 %v2946
        %3136 = vmatmul.mubr.f32.gmra.mrb[0].mxu0 %v2945
        %v3137 = vpop.f32.mrb[0].mxu0
        %v3138 = vadd.f32 %v3053, %v3137
        %v3139 = vpop.f32.mrb[0].mxu0
        %3140 = vdwg.mxu0
        %vm3141 = vcmp.ge.f32.partialorder %v3123, 0.0
        %vm3142 = vcmp.ge.f32.partialorder %v3128, 0.0
        %vm3143 = vcmp.ge.f32.partialorder %v3133, 0.0
        %vm3144 = vcmp.ge.f32.partialorder %v3138, 0.0
        %v3145 = vmul.f32 %v3123, 0.2
        %v3146 = vmul.f32 %v3128, 0.2
        %v3147 = vmul.f32 %v3133, 0.2
        %v3148 = vmul.f32 %v3138, 0.2
        %v3149 = vsel %vm3141, %v3123, %v3145
        %v3150 = vsel %vm3142, %v3128, %v3146
        %v3151 = vsel %vm3143, %v3133, %v3147
        %v3152 = vsel %vm3144, %v3138, %v3148
        %v3153 = vld [vmem:[%s17] sm:$0xff]
        %vm3154 = vcmask 64512
        %v3156 = vsel %vm3154, %v3149, 0
        %v3159 = vsel %vm3154, %v3150, 0
        %v3162 = vsel %vm3154, %v3151, 0
        %v3165 = vsel %vm3154, %v3152, 0
        %3167 = vmatprep.subr.mxu0 0.0
        %3168 = vmatpush1.msra.mxu0 %v3153
        %3169 = vmatprep.subr.mxu0 0.0
        %3170 = vmatpush1.msra.mxu0 0.0
        %3171 = vmatprep.subr.mxu0 0.0
        %3172 = vmatpush1.msra.mxu0 0.0
        %3173 = vmatprep.subr.mxu0 0.0
        %3174 = vmatpush1.msra.mxu0 0.0
        %3175 = vmatprep.subr.mxu0 0.0
        %3176 = vmatpush1.msra.mxu0 0.0
        %3177 = vmatprep.subr.mxu0 0.0
        %3178 = vmatpush1.msra.mxu0 0.0
        %3179 = vmatprep.subr.mxu0 0.0
        %3180 = vmatpush1.msra.mxu0 0.0
        %3181 = vmatprep.subr.mxu0 0.0
        %3182 = vmatpush1.msra.mxu0 0.0
        %3183 = vmatprep.subr.mxu0 0.0
        %3184 = vmatpush1.msra.mxu0 0.0
        %3185 = vmatprep.subr.mxu0 0.0
        %3186 = vmatpush1.msra.mxu0 0.0
        %3187 = vmatprep.subr.mxu0 0.0
        %3188 = vmatpush1.msra.mxu0 0.0
        %3189 = vmatprep.subr.mxu0 0.0
        %3190 = vmatpush1.msra.mxu0 0.0
        %3191 = vmatprep.subr.mxu0 0.0
        %3192 = vmatpush1.msra.mxu0 0.0
        %3193 = vmatprep.subr.mxu0 0.0
        %3194 = vmatpush1.msra.mxu0 0.0
        %3195 = vmatprep.subr.mxu0 0.0
        %3196 = vmatpush1.msra.mxu0 0.0
        %3197 = vmatprep.subr.mxu0 0.0
        %3198 = vmatpush1.msra.mxu0 0.0
        %3199 = vmatprep.subr.mxu0 0.0
        %3200 = vmatpush1.msra.mxu0 0.0
        %3201 = vmatprep.subr.mxu0 0.0
        %3202 = vmatpush1.msra.mxu0 0.0
        %3203 = vmatprep.subr.mxu0 0.0
        %3204 = vmatpush1.msra.mxu0 0.0
        %3205 = vmatprep.subr.mxu0 0.0
        %3206 = vmatpush1.msra.mxu0 0.0
        %3207 = vmatprep.subr.mxu0 0.0
        %3208 = vmatpush1.msra.mxu0 0.0
        %3209 = vmatprep.subr.mxu0 0.0
        %3210 = vmatpush1.msra.mxu0 0.0
        %3211 = vmatprep.subr.mxu0 0.0
        %3212 = vmatpush1.msra.mxu0 0.0
        %3213 = vmatprep.subr.mxu0 0.0
        %3214 = vmatpush1.msra.mxu0 0.0
        %3215 = vmatprep.subr.mxu0 0.0
        %3216 = vmatpush1.msra.mxu0 0.0
        %3217 = vmatprep.subr.mxu0 0.0
        %3218 = vmatpush1.msra.mxu0 0.0
        %3219 = vmatprep.subr.mxu0 0.0
        %3220 = vmatpush1.msra.mxu0 0.0
        %3221 = vmatprep.subr.mxu0 0.0
        %3222 = vmatpush1.msra.mxu0 0.0
        %3223 = vmatprep.subr.mxu0 0.0
        %3224 = vmatpush1.msra.mxu0 0.0
        %3225 = vmatprep.subr.mxu0 0.0
        %3226 = vmatpush1.msra.mxu0 0.0
        %3227 = vmatprep.subr.mxu0 0.0
        %3228 = vmatpush1.msra.mxu0 0.0
        %3229 = vmatprep.subr.mxu0 0.0
        %3230 = vmatpush1.msra.mxu0 0.0
        %3231 = vmatprep.mubr.f32.mxu0 0.0
        %3232 = vmatmul.mubr.f32.gmra.mrb[0].mxu0 %v3156
        %v3233 = vpop.f32.mrb[0].mxu0
        %v3234 = vadd.f32 0.0, %v3233
        %v3235 = vpop.f32.mrb[0].mxu0
        %3236 = vmatprep.mubr.f32.mxu0 0.0
        %3237 = vmatmul.mubr.f32.gmra.mrb[0].mxu0 %v3159
        %v3238 = vpop.f32.mrb[0].mxu0
        %v3239 = vadd.f32 0.0, %v3238
        %v3240 = vpop.f32.mrb[0].mxu0
        %3241 = vmatprep.mubr.f32.mxu0 0.0
        %3242 = vmatmul.mubr.f32.gmra.mrb[0].mxu0 %v3162
        %v3243 = vpop.f32.mrb[0].mxu0
        %v3244 = vadd.f32 0.0, %v3243
        %v3245 = vpop.f32.mrb[0].mxu0
        %3246 = vmatprep.mubr.f32.mxu0 0.0
        %3247 = vmatmul.mubr.f32.gmra.mrb[0].mxu0 %v3165
        %v3248 = vpop.f32.mrb[0].mxu0
        %v3249 = vadd.f32 0.0, %v3248
        %v3250 = vpop.f32.mrb[0].mxu0
        %3251 = vdwg.mxu0
        %3268 = vrot.lane.b32.xlu0 %v2787, 127
        %v3269 = vpop.permute.xlu0 %3268
        %3270 = vrot.lane.b32.xlu0 %v2788, 127
        %v3271 = vpop.permute.xlu0 %3270
        %3272 = vrot.lane.b32.xlu0 %v2789, 127
        %v3273 = vpop.permute.xlu0 %3272
        %3274 = vrot.lane.b32.xlu0 %v2790, 127
        %v3275 = vpop.permute.xlu0 %3274
        %3276 = vrot.lane.b32.xlu0 %v2791, 127
        %v3277 = vpop.permute.xlu0 %3276
        %3278 = vrot.lane.b32.xlu0 %v2792, 127
        %v3279 = vpop.permute.xlu0 %3278
        %3280 = vrot.lane.b32.xlu0 %v2793, 127
        %v3281 = vpop.permute.xlu0 %3280
        %3282 = vrot.lane.b32.xlu0 %v2794, 127
        %v3283 = vpop.permute.xlu0 %3282
        %3284 = vrot.lane.b32.xlu0 %v2795, 127
        %v3285 = vpop.permute.xlu0 %3284
        %3286 = vrot.lane.b32.xlu0 %v2796, 127
        %v3287 = vpop.permute.xlu0 %3286
        %3288 = vrot.lane.b32.xlu0 %v2797, 127
        %v3289 = vpop.permute.xlu0 %3288
        %3290 = vrot.lane.b32.xlu0 %v2798, 127
        %v3291 = vpop.permute.xlu0 %3290
        %3292 = vrot.lane.b32.xlu0 %v2799, 127
        %v3293 = vpop.permute.xlu0 %3292
        %3294 = vrot.lane.b32.xlu0 %v2800, 127
        %v3295 = vpop.permute.xlu0 %3294
        %3296 = vrot.lane.b32.xlu0 %v2801, 127
        %v3297 = vpop.permute.xlu0 %3296
        %3298 = vrot.lane.b32.xlu0 %v2802, 127
        %v3299 = vpop.permute.xlu0 %3298
        %3316 = vmatprep.subr.mxu0 0.0
        %3317 = vmatpush1.msra.mxu0 %v2768
        %3318 = vmatprep.subr.mxu0 0.0
        %3319 = vmatpush1.msra.mxu0 %v2769
        %3320 = vmatprep.subr.mxu0 0.0
        %3321 = vmatpush1.msra.mxu0 %v2770
        %3322 = vmatprep.subr.mxu0 0.0
        %3323 = vmatpush1.msra.mxu0 %v2771
        %3324 = vmatprep.subr.mxu0 0.0
        %3325 = vmatpush1.msra.mxu0 %v2772
        %3326 = vmatprep.subr.mxu0 0.0
        %3327 = vmatpush1.msra.mxu0 %v2773
        %3328 = vmatprep.subr.mxu0 0.0
        %3329 = vmatpush1.msra.mxu0 %v2774
        %3330 = vmatprep.subr.mxu0 0.0
        %3331 = vmatpush1.msra.mxu0 %v2775
        %3332 = vmatprep.subr.mxu0 0.0
        %3333 = vmatpush1.msra.mxu0 %v2776
        %3334 = vmatprep.subr.mxu0 0.0
        %3335 = vmatpush1.msra.mxu0 %v2777
        %3336 = vmatprep.subr.mxu0 0.0
        %3337 = vmatpush1.msra.mxu0 %v2778
        %3338 = vmatprep.subr.mxu0 0.0
        %3339 = vmatpush1.msra.mxu0 %v2779
        %3340 = vmatprep.subr.mxu0 0.0
        %3341 = vmatpush1.msra.mxu0 %v2780
        %3342 = vmatprep.subr.mxu0 0.0
        %3343 = vmatpush1.msra.mxu0 %v2781
        %3344 = vmatprep.subr.mxu0 0.0
        %3345 = vmatpush1.msra.mxu0 %v2782
        %3346 = vmatprep.subr.mxu0 0.0
        %3347 = vmatpush1.msra.mxu0 %v2783
        %3348 = vmatprep.subr.mxu0 0.0
        %3349 = vmatpush1.msra.mxu0 %v2884
        %3350 = vmatprep.subr.mxu0 0.0
        %3351 = vmatpush1.msra.mxu0 %v2886
        %3352 = vmatprep.subr.mxu0 0.0
        %3353 = vmatpush1.msra.mxu0 %v2888
        %3354 = vmatprep.subr.mxu0 0.0
        %3355 = vmatpush1.msra.mxu0 %v2890
        %3356 = vmatprep.subr.mxu0 0.0
        %3357 = vmatpush1.msra.mxu0 %v2892
        %3358 = vmatprep.subr.mxu0 0.0
        %3359 = vmatpush1.msra.mxu0 %v2894
        %3360 = vmatprep.subr.mxu0 0.0
        %3361 = vmatpush1.msra.mxu0 %v2896
        %3362 = vmatprep.subr.mxu0 0.0
        %3363 = vmatpush1.msra.mxu0 %v2898
        %3364 = vmatprep.subr.mxu0 0.0
        %3365 = vmatpush1.msra.mxu0 %v2900
        %3366 = vmatprep.subr.mxu0 0.0
        %3367 = vmatpush1.msra.mxu0 %v2902
        %3368 = vmatprep.subr.mxu0 0.0
        %3369 = vmatpush1.msra.mxu0 %v2904
        %3370 = vmatprep.subr.mxu0 0.0
        %3371 = vmatpush1.msra.mxu0 %v2906
        %3372 = vmatprep.subr.mxu0 0.0
        %3373 = vmatpush1.msra.mxu0 %v2908
        %3374 = vmatprep.subr.mxu0 0.0
        %3375 = vmatpush1.msra.mxu0 %v2910
        %3376 = vmatprep.subr.mxu0 0.0
        %3377 = vmatpush1.msra.mxu0 %v2912
        %3378 = vmatprep.subr.mxu0 0.0
        %3379 = vmatpush1.msra.mxu0 %v2914
        %3380 = vmatprep.mubr.f32.mxu0 %v2932
        %3381 = vmatmul.mubr.f32.gmra.mrb[0].mxu0 %v2931
        %v3382 = vpop.f32.mrb[0].mxu0
        %v3383 = vadd.f32 %v2954, %v3382
        %v3384 = vpop.f32.mrb[0].mxu0
        %3385 = vmatprep.mubr.f32.mxu0 %v2936
        %3386 = vmatmul.mubr.f32.gmra.mrb[0].mxu0 %v2935
        %v3387 = vpop.f32.mrb[0].mxu0
        %v3388 = vadd.f32 %v2959, %v3387
        %v3389 = vpop.f32.mrb[0].mxu0
        %3390 = vmatprep.mubr.f32.mxu0 %v2940
        %3391 = vmatmul.mubr.f32.gmra.mrb[0].mxu0 %v2939
        %v3392 = vpop.f32.mrb[0].mxu0
        %v3393 = vadd.f32 %v2964, %v3392
        %v3394 = vpop.f32.mrb[0].mxu0
        %3395 = vmatprep.mubr.f32.mxu0 %v2944
        %3396 = vmatmul.mubr.f32.gmra.mrb[0].mxu0 %v2943
        %v3397 = vpop.f32.mrb[0].mxu0
        %v3398 = vadd.f32 %v2969, %v3397
        %v3399 = vpop.f32.mrb[0].mxu0
        %3400 = vdwg.mxu0
        %3401 = vmatprep.subr.mxu0 0.0
        %3402 = vmatpush1.msra.mxu0 %v2787
        %3403 = vmatprep.subr.mxu0 0.0
        %3404 = vmatpush1.msra.mxu0 %v2788
        %3405 = vmatprep.subr.mxu0 0.0
        %3406 = vmatpush1.msra.mxu0 %v2789
        %3407 = vmatprep.subr.mxu0 0.0
        %3408 = vmatpush1.msra.mxu0 %v2790
        %3409 = vmatprep.subr.mxu0 0.0
        %3410 = vmatpush1.msra.mxu0 %v2791
        %3411 = vmatprep.subr.mxu0 0.0
        %3412 = vmatpush1.msra.mxu0 %v2792
        %3413 = vmatprep.subr.mxu0 0.0
        %3414 = vmatpush1.msra.mxu0 %v2793
        %3415 = vmatprep.subr.mxu0 0.0
        %3416 = vmatpush1.msra.mxu0 %v2794
        %3417 = vmatprep.subr.mxu0 0.0
        %3418 = vmatpush1.msra.mxu0 %v2795
        %3419 = vmatprep.subr.mxu0 0.0
        %3420 = vmatpush1.msra.mxu0 %v2796
        %3421 = vmatprep.subr.mxu0 0.0
        %3422 = vmatpush1.msra.mxu0 %v2797
        %3423 = vmatprep.subr.mxu0 0.0
        %3424 = vmatpush1.msra.mxu0 %v2798
        %3425 = vmatprep.subr.mxu0 0.0
        %3426 = vmatpush1.msra.mxu0 %v2799
        %3427 = vmatprep.subr.mxu0 0.0
        %3428 = vmatpush1.msra.mxu0 %v2800
        %3429 = vmatprep.subr.mxu0 0.0
        %3430 = vmatpush1.msra.mxu0 %v2801
        %3431 = vmatprep.subr.mxu0 0.0
        %3432 = vmatpush1.msra.mxu0 %v2802
        %3433 = vmatprep.subr.mxu0 0.0
        %3434 = vmatpush1.msra.mxu0 %v3269
        %3435 = vmatprep.subr.mxu0 0.0
        %3436 = vmatpush1.msra.mxu0 %v3271
        %3437 = vmatprep.subr.mxu0 0.0
        %3438 = vmatpush1.msra.mxu0 %v3273
        %3439 = vmatprep.subr.mxu0 0.0
        %3440 = vmatpush1.msra.mxu0 %v3275
        %3441 = vmatprep.subr.mxu0 0.0
        %3442 = vmatpush1.msra.mxu0 %v3277
        %3443 = vmatprep.subr.mxu0 0.0
        %3444 = vmatpush1.msra.mxu0 %v3279
        %3445 = vmatprep.subr.mxu0 0.0
        %3446 = vmatpush1.msra.mxu0 %v3281
        %3447 = vmatprep.subr.mxu0 0.0
        %3448 = vmatpush1.msra.mxu0 %v3283
        %3449 = vmatprep.subr.mxu0 0.0
        %3450 = vmatpush1.msra.mxu0 %v3285
        %3451 = vmatprep.subr.mxu0 0.0
        %3452 = vmatpush1.msra.mxu0 %v3287
        %3453 = vmatprep.subr.mxu0 0.0
        %3454 = vmatpush1.msra.mxu0 %v3289
        %3455 = vmatprep.subr.mxu0 0.0
        %3456 = vmatpush1.msra.mxu0 %v3291
        %3457 = vmatprep.subr.mxu0 0.0
        %3458 = vmatpush1.msra.mxu0 %v3293
        %3459 = vmatprep.subr.mxu0 0.0
        %3460 = vmatpush1.msra.mxu0 %v3295
        %3461 = vmatprep.subr.mxu0 0.0
        %3462 = vmatpush1.msra.mxu0 %v3297
        %3463 = vmatprep.subr.mxu0 0.0
        %3464 = vmatpush1.msra.mxu0 %v3299
        %3465 = vmatprep.mubr.f32.mxu0 %v2934
        %3466 = vmatmul.mubr.f32.gmra.mrb[0].mxu0 %v2933
        %v3467 = vpop.f32.mrb[0].mxu0
        %v3468 = vadd.f32 %v3383, %v3467
        %v3469 = vpop.f32.mrb[0].mxu0
        %3470 = vmatprep.mubr.f32.mxu0 %v2938
        %3471 = vmatmul.mubr.f32.gmra.mrb[0].mxu0 %v2937
        %v3472 = vpop.f32.mrb[0].mxu0
        %v3473 = vadd.f32 %v3388, %v3472
        %v3474 = vpop.f32.mrb[0].mxu0
        %3475 = vmatprep.mubr.f32.mxu0 %v2942
        %3476 = vmatmul.mubr.f32.gmra.mrb[0].mxu0 %v2941
        %v3477 = vpop.f32.mrb[0].mxu0
        %v3478 = vadd.f32 %v3393, %v3477
        %v3479 = vpop.f32.mrb[0].mxu0
        %3480 = vmatprep.mubr.f32.mxu0 %v2946
        %3481 = vmatmul.mubr.f32.gmra.mrb[0].mxu0 %v2945
        %v3482 = vpop.f32.mrb[0].mxu0
        %v3483 = vadd.f32 %v3398, %v3482
        %v3484 = vpop.f32.mrb[0].mxu0
        %3485 = vdwg.mxu0
        %vm3486 = vcmp.ge.f32.partialorder %v3468, 0.0
        %vm3487 = vcmp.ge.f32.partialorder %v3473, 0.0
        %vm3488 = vcmp.ge.f32.partialorder %v3478, 0.0
        %vm3489 = vcmp.ge.f32.partialorder %v3483, 0.0
        %v3490 = vmul.f32 %v3468, 0.2
        %v3491 = vmul.f32 %v3473, 0.2
        %v3492 = vmul.f32 %v3478, 0.2
        %v3493 = vmul.f32 %v3483, 0.2
        %v3494 = vsel %vm3486, %v3468, %v3490
        %v3495 = vsel %vm3487, %v3473, %v3491
        %v3496 = vsel %vm3488, %v3478, %v3492
        %v3497 = vsel %vm3489, %v3483, %v3493
        %v3499 = vsel %vm3154, %v3494, 0
        %v3502 = vsel %vm3154, %v3495, 0
        %v3505 = vsel %vm3154, %v3496, 0
        %v3508 = vsel %vm3154, %v3497, 0
        %3510 = vmatprep.subr.mxu0 0.0
        %3511 = vmatpush1.msra.mxu0 %v3153
        %3512 = vmatprep.subr.mxu0 0.0
        %3513 = vmatpush1.msra.mxu0 0.0
        %3514 = vmatprep.subr.mxu0 0.0
        %3515 = vmatpush1.msra.mxu0 0.0
        %3516 = vmatprep.subr.mxu0 0.0
        %3517 = vmatpush1.msra.mxu0 0.0
        %3518 = vmatprep.subr.mxu0 0.0
        %3519 = vmatpush1.msra.mxu0 0.0
        %3520 = vmatprep.subr.mxu0 0.0
        %3521 = vmatpush1.msra.mxu0 0.0
        %3522 = vmatprep.subr.mxu0 0.0
        %3523 = vmatpush1.msra.mxu0 0.0
        %3524 = vmatprep.subr.mxu0 0.0
        %3525 = vmatpush1.msra.mxu0 0.0
        %3526 = vmatprep.subr.mxu0 0.0
        %3527 = vmatpush1.msra.mxu0 0.0
        %3528 = vmatprep.subr.mxu0 0.0
        %3529 = vmatpush1.msra.mxu0 0.0
        %3530 = vmatprep.subr.mxu0 0.0
        %3531 = vmatpush1.msra.mxu0 0.0
        %3532 = vmatprep.subr.mxu0 0.0
        %3533 = vmatpush1.msra.mxu0 0.0
        %3534 = vmatprep.subr.mxu0 0.0
        %3535 = vmatpush1.msra.mxu0 0.0
        %3536 = vmatprep.subr.mxu0 0.0
        %3537 = vmatpush1.msra.mxu0 0.0
        %3538 = vmatprep.subr.mxu0 0.0
        %3539 = vmatpush1.msra.mxu0 0.0
        %3540 = vmatprep.subr.mxu0 0.0
        %3541 = vmatpush1.msra.mxu0 0.0
        %3542 = vmatprep.subr.mxu0 0.0
        %3543 = vmatpush1.msra.mxu0 0.0
        %3544 = vmatprep.subr.mxu0 0.0
        %3545 = vmatpush1.msra.mxu0 0.0
        %3546 = vmatprep.subr.mxu0 0.0
        %3547 = vmatpush1.msra.mxu0 0.0
        %3548 = vmatprep.subr.mxu0 0.0
        %3549 = vmatpush1.msra.mxu0 0.0
        %3550 = vmatprep.subr.mxu0 0.0
        %3551 = vmatpush1.msra.mxu0 0.0
        %3552 = vmatprep.subr.mxu0 0.0
        %3553 = vmatpush1.msra.mxu0 0.0
        %3554 = vmatprep.subr.mxu0 0.0
        %3555 = vmatpush1.msra.mxu0 0.0
        %3556 = vmatprep.subr.mxu0 0.0
        %3557 = vmatpush1.msra.mxu0 0.0
        %3558 = vmatprep.subr.mxu0 0.0
        %3559 = vmatpush1.msra.mxu0 0.0
        %3560 = vmatprep.subr.mxu0 0.0
        %3561 = vmatpush1.msra.mxu0 0.0
        %3562 = vmatprep.subr.mxu0 0.0
        %3563 = vmatpush1.msra.mxu0 0.0
        %3564 = vmatprep.subr.mxu0 0.0
        %3565 = vmatpush1.msra.mxu0 0.0
        %3566 = vmatprep.subr.mxu0 0.0
        %3567 = vmatpush1.msra.mxu0 0.0
        %3568 = vmatprep.subr.mxu0 0.0
        %3569 = vmatpush1.msra.mxu0 0.0
        %3570 = vmatprep.subr.mxu0 0.0
        %3571 = vmatpush1.msra.mxu0 0.0
        %3572 = vmatprep.subr.mxu0 0.0
        %3573 = vmatpush1.msra.mxu0 0.0
        %3574 = vmatprep.mubr.f32.mxu0 0.0
        %3575 = vmatmul.mubr.f32.gmra.mrb[0].mxu0 %v3499
        %v3576 = vpop.f32.mrb[0].mxu0
        %v3577 = vadd.f32 0.0, %v3576
        %v3578 = vpop.f32.mrb[0].mxu0
        %3579 = vmatprep.mubr.f32.mxu0 0.0
        %3580 = vmatmul.mubr.f32.gmra.mrb[0].mxu0 %v3502
        %v3581 = vpop.f32.mrb[0].mxu0
        %v3582 = vadd.f32 0.0, %v3581
        %v3583 = vpop.f32.mrb[0].mxu0
        %3584 = vmatprep.mubr.f32.mxu0 0.0
        %3585 = vmatmul.mubr.f32.gmra.mrb[0].mxu0 %v3505
        %v3586 = vpop.f32.mrb[0].mxu0
        %v3587 = vadd.f32 0.0, %v3586
        %v3588 = vpop.f32.mrb[0].mxu0
        %3589 = vmatprep.mubr.f32.mxu0 0.0
        %3590 = vmatmul.mubr.f32.gmra.mrb[0].mxu0 %v3508
        %v3591 = vpop.f32.mrb[0].mxu0
        %v3592 = vadd.f32 0.0, %v3591
        %v3593 = vpop.f32.mrb[0].mxu0
        %3594 = vdwg.mxu0
        %3599 = vrot.lane.b32.xlu0 %v3234, 123
        %v3600 = vpop.permute.xlu0 %3599
        %3601 = vrot.lane.b32.xlu0 %v3239, 123
        %v3602 = vpop.permute.xlu0 %3601
        %3603 = vrot.lane.b32.xlu0 %v3244, 123
        %v3604 = vpop.permute.xlu0 %3603
        %3605 = vrot.lane.b32.xlu0 %v3249, 123
        %v3606 = vpop.permute.xlu0 %3605
        %3615 = vrot.lane.b32.xlu0 %v3577, 123
        %v3616 = vpop.permute.xlu0 %3615
        %3617 = vrot.lane.b32.xlu0 %v3582, 123
        %v3618 = vpop.permute.xlu0 %3617
        %3619 = vrot.lane.b32.xlu0 %v3587, 123
        %v3620 = vpop.permute.xlu0 %3619
        %3621 = vrot.lane.b32.xlu0 %v3592, 123
        %v3622 = vpop.permute.xlu0 %3621
        %s3627 = sadd.s32 %s2741, 1
        %s3628 = smul.u32 %s3627, 128
        %s3629 = scalar_lea.vmem [#allocation6], %s3628
        %3630 = vst.msk [vmem:[%s3629] sm:$0xff] %vm2723, %v3234
        %3631 = vst.msk [vmem:[%s3629 + $0x8] sm:$0xff] %vm2723, %v3239
        %3632 = vst.msk [vmem:[%s3629 + $0x10] sm:$0xff] %vm2723, %v3244
        %3633 = vst.msk [vmem:[%s3629 + $0x18] sm:$0xff] %vm2723, %v3249
        %3634 = vst.msk [vmem:[%s3629 + $0x20] sm:$0xff] %vm2723, %v3600
        %3635 = vst.msk [vmem:[%s3629 + $0x28] sm:$0xff] %vm2723, %v3602
        %3636 = vst.msk [vmem:[%s3629 + $0x30] sm:$0xff] %vm2723, %v3604
        %3637 = vst.msk [vmem:[%s3629 + $0x38] sm:$0xff] %vm2723, %v3606
        %3638 = vst.msk [vmem:[%s3629 + $0x40] sm:$0xff] %vm2723, %v3577
        %3639 = vst.msk [vmem:[%s3629 + $0x48] sm:$0xff] %vm2723, %v3582
        %3640 = vst.msk [vmem:[%s3629 + $0x50] sm:$0xff] %vm2723, %v3587
        %3641 = vst.msk [vmem:[%s3629 + $0x58] sm:$0xff] %vm2723, %v3592
        %3642 = vst.msk [vmem:[%s3629 + $0x60] sm:$0xff] %vm2723, %v3616
        %3643 = vst.msk [vmem:[%s3629 + $0x68] sm:$0xff] %vm2723, %v3618
        %3644 = vst.msk [vmem:[%s3629 + $0x70] sm:$0xff] %vm2723, %v3620
        %3645 = vst.msk [vmem:[%s3629 + $0x78] sm:$0xff] %vm2723, %v3622
      $region141: #{discriminator_forward.1} parent=107 // loop_footer
        %s2745 = sadd.s32 1, %s2741
      $region142: #{discriminator_forward.1} parent=107 // loop_footer_branch
        %2740 = sbr.rel target = $region138
      $region143: #{discriminator_forward.1} parent=107 // loop_exit
        _
      %v3646 = vld [vmem:[%s19] sm:$0xff]
      %v3647 = vld [vmem:[%s19 + $0x8] sm:$0xff]
      %v3648 = vld [vmem:[%s19 + $0x10] sm:$0xff]
      %v3649 = vld [vmem:[%s19 + $0x18] sm:$0xff]
      %v3650 = vld [vmem:[%s19 + $0x20] sm:$0xff]
      %v3651 = vld [vmem:[%s19 + $0x28] sm:$0xff]
      %v3652 = vld [vmem:[%s19 + $0x30] sm:$0xff]
      %v3653 = vld [vmem:[%s19 + $0x38] sm:$0xff]
      %v3654 = vld [vmem:[%s19 + $0x40] sm:$0xff]
      %v3655 = vld [vmem:[%s19 + $0x48] sm:$0xff]
      %v3656 = vld [vmem:[%s19 + $0x50] sm:$0xff]
      %v3657 = vld [vmem:[%s19 + $0x58] sm:$0xff]
      %v3658 = vld [vmem:[%s19 + $0x60] sm:$0xff]
      %v3659 = vld [vmem:[%s19 + $0x68] sm:$0xff]
      %v3660 = vld [vmem:[%s19 + $0x70] sm:$0xff]
      %v3661 = vld [vmem:[%s19 + $0x78] sm:$0xff]
      %v3662 = vld [vmem:[#allocation6] sm:$0xff]
      %v3663 = vld [vmem:[#allocation6 + $0x8] sm:$0xff]
      %v3664 = vld [vmem:[#allocation6 + $0x10] sm:$0xff]
      %v3665 = vld [vmem:[#allocation6 + $0x18] sm:$0xff]
      %v3666 = vld [vmem:[#allocation6 + $0x20] sm:$0xff]
      %v3667 = vld [vmem:[#allocation6 + $0x28] sm:$0xff]
      %v3668 = vld [vmem:[#allocation6 + $0x30] sm:$0xff]
      %v3669 = vld [vmem:[#allocation6 + $0x38] sm:$0xff]
      %v3670 = vld [vmem:[#allocation6 + $0x40] sm:$0xff]
      %v3671 = vld [vmem:[#allocation6 + $0x48] sm:$0xff]
      %v3672 = vld [vmem:[#allocation6 + $0x50] sm:$0xff]
      %v3673 = vld [vmem:[#allocation6 + $0x58] sm:$0xff]
      %v3674 = vld [vmem:[#allocation6 + $0x60] sm:$0xff]
      %v3675 = vld [vmem:[#allocation6 + $0x68] sm:$0xff]
      %v3676 = vld [vmem:[#allocation6 + $0x70] sm:$0xff]
      %v3677 = vld [vmem:[#allocation6 + $0x78] sm:$0xff]
      %s3678 = scalar_lea.vmem [#allocation6], 128
      %v3679 = vld [vmem:[%s3678] sm:$0xff]
      %v3680 = vld [vmem:[%s3678 + $0x8] sm:$0xff]
      %v3681 = vld [vmem:[%s3678 + $0x10] sm:$0xff]
      %v3682 = vld [vmem:[%s3678 + $0x18] sm:$0xff]
      %v3683 = vld [vmem:[%s3678 + $0x20] sm:$0xff]
      %v3684 = vld [vmem:[%s3678 + $0x28] sm:$0xff]
      %v3685 = vld [vmem:[%s3678 + $0x30] sm:$0xff]
      %v3686 = vld [vmem:[%s3678 + $0x38] sm:$0xff]
      %v3687 = vld [vmem:[%s3678 + $0x40] sm:$0xff]
      %v3688 = vld [vmem:[%s3678 + $0x48] sm:$0xff]
      %v3689 = vld [vmem:[%s3678 + $0x50] sm:$0xff]
      %v3690 = vld [vmem:[%s3678 + $0x58] sm:$0xff]
      %v3691 = vld [vmem:[%s3678 + $0x60] sm:$0xff]
      %v3692 = vld [vmem:[%s3678 + $0x68] sm:$0xff]
      %v3693 = vld [vmem:[%s3678 + $0x70] sm:$0xff]
      %v3694 = vld [vmem:[%s3678 + $0x78] sm:$0xff]
      %3711 = vrot.lane.b32.xlu0 %v3662, 127
      %v3712 = vpop.permute.xlu0 %3711
      %3713 = vrot.lane.b32.xlu0 %v3663, 127
      %v3714 = vpop.permute.xlu0 %3713
      %3715 = vrot.lane.b32.xlu0 %v3664, 127
      %v3716 = vpop.permute.xlu0 %3715
      %3717 = vrot.lane.b32.xlu0 %v3665, 127
      %v3718 = vpop.permute.xlu0 %3717
      %3719 = vrot.lane.b32.xlu0 %v3666, 127
      %v3720 = vpop.permute.xlu0 %3719
      %3721 = vrot.lane.b32.xlu0 %v3667, 127
      %v3722 = vpop.permute.xlu0 %3721
      %3723 = vrot.lane.b32.xlu0 %v3668, 127
      %v3724 = vpop.permute.xlu0 %3723
      %3725 = vrot.lane.b32.xlu0 %v3669, 127
      %v3726 = vpop.permute.xlu0 %3725
      %3727 = vrot.lane.b32.xlu0 %v3670, 127
      %v3728 = vpop.permute.xlu0 %3727
      %3729 = vrot.lane.b32.xlu0 %v3671, 127
      %v3730 = vpop.permute.xlu0 %3729
      %3731 = vrot.lane.b32.xlu0 %v3672, 127
      %v3732 = vpop.permute.xlu0 %3731
      %3733 = vrot.lane.b32.xlu0 %v3673, 127
      %v3734 = vpop.permute.xlu0 %3733
      %3735 = vrot.lane.b32.xlu0 %v3674, 127
      %v3736 = vpop.permute.xlu0 %3735
      %3737 = vrot.lane.b32.xlu0 %v3675, 127
      %v3738 = vpop.permute.xlu0 %3737
      %3739 = vrot.lane.b32.xlu0 %v3676, 127
      %v3740 = vpop.permute.xlu0 %3739
      %3741 = vrot.lane.b32.xlu0 %v3677, 127
      %v3742 = vpop.permute.xlu0 %3741
      %3775 = vrot.lane.b32.xlu0 %v3679, 127
      %v3776 = vpop.permute.xlu0 %3775
      %3777 = vrot.lane.b32.xlu0 %v3680, 127
      %v3778 = vpop.permute.xlu0 %3777
      %3779 = vrot.lane.b32.xlu0 %v3681, 127
      %v3780 = vpop.permute.xlu0 %3779
      %3781 = vrot.lane.b32.xlu0 %v3682, 127
      %v3782 = vpop.permute.xlu0 %3781
      %3783 = vrot.lane.b32.xlu0 %v3683, 127
      %v3784 = vpop.permute.xlu0 %3783
      %3785 = vrot.lane.b32.xlu0 %v3684, 127
      %v3786 = vpop.permute.xlu0 %3785
      %3787 = vrot.lane.b32.xlu0 %v3685, 127
      %v3788 = vpop.permute.xlu0 %3787
      %3789 = vrot.lane.b32.xlu0 %v3686, 127
      %v3790 = vpop.permute.xlu0 %3789
      %3791 = vrot.lane.b32.xlu0 %v3687, 127
      %v3792 = vpop.permute.xlu0 %3791
      %3793 = vrot.lane.b32.xlu0 %v3688, 127
      %v3794 = vpop.permute.xlu0 %3793
      %3795 = vrot.lane.b32.xlu0 %v3689, 127
      %v3796 = vpop.permute.xlu0 %3795
      %3797 = vrot.lane.b32.xlu0 %v3690, 127
      %v3798 = vpop.permute.xlu0 %3797
      %3799 = vrot.lane.b32.xlu0 %v3691, 127
      %v3800 = vpop.permute.xlu0 %3799
      %3801 = vrot.lane.b32.xlu0 %v3692, 127
      %v3802 = vpop.permute.xlu0 %3801
      %3803 = vrot.lane.b32.xlu0 %v3693, 127
      %v3804 = vpop.permute.xlu0 %3803
      %3805 = vrot.lane.b32.xlu0 %v3694, 127
      %v3806 = vpop.permute.xlu0 %3805
      %v3823 = vld [vmem:[%s6] sm:$0xff]
      %v3824 = vld [vmem:[%s6 + $0x8] sm:$0xff]
      %v3825 = vld [vmem:[%s6 + $0x10] sm:$0xff]
      %v3826 = vld [vmem:[%s6 + $0x18] sm:$0xff]
      %v3827 = vld [vmem:[%s6 + $0x20] sm:$0xff]
      %v3828 = vld [vmem:[%s6 + $0x28] sm:$0xff]
      %v3829 = vld [vmem:[%s6 + $0x30] sm:$0xff]
      %v3830 = vld [vmem:[%s6 + $0x38] sm:$0xff]
      %v3831 = vld [vmem:[%s6 + $0x40] sm:$0xff]
      %v3832 = vld [vmem:[%s6 + $0x48] sm:$0xff]
      %v3833 = vld [vmem:[%s6 + $0x50] sm:$0xff]
      %v3834 = vld [vmem:[%s6 + $0x58] sm:$0xff]
      %v3835 = vld [vmem:[%s6 + $0x60] sm:$0xff]
      %v3836 = vld [vmem:[%s6 + $0x68] sm:$0xff]
      %v3837 = vld [vmem:[%s6 + $0x70] sm:$0xff]
      %v3838 = vld [vmem:[%s6 + $0x78] sm:$0xff]
      %v3839 = vld [vmem:[%s6 + $0x80] sm:$0xff]
      %v3840 = vld [vmem:[%s6 + $0x88] sm:$0xff]
      %v3841 = vld [vmem:[%s6 + $0x90] sm:$0xff]
      %v3842 = vld [vmem:[%s6 + $0x98] sm:$0xff]
      %v3843 = vld [vmem:[%s6 + $0xa0] sm:$0xff]
      %v3844 = vld [vmem:[%s6 + $0xa8] sm:$0xff]
      %v3845 = vld [vmem:[%s6 + $0xb0] sm:$0xff]
      %v3846 = vld [vmem:[%s6 + $0xb8] sm:$0xff]
      %v3847 = vld [vmem:[%s6 + $0xc0] sm:$0xff]
      %v3848 = vld [vmem:[%s6 + $0xc8] sm:$0xff]
      %v3849 = vld [vmem:[%s6 + $0xd0] sm:$0xff]
      %v3850 = vld [vmem:[%s6 + $0xd8] sm:$0xff]
      %v3851 = vld [vmem:[%s6 + $0xe0] sm:$0xff]
      %v3852 = vld [vmem:[%s6 + $0xe8] sm:$0xff]
      %v3853 = vld [vmem:[%s6 + $0xf0] sm:$0xff]
      %v3854 = vld [vmem:[%s6 + $0xf8] sm:$0xff]
      %v3855 = vld [vmem:[%s12] sm:$0xff]
      %v3856 = vld [vmem:[%s12 + $0x8] sm:$0xff]
      %v3857 = vld [vmem:[%s12 + $0x10] sm:$0xff]
      %v3858 = vld [vmem:[%s12 + $0x18] sm:$0xff]
      %v3859 = vld [vmem:[%s12 + $0x20] sm:$0xff]
      %v3860 = vld [vmem:[%s12 + $0x28] sm:$0xff]
      %v3861 = vld [vmem:[%s12 + $0x30] sm:$0xff]
      %v3862 = vld [vmem:[%s12 + $0x38] sm:$0xff]
      %3864 = vset.pattern.permute.xlu0 0
      %3865 = vperm.xlu0 %3864, %v3855
      %v3866 = vpop.permute.xlu0 %3865
      %3869 = vset.pattern.permute.xlu0 0
      %3870 = vperm.xlu0 %3869, %v3856
      %v3871 = vpop.permute.xlu0 %3870
      %3874 = vset.pattern.permute.xlu0 0
      %3875 = vperm.xlu0 %3874, %v3857
      %v3876 = vpop.permute.xlu0 %3875
      %3879 = vset.pattern.permute.xlu0 0
      %3880 = vperm.xlu0 %3879, %v3858
      %v3881 = vpop.permute.xlu0 %3880
      %3884 = vset.pattern.permute.xlu0 0
      %3885 = vperm.xlu0 %3884, %v3859
      %v3886 = vpop.permute.xlu0 %3885
      %3889 = vset.pattern.permute.xlu0 0
      %3890 = vperm.xlu0 %3889, %v3860
      %v3891 = vpop.permute.xlu0 %3890
      %3894 = vset.pattern.permute.xlu0 0
      %3895 = vperm.xlu0 %3894, %v3861
      %v3896 = vpop.permute.xlu0 %3895
      %3899 = vset.pattern.permute.xlu0 0
      %3900 = vperm.xlu0 %3899, %v3862
      %v3901 = vpop.permute.xlu0 %3900
      %3903 = vmatprep.subr.mxu0 0.0
      %3904 = vmatpush1.msra.mxu0 %v3662
      %3905 = vmatprep.subr.mxu0 0.0
      %3906 = vmatpush1.msra.mxu0 %v3663
      %3907 = vmatprep.subr.mxu0 0.0
      %3908 = vmatpush1.msra.mxu0 %v3664
      %3909 = vmatprep.subr.mxu0 0.0
      %3910 = vmatpush1.msra.mxu0 %v3665
      %3911 = vmatprep.subr.mxu0 0.0
      %3912 = vmatpush1.msra.mxu0 %v3666
      %3913 = vmatprep.subr.mxu0 0.0
      %3914 = vmatpush1.msra.mxu0 %v3667
      %3915 = vmatprep.subr.mxu0 0.0
      %3916 = vmatpush1.msra.mxu0 %v3668
      %3917 = vmatprep.subr.mxu0 0.0
      %3918 = vmatpush1.msra.mxu0 %v3669
      %3919 = vmatprep.subr.mxu0 0.0
      %3920 = vmatpush1.msra.mxu0 %v3670
      %3921 = vmatprep.subr.mxu0 0.0
      %3922 = vmatpush1.msra.mxu0 %v3671
      %3923 = vmatprep.subr.mxu0 0.0
      %3924 = vmatpush1.msra.mxu0 %v3672
      %3925 = vmatprep.subr.mxu0 0.0
      %3926 = vmatpush1.msra.mxu0 %v3673
      %3927 = vmatprep.subr.mxu0 0.0
      %3928 = vmatpush1.msra.mxu0 %v3674
      %3929 = vmatprep.subr.mxu0 0.0
      %3930 = vmatpush1.msra.mxu0 %v3675
      %3931 = vmatprep.subr.mxu0 0.0
      %3932 = vmatpush1.msra.mxu0 %v3676
      %3933 = vmatprep.subr.mxu0 0.0
      %3934 = vmatpush1.msra.mxu0 %v3677
      %3935 = vmatprep.subr.mxu0 0.0
      %3936 = vmatpush1.msra.mxu0 %v3712
      %3937 = vmatprep.subr.mxu0 0.0
      %3938 = vmatpush1.msra.mxu0 %v3714
      %3939 = vmatprep.subr.mxu0 0.0
      %3940 = vmatpush1.msra.mxu0 %v3716
      %3941 = vmatprep.subr.mxu0 0.0
      %3942 = vmatpush1.msra.mxu0 %v3718
      %3943 = vmatprep.subr.mxu0 0.0
      %3944 = vmatpush1.msra.mxu0 %v3720
      %3945 = vmatprep.subr.mxu0 0.0
      %3946 = vmatpush1.msra.mxu0 %v3722
      %3947 = vmatprep.subr.mxu0 0.0
      %3948 = vmatpush1.msra.mxu0 %v3724
      %3949 = vmatprep.subr.mxu0 0.0
      %3950 = vmatpush1.msra.mxu0 %v3726
      %3951 = vmatprep.subr.mxu0 0.0
      %3952 = vmatpush1.msra.mxu0 %v3728
      %3953 = vmatprep.subr.mxu0 0.0
      %3954 = vmatpush1.msra.mxu0 %v3730
      %3955 = vmatprep.subr.mxu0 0.0
      %3956 = vmatpush1.msra.mxu0 %v3732
      %3957 = vmatprep.subr.mxu0 0.0
      %3958 = vmatpush1.msra.mxu0 %v3734
      %3959 = vmatprep.subr.mxu0 0.0
      %3960 = vmatpush1.msra.mxu0 %v3736
      %3961 = vmatprep.subr.mxu0 0.0
      %3962 = vmatpush1.msra.mxu0 %v3738
      %3963 = vmatprep.subr.mxu0 0.0
      %3964 = vmatpush1.msra.mxu0 %v3740
      %3965 = vmatprep.subr.mxu0 0.0
      %3966 = vmatpush1.msra.mxu0 %v3742
      %3967 = vmatprep.mubr.f32.mxu0 %v3824
      %3968 = vmatmul.mubr.f32.gmra.mrb[0].mxu0 %v3823
      %v3969 = vpop.f32.mrb[0].mxu0
      %v3970 = vadd.f32 %v3866, %v3969
      %v3971 = vpop.f32.mrb[0].mxu0
      %3972 = vmatprep.mubr.f32.mxu0 %v3828
      %3973 = vmatmul.mubr.f32.gmra.mrb[0].mxu0 %v3827
      %v3974 = vpop.f32.mrb[0].mxu0
      %v3975 = vadd.f32 %v3871, %v3974
      %v3976 = vpop.f32.mrb[0].mxu0
      %3977 = vmatprep.mubr.f32.mxu0 %v3832
      %3978 = vmatmul.mubr.f32.gmra.mrb[0].mxu0 %v3831
      %v3979 = vpop.f32.mrb[0].mxu0
      %v3980 = vadd.f32 %v3876, %v3979
      %v3981 = vpop.f32.mrb[0].mxu0
      %3982 = vmatprep.mubr.f32.mxu0 %v3836
      %3983 = vmatmul.mubr.f32.gmra.mrb[0].mxu0 %v3835
      %v3984 = vpop.f32.mrb[0].mxu0
      %v3985 = vadd.f32 %v3881, %v3984
      %v3986 = vpop.f32.mrb[0].mxu0
      %3987 = vmatprep.mubr.f32.mxu0 %v3840
      %3988 = vmatmul.mubr.f32.gmra.mrb[0].mxu0 %v3839
      %v3989 = vpop.f32.mrb[0].mxu0
      %v3990 = vadd.f32 %v3886, %v3989
      %v3991 = vpop.f32.mrb[0].mxu0
      %3992 = vmatprep.mubr.f32.mxu0 %v3844
      %3993 = vmatmul.mubr.f32.gmra.mrb[0].mxu0 %v3843
      %v3994 = vpop.f32.mrb[0].mxu0
      %v3995 = vadd.f32 %v3891, %v3994
      %v3996 = vpop.f32.mrb[0].mxu0
      %3997 = vmatprep.mubr.f32.mxu0 %v3848
      %3998 = vmatmul.mubr.f32.gmra.mrb[0].mxu0 %v3847
      %v3999 = vpop.f32.mrb[0].mxu0
      %v4000 = vadd.f32 %v3896, %v3999
      %v4001 = vpop.f32.mrb[0].mxu0
      %4002 = vmatprep.mubr.f32.mxu0 %v3852
      %4003 = vmatmul.mubr.f32.gmra.mrb[0].mxu0 %v3851
      %v4004 = vpop.f32.mrb[0].mxu0
      %v4005 = vadd.f32 %v3901, %v4004
      %v4006 = vpop.f32.mrb[0].mxu0
      %4007 = vdwg.mxu0
      %4008 = vmatprep.subr.mxu0 0.0
      %4009 = vmatpush1.msra.mxu0 %v3679
      %4010 = vmatprep.subr.mxu0 0.0
      %4011 = vmatpush1.msra.mxu0 %v3680
      %4012 = vmatprep.subr.mxu0 0.0
      %4013 = vmatpush1.msra.mxu0 %v3681
      %4014 = vmatprep.subr.mxu0 0.0
      %4015 = vmatpush1.msra.mxu0 %v3682
      %4016 = vmatprep.subr.mxu0 0.0
      %4017 = vmatpush1.msra.mxu0 %v3683
      %4018 = vmatprep.subr.mxu0 0.0
      %4019 = vmatpush1.msra.mxu0 %v3684
      %4020 = vmatprep.subr.mxu0 0.0
      %4021 = vmatpush1.msra.mxu0 %v3685
      %4022 = vmatprep.subr.mxu0 0.0
      %4023 = vmatpush1.msra.mxu0 %v3686
      %4024 = vmatprep.subr.mxu0 0.0
      %4025 = vmatpush1.msra.mxu0 %v3687
      %4026 = vmatprep.subr.mxu0 0.0
      %4027 = vmatpush1.msra.mxu0 %v3688
      %4028 = vmatprep.subr.mxu0 0.0
      %4029 = vmatpush1.msra.mxu0 %v3689
      %4030 = vmatprep.subr.mxu0 0.0
      %4031 = vmatpush1.msra.mxu0 %v3690
      %4032 = vmatprep.subr.mxu0 0.0
      %4033 = vmatpush1.msra.mxu0 %v3691
      %4034 = vmatprep.subr.mxu0 0.0
      %4035 = vmatpush1.msra.mxu0 %v3692
      %4036 = vmatprep.subr.mxu0 0.0
      %4037 = vmatpush1.msra.mxu0 %v3693
      %4038 = vmatprep.subr.mxu0 0.0
      %4039 = vmatpush1.msra.mxu0 %v3694
      %4040 = vmatprep.subr.mxu0 0.0
      %4041 = vmatpush1.msra.mxu0 %v3776
      %4042 = vmatprep.subr.mxu0 0.0
      %4043 = vmatpush1.msra.mxu0 %v3778
      %4044 = vmatprep.subr.mxu0 0.0
      %4045 = vmatpush1.msra.mxu0 %v3780
      %4046 = vmatprep.subr.mxu0 0.0
      %4047 = vmatpush1.msra.mxu0 %v3782
      %4048 = vmatprep.subr.mxu0 0.0
      %4049 = vmatpush1.msra.mxu0 %v3784
      %4050 = vmatprep.subr.mxu0 0.0
      %4051 = vmatpush1.msra.mxu0 %v3786
      %4052 = vmatprep.subr.mxu0 0.0
      %4053 = vmatpush1.msra.mxu0 %v3788
      %4054 = vmatprep.subr.mxu0 0.0
      %4055 = vmatpush1.msra.mxu0 %v3790
      %4056 = vmatprep.subr.mxu0 0.0
      %4057 = vmatpush1.msra.mxu0 %v3792
      %4058 = vmatprep.subr.mxu0 0.0
      %4059 = vmatpush1.msra.mxu0 %v3794
      %4060 = vmatprep.subr.mxu0 0.0
      %4061 = vmatpush1.msra.mxu0 %v3796
      %4062 = vmatprep.subr.mxu0 0.0
      %4063 = vmatpush1.msra.mxu0 %v3798
      %4064 = vmatprep.subr.mxu0 0.0
      %4065 = vmatpush1.msra.mxu0 %v3800
      %4066 = vmatprep.subr.mxu0 0.0
      %4067 = vmatpush1.msra.mxu0 %v3802
      %4068 = vmatprep.subr.mxu0 0.0
      %4069 = vmatpush1.msra.mxu0 %v3804
      %4070 = vmatprep.subr.mxu0 0.0
      %4071 = vmatpush1.msra.mxu0 %v3806
      %4072 = vmatprep.mubr.f32.mxu0 %v3826
      %4073 = vmatmul.mubr.f32.gmra.mrb[0].mxu0 %v3825
      %v4074 = vpop.f32.mrb[0].mxu0
      %v4075 = vadd.f32 %v3970, %v4074
      %v4076 = vpop.f32.mrb[0].mxu0
      %4077 = vmatprep.mubr.f32.mxu0 %v3830
      %4078 = vmatmul.mubr.f32.gmra.mrb[0].mxu0 %v3829
      %v4079 = vpop.f32.mrb[0].mxu0
      %v4080 = vadd.f32 %v3975, %v4079
      %v4081 = vpop.f32.mrb[0].mxu0
      %4082 = vmatprep.mubr.f32.mxu0 %v3834
      %4083 = vmatmul.mubr.f32.gmra.mrb[0].mxu0 %v3833
      %v4084 = vpop.f32.mrb[0].mxu0
      %v4085 = vadd.f32 %v3980, %v4084
      %v4086 = vpop.f32.mrb[0].mxu0
      %4087 = vmatprep.mubr.f32.mxu0 %v3838
      %4088 = vmatmul.mubr.f32.gmra.mrb[0].mxu0 %v3837
      %v4089 = vpop.f32.mrb[0].mxu0
      %v4090 = vadd.f32 %v3985, %v4089
      %v4091 = vpop.f32.mrb[0].mxu0
      %4092 = vmatprep.mubr.f32.mxu0 %v3842
      %4093 = vmatmul.mubr.f32.gmra.mrb[0].mxu0 %v3841
      %v4094 = vpop.f32.mrb[0].mxu0
      %v4095 = vadd.f32 %v3990, %v4094
      %v4096 = vpop.f32.mrb[0].mxu0
      %4097 = vmatprep.mubr.f32.mxu0 %v3846
      %4098 = vmatmul.mubr.f32.gmra.mrb[0].mxu0 %v3845
      %v4099 = vpop.f32.mrb[0].mxu0
      %v4100 = vadd.f32 %v3995, %v4099
      %v4101 = vpop.f32.mrb[0].mxu0
      %4102 = vmatprep.mubr.f32.mxu0 %v3850
      %4103 = vmatmul.mubr.f32.gmra.mrb[0].mxu0 %v3849
      %v4104 = vpop.f32.mrb[0].mxu0
      %v4105 = vadd.f32 %v4000, %v4104
      %v4106 = vpop.f32.mrb[0].mxu0
      %4107 = vmatprep.mubr.f32.mxu0 %v3854
      %4108 = vmatmul.mubr.f32.gmra.mrb[0].mxu0 %v3853
      %v4109 = vpop.f32.mrb[0].mxu0
      %v4110 = vadd.f32 %v4005, %v4109
      %v4111 = vpop.f32.mrb[0].mxu0
      %4112 = vdwg.mxu0
      %vm4113 = vcmp.ge.f32.partialorder %v4075, 0.0
      %vm4114 = vcmp.ge.f32.partialorder %v4080, 0.0
      %vm4115 = vcmp.ge.f32.partialorder %v4085, 0.0
      %vm4116 = vcmp.ge.f32.partialorder %v4090, 0.0
      %vm4117 = vcmp.ge.f32.partialorder %v4095, 0.0
      %vm4118 = vcmp.ge.f32.partialorder %v4100, 0.0
      %vm4119 = vcmp.ge.f32.partialorder %v4105, 0.0
      %vm4120 = vcmp.ge.f32.partialorder %v4110, 0.0
      %v4121 = vmul.f32 %v4075, 0.2
      %v4122 = vmul.f32 %v4080, 0.2
      %v4123 = vmul.f32 %v4085, 0.2
      %v4124 = vmul.f32 %v4090, 0.2
      %v4125 = vmul.f32 %v4095, 0.2
      %v4126 = vmul.f32 %v4100, 0.2
      %v4127 = vmul.f32 %v4105, 0.2
      %v4128 = vmul.f32 %v4110, 0.2
      %v4129 = vsel %vm4113, %v4075, %v4121
      %v4130 = vsel %vm4114, %v4080, %v4122
      %v4131 = vsel %vm4115, %v4085, %v4123
      %v4132 = vsel %vm4116, %v4090, %v4124
      %v4133 = vsel %vm4117, %v4095, %v4125
      %v4134 = vsel %vm4118, %v4100, %v4126
      %v4135 = vsel %vm4119, %v4105, %v4127
      %v4136 = vsel %vm4120, %v4110, %v4128
      %v4137 = vld [vmem:[%s18] sm:$0xff]
      %v4138 = vld [vmem:[%s18 + $0x8] sm:$0xff]
      %v4139 = vld [vmem:[%s18 + $0x10] sm:$0xff]
      %v4140 = vld [vmem:[%s18 + $0x18] sm:$0xff]
      %v4141 = vld [vmem:[%s18 + $0x20] sm:$0xff]
      %v4142 = vld [vmem:[%s18 + $0x28] sm:$0xff]
      %v4143 = vld [vmem:[%s18 + $0x30] sm:$0xff]
      %v4144 = vld [vmem:[%s18 + $0x38] sm:$0xff]
      %v4145 = vld [vmem:[%s18 + $0x40] sm:$0xff]
      %v4146 = vld [vmem:[%s18 + $0x48] sm:$0xff]
      %v4147 = vld [vmem:[%s18 + $0x50] sm:$0xff]
      %v4148 = vld [vmem:[%s18 + $0x58] sm:$0xff]
      %v4149 = vld [vmem:[%s18 + $0x60] sm:$0xff]
      %v4150 = vld [vmem:[%s18 + $0x68] sm:$0xff]
      %v4151 = vld [vmem:[%s18 + $0x70] sm:$0xff]
      %v4152 = vld [vmem:[%s18 + $0x78] sm:$0xff]
      %vm4153 = vcmask 523264
      %v4155 = vsel %vm4153, %v4137, 0
      %v4158 = vsel %vm4153, %v4138, 0
      %v4161 = vsel %vm4153, %v4139, 0
      %v4164 = vsel %vm4153, %v4140, 0
      %v4167 = vsel %vm4153, %v4141, 0
      %v4170 = vsel %vm4153, %v4142, 0
      %v4173 = vsel %vm4153, %v4143, 0
      %v4176 = vsel %vm4153, %v4144, 0
      %v4179 = vsel %vm4153, %v4145, 0
      %v4182 = vsel %vm4153, %v4146, 0
      %v4185 = vsel %vm4153, %v4147, 0
      %v4188 = vsel %vm4153, %v4148, 0
      %v4191 = vsel %vm4153, %v4149, 0
      %v4194 = vsel %vm4153, %v4150, 0
      %v4197 = vsel %vm4153, %v4151, 0
      %v4200 = vsel %vm4153, %v4152, 0
      %4202 = vmatprep.subr.mxu0 0.0
      %4203 = vmatpush1.msra.mxu0 %v4129
      %4204 = vmatprep.subr.mxu0 0.0
      %4205 = vmatpush1.msra.mxu0 %v4130
      %4206 = vmatprep.subr.mxu0 0.0
      %4207 = vmatpush1.msra.mxu0 %v4131
      %4208 = vmatprep.subr.mxu0 0.0
      %4209 = vmatpush1.msra.mxu0 %v4132
      %4210 = vmatprep.subr.mxu0 0.0
      %4211 = vmatpush1.msra.mxu0 %v4133
      %4212 = vmatprep.subr.mxu0 0.0
      %4213 = vmatpush1.msra.mxu0 %v4134
      %4214 = vmatprep.subr.mxu0 0.0
      %4215 = vmatpush1.msra.mxu0 %v4135
      %4216 = vmatprep.subr.mxu0 0.0
      %4217 = vmatpush1.msra.mxu0 %v4136
      %4218 = vmatprep.subr.mxu0 0.0
      %4219 = vmatpush1.msra.mxu0 0.0
      %4220 = vmatprep.subr.mxu0 0.0
      %4221 = vmatpush1.msra.mxu0 0.0
      %4222 = vmatprep.subr.mxu0 0.0
      %4223 = vmatpush1.msra.mxu0 0.0
      %4224 = vmatprep.subr.mxu0 0.0
      %4225 = vmatpush1.msra.mxu0 0.0
      %4226 = vmatprep.subr.mxu0 0.0
      %4227 = vmatpush1.msra.mxu0 0.0
      %4228 = vmatprep.subr.mxu0 0.0
      %4229 = vmatpush1.msra.mxu0 0.0
      %4230 = vmatprep.subr.mxu0 0.0
      %4231 = vmatpush1.msra.mxu0 0.0
      %4232 = vmatprep.subr.mxu0 0.0
      %4233 = vmatpush1.msra.mxu0 0.0
      %4234 = vmatprep.subr.mxu0 0.0
      %4235 = vmatpush1.msra.mxu0 0.0
      %4236 = vmatprep.subr.mxu0 0.0
      %4237 = vmatpush1.msra.mxu0 0.0
      %4238 = vmatprep.subr.mxu0 0.0
      %4239 = vmatpush1.msra.mxu0 0.0
      %4240 = vmatprep.subr.mxu0 0.0
      %4241 = vmatpush1.msra.mxu0 0.0
      %4242 = vmatprep.subr.mxu0 0.0
      %4243 = vmatpush1.msra.mxu0 0.0
      %4244 = vmatprep.subr.mxu0 0.0
      %4245 = vmatpush1.msra.mxu0 0.0
      %4246 = vmatprep.subr.mxu0 0.0
      %4247 = vmatpush1.msra.mxu0 0.0
      %4248 = vmatprep.subr.mxu0 0.0
      %4249 = vmatpush1.msra.mxu0 0.0
      %4250 = vmatprep.subr.mxu0 0.0
      %4251 = vmatpush1.msra.mxu0 0.0
      %4252 = vmatprep.subr.mxu0 0.0
      %4253 = vmatpush1.msra.mxu0 0.0
      %4254 = vmatprep.subr.mxu0 0.0
      %4255 = vmatpush1.msra.mxu0 0.0
      %4256 = vmatprep.subr.mxu0 0.0
      %4257 = vmatpush1.msra.mxu0 0.0
      %4258 = vmatprep.subr.mxu0 0.0
      %4259 = vmatpush1.msra.mxu0 0.0
      %4260 = vmatprep.subr.mxu0 0.0
      %4261 = vmatpush1.msra.mxu0 0.0
      %4262 = vmatprep.subr.mxu0 0.0
      %4263 = vmatpush1.msra.mxu0 0.0
      %4264 = vmatprep.subr.mxu0 0.0
      %4265 = vmatpush1.msra.mxu0 0.0
      %4266 = vmatprep.mubr.f32.mxu0 0.0
      %4267 = vmatmul.mubr.f32.gmra.mrb[0].mxu0 %v4155
      %v4268 = vpop.f32.mrb[0].mxu0
      %v4269 = vadd.f32 0.0, %v4268
      %v4270 = vpop.f32.mrb[0].mxu0
      %4271 = vmatprep.mubr.f32.mxu0 0.0
      %4272 = vmatmul.mubr.f32.gmra.mrb[0].mxu0 %v4158
      %v4273 = vpop.f32.mrb[0].mxu0
      %v4274 = vadd.f32 0.0, %v4273
      %v4275 = vpop.f32.mrb[0].mxu0
      %4276 = vmatprep.mubr.f32.mxu0 0.0
      %4277 = vmatmul.mubr.f32.gmra.mrb[0].mxu0 %v4161
      %v4278 = vpop.f32.mrb[0].mxu0
      %v4279 = vadd.f32 0.0, %v4278
      %v4280 = vpop.f32.mrb[0].mxu0
      %4281 = vmatprep.mubr.f32.mxu0 0.0
      %4282 = vmatmul.mubr.f32.gmra.mrb[0].mxu0 %v4164
      %v4283 = vpop.f32.mrb[0].mxu0
      %v4284 = vadd.f32 0.0, %v4283
      %v4285 = vpop.f32.mrb[0].mxu0
      %4286 = vmatprep.mubr.f32.mxu0 0.0
      %4287 = vmatmul.mubr.f32.gmra.mrb[0].mxu0 %v4167
      %v4288 = vpop.f32.mrb[0].mxu0
      %v4289 = vadd.f32 0.0, %v4288
      %v4290 = vpop.f32.mrb[0].mxu0
      %4291 = vmatprep.mubr.f32.mxu0 0.0
      %4292 = vmatmul.mubr.f32.gmra.mrb[0].mxu0 %v4170
      %v4293 = vpop.f32.mrb[0].mxu0
      %v4294 = vadd.f32 0.0, %v4293
      %v4295 = vpop.f32.mrb[0].mxu0
      %4296 = vmatprep.mubr.f32.mxu0 0.0
      %4297 = vmatmul.mubr.f32.gmra.mrb[0].mxu0 %v4173
      %v4298 = vpop.f32.mrb[0].mxu0
      %v4299 = vadd.f32 0.0, %v4298
      %v4300 = vpop.f32.mrb[0].mxu0
      %4301 = vmatprep.mubr.f32.mxu0 0.0
      %4302 = vmatmul.mubr.f32.gmra.mrb[0].mxu0 %v4176
      %v4303 = vpop.f32.mrb[0].mxu0
      %v4304 = vadd.f32 0.0, %v4303
      %v4305 = vpop.f32.mrb[0].mxu0
      %4306 = vmatprep.mubr.f32.mxu0 0.0
      %4307 = vmatmul.mubr.f32.gmra.mrb[0].mxu0 %v4179
      %v4308 = vpop.f32.mrb[0].mxu0
      %v4309 = vadd.f32 0.0, %v4308
      %v4310 = vpop.f32.mrb[0].mxu0
      %4311 = vmatprep.mubr.f32.mxu0 0.0
      %4312 = vmatmul.mubr.f32.gmra.mrb[0].mxu0 %v4182
      %v4313 = vpop.f32.mrb[0].mxu0
      %v4314 = vadd.f32 0.0, %v4313
      %v4315 = vpop.f32.mrb[0].mxu0
      %4316 = vmatprep.mubr.f32.mxu0 0.0
      %4317 = vmatmul.mubr.f32.gmra.mrb[0].mxu0 %v4185
      %v4318 = vpop.f32.mrb[0].mxu0
      %v4319 = vadd.f32 0.0, %v4318
      %v4320 = vpop.f32.mrb[0].mxu0
      %4321 = vmatprep.mubr.f32.mxu0 0.0
      %4322 = vmatmul.mubr.f32.gmra.mrb[0].mxu0 %v4188
      %v4323 = vpop.f32.mrb[0].mxu0
      %v4324 = vadd.f32 0.0, %v4323
      %v4325 = vpop.f32.mrb[0].mxu0
      %4326 = vmatprep.mubr.f32.mxu0 0.0
      %4327 = vmatmul.mubr.f32.gmra.mrb[0].mxu0 %v4191
      %v4328 = vpop.f32.mrb[0].mxu0
      %v4329 = vadd.f32 0.0, %v4328
      %v4330 = vpop.f32.mrb[0].mxu0
      %4331 = vmatprep.mubr.f32.mxu0 0.0
      %4332 = vmatmul.mubr.f32.gmra.mrb[0].mxu0 %v4194
      %v4333 = vpop.f32.mrb[0].mxu0
      %v4334 = vadd.f32 0.0, %v4333
      %v4335 = vpop.f32.mrb[0].mxu0
      %4336 = vmatprep.mubr.f32.mxu0 0.0
      %4337 = vmatmul.mubr.f32.gmra.mrb[0].mxu0 %v4197
      %v4338 = vpop.f32.mrb[0].mxu0
      %v4339 = vadd.f32 0.0, %v4338
      %v4340 = vpop.f32.mrb[0].mxu0
      %4341 = vmatprep.mubr.f32.mxu0 0.0
      %4342 = vmatmul.mubr.f32.gmra.mrb[0].mxu0 %v4200
      %v4343 = vpop.f32.mrb[0].mxu0
      %v4344 = vadd.f32 0.0, %v4343
      %v4345 = vpop.f32.mrb[0].mxu0
      %4346 = vdwg.mxu0
      %v4347 = vadd.f32 %v3646, %v4269
      %v4348 = vadd.f32 %v3647, %v4274
      %v4349 = vadd.f32 %v3648, %v4279
      %v4350 = vadd.f32 %v3649, %v4284
      %v4351 = vadd.f32 %v3650, %v4289
      %v4352 = vadd.f32 %v3651, %v4294
      %v4353 = vadd.f32 %v3652, %v4299
      %v4354 = vadd.f32 %v3653, %v4304
      %v4355 = vadd.f32 %v3654, %v4309
      %v4356 = vadd.f32 %v3655, %v4314
      %v4357 = vadd.f32 %v3656, %v4319
      %v4358 = vadd.f32 %v3657, %v4324
      %v4359 = vadd.f32 %v3658, %v4329
      %v4360 = vadd.f32 %v3659, %v4334
      %v4361 = vadd.f32 %v3660, %v4339
      %v4362 = vadd.f32 %v3661, %v4344
      %s4363 = scalar_lea.vmem %s18, 128
      %v4364 = vld [vmem:[%s4363] sm:$0xff]
      %v4365 = vld [vmem:[%s4363 + $0x8] sm:$0xff]
      %v4366 = vld [vmem:[%s4363 + $0x10] sm:$0xff]
      %v4367 = vld [vmem:[%s4363 + $0x18] sm:$0xff]
      %v4368 = vld [vmem:[%s4363 + $0x20] sm:$0xff]
      %v4369 = vld [vmem:[%s4363 + $0x28] sm:$0xff]
      %v4370 = vld [vmem:[%s4363 + $0x30] sm:$0xff]
      %v4371 = vld [vmem:[%s4363 + $0x38] sm:$0xff]
      %v4372 = vld [vmem:[%s4363 + $0x40] sm:$0xff]
      %v4373 = vld [vmem:[%s4363 + $0x48] sm:$0xff]
      %v4374 = vld [vmem:[%s4363 + $0x50] sm:$0xff]
      %v4375 = vld [vmem:[%s4363 + $0x58] sm:$0xff]
      %v4376 = vld [vmem:[%s4363 + $0x60] sm:$0xff]
      %v4377 = vld [vmem:[%s4363 + $0x68] sm:$0xff]
      %v4378 = vld [vmem:[%s4363 + $0x70] sm:$0xff]
      %v4379 = vld [vmem:[%s4363 + $0x78] sm:$0xff]
      %v4381 = vsel %vm4153, %v4364, 0
      %v4384 = vsel %vm4153, %v4365, 0
      %v4387 = vsel %vm4153, %v4366, 0
      %v4390 = vsel %vm4153, %v4367, 0
      %v4393 = vsel %vm4153, %v4368, 0
      %v4396 = vsel %vm4153, %v4369, 0
      %v4399 = vsel %vm4153, %v4370, 0
      %v4402 = vsel %vm4153, %v4371, 0
      %v4405 = vsel %vm4153, %v4372, 0
      %v4408 = vsel %vm4153, %v4373, 0
      %v4411 = vsel %vm4153, %v4374, 0
      %v4414 = vsel %vm4153, %v4375, 0
      %v4417 = vsel %vm4153, %v4376, 0
      %v4420 = vsel %vm4153, %v4377, 0
      %v4423 = vsel %vm4153, %v4378, 0
      %v4426 = vsel %vm4153, %v4379, 0
      %4428 = vmatprep.subr.mxu0 0.0
      %4429 = vmatpush1.msra.mxu0 %v4129
      %4430 = vmatprep.subr.mxu0 0.0
      %4431 = vmatpush1.msra.mxu0 %v4130
      %4432 = vmatprep.subr.mxu0 0.0
      %4433 = vmatpush1.msra.mxu0 %v4131
      %4434 = vmatprep.subr.mxu0 0.0
      %4435 = vmatpush1.msra.mxu0 %v4132
      %4436 = vmatprep.subr.mxu0 0.0
      %4437 = vmatpush1.msra.mxu0 %v4133
      %4438 = vmatprep.subr.mxu0 0.0
      %4439 = vmatpush1.msra.mxu0 %v4134
      %4440 = vmatprep.subr.mxu0 0.0
      %4441 = vmatpush1.msra.mxu0 %v4135
      %4442 = vmatprep.subr.mxu0 0.0
      %4443 = vmatpush1.msra.mxu0 %v4136
      %4444 = vmatprep.subr.mxu0 0.0
      %4445 = vmatpush1.msra.mxu0 0.0
      %4446 = vmatprep.subr.mxu0 0.0
      %4447 = vmatpush1.msra.mxu0 0.0
      %4448 = vmatprep.subr.mxu0 0.0
      %4449 = vmatpush1.msra.mxu0 0.0
      %4450 = vmatprep.subr.mxu0 0.0
      %4451 = vmatpush1.msra.mxu0 0.0
      %4452 = vmatprep.subr.mxu0 0.0
      %4453 = vmatpush1.msra.mxu0 0.0
      %4454 = vmatprep.subr.mxu0 0.0
      %4455 = vmatpush1.msra.mxu0 0.0
      %4456 = vmatprep.subr.mxu0 0.0
      %4457 = vmatpush1.msra.mxu0 0.0
      %4458 = vmatprep.subr.mxu0 0.0
      %4459 = vmatpush1.msra.mxu0 0.0
      %4460 = vmatprep.subr.mxu0 0.0
      %4461 = vmatpush1.msra.mxu0 0.0
      %4462 = vmatprep.subr.mxu0 0.0
      %4463 = vmatpush1.msra.mxu0 0.0
      %4464 = vmatprep.subr.mxu0 0.0
      %4465 = vmatpush1.msra.mxu0 0.0
      %4466 = vmatprep.subr.mxu0 0.0
      %4467 = vmatpush1.msra.mxu0 0.0
      %4468 = vmatprep.subr.mxu0 0.0
      %4469 = vmatpush1.msra.mxu0 0.0
      %4470 = vmatprep.subr.mxu0 0.0
      %4471 = vmatpush1.msra.mxu0 0.0
      %4472 = vmatprep.subr.mxu0 0.0
      %4473 = vmatpush1.msra.mxu0 0.0
      %4474 = vmatprep.subr.mxu0 0.0
      %4475 = vmatpush1.msra.mxu0 0.0
      %4476 = vmatprep.subr.mxu0 0.0
      %4477 = vmatpush1.msra.mxu0 0.0
      %4478 = vmatprep.subr.mxu0 0.0
      %4479 = vmatpush1.msra.mxu0 0.0
      %4480 = vmatprep.subr.mxu0 0.0
      %4481 = vmatpush1.msra.mxu0 0.0
      %4482 = vmatprep.subr.mxu0 0.0
      %4483 = vmatpush1.msra.mxu0 0.0
      %4484 = vmatprep.subr.mxu0 0.0
      %4485 = vmatpush1.msra.mxu0 0.0
      %4486 = vmatprep.subr.mxu0 0.0
      %4487 = vmatpush1.msra.mxu0 0.0
      %4488 = vmatprep.subr.mxu0 0.0
      %4489 = vmatpush1.msra.mxu0 0.0
      %4490 = vmatprep.subr.mxu0 0.0
      %4491 = vmatpush1.msra.mxu0 0.0
      %4492 = vmatprep.mubr.f32.mxu0 0.0
      %4493 = vmatmul.mubr.f32.gmra.mrb[0].mxu0 %v4381
      %v4494 = vpop.f32.mrb[0].mxu0
      %v4495 = vadd.f32 0.0, %v4494
      %v4496 = vpop.f32.mrb[0].mxu0
      %4497 = vmatprep.mubr.f32.mxu0 0.0
      %4498 = vmatmul.mubr.f32.gmra.mrb[0].mxu0 %v4384
      %v4499 = vpop.f32.mrb[0].mxu0
      %v4500 = vadd.f32 0.0, %v4499
      %v4501 = vpop.f32.mrb[0].mxu0
      %4502 = vmatprep.mubr.f32.mxu0 0.0
      %4503 = vmatmul.mubr.f32.gmra.mrb[0].mxu0 %v4387
      %v4504 = vpop.f32.mrb[0].mxu0
      %v4505 = vadd.f32 0.0, %v4504
      %v4506 = vpop.f32.mrb[0].mxu0
      %4507 = vmatprep.mubr.f32.mxu0 0.0
      %4508 = vmatmul.mubr.f32.gmra.mrb[0].mxu0 %v4390
      %v4509 = vpop.f32.mrb[0].mxu0
      %v4510 = vadd.f32 0.0, %v4509
      %v4511 = vpop.f32.mrb[0].mxu0
      %4512 = vmatprep.mubr.f32.mxu0 0.0
      %4513 = vmatmul.mubr.f32.gmra.mrb[0].mxu0 %v4393
      %v4514 = vpop.f32.mrb[0].mxu0
      %v4515 = vadd.f32 0.0, %v4514
      %v4516 = vpop.f32.mrb[0].mxu0
      %4517 = vmatprep.mubr.f32.mxu0 0.0
      %4518 = vmatmul.mubr.f32.gmra.mrb[0].mxu0 %v4396
      %v4519 = vpop.f32.mrb[0].mxu0
      %v4520 = vadd.f32 0.0, %v4519
      %v4521 = vpop.f32.mrb[0].mxu0
      %4522 = vmatprep.mubr.f32.mxu0 0.0
      %4523 = vmatmul.mubr.f32.gmra.mrb[0].mxu0 %v4399
      %v4524 = vpop.f32.mrb[0].mxu0
      %v4525 = vadd.f32 0.0, %v4524
      %v4526 = vpop.f32.mrb[0].mxu0
      %4527 = vmatprep.mubr.f32.mxu0 0.0
      %4528 = vmatmul.mubr.f32.gmra.mrb[0].mxu0 %v4402
      %v4529 = vpop.f32.mrb[0].mxu0
      %v4530 = vadd.f32 0.0, %v4529
      %v4531 = vpop.f32.mrb[0].mxu0
      %4532 = vmatprep.mubr.f32.mxu0 0.0
      %4533 = vmatmul.mubr.f32.gmra.mrb[0].mxu0 %v4405
      %v4534 = vpop.f32.mrb[0].mxu0
      %v4535 = vadd.f32 0.0, %v4534
      %v4536 = vpop.f32.mrb[0].mxu0
      %4537 = vmatprep.mubr.f32.mxu0 0.0
      %4538 = vmatmul.mubr.f32.gmra.mrb[0].mxu0 %v4408
      %v4539 = vpop.f32.mrb[0].mxu0
      %v4540 = vadd.f32 0.0, %v4539
      %v4541 = vpop.f32.mrb[0].mxu0
      %4542 = vmatprep.mubr.f32.mxu0 0.0
      %4543 = vmatmul.mubr.f32.gmra.mrb[0].mxu0 %v4411
      %v4544 = vpop.f32.mrb[0].mxu0
      %v4545 = vadd.f32 0.0, %v4544
      %v4546 = vpop.f32.mrb[0].mxu0
      %4547 = vmatprep.mubr.f32.mxu0 0.0
      %4548 = vmatmul.mubr.f32.gmra.mrb[0].mxu0 %v4414
      %v4549 = vpop.f32.mrb[0].mxu0
      %v4550 = vadd.f32 0.0, %v4549
      %v4551 = vpop.f32.mrb[0].mxu0
      %4552 = vmatprep.mubr.f32.mxu0 0.0
      %4553 = vmatmul.mubr.f32.gmra.mrb[0].mxu0 %v4417
      %v4554 = vpop.f32.mrb[0].mxu0
      %v4555 = vadd.f32 0.0, %v4554
      %v4556 = vpop.f32.mrb[0].mxu0
      %4557 = vmatprep.mubr.f32.mxu0 0.0
      %4558 = vmatmul.mubr.f32.gmra.mrb[0].mxu0 %v4420
      %v4559 = vpop.f32.mrb[0].mxu0
      %v4560 = vadd.f32 0.0, %v4559
      %v4561 = vpop.f32.mrb[0].mxu0
      %4562 = vmatprep.mubr.f32.mxu0 0.0
      %4563 = vmatmul.mubr.f32.gmra.mrb[0].mxu0 %v4423
      %v4564 = vpop.f32.mrb[0].mxu0
      %v4565 = vadd.f32 0.0, %v4564
      %v4566 = vpop.f32.mrb[0].mxu0
      %4567 = vmatprep.mubr.f32.mxu0 0.0
      %4568 = vmatmul.mubr.f32.gmra.mrb[0].mxu0 %v4426
      %v4569 = vpop.f32.mrb[0].mxu0
      %v4570 = vadd.f32 0.0, %v4569
      %v4571 = vpop.f32.mrb[0].mxu0
      %4572 = vdwg.mxu0
      %4589 = vrot.lane.b32.xlu0 %v4495, 127
      %v4590 = vpop.permute.xlu0 %4589
      %4591 = vrot.lane.b32.xlu0 %v4500, 127
      %v4592 = vpop.permute.xlu0 %4591
      %4593 = vrot.lane.b32.xlu0 %v4505, 127
      %v4594 = vpop.permute.xlu0 %4593
      %4595 = vrot.lane.b32.xlu0 %v4510, 127
      %v4596 = vpop.permute.xlu0 %4595
      %4597 = vrot.lane.b32.xlu0 %v4515, 127
      %v4598 = vpop.permute.xlu0 %4597
      %4599 = vrot.lane.b32.xlu0 %v4520, 127
      %v4600 = vpop.permute.xlu0 %4599
      %4601 = vrot.lane.b32.xlu0 %v4525, 127
      %v4602 = vpop.permute.xlu0 %4601
      %4603 = vrot.lane.b32.xlu0 %v4530, 127
      %v4604 = vpop.permute.xlu0 %4603
      %4605 = vrot.lane.b32.xlu0 %v4535, 127
      %v4606 = vpop.permute.xlu0 %4605
      %4607 = vrot.lane.b32.xlu0 %v4540, 127
      %v4608 = vpop.permute.xlu0 %4607
      %4609 = vrot.lane.b32.xlu0 %v4545, 127
      %v4610 = vpop.permute.xlu0 %4609
      %4611 = vrot.lane.b32.xlu0 %v4550, 127
      %v4612 = vpop.permute.xlu0 %4611
      %4613 = vrot.lane.b32.xlu0 %v4555, 127
      %v4614 = vpop.permute.xlu0 %4613
      %4615 = vrot.lane.b32.xlu0 %v4560, 127
      %v4616 = vpop.permute.xlu0 %4615
      %4617 = vrot.lane.b32.xlu0 %v4565, 127
      %v4618 = vpop.permute.xlu0 %4617
      %4619 = vrot.lane.b32.xlu0 %v4570, 127
      %v4620 = vpop.permute.xlu0 %4619
      %v4637 = vadd.f32 %v4347, %v4590
      %v4638 = vadd.f32 %v4348, %v4592
      %v4639 = vadd.f32 %v4349, %v4594
      %v4640 = vadd.f32 %v4350, %v4596
      %v4641 = vadd.f32 %v4351, %v4598
      %v4642 = vadd.f32 %v4352, %v4600
      %v4643 = vadd.f32 %v4353, %v4602
      %v4644 = vadd.f32 %v4354, %v4604
      %v4645 = vadd.f32 %v4355, %v4606
      %v4646 = vadd.f32 %v4356, %v4608
      %v4647 = vadd.f32 %v4357, %v4610
      %v4648 = vadd.f32 %v4358, %v4612
      %v4649 = vadd.f32 %v4359, %v4614
      %v4650 = vadd.f32 %v4360, %v4616
      %v4651 = vadd.f32 %v4361, %v4618
      %v4652 = vadd.f32 %v4362, %v4620
      %s4653 = scalar_lea.vmem %s18, 256
      %v4654 = vld [vmem:[%s4653] sm:$0xff]
      %v4655 = vld [vmem:[%s4653 + $0x8] sm:$0xff]
      %v4656 = vld [vmem:[%s4653 + $0x10] sm:$0xff]
      %v4657 = vld [vmem:[%s4653 + $0x18] sm:$0xff]
      %v4658 = vld [vmem:[%s4653 + $0x20] sm:$0xff]
      %v4659 = vld [vmem:[%s4653 + $0x28] sm:$0xff]
      %v4660 = vld [vmem:[%s4653 + $0x30] sm:$0xff]
      %v4661 = vld [vmem:[%s4653 + $0x38] sm:$0xff]
      %v4662 = vld [vmem:[%s4653 + $0x40] sm:$0xff]
      %v4663 = vld [vmem:[%s4653 + $0x48] sm:$0xff]
      %v4664 = vld [vmem:[%s4653 + $0x50] sm:$0xff]
      %v4665 = vld [vmem:[%s4653 + $0x58] sm:$0xff]
      %v4666 = vld [vmem:[%s4653 + $0x60] sm:$0xff]
      %v4667 = vld [vmem:[%s4653 + $0x68] sm:$0xff]
      %v4668 = vld [vmem:[%s4653 + $0x70] sm:$0xff]
      %v4669 = vld [vmem:[%s4653 + $0x78] sm:$0xff]
      %v4671 = vsel %vm4153, %v4654, 0
      %v4674 = vsel %vm4153, %v4655, 0
      %v4677 = vsel %vm4153, %v4656, 0
      %v4680 = vsel %vm4153, %v4657, 0
      %v4683 = vsel %vm4153, %v4658, 0
      %v4686 = vsel %vm4153, %v4659, 0
      %v4689 = vsel %vm4153, %v4660, 0
      %v4692 = vsel %vm4153, %v4661, 0
      %v4695 = vsel %vm4153, %v4662, 0
      %v4698 = vsel %vm4153, %v4663, 0
      %v4701 = vsel %vm4153, %v4664, 0
      %v4704 = vsel %vm4153, %v4665, 0
      %v4707 = vsel %vm4153, %v4666, 0
      %v4710 = vsel %vm4153, %v4667, 0
      %v4713 = vsel %vm4153, %v4668, 0
      %v4716 = vsel %vm4153, %v4669, 0
      %4718 = vmatprep.subr.mxu0 0.0
      %4719 = vmatpush1.msra.mxu0 %v4129
      %4720 = vmatprep.subr.mxu0 0.0
      %4721 = vmatpush1.msra.mxu0 %v4130
      %4722 = vmatprep.subr.mxu0 0.0
      %4723 = vmatpush1.msra.mxu0 %v4131
      %4724 = vmatprep.subr.mxu0 0.0
      %4725 = vmatpush1.msra.mxu0 %v4132
      %4726 = vmatprep.subr.mxu0 0.0
      %4727 = vmatpush1.msra.mxu0 %v4133
      %4728 = vmatprep.subr.mxu0 0.0
      %4729 = vmatpush1.msra.mxu0 %v4134
      %4730 = vmatprep.subr.mxu0 0.0
      %4731 = vmatpush1.msra.mxu0 %v4135
      %4732 = vmatprep.subr.mxu0 0.0
      %4733 = vmatpush1.msra.mxu0 %v4136
      %4734 = vmatprep.subr.mxu0 0.0
      %4735 = vmatpush1.msra.mxu0 0.0
      %4736 = vmatprep.subr.mxu0 0.0
      %4737 = vmatpush1.msra.mxu0 0.0
      %4738 = vmatprep.subr.mxu0 0.0
      %4739 = vmatpush1.msra.mxu0 0.0
      %4740 = vmatprep.subr.mxu0 0.0
      %4741 = vmatpush1.msra.mxu0 0.0
      %4742 = vmatprep.subr.mxu0 0.0
      %4743 = vmatpush1.msra.mxu0 0.0
      %4744 = vmatprep.subr.mxu0 0.0
      %4745 = vmatpush1.msra.mxu0 0.0
      %4746 = vmatprep.subr.mxu0 0.0
      %4747 = vmatpush1.msra.mxu0 0.0
      %4748 = vmatprep.subr.mxu0 0.0
      %4749 = vmatpush1.msra.mxu0 0.0
      %4750 = vmatprep.subr.mxu0 0.0
      %4751 = vmatpush1.msra.mxu0 0.0
      %4752 = vmatprep.subr.mxu0 0.0
      %4753 = vmatpush1.msra.mxu0 0.0
      %4754 = vmatprep.subr.mxu0 0.0
      %4755 = vmatpush1.msra.mxu0 0.0
      %4756 = vmatprep.subr.mxu0 0.0
      %4757 = vmatpush1.msra.mxu0 0.0
      %4758 = vmatprep.subr.mxu0 0.0
      %4759 = vmatpush1.msra.mxu0 0.0
      %4760 = vmatprep.subr.mxu0 0.0
      %4761 = vmatpush1.msra.mxu0 0.0
      %4762 = vmatprep.subr.mxu0 0.0
      %4763 = vmatpush1.msra.mxu0 0.0
      %4764 = vmatprep.subr.mxu0 0.0
      %4765 = vmatpush1.msra.mxu0 0.0
      %4766 = vmatprep.subr.mxu0 0.0
      %4767 = vmatpush1.msra.mxu0 0.0
      %4768 = vmatprep.subr.mxu0 0.0
      %4769 = vmatpush1.msra.mxu0 0.0
      %4770 = vmatprep.subr.mxu0 0.0
      %4771 = vmatpush1.msra.mxu0 0.0
      %4772 = vmatprep.subr.mxu0 0.0
      %4773 = vmatpush1.msra.mxu0 0.0
      %4774 = vmatprep.subr.mxu0 0.0
      %4775 = vmatpush1.msra.mxu0 0.0
      %4776 = vmatprep.subr.mxu0 0.0
      %4777 = vmatpush1.msra.mxu0 0.0
      %4778 = vmatprep.subr.mxu0 0.0
      %4779 = vmatpush1.msra.mxu0 0.0
      %4780 = vmatprep.subr.mxu0 0.0
      %4781 = vmatpush1.msra.mxu0 0.0
      %4782 = vmatprep.mubr.f32.mxu0 0.0
      %4783 = vmatmul.mubr.f32.gmra.mrb[0].mxu0 %v4671
      %v4784 = vpop.f32.mrb[0].mxu0
      %v4785 = vadd.f32 0.0, %v4784
      %v4786 = vpop.f32.mrb[0].mxu0
      %4787 = vmatprep.mubr.f32.mxu0 0.0
      %4788 = vmatmul.mubr.f32.gmra.mrb[0].mxu0 %v4674
      %v4789 = vpop.f32.mrb[0].mxu0
      %v4790 = vadd.f32 0.0, %v4789
      %v4791 = vpop.f32.mrb[0].mxu0
      %4792 = vmatprep.mubr.f32.mxu0 0.0
      %4793 = vmatmul.mubr.f32.gmra.mrb[0].mxu0 %v4677
      %v4794 = vpop.f32.mrb[0].mxu0
      %v4795 = vadd.f32 0.0, %v4794
      %v4796 = vpop.f32.mrb[0].mxu0
      %4797 = vmatprep.mubr.f32.mxu0 0.0
      %4798 = vmatmul.mubr.f32.gmra.mrb[0].mxu0 %v4680
      %v4799 = vpop.f32.mrb[0].mxu0
      %v4800 = vadd.f32 0.0, %v4799
      %v4801 = vpop.f32.mrb[0].mxu0
      %4802 = vmatprep.mubr.f32.mxu0 0.0
      %4803 = vmatmul.mubr.f32.gmra.mrb[0].mxu0 %v4683
      %v4804 = vpop.f32.mrb[0].mxu0
      %v4805 = vadd.f32 0.0, %v4804
      %v4806 = vpop.f32.mrb[0].mxu0
      %4807 = vmatprep.mubr.f32.mxu0 0.0
      %4808 = vmatmul.mubr.f32.gmra.mrb[0].mxu0 %v4686
      %v4809 = vpop.f32.mrb[0].mxu0
      %v4810 = vadd.f32 0.0, %v4809
      %v4811 = vpop.f32.mrb[0].mxu0
      %4812 = vmatprep.mubr.f32.mxu0 0.0
      %4813 = vmatmul.mubr.f32.gmra.mrb[0].mxu0 %v4689
      %v4814 = vpop.f32.mrb[0].mxu0
      %v4815 = vadd.f32 0.0, %v4814
      %v4816 = vpop.f32.mrb[0].mxu0
      %4817 = vmatprep.mubr.f32.mxu0 0.0
      %4818 = vmatmul.mubr.f32.gmra.mrb[0].mxu0 %v4692
      %v4819 = vpop.f32.mrb[0].mxu0
      %v4820 = vadd.f32 0.0, %v4819
      %v4821 = vpop.f32.mrb[0].mxu0
      %4822 = vmatprep.mubr.f32.mxu0 0.0
      %4823 = vmatmul.mubr.f32.gmra.mrb[0].mxu0 %v4695
      %v4824 = vpop.f32.mrb[0].mxu0
      %v4825 = vadd.f32 0.0, %v4824
      %v4826 = vpop.f32.mrb[0].mxu0
      %4827 = vmatprep.mubr.f32.mxu0 0.0
      %4828 = vmatmul.mubr.f32.gmra.mrb[0].mxu0 %v4698
      %v4829 = vpop.f32.mrb[0].mxu0
      %v4830 = vadd.f32 0.0, %v4829
      %v4831 = vpop.f32.mrb[0].mxu0
      %4832 = vmatprep.mubr.f32.mxu0 0.0
      %4833 = vmatmul.mubr.f32.gmra.mrb[0].mxu0 %v4701
      %v4834 = vpop.f32.mrb[0].mxu0
      %v4835 = vadd.f32 0.0, %v4834
      %v4836 = vpop.f32.mrb[0].mxu0
      %4837 = vmatprep.mubr.f32.mxu0 0.0
      %4838 = vmatmul.mubr.f32.gmra.mrb[0].mxu0 %v4704
      %v4839 = vpop.f32.mrb[0].mxu0
      %v4840 = vadd.f32 0.0, %v4839
      %v4841 = vpop.f32.mrb[0].mxu0
      %4842 = vmatprep.mubr.f32.mxu0 0.0
      %4843 = vmatmul.mubr.f32.gmra.mrb[0].mxu0 %v4707
      %v4844 = vpop.f32.mrb[0].mxu0
      %v4845 = vadd.f32 0.0, %v4844
      %v4846 = vpop.f32.mrb[0].mxu0
      %4847 = vmatprep.mubr.f32.mxu0 0.0
      %4848 = vmatmul.mubr.f32.gmra.mrb[0].mxu0 %v4710
      %v4849 = vpop.f32.mrb[0].mxu0
      %v4850 = vadd.f32 0.0, %v4849
      %v4851 = vpop.f32.mrb[0].mxu0
      %4852 = vmatprep.mubr.f32.mxu0 0.0
      %4853 = vmatmul.mubr.f32.gmra.mrb[0].mxu0 %v4713
      %v4854 = vpop.f32.mrb[0].mxu0
      %v4855 = vadd.f32 0.0, %v4854
      %v4856 = vpop.f32.mrb[0].mxu0
      %4857 = vmatprep.mubr.f32.mxu0 0.0
      %4858 = vmatmul.mubr.f32.gmra.mrb[0].mxu0 %v4716
      %v4859 = vpop.f32.mrb[0].mxu0
      %v4860 = vadd.f32 0.0, %v4859
      %v4861 = vpop.f32.mrb[0].mxu0
      %4862 = vdwg.mxu0
      %4879 = vrot.lane.b32.xlu0 %v4785, 126
      %v4880 = vpop.permute.xlu0 %4879
      %4881 = vrot.lane.b32.xlu0 %v4790, 126
      %v4882 = vpop.permute.xlu0 %4881
      %4883 = vrot.lane.b32.xlu0 %v4795, 126
      %v4884 = vpop.permute.xlu0 %4883
      %4885 = vrot.lane.b32.xlu0 %v4800, 126
      %v4886 = vpop.permute.xlu0 %4885
      %4887 = vrot.lane.b32.xlu0 %v4805, 126
      %v4888 = vpop.permute.xlu0 %4887
      %4889 = vrot.lane.b32.xlu0 %v4810, 126
      %v4890 = vpop.permute.xlu0 %4889
      %4891 = vrot.lane.b32.xlu0 %v4815, 126
      %v4892 = vpop.permute.xlu0 %4891
      %4893 = vrot.lane.b32.xlu0 %v4820, 126
      %v4894 = vpop.permute.xlu0 %4893
      %4895 = vrot.lane.b32.xlu0 %v4825, 126
      %v4896 = vpop.permute.xlu0 %4895
      %4897 = vrot.lane.b32.xlu0 %v4830, 126
      %v4898 = vpop.permute.xlu0 %4897
      %4899 = vrot.lane.b32.xlu0 %v4835, 126
      %v4900 = vpop.permute.xlu0 %4899
      %4901 = vrot.lane.b32.xlu0 %v4840, 126
      %v4902 = vpop.permute.xlu0 %4901
      %4903 = vrot.lane.b32.xlu0 %v4845, 126
      %v4904 = vpop.permute.xlu0 %4903
      %4905 = vrot.lane.b32.xlu0 %v4850, 126
      %v4906 = vpop.permute.xlu0 %4905
      %4907 = vrot.lane.b32.xlu0 %v4855, 126
      %v4908 = vpop.permute.xlu0 %4907
      %4909 = vrot.lane.b32.xlu0 %v4860, 126
      %v4910 = vpop.permute.xlu0 %4909
      %v4927 = vadd.f32 %v4637, %v4880
      %v4928 = vadd.f32 %v4638, %v4882
      %v4929 = vadd.f32 %v4639, %v4884
      %v4930 = vadd.f32 %v4640, %v4886
      %v4931 = vadd.f32 %v4641, %v4888
      %v4932 = vadd.f32 %v4642, %v4890
      %v4933 = vadd.f32 %v4643, %v4892
      %v4934 = vadd.f32 %v4644, %v4894
      %v4935 = vadd.f32 %v4645, %v4896
      %v4936 = vadd.f32 %v4646, %v4898
      %v4937 = vadd.f32 %v4647, %v4900
      %v4938 = vadd.f32 %v4648, %v4902
      %v4939 = vadd.f32 %v4649, %v4904
      %v4940 = vadd.f32 %v4650, %v4906
      %v4941 = vadd.f32 %v4651, %v4908
      %v4942 = vadd.f32 %v4652, %v4910
      %s4943 = scalar_lea.vmem %s18, 384
      %v4944 = vld [vmem:[%s4943] sm:$0xff]
      %v4945 = vld [vmem:[%s4943 + $0x8] sm:$0xff]
      %v4946 = vld [vmem:[%s4943 + $0x10] sm:$0xff]
      %v4947 = vld [vmem:[%s4943 + $0x18] sm:$0xff]
      %v4948 = vld [vmem:[%s4943 + $0x20] sm:$0xff]
      %v4949 = vld [vmem:[%s4943 + $0x28] sm:$0xff]
      %v4950 = vld [vmem:[%s4943 + $0x30] sm:$0xff]
      %v4951 = vld [vmem:[%s4943 + $0x38] sm:$0xff]
      %v4952 = vld [vmem:[%s4943 + $0x40] sm:$0xff]
      %v4953 = vld [vmem:[%s4943 + $0x48] sm:$0xff]
      %v4954 = vld [vmem:[%s4943 + $0x50] sm:$0xff]
      %v4955 = vld [vmem:[%s4943 + $0x58] sm:$0xff]
      %v4956 = vld [vmem:[%s4943 + $0x60] sm:$0xff]
      %v4957 = vld [vmem:[%s4943 + $0x68] sm:$0xff]
      %v4958 = vld [vmem:[%s4943 + $0x70] sm:$0xff]
      %v4959 = vld [vmem:[%s4943 + $0x78] sm:$0xff]
      %v4961 = vsel %vm4153, %v4944, 0
      %v4964 = vsel %vm4153, %v4945, 0
      %v4967 = vsel %vm4153, %v4946, 0
      %v4970 = vsel %vm4153, %v4947, 0
      %v4973 = vsel %vm4153, %v4948, 0
      %v4976 = vsel %vm4153, %v4949, 0
      %v4979 = vsel %vm4153, %v4950, 0
      %v4982 = vsel %vm4153, %v4951, 0
      %v4985 = vsel %vm4153, %v4952, 0
      %v4988 = vsel %vm4153, %v4953, 0
      %v4991 = vsel %vm4153, %v4954, 0
      %v4994 = vsel %vm4153, %v4955, 0
      %v4997 = vsel %vm4153, %v4956, 0
      %v5000 = vsel %vm4153, %v4957, 0
      %v5003 = vsel %vm4153, %v4958, 0
      %v5006 = vsel %vm4153, %v4959, 0
      %5008 = vmatprep.subr.mxu0 0.0
      %5009 = vmatpush1.msra.mxu0 %v4129
      %5010 = vmatprep.subr.mxu0 0.0
      %5011 = vmatpush1.msra.mxu0 %v4130
      %5012 = vmatprep.subr.mxu0 0.0
      %5013 = vmatpush1.msra.mxu0 %v4131
      %5014 = vmatprep.subr.mxu0 0.0
      %5015 = vmatpush1.msra.mxu0 %v4132
      %5016 = vmatprep.subr.mxu0 0.0
      %5017 = vmatpush1.msra.mxu0 %v4133
      %5018 = vmatprep.subr.mxu0 0.0
      %5019 = vmatpush1.msra.mxu0 %v4134
      %5020 = vmatprep.subr.mxu0 0.0
      %5021 = vmatpush1.msra.mxu0 %v4135
      %5022 = vmatprep.subr.mxu0 0.0
      %5023 = vmatpush1.msra.mxu0 %v4136
      %5024 = vmatprep.subr.mxu0 0.0
      %5025 = vmatpush1.msra.mxu0 0.0
      %5026 = vmatprep.subr.mxu0 0.0
      %5027 = vmatpush1.msra.mxu0 0.0
      %5028 = vmatprep.subr.mxu0 0.0
      %5029 = vmatpush1.msra.mxu0 0.0
      %5030 = vmatprep.subr.mxu0 0.0
      %5031 = vmatpush1.msra.mxu0 0.0
      %5032 = vmatprep.subr.mxu0 0.0
      %5033 = vmatpush1.msra.mxu0 0.0
      %5034 = vmatprep.subr.mxu0 0.0
      %5035 = vmatpush1.msra.mxu0 0.0
      %5036 = vmatprep.subr.mxu0 0.0
      %5037 = vmatpush1.msra.mxu0 0.0
      %5038 = vmatprep.subr.mxu0 0.0
      %5039 = vmatpush1.msra.mxu0 0.0
      %5040 = vmatprep.subr.mxu0 0.0
      %5041 = vmatpush1.msra.mxu0 0.0
      %5042 = vmatprep.subr.mxu0 0.0
      %5043 = vmatpush1.msra.mxu0 0.0
      %5044 = vmatprep.subr.mxu0 0.0
      %5045 = vmatpush1.msra.mxu0 0.0
      %5046 = vmatprep.subr.mxu0 0.0
      %5047 = vmatpush1.msra.mxu0 0.0
      %5048 = vmatprep.subr.mxu0 0.0
      %5049 = vmatpush1.msra.mxu0 0.0
      %5050 = vmatprep.subr.mxu0 0.0
      %5051 = vmatpush1.msra.mxu0 0.0
      %5052 = vmatprep.subr.mxu0 0.0
      %5053 = vmatpush1.msra.mxu0 0.0
      %5054 = vmatprep.subr.mxu0 0.0
      %5055 = vmatpush1.msra.mxu0 0.0
      %5056 = vmatprep.subr.mxu0 0.0
      %5057 = vmatpush1.msra.mxu0 0.0
      %5058 = vmatprep.subr.mxu0 0.0
      %5059 = vmatpush1.msra.mxu0 0.0
      %5060 = vmatprep.subr.mxu0 0.0
      %5061 = vmatpush1.msra.mxu0 0.0
      %5062 = vmatprep.subr.mxu0 0.0
      %5063 = vmatpush1.msra.mxu0 0.0
      %5064 = vmatprep.subr.mxu0 0.0
      %5065 = vmatpush1.msra.mxu0 0.0
      %5066 = vmatprep.subr.mxu0 0.0
      %5067 = vmatpush1.msra.mxu0 0.0
      %5068 = vmatprep.subr.mxu0 0.0
      %5069 = vmatpush1.msra.mxu0 0.0
      %5070 = vmatprep.subr.mxu0 0.0
      %5071 = vmatpush1.msra.mxu0 0.0
      %5072 = vmatprep.mubr.f32.mxu0 0.0
      %5073 = vmatmul.mubr.f32.gmra.mrb[0].mxu0 %v4961
      %v5074 = vpop.f32.mrb[0].mxu0
      %v5075 = vadd.f32 0.0, %v5074
      %v5076 = vpop.f32.mrb[0].mxu0
      %5077 = vmatprep.mubr.f32.mxu0 0.0
      %5078 = vmatmul.mubr.f32.gmra.mrb[0].mxu0 %v4964
      %v5079 = vpop.f32.mrb[0].mxu0
      %v5080 = vadd.f32 0.0, %v5079
      %v5081 = vpop.f32.mrb[0].mxu0
      %5082 = vmatprep.mubr.f32.mxu0 0.0
      %5083 = vmatmul.mubr.f32.gmra.mrb[0].mxu0 %v4967
      %v5084 = vpop.f32.mrb[0].mxu0
      %v5085 = vadd.f32 0.0, %v5084
      %v5086 = vpop.f32.mrb[0].mxu0
      %5087 = vmatprep.mubr.f32.mxu0 0.0
      %5088 = vmatmul.mubr.f32.gmra.mrb[0].mxu0 %v4970
      %v5089 = vpop.f32.mrb[0].mxu0
      %v5090 = vadd.f32 0.0, %v5089
      %v5091 = vpop.f32.mrb[0].mxu0
      %5092 = vmatprep.mubr.f32.mxu0 0.0
      %5093 = vmatmul.mubr.f32.gmra.mrb[0].mxu0 %v4973
      %v5094 = vpop.f32.mrb[0].mxu0
      %v5095 = vadd.f32 0.0, %v5094
      %v5096 = vpop.f32.mrb[0].mxu0
      %5097 = vmatprep.mubr.f32.mxu0 0.0
      %5098 = vmatmul.mubr.f32.gmra.mrb[0].mxu0 %v4976
      %v5099 = vpop.f32.mrb[0].mxu0
      %v5100 = vadd.f32 0.0, %v5099
      %v5101 = vpop.f32.mrb[0].mxu0
      %5102 = vmatprep.mubr.f32.mxu0 0.0
      %5103 = vmatmul.mubr.f32.gmra.mrb[0].mxu0 %v4979
      %v5104 = vpop.f32.mrb[0].mxu0
      %v5105 = vadd.f32 0.0, %v5104
      %v5106 = vpop.f32.mrb[0].mxu0
      %5107 = vmatprep.mubr.f32.mxu0 0.0
      %5108 = vmatmul.mubr.f32.gmra.mrb[0].mxu0 %v4982
      %v5109 = vpop.f32.mrb[0].mxu0
      %v5110 = vadd.f32 0.0, %v5109
      %v5111 = vpop.f32.mrb[0].mxu0
      %5112 = vmatprep.mubr.f32.mxu0 0.0
      %5113 = vmatmul.mubr.f32.gmra.mrb[0].mxu0 %v4985
      %v5114 = vpop.f32.mrb[0].mxu0
      %v5115 = vadd.f32 0.0, %v5114
      %v5116 = vpop.f32.mrb[0].mxu0
      %5117 = vmatprep.mubr.f32.mxu0 0.0
      %5118 = vmatmul.mubr.f32.gmra.mrb[0].mxu0 %v4988
      %v5119 = vpop.f32.mrb[0].mxu0
      %v5120 = vadd.f32 0.0, %v5119
      %v5121 = vpop.f32.mrb[0].mxu0
      %5122 = vmatprep.mubr.f32.mxu0 0.0
      %5123 = vmatmul.mubr.f32.gmra.mrb[0].mxu0 %v4991
      %v5124 = vpop.f32.mrb[0].mxu0
      %v5125 = vadd.f32 0.0, %v5124
      %v5126 = vpop.f32.mrb[0].mxu0
      %5127 = vmatprep.mubr.f32.mxu0 0.0
      %5128 = vmatmul.mubr.f32.gmra.mrb[0].mxu0 %v4994
      %v5129 = vpop.f32.mrb[0].mxu0
      %v5130 = vadd.f32 0.0, %v5129
      %v5131 = vpop.f32.mrb[0].mxu0
      %5132 = vmatprep.mubr.f32.mxu0 0.0
      %5133 = vmatmul.mubr.f32.gmra.mrb[0].mxu0 %v4997
      %v5134 = vpop.f32.mrb[0].mxu0
      %v5135 = vadd.f32 0.0, %v5134
      %v5136 = vpop.f32.mrb[0].mxu0
      %5137 = vmatprep.mubr.f32.mxu0 0.0
      %5138 = vmatmul.mubr.f32.gmra.mrb[0].mxu0 %v5000
      %v5139 = vpop.f32.mrb[0].mxu0
      %v5140 = vadd.f32 0.0, %v5139
      %v5141 = vpop.f32.mrb[0].mxu0
      %5142 = vmatprep.mubr.f32.mxu0 0.0
      %5143 = vmatmul.mubr.f32.gmra.mrb[0].mxu0 %v5003
      %v5144 = vpop.f32.mrb[0].mxu0
      %v5145 = vadd.f32 0.0, %v5144
      %v5146 = vpop.f32.mrb[0].mxu0
      %5147 = vmatprep.mubr.f32.mxu0 0.0
      %5148 = vmatmul.mubr.f32.gmra.mrb[0].mxu0 %v5006
      %v5149 = vpop.f32.mrb[0].mxu0
      %v5150 = vadd.f32 0.0, %v5149
      %v5151 = vpop.f32.mrb[0].mxu0
      %5152 = vdwg.mxu0
      %5169 = vrot.lane.b32.xlu0 %v5075, 125
      %v5170 = vpop.permute.xlu0 %5169
      %5171 = vrot.lane.b32.xlu0 %v5080, 125
      %v5172 = vpop.permute.xlu0 %5171
      %5173 = vrot.lane.b32.xlu0 %v5085, 125
      %v5174 = vpop.permute.xlu0 %5173
      %5175 = vrot.lane.b32.xlu0 %v5090, 125
      %v5176 = vpop.permute.xlu0 %5175
      %5177 = vrot.lane.b32.xlu0 %v5095, 125
      %v5178 = vpop.permute.xlu0 %5177
      %5179 = vrot.lane.b32.xlu0 %v5100, 125
      %v5180 = vpop.permute.xlu0 %5179
      %5181 = vrot.lane.b32.xlu0 %v5105, 125
      %v5182 = vpop.permute.xlu0 %5181
      %5183 = vrot.lane.b32.xlu0 %v5110, 125
      %v5184 = vpop.permute.xlu0 %5183
      %5185 = vrot.lane.b32.xlu0 %v5115, 125
      %v5186 = vpop.permute.xlu0 %5185
      %5187 = vrot.lane.b32.xlu0 %v5120, 125
      %v5188 = vpop.permute.xlu0 %5187
      %5189 = vrot.lane.b32.xlu0 %v5125, 125
      %v5190 = vpop.permute.xlu0 %5189
      %5191 = vrot.lane.b32.xlu0 %v5130, 125
      %v5192 = vpop.permute.xlu0 %5191
      %5193 = vrot.lane.b32.xlu0 %v5135, 125
      %v5194 = vpop.permute.xlu0 %5193
      %5195 = vrot.lane.b32.xlu0 %v5140, 125
      %v5196 = vpop.permute.xlu0 %5195
      %5197 = vrot.lane.b32.xlu0 %v5145, 125
      %v5198 = vpop.permute.xlu0 %5197
      %5199 = vrot.lane.b32.xlu0 %v5150, 125
      %v5200 = vpop.permute.xlu0 %5199
      %v5217 = vadd.f32 %v4927, %v5170
      %v5218 = vadd.f32 %v4928, %v5172
      %v5219 = vadd.f32 %v4929, %v5174
      %v5220 = vadd.f32 %v4930, %v5176
      %v5221 = vadd.f32 %v4931, %v5178
      %v5222 = vadd.f32 %v4932, %v5180
      %v5223 = vadd.f32 %v4933, %v5182
      %v5224 = vadd.f32 %v4934, %v5184
      %v5225 = vadd.f32 %v4935, %v5186
      %v5226 = vadd.f32 %v4936, %v5188
      %v5227 = vadd.f32 %v4937, %v5190
      %v5228 = vadd.f32 %v4938, %v5192
      %v5229 = vadd.f32 %v4939, %v5194
      %v5230 = vadd.f32 %v4940, %v5196
      %v5231 = vadd.f32 %v4941, %v5198
      %v5232 = vadd.f32 %v4942, %v5200
      %s5233 = scalar_lea.vmem [#allocation6], 256
      %v5234 = vld [vmem:[%s5233] sm:$0xff]
      %v5235 = vld [vmem:[%s5233 + $0x8] sm:$0xff]
      %v5236 = vld [vmem:[%s5233 + $0x10] sm:$0xff]
      %v5237 = vld [vmem:[%s5233 + $0x18] sm:$0xff]
      %v5238 = vld [vmem:[%s5233 + $0x20] sm:$0xff]
      %v5239 = vld [vmem:[%s5233 + $0x28] sm:$0xff]
      %v5240 = vld [vmem:[%s5233 + $0x30] sm:$0xff]
      %v5241 = vld [vmem:[%s5233 + $0x38] sm:$0xff]
      %v5242 = vld [vmem:[%s5233 + $0x40] sm:$0xff]
      %v5243 = vld [vmem:[%s5233 + $0x48] sm:$0xff]
      %v5244 = vld [vmem:[%s5233 + $0x50] sm:$0xff]
      %v5245 = vld [vmem:[%s5233 + $0x58] sm:$0xff]
      %v5246 = vld [vmem:[%s5233 + $0x60] sm:$0xff]
      %v5247 = vld [vmem:[%s5233 + $0x68] sm:$0xff]
      %v5248 = vld [vmem:[%s5233 + $0x70] sm:$0xff]
      %v5249 = vld [vmem:[%s5233 + $0x78] sm:$0xff]
      %5266 = vrot.lane.b32.xlu0 %v5234, 127
      %v5267 = vpop.permute.xlu0 %5266
      %5268 = vrot.lane.b32.xlu0 %v5235, 127
      %v5269 = vpop.permute.xlu0 %5268
      %5270 = vrot.lane.b32.xlu0 %v5236, 127
      %v5271 = vpop.permute.xlu0 %5270
      %5272 = vrot.lane.b32.xlu0 %v5237, 127
      %v5273 = vpop.permute.xlu0 %5272
      %5274 = vrot.lane.b32.xlu0 %v5238, 127
      %v5275 = vpop.permute.xlu0 %5274
      %5276 = vrot.lane.b32.xlu0 %v5239, 127
      %v5277 = vpop.permute.xlu0 %5276
      %5278 = vrot.lane.b32.xlu0 %v5240, 127
      %v5279 = vpop.permute.xlu0 %5278
      %5280 = vrot.lane.b32.xlu0 %v5241, 127
      %v5281 = vpop.permute.xlu0 %5280
      %5282 = vrot.lane.b32.xlu0 %v5242, 127
      %v5283 = vpop.permute.xlu0 %5282
      %5284 = vrot.lane.b32.xlu0 %v5243, 127
      %v5285 = vpop.permute.xlu0 %5284
      %5286 = vrot.lane.b32.xlu0 %v5244, 127
      %v5287 = vpop.permute.xlu0 %5286
      %5288 = vrot.lane.b32.xlu0 %v5245, 127
      %v5289 = vpop.permute.xlu0 %5288
      %5290 = vrot.lane.b32.xlu0 %v5246, 127
      %v5291 = vpop.permute.xlu0 %5290
      %5292 = vrot.lane.b32.xlu0 %v5247, 127
      %v5293 = vpop.permute.xlu0 %5292
      %5294 = vrot.lane.b32.xlu0 %v5248, 127
      %v5295 = vpop.permute.xlu0 %5294
      %5296 = vrot.lane.b32.xlu0 %v5249, 127
      %v5297 = vpop.permute.xlu0 %5296
      %5314 = vmatprep.subr.mxu0 0.0
      %5315 = vmatpush1.msra.mxu0 %v3679
      %5316 = vmatprep.subr.mxu0 0.0
      %5317 = vmatpush1.msra.mxu0 %v3680
      %5318 = vmatprep.subr.mxu0 0.0
      %5319 = vmatpush1.msra.mxu0 %v3681
      %5320 = vmatprep.subr.mxu0 0.0
      %5321 = vmatpush1.msra.mxu0 %v3682
      %5322 = vmatprep.subr.mxu0 0.0
      %5323 = vmatpush1.msra.mxu0 %v3683
      %5324 = vmatprep.subr.mxu0 0.0
      %5325 = vmatpush1.msra.mxu0 %v3684
      %5326 = vmatprep.subr.mxu0 0.0
      %5327 = vmatpush1.msra.mxu0 %v3685
      %5328 = vmatprep.subr.mxu0 0.0
      %5329 = vmatpush1.msra.mxu0 %v3686
      %5330 = vmatprep.subr.mxu0 0.0
      %5331 = vmatpush1.msra.mxu0 %v3687
      %5332 = vmatprep.subr.mxu0 0.0
      %5333 = vmatpush1.msra.mxu0 %v3688
      %5334 = vmatprep.subr.mxu0 0.0
      %5335 = vmatpush1.msra.mxu0 %v3689
      %5336 = vmatprep.subr.mxu0 0.0
      %5337 = vmatpush1.msra.mxu0 %v3690
      %5338 = vmatprep.subr.mxu0 0.0
      %5339 = vmatpush1.msra.mxu0 %v3691
      %5340 = vmatprep.subr.mxu0 0.0
      %5341 = vmatpush1.msra.mxu0 %v3692
      %5342 = vmatprep.subr.mxu0 0.0
      %5343 = vmatpush1.msra.mxu0 %v3693
      %5344 = vmatprep.subr.mxu0 0.0
      %5345 = vmatpush1.msra.mxu0 %v3694
      %5346 = vmatprep.subr.mxu0 0.0
      %5347 = vmatpush1.msra.mxu0 %v3776
      %5348 = vmatprep.subr.mxu0 0.0
      %5349 = vmatpush1.msra.mxu0 %v3778
      %5350 = vmatprep.subr.mxu0 0.0
      %5351 = vmatpush1.msra.mxu0 %v3780
      %5352 = vmatprep.subr.mxu0 0.0
      %5353 = vmatpush1.msra.mxu0 %v3782
      %5354 = vmatprep.subr.mxu0 0.0
      %5355 = vmatpush1.msra.mxu0 %v3784
      %5356 = vmatprep.subr.mxu0 0.0
      %5357 = vmatpush1.msra.mxu0 %v3786
      %5358 = vmatprep.subr.mxu0 0.0
      %5359 = vmatpush1.msra.mxu0 %v3788
      %5360 = vmatprep.subr.mxu0 0.0
      %5361 = vmatpush1.msra.mxu0 %v3790
      %5362 = vmatprep.subr.mxu0 0.0
      %5363 = vmatpush1.msra.mxu0 %v3792
      %5364 = vmatprep.subr.mxu0 0.0
      %5365 = vmatpush1.msra.mxu0 %v3794
      %5366 = vmatprep.subr.mxu0 0.0
      %5367 = vmatpush1.msra.mxu0 %v3796
      %5368 = vmatprep.subr.mxu0 0.0
      %5369 = vmatpush1.msra.mxu0 %v3798
      %5370 = vmatprep.subr.mxu0 0.0
      %5371 = vmatpush1.msra.mxu0 %v3800
      %5372 = vmatprep.subr.mxu0 0.0
      %5373 = vmatpush1.msra.mxu0 %v3802
      %5374 = vmatprep.subr.mxu0 0.0
      %5375 = vmatpush1.msra.mxu0 %v3804
      %5376 = vmatprep.subr.mxu0 0.0
      %5377 = vmatpush1.msra.mxu0 %v3806
      %5378 = vmatprep.mubr.f32.mxu0 %v3824
      %5379 = vmatmul.mubr.f32.gmra.mrb[0].mxu0 %v3823
      %v5380 = vpop.f32.mrb[0].mxu0
      %v5381 = vadd.f32 %v3866, %v5380
      %v5382 = vpop.f32.mrb[0].mxu0
      %5383 = vmatprep.mubr.f32.mxu0 %v3828
      %5384 = vmatmul.mubr.f32.gmra.mrb[0].mxu0 %v3827
      %v5385 = vpop.f32.mrb[0].mxu0
      %v5386 = vadd.f32 %v3871, %v5385
      %v5387 = vpop.f32.mrb[0].mxu0
      %5388 = vmatprep.mubr.f32.mxu0 %v3832
      %5389 = vmatmul.mubr.f32.gmra.mrb[0].mxu0 %v3831
      %v5390 = vpop.f32.mrb[0].mxu0
      %v5391 = vadd.f32 %v3876, %v5390
      %v5392 = vpop.f32.mrb[0].mxu0
      %5393 = vmatprep.mubr.f32.mxu0 %v3836
      %5394 = vmatmul.mubr.f32.gmra.mrb[0].mxu0 %v3835
      %v5395 = vpop.f32.mrb[0].mxu0
      %v5396 = vadd.f32 %v3881, %v5395
      %v5397 = vpop.f32.mrb[0].mxu0
      %5398 = vmatprep.mubr.f32.mxu0 %v3840
      %5399 = vmatmul.mubr.f32.gmra.mrb[0].mxu0 %v3839
      %v5400 = vpop.f32.mrb[0].mxu0
      %v5401 = vadd.f32 %v3886, %v5400
      %v5402 = vpop.f32.mrb[0].mxu0
      %5403 = vmatprep.mubr.f32.mxu0 %v3844
      %5404 = vmatmul.mubr.f32.gmra.mrb[0].mxu0 %v3843
      %v5405 = vpop.f32.mrb[0].mxu0
      %v5406 = vadd.f32 %v3891, %v5405
      %v5407 = vpop.f32.mrb[0].mxu0
      %5408 = vmatprep.mubr.f32.mxu0 %v3848
      %5409 = vmatmul.mubr.f32.gmra.mrb[0].mxu0 %v3847
      %v5410 = vpop.f32.mrb[0].mxu0
      %v5411 = vadd.f32 %v3896, %v5410
      %v5412 = vpop.f32.mrb[0].mxu0
      %5413 = vmatprep.mubr.f32.mxu0 %v3852
      %5414 = vmatmul.mubr.f32.gmra.mrb[0].mxu0 %v3851
      %v5415 = vpop.f32.mrb[0].mxu0
      %v5416 = vadd.f32 %v3901, %v5415
      %v5417 = vpop.f32.mrb[0].mxu0
      %5418 = vdwg.mxu0
      %5419 = vmatprep.subr.mxu0 0.0
      %5420 = vmatpush1.msra.mxu0 %v5234
      %5421 = vmatprep.subr.mxu0 0.0
      %5422 = vmatpush1.msra.mxu0 %v5235
      %5423 = vmatprep.subr.mxu0 0.0
      %5424 = vmatpush1.msra.mxu0 %v5236
      %5425 = vmatprep.subr.mxu0 0.0
      %5426 = vmatpush1.msra.mxu0 %v5237
      %5427 = vmatprep.subr.mxu0 0.0
      %5428 = vmatpush1.msra.mxu0 %v5238
      %5429 = vmatprep.subr.mxu0 0.0
      %5430 = vmatpush1.msra.mxu0 %v5239
      %5431 = vmatprep.subr.mxu0 0.0
      %5432 = vmatpush1.msra.mxu0 %v5240
      %5433 = vmatprep.subr.mxu0 0.0
      %5434 = vmatpush1.msra.mxu0 %v5241
      %5435 = vmatprep.subr.mxu0 0.0
      %5436 = vmatpush1.msra.mxu0 %v5242
      %5437 = vmatprep.subr.mxu0 0.0
      %5438 = vmatpush1.msra.mxu0 %v5243
      %5439 = vmatprep.subr.mxu0 0.0
      %5440 = vmatpush1.msra.mxu0 %v5244
      %5441 = vmatprep.subr.mxu0 0.0
      %5442 = vmatpush1.msra.mxu0 %v5245
      %5443 = vmatprep.subr.mxu0 0.0
      %5444 = vmatpush1.msra.mxu0 %v5246
      %5445 = vmatprep.subr.mxu0 0.0
      %5446 = vmatpush1.msra.mxu0 %v5247
      %5447 = vmatprep.subr.mxu0 0.0
      %5448 = vmatpush1.msra.mxu0 %v5248
      %5449 = vmatprep.subr.mxu0 0.0
      %5450 = vmatpush1.msra.mxu0 %v5249
      %5451 = vmatprep.subr.mxu0 0.0
      %5452 = vmatpush1.msra.mxu0 %v5267
      %5453 = vmatprep.subr.mxu0 0.0
      %5454 = vmatpush1.msra.mxu0 %v5269
      %5455 = vmatprep.subr.mxu0 0.0
      %5456 = vmatpush1.msra.mxu0 %v5271
      %5457 = vmatprep.subr.mxu0 0.0
      %5458 = vmatpush1.msra.mxu0 %v5273
      %5459 = vmatprep.subr.mxu0 0.0
      %5460 = vmatpush1.msra.mxu0 %v5275
      %5461 = vmatprep.subr.mxu0 0.0
      %5462 = vmatpush1.msra.mxu0 %v5277
      %5463 = vmatprep.subr.mxu0 0.0
      %5464 = vmatpush1.msra.mxu0 %v5279
      %5465 = vmatprep.subr.mxu0 0.0
      %5466 = vmatpush1.msra.mxu0 %v5281
      %5467 = vmatprep.subr.mxu0 0.0
      %5468 = vmatpush1.msra.mxu0 %v5283
      %5469 = vmatprep.subr.mxu0 0.0
      %5470 = vmatpush1.msra.mxu0 %v5285
      %5471 = vmatprep.subr.mxu0 0.0
      %5472 = vmatpush1.msra.mxu0 %v5287
      %5473 = vmatprep.subr.mxu0 0.0
      %5474 = vmatpush1.msra.mxu0 %v5289
      %5475 = vmatprep.subr.mxu0 0.0
      %5476 = vmatpush1.msra.mxu0 %v5291
      %5477 = vmatprep.subr.mxu0 0.0
      %5478 = vmatpush1.msra.mxu0 %v5293
      %5479 = vmatprep.subr.mxu0 0.0
      %5480 = vmatpush1.msra.mxu0 %v5295
      %5481 = vmatprep.subr.mxu0 0.0
      %5482 = vmatpush1.msra.mxu0 %v5297
      %5483 = vmatprep.mubr.f32.mxu0 %v3826
      %5484 = vmatmul.mubr.f32.gmra.mrb[0].mxu0 %v3825
      %v5485 = vpop.f32.mrb[0].mxu0
      %v5486 = vadd.f32 %v5381, %v5485
      %v5487 = vpop.f32.mrb[0].mxu0
      %5488 = vmatprep.mubr.f32.mxu0 %v3830
      %5489 = vmatmul.mubr.f32.gmra.mrb[0].mxu0 %v3829
      %v5490 = vpop.f32.mrb[0].mxu0
      %v5491 = vadd.f32 %v5386, %v5490
      %v5492 = vpop.f32.mrb[0].mxu0
      %5493 = vmatprep.mubr.f32.mxu0 %v3834
      %5494 = vmatmul.mubr.f32.gmra.mrb[0].mxu0 %v3833
      %v5495 = vpop.f32.mrb[0].mxu0
      %v5496 = vadd.f32 %v5391, %v5495
      %v5497 = vpop.f32.mrb[0].mxu0
      %5498 = vmatprep.mubr.f32.mxu0 %v3838
      %5499 = vmatmul.mubr.f32.gmra.mrb[0].mxu0 %v3837
      %v5500 = vpop.f32.mrb[0].mxu0
      %v5501 = vadd.f32 %v5396, %v5500
      %v5502 = vpop.f32.mrb[0].mxu0
      %5503 = vmatprep.mubr.f32.mxu0 %v3842
      %5504 = vmatmul.mubr.f32.gmra.mrb[0].mxu0 %v3841
      %v5505 = vpop.f32.mrb[0].mxu0
      %v5506 = vadd.f32 %v5401, %v5505
      %v5507 = vpop.f32.mrb[0].mxu0
      %5508 = vmatprep.mubr.f32.mxu0 %v3846
      %5509 = vmatmul.mubr.f32.gmra.mrb[0].mxu0 %v3845
      %v5510 = vpop.f32.mrb[0].mxu0
      %v5511 = vadd.f32 %v5406, %v5510
      %v5512 = vpop.f32.mrb[0].mxu0
      %5513 = vmatprep.mubr.f32.mxu0 %v3850
      %5514 = vmatmul.mubr.f32.gmra.mrb[0].mxu0 %v3849
      %v5515 = vpop.f32.mrb[0].mxu0
      %v5516 = vadd.f32 %v5411, %v5515
      %v5517 = vpop.f32.mrb[0].mxu0
      %5518 = vmatprep.mubr.f32.mxu0 %v3854
      %5519 = vmatmul.mubr.f32.gmra.mrb[0].mxu0 %v3853
      %v5520 = vpop.f32.mrb[0].mxu0
      %v5521 = vadd.f32 %v5416, %v5520
      %v5522 = vpop.f32.mrb[0].mxu0
      %5523 = vdwg.mxu0
      %vm5524 = vcmp.ge.f32.partialorder %v5486, 0.0
      %vm5525 = vcmp.ge.f32.partialorder %v5491, 0.0
      %vm5526 = vcmp.ge.f32.partialorder %v5496, 0.0
      %vm5527 = vcmp.ge.f32.partialorder %v5501, 0.0
      %vm5528 = vcmp.ge.f32.partialorder %v5506, 0.0
      %vm5529 = vcmp.ge.f32.partialorder %v5511, 0.0
      %vm5530 = vcmp.ge.f32.partialorder %v5516, 0.0
      %vm5531 = vcmp.ge.f32.partialorder %v5521, 0.0
      %v5532 = vmul.f32 %v5486, 0.2
      %v5533 = vmul.f32 %v5491, 0.2
      %v5534 = vmul.f32 %v5496, 0.2
      %v5535 = vmul.f32 %v5501, 0.2
      %v5536 = vmul.f32 %v5506, 0.2
      %v5537 = vmul.f32 %v5511, 0.2
      %v5538 = vmul.f32 %v5516, 0.2
      %v5539 = vmul.f32 %v5521, 0.2
      %v5540 = vsel %vm5524, %v5486, %v5532
      %v5541 = vsel %vm5525, %v5491, %v5533
      %v5542 = vsel %vm5526, %v5496, %v5534
      %v5543 = vsel %vm5527, %v5501, %v5535
      %v5544 = vsel %vm5528, %v5506, %v5536
      %v5545 = vsel %vm5529, %v5511, %v5537
      %v5546 = vsel %vm5530, %v5516, %v5538
      %v5547 = vsel %vm5531, %v5521, %v5539
      %s5548 = scalar_lea.vmem %s18, 512
      %v5549 = vld [vmem:[%s5548] sm:$0xff]
      %v5550 = vld [vmem:[%s5548 + $0x8] sm:$0xff]
      %v5551 = vld [vmem:[%s5548 + $0x10] sm:$0xff]
      %v5552 = vld [vmem:[%s5548 + $0x18] sm:$0xff]
      %v5553 = vld [vmem:[%s5548 + $0x20] sm:$0xff]
      %v5554 = vld [vmem:[%s5548 + $0x28] sm:$0xff]
      %v5555 = vld [vmem:[%s5548 + $0x30] sm:$0xff]
      %v5556 = vld [vmem:[%s5548 + $0x38] sm:$0xff]
      %v5557 = vld [vmem:[%s5548 + $0x40] sm:$0xff]
      %v5558 = vld [vmem:[%s5548 + $0x48] sm:$0xff]
      %v5559 = vld [vmem:[%s5548 + $0x50] sm:$0xff]
      %v5560 = vld [vmem:[%s5548 + $0x58] sm:$0xff]
      %v5561 = vld [vmem:[%s5548 + $0x60] sm:$0xff]
      %v5562 = vld [vmem:[%s5548 + $0x68] sm:$0xff]
      %v5563 = vld [vmem:[%s5548 + $0x70] sm:$0xff]
      %v5564 = vld [vmem:[%s5548 + $0x78] sm:$0xff]
      %v5566 = vsel %vm4153, %v5549, 0
      %v5569 = vsel %vm4153, %v5550, 0
      %v5572 = vsel %vm4153, %v5551, 0
      %v5575 = vsel %vm4153, %v5552, 0
      %v5578 = vsel %vm4153, %v5553, 0
      %v5581 = vsel %vm4153, %v5554, 0
      %v5584 = vsel %vm4153, %v5555, 0
      %v5587 = vsel %vm4153, %v5556, 0
      %v5590 = vsel %vm4153, %v5557, 0
      %v5593 = vsel %vm4153, %v5558, 0
      %v5596 = vsel %vm4153, %v5559, 0
      %v5599 = vsel %vm4153, %v5560, 0
      %v5602 = vsel %vm4153, %v5561, 0
      %v5605 = vsel %vm4153, %v5562, 0
      %v5608 = vsel %vm4153, %v5563, 0
      %v5611 = vsel %vm4153, %v5564, 0
      %5613 = vmatprep.subr.mxu0 0.0
      %5614 = vmatpush1.msra.mxu0 %v5540
      %5615 = vmatprep.subr.mxu0 0.0
      %5616 = vmatpush1.msra.mxu0 %v5541
      %5617 = vmatprep.subr.mxu0 0.0
      %5618 = vmatpush1.msra.mxu0 %v5542
      %5619 = vmatprep.subr.mxu0 0.0
      %5620 = vmatpush1.msra.mxu0 %v5543
      %5621 = vmatprep.subr.mxu0 0.0
      %5622 = vmatpush1.msra.mxu0 %v5544
      %5623 = vmatprep.subr.mxu0 0.0
      %5624 = vmatpush1.msra.mxu0 %v5545
      %5625 = vmatprep.subr.mxu0 0.0
      %5626 = vmatpush1.msra.mxu0 %v5546
      %5627 = vmatprep.subr.mxu0 0.0
      %5628 = vmatpush1.msra.mxu0 %v5547
      %5629 = vmatprep.subr.mxu0 0.0
      %5630 = vmatpush1.msra.mxu0 0.0
      %5631 = vmatprep.subr.mxu0 0.0
      %5632 = vmatpush1.msra.mxu0 0.0
      %5633 = vmatprep.subr.mxu0 0.0
      %5634 = vmatpush1.msra.mxu0 0.0
      %5635 = vmatprep.subr.mxu0 0.0
      %5636 = vmatpush1.msra.mxu0 0.0
      %5637 = vmatprep.subr.mxu0 0.0
      %5638 = vmatpush1.msra.mxu0 0.0
      %5639 = vmatprep.subr.mxu0 0.0
      %5640 = vmatpush1.msra.mxu0 0.0
      %5641 = vmatprep.subr.mxu0 0.0
      %5642 = vmatpush1.msra.mxu0 0.0
      %5643 = vmatprep.subr.mxu0 0.0
      %5644 = vmatpush1.msra.mxu0 0.0
      %5645 = vmatprep.subr.mxu0 0.0
      %5646 = vmatpush1.msra.mxu0 0.0
      %5647 = vmatprep.subr.mxu0 0.0
      %5648 = vmatpush1.msra.mxu0 0.0
      %5649 = vmatprep.subr.mxu0 0.0
      %5650 = vmatpush1.msra.mxu0 0.0
      %5651 = vmatprep.subr.mxu0 0.0
      %5652 = vmatpush1.msra.mxu0 0.0
      %5653 = vmatprep.subr.mxu0 0.0
      %5654 = vmatpush1.msra.mxu0 0.0
      %5655 = vmatprep.subr.mxu0 0.0
      %5656 = vmatpush1.msra.mxu0 0.0
      %5657 = vmatprep.subr.mxu0 0.0
      %5658 = vmatpush1.msra.mxu0 0.0
      %5659 = vmatprep.subr.mxu0 0.0
      %5660 = vmatpush1.msra.mxu0 0.0
      %5661 = vmatprep.subr.mxu0 0.0
      %5662 = vmatpush1.msra.mxu0 0.0
      %5663 = vmatprep.subr.mxu0 0.0
      %5664 = vmatpush1.msra.mxu0 0.0
      %5665 = vmatprep.subr.mxu0 0.0
      %5666 = vmatpush1.msra.mxu0 0.0
      %5667 = vmatprep.subr.mxu0 0.0
      %5668 = vmatpush1.msra.mxu0 0.0
      %5669 = vmatprep.subr.mxu0 0.0
      %5670 = vmatpush1.msra.mxu0 0.0
      %5671 = vmatprep.subr.mxu0 0.0
      %5672 = vmatpush1.msra.mxu0 0.0
      %5673 = vmatprep.subr.mxu0 0.0
      %5674 = vmatpush1.msra.mxu0 0.0
      %5675 = vmatprep.subr.mxu0 0.0
      %5676 = vmatpush1.msra.mxu0 0.0
      %5677 = vmatprep.mubr.f32.mxu0 0.0
      %5678 = vmatmul.mubr.f32.gmra.mrb[0].mxu0 %v5566
      %v5679 = vpop.f32.mrb[0].mxu0
      %v5680 = vadd.f32 0.0, %v5679
      %v5681 = vpop.f32.mrb[0].mxu0
      %5682 = vmatprep.mubr.f32.mxu0 0.0
      %5683 = vmatmul.mubr.f32.gmra.mrb[0].mxu0 %v5569
      %v5684 = vpop.f32.mrb[0].mxu0
      %v5685 = vadd.f32 0.0, %v5684
      %v5686 = vpop.f32.mrb[0].mxu0
      %5687 = vmatprep.mubr.f32.mxu0 0.0
      %5688 = vmatmul.mubr.f32.gmra.mrb[0].mxu0 %v5572
      %v5689 = vpop.f32.mrb[0].mxu0
      %v5690 = vadd.f32 0.0, %v5689
      %v5691 = vpop.f32.mrb[0].mxu0
      %5692 = vmatprep.mubr.f32.mxu0 0.0
      %5693 = vmatmul.mubr.f32.gmra.mrb[0].mxu0 %v5575
      %v5694 = vpop.f32.mrb[0].mxu0
      %v5695 = vadd.f32 0.0, %v5694
      %v5696 = vpop.f32.mrb[0].mxu0
      %5697 = vmatprep.mubr.f32.mxu0 0.0
      %5698 = vmatmul.mubr.f32.gmra.mrb[0].mxu0 %v5578
      %v5699 = vpop.f32.mrb[0].mxu0
      %v5700 = vadd.f32 0.0, %v5699
      %v5701 = vpop.f32.mrb[0].mxu0
      %5702 = vmatprep.mubr.f32.mxu0 0.0
      %5703 = vmatmul.mubr.f32.gmra.mrb[0].mxu0 %v5581
      %v5704 = vpop.f32.mrb[0].mxu0
      %v5705 = vadd.f32 0.0, %v5704
      %v5706 = vpop.f32.mrb[0].mxu0
      %5707 = vmatprep.mubr.f32.mxu0 0.0
      %5708 = vmatmul.mubr.f32.gmra.mrb[0].mxu0 %v5584
      %v5709 = vpop.f32.mrb[0].mxu0
      %v5710 = vadd.f32 0.0, %v5709
      %v5711 = vpop.f32.mrb[0].mxu0
      %5712 = vmatprep.mubr.f32.mxu0 0.0
      %5713 = vmatmul.mubr.f32.gmra.mrb[0].mxu0 %v5587
      %v5714 = vpop.f32.mrb[0].mxu0
      %v5715 = vadd.f32 0.0, %v5714
      %v5716 = vpop.f32.mrb[0].mxu0
      %5717 = vmatprep.mubr.f32.mxu0 0.0
      %5718 = vmatmul.mubr.f32.gmra.mrb[0].mxu0 %v5590
      %v5719 = vpop.f32.mrb[0].mxu0
      %v5720 = vadd.f32 0.0, %v5719
      %v5721 = vpop.f32.mrb[0].mxu0
      %5722 = vmatprep.mubr.f32.mxu0 0.0
      %5723 = vmatmul.mubr.f32.gmra.mrb[0].mxu0 %v5593
      %v5724 = vpop.f32.mrb[0].mxu0
      %v5725 = vadd.f32 0.0, %v5724
      %v5726 = vpop.f32.mrb[0].mxu0
      %5727 = vmatprep.mubr.f32.mxu0 0.0
      %5728 = vmatmul.mubr.f32.gmra.mrb[0].mxu0 %v5596
      %v5729 = vpop.f32.mrb[0].mxu0
      %v5730 = vadd.f32 0.0, %v5729
      %v5731 = vpop.f32.mrb[0].mxu0
      %5732 = vmatprep.mubr.f32.mxu0 0.0
      %5733 = vmatmul.mubr.f32.gmra.mrb[0].mxu0 %v5599
      %v5734 = vpop.f32.mrb[0].mxu0
      %v5735 = vadd.f32 0.0, %v5734
      %v5736 = vpop.f32.mrb[0].mxu0
      %5737 = vmatprep.mubr.f32.mxu0 0.0
      %5738 = vmatmul.mubr.f32.gmra.mrb[0].mxu0 %v5602
      %v5739 = vpop.f32.mrb[0].mxu0
      %v5740 = vadd.f32 0.0, %v5739
      %v5741 = vpop.f32.mrb[0].mxu0
      %5742 = vmatprep.mubr.f32.mxu0 0.0
      %5743 = vmatmul.mubr.f32.gmra.mrb[0].mxu0 %v5605
      %v5744 = vpop.f32.mrb[0].mxu0
      %v5745 = vadd.f32 0.0, %v5744
      %v5746 = vpop.f32.mrb[0].mxu0
      %5747 = vmatprep.mubr.f32.mxu0 0.0
      %5748 = vmatmul.mubr.f32.gmra.mrb[0].mxu0 %v5608
      %v5749 = vpop.f32.mrb[0].mxu0
      %v5750 = vadd.f32 0.0, %v5749
      %v5751 = vpop.f32.mrb[0].mxu0
      %5752 = vmatprep.mubr.f32.mxu0 0.0
      %5753 = vmatmul.mubr.f32.gmra.mrb[0].mxu0 %v5611
      %v5754 = vpop.f32.mrb[0].mxu0
      %v5755 = vadd.f32 0.0, %v5754
      %v5756 = vpop.f32.mrb[0].mxu0
      %5757 = vdwg.mxu0
      %v5758 = vadd.f32 %v5217, %v5680
      %v5759 = vadd.f32 %v5218, %v5685
      %v5760 = vadd.f32 %v5219, %v5690
      %v5761 = vadd.f32 %v5220, %v5695
      %v5762 = vadd.f32 %v5221, %v5700
      %v5763 = vadd.f32 %v5222, %v5705
      %v5764 = vadd.f32 %v5223, %v5710
      %v5765 = vadd.f32 %v5224, %v5715
      %v5766 = vadd.f32 %v5225, %v5720
      %v5767 = vadd.f32 %v5226, %v5725
      %v5768 = vadd.f32 %v5227, %v5730
      %v5769 = vadd.f32 %v5228, %v5735
      %v5770 = vadd.f32 %v5229, %v5740
      %v5771 = vadd.f32 %v5230, %v5745
      %v5772 = vadd.f32 %v5231, %v5750
      %v5773 = vadd.f32 %v5232, %v5755
      %s5774 = scalar_lea.vmem %s18, 640
      %v5775 = vld [vmem:[%s5774] sm:$0xff]
      %v5776 = vld [vmem:[%s5774 + $0x8] sm:$0xff]
      %v5777 = vld [vmem:[%s5774 + $0x10] sm:$0xff]
      %v5778 = vld [vmem:[%s5774 + $0x18] sm:$0xff]
      %v5779 = vld [vmem:[%s5774 + $0x20] sm:$0xff]
      %v5780 = vld [vmem:[%s5774 + $0x28] sm:$0xff]
      %v5781 = vld [vmem:[%s5774 + $0x30] sm:$0xff]
      %v5782 = vld [vmem:[%s5774 + $0x38] sm:$0xff]
      %v5783 = vld [vmem:[%s5774 + $0x40] sm:$0xff]
      %v5784 = vld [vmem:[%s5774 + $0x48] sm:$0xff]
      %v5785 = vld [vmem:[%s5774 + $0x50] sm:$0xff]
      %v5786 = vld [vmem:[%s5774 + $0x58] sm:$0xff]
      %v5787 = vld [vmem:[%s5774 + $0x60] sm:$0xff]
      %v5788 = vld [vmem:[%s5774 + $0x68] sm:$0xff]
      %v5789 = vld [vmem:[%s5774 + $0x70] sm:$0xff]
      %v5790 = vld [vmem:[%s5774 + $0x78] sm:$0xff]
      %v5792 = vsel %vm4153, %v5775, 0
      %v5795 = vsel %vm4153, %v5776, 0
      %v5798 = vsel %vm4153, %v5777, 0
      %v5801 = vsel %vm4153, %v5778, 0
      %v5804 = vsel %vm4153, %v5779, 0
      %v5807 = vsel %vm4153, %v5780, 0
      %v5810 = vsel %vm4153, %v5781, 0
      %v5813 = vsel %vm4153, %v5782, 0
      %v5816 = vsel %vm4153, %v5783, 0
      %v5819 = vsel %vm4153, %v5784, 0
      %v5822 = vsel %vm4153, %v5785, 0
      %v5825 = vsel %vm4153, %v5786, 0
      %v5828 = vsel %vm4153, %v5787, 0
      %v5831 = vsel %vm4153, %v5788, 0
      %v5834 = vsel %vm4153, %v5789, 0
      %v5837 = vsel %vm4153, %v5790, 0
      %5839 = vmatprep.subr.mxu0 0.0
      %5840 = vmatpush1.msra.mxu0 %v5540
      %5841 = vmatprep.subr.mxu0 0.0
      %5842 = vmatpush1.msra.mxu0 %v5541
      %5843 = vmatprep.subr.mxu0 0.0
      %5844 = vmatpush1.msra.mxu0 %v5542
      %5845 = vmatprep.subr.mxu0 0.0
      %5846 = vmatpush1.msra.mxu0 %v5543
      %5847 = vmatprep.subr.mxu0 0.0
      %5848 = vmatpush1.msra.mxu0 %v5544
      %5849 = vmatprep.subr.mxu0 0.0
      %5850 = vmatpush1.msra.mxu0 %v5545
      %5851 = vmatprep.subr.mxu0 0.0
      %5852 = vmatpush1.msra.mxu0 %v5546
      %5853 = vmatprep.subr.mxu0 0.0
      %5854 = vmatpush1.msra.mxu0 %v5547
      %5855 = vmatprep.subr.mxu0 0.0
      %5856 = vmatpush1.msra.mxu0 0.0
      %5857 = vmatprep.subr.mxu0 0.0
      %5858 = vmatpush1.msra.mxu0 0.0
      %5859 = vmatprep.subr.mxu0 0.0
      %5860 = vmatpush1.msra.mxu0 0.0
      %5861 = vmatprep.subr.mxu0 0.0
      %5862 = vmatpush1.msra.mxu0 0.0
      %5863 = vmatprep.subr.mxu0 0.0
      %5864 = vmatpush1.msra.mxu0 0.0
      %5865 = vmatprep.subr.mxu0 0.0
      %5866 = vmatpush1.msra.mxu0 0.0
      %5867 = vmatprep.subr.mxu0 0.0
      %5868 = vmatpush1.msra.mxu0 0.0
      %5869 = vmatprep.subr.mxu0 0.0
      %5870 = vmatpush1.msra.mxu0 0.0
      %5871 = vmatprep.subr.mxu0 0.0
      %5872 = vmatpush1.msra.mxu0 0.0
      %5873 = vmatprep.subr.mxu0 0.0
      %5874 = vmatpush1.msra.mxu0 0.0
      %5875 = vmatprep.subr.mxu0 0.0
      %5876 = vmatpush1.msra.mxu0 0.0
      %5877 = vmatprep.subr.mxu0 0.0
      %5878 = vmatpush1.msra.mxu0 0.0
      %5879 = vmatprep.subr.mxu0 0.0
      %5880 = vmatpush1.msra.mxu0 0.0
      %5881 = vmatprep.subr.mxu0 0.0
      %5882 = vmatpush1.msra.mxu0 0.0
      %5883 = vmatprep.subr.mxu0 0.0
      %5884 = vmatpush1.msra.mxu0 0.0
      %5885 = vmatprep.subr.mxu0 0.0
      %5886 = vmatpush1.msra.mxu0 0.0
      %5887 = vmatprep.subr.mxu0 0.0
      %5888 = vmatpush1.msra.mxu0 0.0
      %5889 = vmatprep.subr.mxu0 0.0
      %5890 = vmatpush1.msra.mxu0 0.0
      %5891 = vmatprep.subr.mxu0 0.0
      %5892 = vmatpush1.msra.mxu0 0.0
      %5893 = vmatprep.subr.mxu0 0.0
      %5894 = vmatpush1.msra.mxu0 0.0
      %5895 = vmatprep.subr.mxu0 0.0
      %5896 = vmatpush1.msra.mxu0 0.0
      %5897 = vmatprep.subr.mxu0 0.0
      %5898 = vmatpush1.msra.mxu0 0.0
      %5899 = vmatprep.subr.mxu0 0.0
      %5900 = vmatpush1.msra.mxu0 0.0
      %5901 = vmatprep.subr.mxu0 0.0
      %5902 = vmatpush1.msra.mxu0 0.0
      %5903 = vmatprep.mubr.f32.mxu0 0.0
      %5904 = vmatmul.mubr.f32.gmra.mrb[0].mxu0 %v5792
      %v5905 = vpop.f32.mrb[0].mxu0
      %v5906 = vadd.f32 0.0, %v5905
      %v5907 = vpop.f32.mrb[0].mxu0
      %5908 = vmatprep.mubr.f32.mxu0 0.0
      %5909 = vmatmul.mubr.f32.gmra.mrb[0].mxu0 %v5795
      %v5910 = vpop.f32.mrb[0].mxu0
      %v5911 = vadd.f32 0.0, %v5910
      %v5912 = vpop.f32.mrb[0].mxu0
      %5913 = vmatprep.mubr.f32.mxu0 0.0
      %5914 = vmatmul.mubr.f32.gmra.mrb[0].mxu0 %v5798
      %v5915 = vpop.f32.mrb[0].mxu0
      %v5916 = vadd.f32 0.0, %v5915
      %v5917 = vpop.f32.mrb[0].mxu0
      %5918 = vmatprep.mubr.f32.mxu0 0.0
      %5919 = vmatmul.mubr.f32.gmra.mrb[0].mxu0 %v5801
      %v5920 = vpop.f32.mrb[0].mxu0
      %v5921 = vadd.f32 0.0, %v5920
      %v5922 = vpop.f32.mrb[0].mxu0
      %5923 = vmatprep.mubr.f32.mxu0 0.0
      %5924 = vmatmul.mubr.f32.gmra.mrb[0].mxu0 %v5804
      %v5925 = vpop.f32.mrb[0].mxu0
      %v5926 = vadd.f32 0.0, %v5925
      %v5927 = vpop.f32.mrb[0].mxu0
      %5928 = vmatprep.mubr.f32.mxu0 0.0
      %5929 = vmatmul.mubr.f32.gmra.mrb[0].mxu0 %v5807
      %v5930 = vpop.f32.mrb[0].mxu0
      %v5931 = vadd.f32 0.0, %v5930
      %v5932 = vpop.f32.mrb[0].mxu0
      %5933 = vmatprep.mubr.f32.mxu0 0.0
      %5934 = vmatmul.mubr.f32.gmra.mrb[0].mxu0 %v5810
      %v5935 = vpop.f32.mrb[0].mxu0
      %v5936 = vadd.f32 0.0, %v5935
      %v5937 = vpop.f32.mrb[0].mxu0
      %5938 = vmatprep.mubr.f32.mxu0 0.0
      %5939 = vmatmul.mubr.f32.gmra.mrb[0].mxu0 %v5813
      %v5940 = vpop.f32.mrb[0].mxu0
      %v5941 = vadd.f32 0.0, %v5940
      %v5942 = vpop.f32.mrb[0].mxu0
      %5943 = vmatprep.mubr.f32.mxu0 0.0
      %5944 = vmatmul.mubr.f32.gmra.mrb[0].mxu0 %v5816
      %v5945 = vpop.f32.mrb[0].mxu0
      %v5946 = vadd.f32 0.0, %v5945
      %v5947 = vpop.f32.mrb[0].mxu0
      %5948 = vmatprep.mubr.f32.mxu0 0.0
      %5949 = vmatmul.mubr.f32.gmra.mrb[0].mxu0 %v5819
      %v5950 = vpop.f32.mrb[0].mxu0
      %v5951 = vadd.f32 0.0, %v5950
      %v5952 = vpop.f32.mrb[0].mxu0
      %5953 = vmatprep.mubr.f32.mxu0 0.0
      %5954 = vmatmul.mubr.f32.gmra.mrb[0].mxu0 %v5822
      %v5955 = vpop.f32.mrb[0].mxu0
      %v5956 = vadd.f32 0.0, %v5955
      %v5957 = vpop.f32.mrb[0].mxu0
      %5958 = vmatprep.mubr.f32.mxu0 0.0
      %5959 = vmatmul.mubr.f32.gmra.mrb[0].mxu0 %v5825
      %v5960 = vpop.f32.mrb[0].mxu0
      %v5961 = vadd.f32 0.0, %v5960
      %v5962 = vpop.f32.mrb[0].mxu0
      %5963 = vmatprep.mubr.f32.mxu0 0.0
      %5964 = vmatmul.mubr.f32.gmra.mrb[0].mxu0 %v5828
      %v5965 = vpop.f32.mrb[0].mxu0
      %v5966 = vadd.f32 0.0, %v5965
      %v5967 = vpop.f32.mrb[0].mxu0
      %5968 = vmatprep.mubr.f32.mxu0 0.0
      %5969 = vmatmul.mubr.f32.gmra.mrb[0].mxu0 %v5831
      %v5970 = vpop.f32.mrb[0].mxu0
      %v5971 = vadd.f32 0.0, %v5970
      %v5972 = vpop.f32.mrb[0].mxu0
      %5973 = vmatprep.mubr.f32.mxu0 0.0
      %5974 = vmatmul.mubr.f32.gmra.mrb[0].mxu0 %v5834
      %v5975 = vpop.f32.mrb[0].mxu0
      %v5976 = vadd.f32 0.0, %v5975
      %v5977 = vpop.f32.mrb[0].mxu0
      %5978 = vmatprep.mubr.f32.mxu0 0.0
      %5979 = vmatmul.mubr.f32.gmra.mrb[0].mxu0 %v5837
      %v5980 = vpop.f32.mrb[0].mxu0
      %v5981 = vadd.f32 0.0, %v5980
      %v5982 = vpop.f32.mrb[0].mxu0
      %5983 = vdwg.mxu0
      %6000 = vrot.lane.b32.xlu0 %v5906, 127
      %v6001 = vpop.permute.xlu0 %6000
      %6002 = vrot.lane.b32.xlu0 %v5911, 127
      %v6003 = vpop.permute.xlu0 %6002
      %6004 = vrot.lane.b32.xlu0 %v5916, 127
      %v6005 = vpop.permute.xlu0 %6004
      %6006 = vrot.lane.b32.xlu0 %v5921, 127
      %v6007 = vpop.permute.xlu0 %6006
      %6008 = vrot.lane.b32.xlu0 %v5926, 127
      %v6009 = vpop.permute.xlu0 %6008
      %6010 = vrot.lane.b32.xlu0 %v5931, 127
      %v6011 = vpop.permute.xlu0 %6010
      %6012 = vrot.lane.b32.xlu0 %v5936, 127
      %v6013 = vpop.permute.xlu0 %6012
      %6014 = vrot.lane.b32.xlu0 %v5941, 127
      %v6015 = vpop.permute.xlu0 %6014
      %6016 = vrot.lane.b32.xlu0 %v5946, 127
      %v6017 = vpop.permute.xlu0 %6016
      %6018 = vrot.lane.b32.xlu0 %v5951, 127
      %v6019 = vpop.permute.xlu0 %6018
      %6020 = vrot.lane.b32.xlu0 %v5956, 127
      %v6021 = vpop.permute.xlu0 %6020
      %6022 = vrot.lane.b32.xlu0 %v5961, 127
      %v6023 = vpop.permute.xlu0 %6022
      %6024 = vrot.lane.b32.xlu0 %v5966, 127
      %v6025 = vpop.permute.xlu0 %6024
      %6026 = vrot.lane.b32.xlu0 %v5971, 127
      %v6027 = vpop.permute.xlu0 %6026
      %6028 = vrot.lane.b32.xlu0 %v5976, 127
      %v6029 = vpop.permute.xlu0 %6028
      %6030 = vrot.lane.b32.xlu0 %v5981, 127
      %v6031 = vpop.permute.xlu0 %6030
      %v6048 = vadd.f32 %v5758, %v6001
      %v6049 = vadd.f32 %v5759, %v6003
      %v6050 = vadd.f32 %v5760, %v6005
      %v6051 = vadd.f32 %v5761, %v6007
      %v6052 = vadd.f32 %v5762, %v6009
      %v6053 = vadd.f32 %v5763, %v6011
      %v6054 = vadd.f32 %v5764, %v6013
      %v6055 = vadd.f32 %v5765, %v6015
      %v6056 = vadd.f32 %v5766, %v6017
      %v6057 = vadd.f32 %v5767, %v6019
      %v6058 = vadd.f32 %v5768, %v6021
      %v6059 = vadd.f32 %v5769, %v6023
      %v6060 = vadd.f32 %v5770, %v6025
      %v6061 = vadd.f32 %v5771, %v6027
      %v6062 = vadd.f32 %v5772, %v6029
      %v6063 = vadd.f32 %v5773, %v6031
      %s6064 = scalar_lea.vmem %s18, 768
      %v6065 = vld [vmem:[%s6064] sm:$0xff]
      %v6066 = vld [vmem:[%s6064 + $0x8] sm:$0xff]
      %v6067 = vld [vmem:[%s6064 + $0x10] sm:$0xff]
      %v6068 = vld [vmem:[%s6064 + $0x18] sm:$0xff]
      %v6069 = vld [vmem:[%s6064 + $0x20] sm:$0xff]
      %v6070 = vld [vmem:[%s6064 + $0x28] sm:$0xff]
      %v6071 = vld [vmem:[%s6064 + $0x30] sm:$0xff]
      %v6072 = vld [vmem:[%s6064 + $0x38] sm:$0xff]
      %v6073 = vld [vmem:[%s6064 + $0x40] sm:$0xff]
      %v6074 = vld [vmem:[%s6064 + $0x48] sm:$0xff]
      %v6075 = vld [vmem:[%s6064 + $0x50] sm:$0xff]
      %v6076 = vld [vmem:[%s6064 + $0x58] sm:$0xff]
      %v6077 = vld [vmem:[%s6064 + $0x60] sm:$0xff]
      %v6078 = vld [vmem:[%s6064 + $0x68] sm:$0xff]
      %v6079 = vld [vmem:[%s6064 + $0x70] sm:$0xff]
      %v6080 = vld [vmem:[%s6064 + $0x78] sm:$0xff]
      %v6082 = vsel %vm4153, %v6065, 0
      %v6085 = vsel %vm4153, %v6066, 0
      %v6088 = vsel %vm4153, %v6067, 0
      %v6091 = vsel %vm4153, %v6068, 0
      %v6094 = vsel %vm4153, %v6069, 0
      %v6097 = vsel %vm4153, %v6070, 0
      %v6100 = vsel %vm4153, %v6071, 0
      %v6103 = vsel %vm4153, %v6072, 0
      %v6106 = vsel %vm4153, %v6073, 0
      %v6109 = vsel %vm4153, %v6074, 0
      %v6112 = vsel %vm4153, %v6075, 0
      %v6115 = vsel %vm4153, %v6076, 0
      %v6118 = vsel %vm4153, %v6077, 0
      %v6121 = vsel %vm4153, %v6078, 0
      %v6124 = vsel %vm4153, %v6079, 0
      %v6127 = vsel %vm4153, %v6080, 0
      %6129 = vmatprep.subr.mxu0 0.0
      %6130 = vmatpush1.msra.mxu0 %v5540
      %6131 = vmatprep.subr.mxu0 0.0
      %6132 = vmatpush1.msra.mxu0 %v5541
      %6133 = vmatprep.subr.mxu0 0.0
      %6134 = vmatpush1.msra.mxu0 %v5542
      %6135 = vmatprep.subr.mxu0 0.0
      %6136 = vmatpush1.msra.mxu0 %v5543
      %6137 = vmatprep.subr.mxu0 0.0
      %6138 = vmatpush1.msra.mxu0 %v5544
      %6139 = vmatprep.subr.mxu0 0.0
      %6140 = vmatpush1.msra.mxu0 %v5545
      %6141 = vmatprep.subr.mxu0 0.0
      %6142 = vmatpush1.msra.mxu0 %v5546
      %6143 = vmatprep.subr.mxu0 0.0
      %6144 = vmatpush1.msra.mxu0 %v5547
      %6145 = vmatprep.subr.mxu0 0.0
      %6146 = vmatpush1.msra.mxu0 0.0
      %6147 = vmatprep.subr.mxu0 0.0
      %6148 = vmatpush1.msra.mxu0 0.0
      %6149 = vmatprep.subr.mxu0 0.0
      %6150 = vmatpush1.msra.mxu0 0.0
      %6151 = vmatprep.subr.mxu0 0.0
      %6152 = vmatpush1.msra.mxu0 0.0
      %6153 = vmatprep.subr.mxu0 0.0
      %6154 = vmatpush1.msra.mxu0 0.0
      %6155 = vmatprep.subr.mxu0 0.0
      %6156 = vmatpush1.msra.mxu0 0.0
      %6157 = vmatprep.subr.mxu0 0.0
      %6158 = vmatpush1.msra.mxu0 0.0
      %6159 = vmatprep.subr.mxu0 0.0
      %6160 = vmatpush1.msra.mxu0 0.0
      %6161 = vmatprep.subr.mxu0 0.0
      %6162 = vmatpush1.msra.mxu0 0.0
      %6163 = vmatprep.subr.mxu0 0.0
      %6164 = vmatpush1.msra.mxu0 0.0
      %6165 = vmatprep.subr.mxu0 0.0
      %6166 = vmatpush1.msra.mxu0 0.0
      %6167 = vmatprep.subr.mxu0 0.0
      %6168 = vmatpush1.msra.mxu0 0.0
      %6169 = vmatprep.subr.mxu0 0.0
      %6170 = vmatpush1.msra.mxu0 0.0
      %6171 = vmatprep.subr.mxu0 0.0
      %6172 = vmatpush1.msra.mxu0 0.0
      %6173 = vmatprep.subr.mxu0 0.0
      %6174 = vmatpush1.msra.mxu0 0.0
      %6175 = vmatprep.subr.mxu0 0.0
      %6176 = vmatpush1.msra.mxu0 0.0
      %6177 = vmatprep.subr.mxu0 0.0
      %6178 = vmatpush1.msra.mxu0 0.0
      %6179 = vmatprep.subr.mxu0 0.0
      %6180 = vmatpush1.msra.mxu0 0.0
      %6181 = vmatprep.subr.mxu0 0.0
      %6182 = vmatpush1.msra.mxu0 0.0
      %6183 = vmatprep.subr.mxu0 0.0
      %6184 = vmatpush1.msra.mxu0 0.0
      %6185 = vmatprep.subr.mxu0 0.0
      %6186 = vmatpush1.msra.mxu0 0.0
      %6187 = vmatprep.subr.mxu0 0.0
      %6188 = vmatpush1.msra.mxu0 0.0
      %6189 = vmatprep.subr.mxu0 0.0
      %6190 = vmatpush1.msra.mxu0 0.0
      %6191 = vmatprep.subr.mxu0 0.0
      %6192 = vmatpush1.msra.mxu0 0.0
      %6193 = vmatprep.mubr.f32.mxu0 0.0
      %6194 = vmatmul.mubr.f32.gmra.mrb[0].mxu0 %v6082
      %v6195 = vpop.f32.mrb[0].mxu0
      %v6196 = vadd.f32 0.0, %v6195
      %v6197 = vpop.f32.mrb[0].mxu0
      %6198 = vmatprep.mubr.f32.mxu0 0.0
      %6199 = vmatmul.mubr.f32.gmra.mrb[0].mxu0 %v6085
      %v6200 = vpop.f32.mrb[0].mxu0
      %v6201 = vadd.f32 0.0, %v6200
      %v6202 = vpop.f32.mrb[0].mxu0
      %6203 = vmatprep.mubr.f32.mxu0 0.0
      %6204 = vmatmul.mubr.f32.gmra.mrb[0].mxu0 %v6088
      %v6205 = vpop.f32.mrb[0].mxu0
      %v6206 = vadd.f32 0.0, %v6205
      %v6207 = vpop.f32.mrb[0].mxu0
      %6208 = vmatprep.mubr.f32.mxu0 0.0
      %6209 = vmatmul.mubr.f32.gmra.mrb[0].mxu0 %v6091
      %v6210 = vpop.f32.mrb[0].mxu0
      %v6211 = vadd.f32 0.0, %v6210
      %v6212 = vpop.f32.mrb[0].mxu0
      %6213 = vmatprep.mubr.f32.mxu0 0.0
      %6214 = vmatmul.mubr.f32.gmra.mrb[0].mxu0 %v6094
      %v6215 = vpop.f32.mrb[0].mxu0
      %v6216 = vadd.f32 0.0, %v6215
      %v6217 = vpop.f32.mrb[0].mxu0
      %6218 = vmatprep.mubr.f32.mxu0 0.0
      %6219 = vmatmul.mubr.f32.gmra.mrb[0].mxu0 %v6097
      %v6220 = vpop.f32.mrb[0].mxu0
      %v6221 = vadd.f32 0.0, %v6220
      %v6222 = vpop.f32.mrb[0].mxu0
      %6223 = vmatprep.mubr.f32.mxu0 0.0
      %6224 = vmatmul.mubr.f32.gmra.mrb[0].mxu0 %v6100
      %v6225 = vpop.f32.mrb[0].mxu0
      %v6226 = vadd.f32 0.0, %v6225
      %v6227 = vpop.f32.mrb[0].mxu0
      %6228 = vmatprep.mubr.f32.mxu0 0.0
      %6229 = vmatmul.mubr.f32.gmra.mrb[0].mxu0 %v6103
      %v6230 = vpop.f32.mrb[0].mxu0
      %v6231 = vadd.f32 0.0, %v6230
      %v6232 = vpop.f32.mrb[0].mxu0
      %6233 = vmatprep.mubr.f32.mxu0 0.0
      %6234 = vmatmul.mubr.f32.gmra.mrb[0].mxu0 %v6106
      %v6235 = vpop.f32.mrb[0].mxu0
      %v6236 = vadd.f32 0.0, %v6235
      %v6237 = vpop.f32.mrb[0].mxu0
      %6238 = vmatprep.mubr.f32.mxu0 0.0
      %6239 = vmatmul.mubr.f32.gmra.mrb[0].mxu0 %v6109
      %v6240 = vpop.f32.mrb[0].mxu0
      %v6241 = vadd.f32 0.0, %v6240
      %v6242 = vpop.f32.mrb[0].mxu0
      %6243 = vmatprep.mubr.f32.mxu0 0.0
      %6244 = vmatmul.mubr.f32.gmra.mrb[0].mxu0 %v6112
      %v6245 = vpop.f32.mrb[0].mxu0
      %v6246 = vadd.f32 0.0, %v6245
      %v6247 = vpop.f32.mrb[0].mxu0
      %6248 = vmatprep.mubr.f32.mxu0 0.0
      %6249 = vmatmul.mubr.f32.gmra.mrb[0].mxu0 %v6115
      %v6250 = vpop.f32.mrb[0].mxu0
      %v6251 = vadd.f32 0.0, %v6250
      %v6252 = vpop.f32.mrb[0].mxu0
      %6253 = vmatprep.mubr.f32.mxu0 0.0
      %6254 = vmatmul.mubr.f32.gmra.mrb[0].mxu0 %v6118
      %v6255 = vpop.f32.mrb[0].mxu0
      %v6256 = vadd.f32 0.0, %v6255
      %v6257 = vpop.f32.mrb[0].mxu0
      %6258 = vmatprep.mubr.f32.mxu0 0.0
      %6259 = vmatmul.mubr.f32.gmra.mrb[0].mxu0 %v6121
      %v6260 = vpop.f32.mrb[0].mxu0
      %v6261 = vadd.f32 0.0, %v6260
      %v6262 = vpop.f32.mrb[0].mxu0
      %6263 = vmatprep.mubr.f32.mxu0 0.0
      %6264 = vmatmul.mubr.f32.gmra.mrb[0].mxu0 %v6124
      %v6265 = vpop.f32.mrb[0].mxu0
      %v6266 = vadd.f32 0.0, %v6265
      %v6267 = vpop.f32.mrb[0].mxu0
      %6268 = vmatprep.mubr.f32.mxu0 0.0
      %6269 = vmatmul.mubr.f32.gmra.mrb[0].mxu0 %v6127
      %v6270 = vpop.f32.mrb[0].mxu0
      %v6271 = vadd.f32 0.0, %v6270
      %v6272 = vpop.f32.mrb[0].mxu0
      %6273 = vdwg.mxu0
      %6290 = vrot.lane.b32.xlu0 %v6196, 126
      %v6291 = vpop.permute.xlu0 %6290
      %6292 = vrot.lane.b32.xlu0 %v6201, 126
      %v6293 = vpop.permute.xlu0 %6292
      %6294 = vrot.lane.b32.xlu0 %v6206, 126
      %v6295 = vpop.permute.xlu0 %6294
      %6296 = vrot.lane.b32.xlu0 %v6211, 126
      %v6297 = vpop.permute.xlu0 %6296
      %6298 = vrot.lane.b32.xlu0 %v6216, 126
      %v6299 = vpop.permute.xlu0 %6298
      %6300 = vrot.lane.b32.xlu0 %v6221, 126
      %v6301 = vpop.permute.xlu0 %6300
      %6302 = vrot.lane.b32.xlu0 %v6226, 126
      %v6303 = vpop.permute.xlu0 %6302
      %6304 = vrot.lane.b32.xlu0 %v6231, 126
      %v6305 = vpop.permute.xlu0 %6304
      %6306 = vrot.lane.b32.xlu0 %v6236, 126
      %v6307 = vpop.permute.xlu0 %6306
      %6308 = vrot.lane.b32.xlu0 %v6241, 126
      %v6309 = vpop.permute.xlu0 %6308
      %6310 = vrot.lane.b32.xlu0 %v6246, 126
      %v6311 = vpop.permute.xlu0 %6310
      %6312 = vrot.lane.b32.xlu0 %v6251, 126
      %v6313 = vpop.permute.xlu0 %6312
      %6314 = vrot.lane.b32.xlu0 %v6256, 126
      %v6315 = vpop.permute.xlu0 %6314
      %6316 = vrot.lane.b32.xlu0 %v6261, 126
      %v6317 = vpop.permute.xlu0 %6316
      %6318 = vrot.lane.b32.xlu0 %v6266, 126
      %v6319 = vpop.permute.xlu0 %6318
      %6320 = vrot.lane.b32.xlu0 %v6271, 126
      %v6321 = vpop.permute.xlu0 %6320
      %v6338 = vadd.f32 %v6048, %v6291
      %v6339 = vadd.f32 %v6049, %v6293
      %v6340 = vadd.f32 %v6050, %v6295
      %v6341 = vadd.f32 %v6051, %v6297
      %v6342 = vadd.f32 %v6052, %v6299
      %v6343 = vadd.f32 %v6053, %v6301
      %v6344 = vadd.f32 %v6054, %v6303
      %v6345 = vadd.f32 %v6055, %v6305
      %v6346 = vadd.f32 %v6056, %v6307
      %v6347 = vadd.f32 %v6057, %v6309
      %v6348 = vadd.f32 %v6058, %v6311
      %v6349 = vadd.f32 %v6059, %v6313
      %v6350 = vadd.f32 %v6060, %v6315
      %v6351 = vadd.f32 %v6061, %v6317
      %v6352 = vadd.f32 %v6062, %v6319
      %v6353 = vadd.f32 %v6063, %v6321
      %s6354 = scalar_lea.vmem %s18, 896
      %v6355 = vld [vmem:[%s6354] sm:$0xff]
      %v6356 = vld [vmem:[%s6354 + $0x8] sm:$0xff]
      %v6357 = vld [vmem:[%s6354 + $0x10] sm:$0xff]
      %v6358 = vld [vmem:[%s6354 + $0x18] sm:$0xff]
      %v6359 = vld [vmem:[%s6354 + $0x20] sm:$0xff]
      %v6360 = vld [vmem:[%s6354 + $0x28] sm:$0xff]
      %v6361 = vld [vmem:[%s6354 + $0x30] sm:$0xff]
      %v6362 = vld [vmem:[%s6354 + $0x38] sm:$0xff]
      %v6363 = vld [vmem:[%s6354 + $0x40] sm:$0xff]
      %v6364 = vld [vmem:[%s6354 + $0x48] sm:$0xff]
      %v6365 = vld [vmem:[%s6354 + $0x50] sm:$0xff]
      %v6366 = vld [vmem:[%s6354 + $0x58] sm:$0xff]
      %v6367 = vld [vmem:[%s6354 + $0x60] sm:$0xff]
      %v6368 = vld [vmem:[%s6354 + $0x68] sm:$0xff]
      %v6369 = vld [vmem:[%s6354 + $0x70] sm:$0xff]
      %v6370 = vld [vmem:[%s6354 + $0x78] sm:$0xff]
      %v6372 = vsel %vm4153, %v6355, 0
      %v6375 = vsel %vm4153, %v6356, 0
      %v6378 = vsel %vm4153, %v6357, 0
      %v6381 = vsel %vm4153, %v6358, 0
      %v6384 = vsel %vm4153, %v6359, 0
      %v6387 = vsel %vm4153, %v6360, 0
      %v6390 = vsel %vm4153, %v6361, 0
      %v6393 = vsel %vm4153, %v6362, 0
      %v6396 = vsel %vm4153, %v6363, 0
      %v6399 = vsel %vm4153, %v6364, 0
      %v6402 = vsel %vm4153, %v6365, 0
      %v6405 = vsel %vm4153, %v6366, 0
      %v6408 = vsel %vm4153, %v6367, 0
      %v6411 = vsel %vm4153, %v6368, 0
      %v6414 = vsel %vm4153, %v6369, 0
      %v6417 = vsel %vm4153, %v6370, 0
      %6419 = vmatprep.subr.mxu0 0.0
      %6420 = vmatpush1.msra.mxu0 %v5540
      %6421 = vmatprep.subr.mxu0 0.0
      %6422 = vmatpush1.msra.mxu0 %v5541
      %6423 = vmatprep.subr.mxu0 0.0
      %6424 = vmatpush1.msra.mxu0 %v5542
      %6425 = vmatprep.subr.mxu0 0.0
      %6426 = vmatpush1.msra.mxu0 %v5543
      %6427 = vmatprep.subr.mxu0 0.0
      %6428 = vmatpush1.msra.mxu0 %v5544
      %6429 = vmatprep.subr.mxu0 0.0
      %6430 = vmatpush1.msra.mxu0 %v5545
      %6431 = vmatprep.subr.mxu0 0.0
      %6432 = vmatpush1.msra.mxu0 %v5546
      %6433 = vmatprep.subr.mxu0 0.0
      %6434 = vmatpush1.msra.mxu0 %v5547
      %6435 = vmatprep.subr.mxu0 0.0
      %6436 = vmatpush1.msra.mxu0 0.0
      %6437 = vmatprep.subr.mxu0 0.0
      %6438 = vmatpush1.msra.mxu0 0.0
      %6439 = vmatprep.subr.mxu0 0.0
      %6440 = vmatpush1.msra.mxu0 0.0
      %6441 = vmatprep.subr.mxu0 0.0
      %6442 = vmatpush1.msra.mxu0 0.0
      %6443 = vmatprep.subr.mxu0 0.0
      %6444 = vmatpush1.msra.mxu0 0.0
      %6445 = vmatprep.subr.mxu0 0.0
      %6446 = vmatpush1.msra.mxu0 0.0
      %6447 = vmatprep.subr.mxu0 0.0
      %6448 = vmatpush1.msra.mxu0 0.0
      %6449 = vmatprep.subr.mxu0 0.0
      %6450 = vmatpush1.msra.mxu0 0.0
      %6451 = vmatprep.subr.mxu0 0.0
      %6452 = vmatpush1.msra.mxu0 0.0
      %6453 = vmatprep.subr.mxu0 0.0
      %6454 = vmatpush1.msra.mxu0 0.0
      %6455 = vmatprep.subr.mxu0 0.0
      %6456 = vmatpush1.msra.mxu0 0.0
      %6457 = vmatprep.subr.mxu0 0.0
      %6458 = vmatpush1.msra.mxu0 0.0
      %6459 = vmatprep.subr.mxu0 0.0
      %6460 = vmatpush1.msra.mxu0 0.0
      %6461 = vmatprep.subr.mxu0 0.0
      %6462 = vmatpush1.msra.mxu0 0.0
      %6463 = vmatprep.subr.mxu0 0.0
      %6464 = vmatpush1.msra.mxu0 0.0
      %6465 = vmatprep.subr.mxu0 0.0
      %6466 = vmatpush1.msra.mxu0 0.0
      %6467 = vmatprep.subr.mxu0 0.0
      %6468 = vmatpush1.msra.mxu0 0.0
      %6469 = vmatprep.subr.mxu0 0.0
      %6470 = vmatpush1.msra.mxu0 0.0
      %6471 = vmatprep.subr.mxu0 0.0
      %6472 = vmatpush1.msra.mxu0 0.0
      %6473 = vmatprep.subr.mxu0 0.0
      %6474 = vmatpush1.msra.mxu0 0.0
      %6475 = vmatprep.subr.mxu0 0.0
      %6476 = vmatpush1.msra.mxu0 0.0
      %6477 = vmatprep.subr.mxu0 0.0
      %6478 = vmatpush1.msra.mxu0 0.0
      %6479 = vmatprep.subr.mxu0 0.0
      %6480 = vmatpush1.msra.mxu0 0.0
      %6481 = vmatprep.subr.mxu0 0.0
      %6482 = vmatpush1.msra.mxu0 0.0
      %6483 = vmatprep.mubr.f32.mxu0 0.0
      %6484 = vmatmul.mubr.f32.gmra.mrb[0].mxu0 %v6372
      %v6485 = vpop.f32.mrb[0].mxu0
      %v6486 = vadd.f32 0.0, %v6485
      %v6487 = vpop.f32.mrb[0].mxu0
      %6488 = vmatprep.mubr.f32.mxu0 0.0
      %6489 = vmatmul.mubr.f32.gmra.mrb[0].mxu0 %v6375
      %v6490 = vpop.f32.mrb[0].mxu0
      %v6491 = vadd.f32 0.0, %v6490
      %v6492 = vpop.f32.mrb[0].mxu0
      %6493 = vmatprep.mubr.f32.mxu0 0.0
      %6494 = vmatmul.mubr.f32.gmra.mrb[0].mxu0 %v6378
      %v6495 = vpop.f32.mrb[0].mxu0
      %v6496 = vadd.f32 0.0, %v6495
      %v6497 = vpop.f32.mrb[0].mxu0
      %6498 = vmatprep.mubr.f32.mxu0 0.0
      %6499 = vmatmul.mubr.f32.gmra.mrb[0].mxu0 %v6381
      %v6500 = vpop.f32.mrb[0].mxu0
      %v6501 = vadd.f32 0.0, %v6500
      %v6502 = vpop.f32.mrb[0].mxu0
      %6503 = vmatprep.mubr.f32.mxu0 0.0
      %6504 = vmatmul.mubr.f32.gmra.mrb[0].mxu0 %v6384
      %v6505 = vpop.f32.mrb[0].mxu0
      %v6506 = vadd.f32 0.0, %v6505
      %v6507 = vpop.f32.mrb[0].mxu0
      %6508 = vmatprep.mubr.f32.mxu0 0.0
      %6509 = vmatmul.mubr.f32.gmra.mrb[0].mxu0 %v6387
      %v6510 = vpop.f32.mrb[0].mxu0
      %v6511 = vadd.f32 0.0, %v6510
      %v6512 = vpop.f32.mrb[0].mxu0
      %6513 = vmatprep.mubr.f32.mxu0 0.0
      %6514 = vmatmul.mubr.f32.gmra.mrb[0].mxu0 %v6390
      %v6515 = vpop.f32.mrb[0].mxu0
      %v6516 = vadd.f32 0.0, %v6515
      %v6517 = vpop.f32.mrb[0].mxu0
      %6518 = vmatprep.mubr.f32.mxu0 0.0
      %6519 = vmatmul.mubr.f32.gmra.mrb[0].mxu0 %v6393
      %v6520 = vpop.f32.mrb[0].mxu0
      %v6521 = vadd.f32 0.0, %v6520
      %v6522 = vpop.f32.mrb[0].mxu0
      %6523 = vmatprep.mubr.f32.mxu0 0.0
      %6524 = vmatmul.mubr.f32.gmra.mrb[0].mxu0 %v6396
      %v6525 = vpop.f32.mrb[0].mxu0
      %v6526 = vadd.f32 0.0, %v6525
      %v6527 = vpop.f32.mrb[0].mxu0
      %6528 = vmatprep.mubr.f32.mxu0 0.0
      %6529 = vmatmul.mubr.f32.gmra.mrb[0].mxu0 %v6399
      %v6530 = vpop.f32.mrb[0].mxu0
      %v6531 = vadd.f32 0.0, %v6530
      %v6532 = vpop.f32.mrb[0].mxu0
      %6533 = vmatprep.mubr.f32.mxu0 0.0
      %6534 = vmatmul.mubr.f32.gmra.mrb[0].mxu0 %v6402
      %v6535 = vpop.f32.mrb[0].mxu0
      %v6536 = vadd.f32 0.0, %v6535
      %v6537 = vpop.f32.mrb[0].mxu0
      %6538 = vmatprep.mubr.f32.mxu0 0.0
      %6539 = vmatmul.mubr.f32.gmra.mrb[0].mxu0 %v6405
      %v6540 = vpop.f32.mrb[0].mxu0
      %v6541 = vadd.f32 0.0, %v6540
      %v6542 = vpop.f32.mrb[0].mxu0
      %6543 = vmatprep.mubr.f32.mxu0 0.0
      %6544 = vmatmul.mubr.f32.gmra.mrb[0].mxu0 %v6408
      %v6545 = vpop.f32.mrb[0].mxu0
      %v6546 = vadd.f32 0.0, %v6545
      %v6547 = vpop.f32.mrb[0].mxu0
      %6548 = vmatprep.mubr.f32.mxu0 0.0
      %6549 = vmatmul.mubr.f32.gmra.mrb[0].mxu0 %v6411
      %v6550 = vpop.f32.mrb[0].mxu0
      %v6551 = vadd.f32 0.0, %v6550
      %v6552 = vpop.f32.mrb[0].mxu0
      %6553 = vmatprep.mubr.f32.mxu0 0.0
      %6554 = vmatmul.mubr.f32.gmra.mrb[0].mxu0 %v6414
      %v6555 = vpop.f32.mrb[0].mxu0
      %v6556 = vadd.f32 0.0, %v6555
      %v6557 = vpop.f32.mrb[0].mxu0
      %6558 = vmatprep.mubr.f32.mxu0 0.0
      %6559 = vmatmul.mubr.f32.gmra.mrb[0].mxu0 %v6417
      %v6560 = vpop.f32.mrb[0].mxu0
      %v6561 = vadd.f32 0.0, %v6560
      %v6562 = vpop.f32.mrb[0].mxu0
      %6563 = vdwg.mxu0
      %6580 = vrot.lane.b32.xlu0 %v6486, 125
      %v6581 = vpop.permute.xlu0 %6580
      %6582 = vrot.lane.b32.xlu0 %v6491, 125
      %v6583 = vpop.permute.xlu0 %6582
      %6584 = vrot.lane.b32.xlu0 %v6496, 125
      %v6585 = vpop.permute.xlu0 %6584
      %6586 = vrot.lane.b32.xlu0 %v6501, 125
      %v6587 = vpop.permute.xlu0 %6586
      %6588 = vrot.lane.b32.xlu0 %v6506, 125
      %v6589 = vpop.permute.xlu0 %6588
      %6590 = vrot.lane.b32.xlu0 %v6511, 125
      %v6591 = vpop.permute.xlu0 %6590
      %6592 = vrot.lane.b32.xlu0 %v6516, 125
      %v6593 = vpop.permute.xlu0 %6592
      %6594 = vrot.lane.b32.xlu0 %v6521, 125
      %v6595 = vpop.permute.xlu0 %6594
      %6596 = vrot.lane.b32.xlu0 %v6526, 125
      %v6597 = vpop.permute.xlu0 %6596
      %6598 = vrot.lane.b32.xlu0 %v6531, 125
      %v6599 = vpop.permute.xlu0 %6598
      %6600 = vrot.lane.b32.xlu0 %v6536, 125
      %v6601 = vpop.permute.xlu0 %6600
      %6602 = vrot.lane.b32.xlu0 %v6541, 125
      %v6603 = vpop.permute.xlu0 %6602
      %6604 = vrot.lane.b32.xlu0 %v6546, 125
      %v6605 = vpop.permute.xlu0 %6604
      %6606 = vrot.lane.b32.xlu0 %v6551, 125
      %v6607 = vpop.permute.xlu0 %6606
      %6608 = vrot.lane.b32.xlu0 %v6556, 125
      %v6609 = vpop.permute.xlu0 %6608
      %6610 = vrot.lane.b32.xlu0 %v6561, 125
      %v6611 = vpop.permute.xlu0 %6610
      %v6628 = vadd.f32 %v6338, %v6581
      %v6629 = vadd.f32 %v6339, %v6583
      %v6630 = vadd.f32 %v6340, %v6585
      %v6631 = vadd.f32 %v6341, %v6587
      %v6632 = vadd.f32 %v6342, %v6589
      %v6633 = vadd.f32 %v6343, %v6591
      %v6634 = vadd.f32 %v6344, %v6593
      %v6635 = vadd.f32 %v6345, %v6595
      %v6636 = vadd.f32 %v6346, %v6597
      %v6637 = vadd.f32 %v6347, %v6599
      %v6638 = vadd.f32 %v6348, %v6601
      %v6639 = vadd.f32 %v6349, %v6603
      %v6640 = vadd.f32 %v6350, %v6605
      %v6641 = vadd.f32 %v6351, %v6607
      %v6642 = vadd.f32 %v6352, %v6609
      %v6643 = vadd.f32 %v6353, %v6611
      %s6644 = scalar_lea.vmem [#allocation6], 384
      %v6645 = vld [vmem:[%s6644] sm:$0xff]
      %v6646 = vld [vmem:[%s6644 + $0x8] sm:$0xff]
      %v6647 = vld [vmem:[%s6644 + $0x10] sm:$0xff]
      %v6648 = vld [vmem:[%s6644 + $0x18] sm:$0xff]
      %v6649 = vld [vmem:[%s6644 + $0x20] sm:$0xff]
      %v6650 = vld [vmem:[%s6644 + $0x28] sm:$0xff]
      %v6651 = vld [vmem:[%s6644 + $0x30] sm:$0xff]
      %v6652 = vld [vmem:[%s6644 + $0x38] sm:$0xff]
      %v6653 = vld [vmem:[%s6644 + $0x40] sm:$0xff]
      %v6654 = vld [vmem:[%s6644 + $0x48] sm:$0xff]
      %v6655 = vld [vmem:[%s6644 + $0x50] sm:$0xff]
      %v6656 = vld [vmem:[%s6644 + $0x58] sm:$0xff]
      %v6657 = vld [vmem:[%s6644 + $0x60] sm:$0xff]
      %v6658 = vld [vmem:[%s6644 + $0x68] sm:$0xff]
      %v6659 = vld [vmem:[%s6644 + $0x70] sm:$0xff]
      %v6660 = vld [vmem:[%s6644 + $0x78] sm:$0xff]
      %6677 = vrot.lane.b32.xlu0 %v6645, 127
      %v6678 = vpop.permute.xlu0 %6677
      %6679 = vrot.lane.b32.xlu0 %v6646, 127
      %v6680 = vpop.permute.xlu0 %6679
      %6681 = vrot.lane.b32.xlu0 %v6647, 127
      %v6682 = vpop.permute.xlu0 %6681
      %6683 = vrot.lane.b32.xlu0 %v6648, 127
      %v6684 = vpop.permute.xlu0 %6683
      %6685 = vrot.lane.b32.xlu0 %v6649, 127
      %v6686 = vpop.permute.xlu0 %6685
      %6687 = vrot.lane.b32.xlu0 %v6650, 127
      %v6688 = vpop.permute.xlu0 %6687
      %6689 = vrot.lane.b32.xlu0 %v6651, 127
      %v6690 = vpop.permute.xlu0 %6689
      %6691 = vrot.lane.b32.xlu0 %v6652, 127
      %v6692 = vpop.permute.xlu0 %6691
      %6693 = vrot.lane.b32.xlu0 %v6653, 127
      %v6694 = vpop.permute.xlu0 %6693
      %6695 = vrot.lane.b32.xlu0 %v6654, 127
      %v6696 = vpop.permute.xlu0 %6695
      %6697 = vrot.lane.b32.xlu0 %v6655, 127
      %v6698 = vpop.permute.xlu0 %6697
      %6699 = vrot.lane.b32.xlu0 %v6656, 127
      %v6700 = vpop.permute.xlu0 %6699
      %6701 = vrot.lane.b32.xlu0 %v6657, 127
      %v6702 = vpop.permute.xlu0 %6701
      %6703 = vrot.lane.b32.xlu0 %v6658, 127
      %v6704 = vpop.permute.xlu0 %6703
      %6705 = vrot.lane.b32.xlu0 %v6659, 127
      %v6706 = vpop.permute.xlu0 %6705
      %6707 = vrot.lane.b32.xlu0 %v6660, 127
      %v6708 = vpop.permute.xlu0 %6707
      %6725 = vmatprep.subr.mxu0 0.0
      %6726 = vmatpush1.msra.mxu0 %v5234
      %6727 = vmatprep.subr.mxu0 0.0
      %6728 = vmatpush1.msra.mxu0 %v5235
      %6729 = vmatprep.subr.mxu0 0.0
      %6730 = vmatpush1.msra.mxu0 %v5236
      %6731 = vmatprep.subr.mxu0 0.0
      %6732 = vmatpush1.msra.mxu0 %v5237
      %6733 = vmatprep.subr.mxu0 0.0
      %6734 = vmatpush1.msra.mxu0 %v5238
      %6735 = vmatprep.subr.mxu0 0.0
      %6736 = vmatpush1.msra.mxu0 %v5239
      %6737 = vmatprep.subr.mxu0 0.0
      %6738 = vmatpush1.msra.mxu0 %v5240
      %6739 = vmatprep.subr.mxu0 0.0
      %6740 = vmatpush1.msra.mxu0 %v5241
      %6741 = vmatprep.subr.mxu0 0.0
      %6742 = vmatpush1.msra.mxu0 %v5242
      %6743 = vmatprep.subr.mxu0 0.0
      %6744 = vmatpush1.msra.mxu0 %v5243
      %6745 = vmatprep.subr.mxu0 0.0
      %6746 = vmatpush1.msra.mxu0 %v5244
      %6747 = vmatprep.subr.mxu0 0.0
      %6748 = vmatpush1.msra.mxu0 %v5245
      %6749 = vmatprep.subr.mxu0 0.0
      %6750 = vmatpush1.msra.mxu0 %v5246
      %6751 = vmatprep.subr.mxu0 0.0
      %6752 = vmatpush1.msra.mxu0 %v5247
      %6753 = vmatprep.subr.mxu0 0.0
      %6754 = vmatpush1.msra.mxu0 %v5248
      %6755 = vmatprep.subr.mxu0 0.0
      %6756 = vmatpush1.msra.mxu0 %v5249
      %6757 = vmatprep.subr.mxu0 0.0
      %6758 = vmatpush1.msra.mxu0 %v5267
      %6759 = vmatprep.subr.mxu0 0.0
      %6760 = vmatpush1.msra.mxu0 %v5269
      %6761 = vmatprep.subr.mxu0 0.0
      %6762 = vmatpush1.msra.mxu0 %v5271
      %6763 = vmatprep.subr.mxu0 0.0
      %6764 = vmatpush1.msra.mxu0 %v5273
      %6765 = vmatprep.subr.mxu0 0.0
      %6766 = vmatpush1.msra.mxu0 %v5275
      %6767 = vmatprep.subr.mxu0 0.0
      %6768 = vmatpush1.msra.mxu0 %v5277
      %6769 = vmatprep.subr.mxu0 0.0
      %6770 = vmatpush1.msra.mxu0 %v5279
      %6771 = vmatprep.subr.mxu0 0.0
      %6772 = vmatpush1.msra.mxu0 %v5281
      %6773 = vmatprep.subr.mxu0 0.0
      %6774 = vmatpush1.msra.mxu0 %v5283
      %6775 = vmatprep.subr.mxu0 0.0
      %6776 = vmatpush1.msra.mxu0 %v5285
      %6777 = vmatprep.subr.mxu0 0.0
      %6778 = vmatpush1.msra.mxu0 %v5287
      %6779 = vmatprep.subr.mxu0 0.0
      %6780 = vmatpush1.msra.mxu0 %v5289
      %6781 = vmatprep.subr.mxu0 0.0
      %6782 = vmatpush1.msra.mxu0 %v5291
      %6783 = vmatprep.subr.mxu0 0.0
      %6784 = vmatpush1.msra.mxu0 %v5293
      %6785 = vmatprep.subr.mxu0 0.0
      %6786 = vmatpush1.msra.mxu0 %v5295
      %6787 = vmatprep.subr.mxu0 0.0
      %6788 = vmatpush1.msra.mxu0 %v5297
      %6789 = vmatprep.mubr.f32.mxu0 %v3824
      %6790 = vmatmul.mubr.f32.gmra.mrb[0].mxu0 %v3823
      %v6791 = vpop.f32.mrb[0].mxu0
      %v6792 = vadd.f32 %v3866, %v6791
      %v6793 = vpop.f32.mrb[0].mxu0
      %6794 = vmatprep.mubr.f32.mxu0 %v3828
      %6795 = vmatmul.mubr.f32.gmra.mrb[0].mxu0 %v3827
      %v6796 = vpop.f32.mrb[0].mxu0
      %v6797 = vadd.f32 %v3871, %v6796
      %v6798 = vpop.f32.mrb[0].mxu0
      %6799 = vmatprep.mubr.f32.mxu0 %v3832
      %6800 = vmatmul.mubr.f32.gmra.mrb[0].mxu0 %v3831
      %v6801 = vpop.f32.mrb[0].mxu0
      %v6802 = vadd.f32 %v3876, %v6801
      %v6803 = vpop.f32.mrb[0].mxu0
      %6804 = vmatprep.mubr.f32.mxu0 %v3836
      %6805 = vmatmul.mubr.f32.gmra.mrb[0].mxu0 %v3835
      %v6806 = vpop.f32.mrb[0].mxu0
      %v6807 = vadd.f32 %v3881, %v6806
      %v6808 = vpop.f32.mrb[0].mxu0
      %6809 = vmatprep.mubr.f32.mxu0 %v3840
      %6810 = vmatmul.mubr.f32.gmra.mrb[0].mxu0 %v3839
      %v6811 = vpop.f32.mrb[0].mxu0
      %v6812 = vadd.f32 %v3886, %v6811
      %v6813 = vpop.f32.mrb[0].mxu0
      %6814 = vmatprep.mubr.f32.mxu0 %v3844
      %6815 = vmatmul.mubr.f32.gmra.mrb[0].mxu0 %v3843
      %v6816 = vpop.f32.mrb[0].mxu0
      %v6817 = vadd.f32 %v3891, %v6816
      %v6818 = vpop.f32.mrb[0].mxu0
      %6819 = vmatprep.mubr.f32.mxu0 %v3848
      %6820 = vmatmul.mubr.f32.gmra.mrb[0].mxu0 %v3847
      %v6821 = vpop.f32.mrb[0].mxu0
      %v6822 = vadd.f32 %v3896, %v6821
      %v6823 = vpop.f32.mrb[0].mxu0
      %6824 = vmatprep.mubr.f32.mxu0 %v3852
      %6825 = vmatmul.mubr.f32.gmra.mrb[0].mxu0 %v3851
      %v6826 = vpop.f32.mrb[0].mxu0
      %v6827 = vadd.f32 %v3901, %v6826
      %v6828 = vpop.f32.mrb[0].mxu0
      %6829 = vdwg.mxu0
      %6830 = vmatprep.subr.mxu0 0.0
      %6831 = vmatpush1.msra.mxu0 %v6645
      %6832 = vmatprep.subr.mxu0 0.0
      %6833 = vmatpush1.msra.mxu0 %v6646
      %6834 = vmatprep.subr.mxu0 0.0
      %6835 = vmatpush1.msra.mxu0 %v6647
      %6836 = vmatprep.subr.mxu0 0.0
      %6837 = vmatpush1.msra.mxu0 %v6648
      %6838 = vmatprep.subr.mxu0 0.0
      %6839 = vmatpush1.msra.mxu0 %v6649
      %6840 = vmatprep.subr.mxu0 0.0
      %6841 = vmatpush1.msra.mxu0 %v6650
      %6842 = vmatprep.subr.mxu0 0.0
      %6843 = vmatpush1.msra.mxu0 %v6651
      %6844 = vmatprep.subr.mxu0 0.0
      %6845 = vmatpush1.msra.mxu0 %v6652
      %6846 = vmatprep.subr.mxu0 0.0
      %6847 = vmatpush1.msra.mxu0 %v6653
      %6848 = vmatprep.subr.mxu0 0.0
      %6849 = vmatpush1.msra.mxu0 %v6654
      %6850 = vmatprep.subr.mxu0 0.0
      %6851 = vmatpush1.msra.mxu0 %v6655
      %6852 = vmatprep.subr.mxu0 0.0
      %6853 = vmatpush1.msra.mxu0 %v6656
      %6854 = vmatprep.subr.mxu0 0.0
      %6855 = vmatpush1.msra.mxu0 %v6657
      %6856 = vmatprep.subr.mxu0 0.0
      %6857 = vmatpush1.msra.mxu0 %v6658
      %6858 = vmatprep.subr.mxu0 0.0
      %6859 = vmatpush1.msra.mxu0 %v6659
      %6860 = vmatprep.subr.mxu0 0.0
      %6861 = vmatpush1.msra.mxu0 %v6660
      %6862 = vmatprep.subr.mxu0 0.0
      %6863 = vmatpush1.msra.mxu0 %v6678
      %6864 = vmatprep.subr.mxu0 0.0
      %6865 = vmatpush1.msra.mxu0 %v6680
      %6866 = vmatprep.subr.mxu0 0.0
      %6867 = vmatpush1.msra.mxu0 %v6682
      %6868 = vmatprep.subr.mxu0 0.0
      %6869 = vmatpush1.msra.mxu0 %v6684
      %6870 = vmatprep.subr.mxu0 0.0
      %6871 = vmatpush1.msra.mxu0 %v6686
      %6872 = vmatprep.subr.mxu0 0.0
      %6873 = vmatpush1.msra.mxu0 %v6688
      %6874 = vmatprep.subr.mxu0 0.0
      %6875 = vmatpush1.msra.mxu0 %v6690
      %6876 = vmatprep.subr.mxu0 0.0
      %6877 = vmatpush1.msra.mxu0 %v6692
      %6878 = vmatprep.subr.mxu0 0.0
      %6879 = vmatpush1.msra.mxu0 %v6694
      %6880 = vmatprep.subr.mxu0 0.0
      %6881 = vmatpush1.msra.mxu0 %v6696
      %6882 = vmatprep.subr.mxu0 0.0
      %6883 = vmatpush1.msra.mxu0 %v6698
      %6884 = vmatprep.subr.mxu0 0.0
      %6885 = vmatpush1.msra.mxu0 %v6700
      %6886 = vmatprep.subr.mxu0 0.0
      %6887 = vmatpush1.msra.mxu0 %v6702
      %6888 = vmatprep.subr.mxu0 0.0
      %6889 = vmatpush1.msra.mxu0 %v6704
      %6890 = vmatprep.subr.mxu0 0.0
      %6891 = vmatpush1.msra.mxu0 %v6706
      %6892 = vmatprep.subr.mxu0 0.0
      %6893 = vmatpush1.msra.mxu0 %v6708
      %6894 = vmatprep.mubr.f32.mxu0 %v3826
      %6895 = vmatmul.mubr.f32.gmra.mrb[0].mxu0 %v3825
      %v6896 = vpop.f32.mrb[0].mxu0
      %v6897 = vadd.f32 %v6792, %v6896
      %v6898 = vpop.f32.mrb[0].mxu0
      %6899 = vmatprep.mubr.f32.mxu0 %v3830
      %6900 = vmatmul.mubr.f32.gmra.mrb[0].mxu0 %v3829
      %v6901 = vpop.f32.mrb[0].mxu0
      %v6902 = vadd.f32 %v6797, %v6901
      %v6903 = vpop.f32.mrb[0].mxu0
      %6904 = vmatprep.mubr.f32.mxu0 %v3834
      %6905 = vmatmul.mubr.f32.gmra.mrb[0].mxu0 %v3833
      %v6906 = vpop.f32.mrb[0].mxu0
      %v6907 = vadd.f32 %v6802, %v6906
      %v6908 = vpop.f32.mrb[0].mxu0
      %6909 = vmatprep.mubr.f32.mxu0 %v3838
      %6910 = vmatmul.mubr.f32.gmra.mrb[0].mxu0 %v3837
      %v6911 = vpop.f32.mrb[0].mxu0
      %v6912 = vadd.f32 %v6807, %v6911
      %v6913 = vpop.f32.mrb[0].mxu0
      %6914 = vmatprep.mubr.f32.mxu0 %v3842
      %6915 = vmatmul.mubr.f32.gmra.mrb[0].mxu0 %v3841
      %v6916 = vpop.f32.mrb[0].mxu0
      %v6917 = vadd.f32 %v6812, %v6916
      %v6918 = vpop.f32.mrb[0].mxu0
      %6919 = vmatprep.mubr.f32.mxu0 %v3846
      %6920 = vmatmul.mubr.f32.gmra.mrb[0].mxu0 %v3845
      %v6921 = vpop.f32.mrb[0].mxu0
      %v6922 = vadd.f32 %v6817, %v6921
      %v6923 = vpop.f32.mrb[0].mxu0
      %6924 = vmatprep.mubr.f32.mxu0 %v3850
      %6925 = vmatmul.mubr.f32.gmra.mrb[0].mxu0 %v3849
      %v6926 = vpop.f32.mrb[0].mxu0
      %v6927 = vadd.f32 %v6822, %v6926
      %v6928 = vpop.f32.mrb[0].mxu0
      %6929 = vmatprep.mubr.f32.mxu0 %v3854
      %6930 = vmatmul.mubr.f32.gmra.mrb[0].mxu0 %v3853
      %v6931 = vpop.f32.mrb[0].mxu0
      %v6932 = vadd.f32 %v6827, %v6931
      %v6933 = vpop.f32.mrb[0].mxu0
      %6934 = vdwg.mxu0
      %vm6935 = vcmp.ge.f32.partialorder %v6897, 0.0
      %vm6936 = vcmp.ge.f32.partialorder %v6902, 0.0
      %vm6937 = vcmp.ge.f32.partialorder %v6907, 0.0
      %vm6938 = vcmp.ge.f32.partialorder %v6912, 0.0
      %vm6939 = vcmp.ge.f32.partialorder %v6917, 0.0
      %vm6940 = vcmp.ge.f32.partialorder %v6922, 0.0
      %vm6941 = vcmp.ge.f32.partialorder %v6927, 0.0
      %vm6942 = vcmp.ge.f32.partialorder %v6932, 0.0
      %v6943 = vmul.f32 %v6897, 0.2
      %v6944 = vmul.f32 %v6902, 0.2
      %v6945 = vmul.f32 %v6907, 0.2
      %v6946 = vmul.f32 %v6912, 0.2
      %v6947 = vmul.f32 %v6917, 0.2
      %v6948 = vmul.f32 %v6922, 0.2
      %v6949 = vmul.f32 %v6927, 0.2
      %v6950 = vmul.f32 %v6932, 0.2
      %v6951 = vsel %vm6935, %v6897, %v6943
      %v6952 = vsel %vm6936, %v6902, %v6944
      %v6953 = vsel %vm6937, %v6907, %v6945
      %v6954 = vsel %vm6938, %v6912, %v6946
      %v6955 = vsel %vm6939, %v6917, %v6947
      %v6956 = vsel %vm6940, %v6922, %v6948
      %v6957 = vsel %vm6941, %v6927, %v6949
      %v6958 = vsel %vm6942, %v6932, %v6950
      %s6959 = scalar_lea.vmem %s18, 1024
      %v6960 = vld [vmem:[%s6959] sm:$0xff]
      %v6961 = vld [vmem:[%s6959 + $0x8] sm:$0xff]
      %v6962 = vld [vmem:[%s6959 + $0x10] sm:$0xff]
      %v6963 = vld [vmem:[%s6959 + $0x18] sm:$0xff]
      %v6964 = vld [vmem:[%s6959 + $0x20] sm:$0xff]
      %v6965 = vld [vmem:[%s6959 + $0x28] sm:$0xff]
      %v6966 = vld [vmem:[%s6959 + $0x30] sm:$0xff]
      %v6967 = vld [vmem:[%s6959 + $0x38] sm:$0xff]
      %v6968 = vld [vmem:[%s6959 + $0x40] sm:$0xff]
      %v6969 = vld [vmem:[%s6959 + $0x48] sm:$0xff]
      %v6970 = vld [vmem:[%s6959 + $0x50] sm:$0xff]
      %v6971 = vld [vmem:[%s6959 + $0x58] sm:$0xff]
      %v6972 = vld [vmem:[%s6959 + $0x60] sm:$0xff]
      %v6973 = vld [vmem:[%s6959 + $0x68] sm:$0xff]
      %v6974 = vld [vmem:[%s6959 + $0x70] sm:$0xff]
      %v6975 = vld [vmem:[%s6959 + $0x78] sm:$0xff]
      %v6977 = vsel %vm4153, %v6960, 0
      %v6980 = vsel %vm4153, %v6961, 0
      %v6983 = vsel %vm4153, %v6962, 0
      %v6986 = vsel %vm4153, %v6963, 0
      %v6989 = vsel %vm4153, %v6964, 0
      %v6992 = vsel %vm4153, %v6965, 0
      %v6995 = vsel %vm4153, %v6966, 0
      %v6998 = vsel %vm4153, %v6967, 0
      %v7001 = vsel %vm4153, %v6968, 0
      %v7004 = vsel %vm4153, %v6969, 0
      %v7007 = vsel %vm4153, %v6970, 0
      %v7010 = vsel %vm4153, %v6971, 0
      %v7013 = vsel %vm4153, %v6972, 0
      %v7016 = vsel %vm4153, %v6973, 0
      %v7019 = vsel %vm4153, %v6974, 0
      %v7022 = vsel %vm4153, %v6975, 0
      %7024 = vmatprep.subr.mxu0 0.0
      %7025 = vmatpush1.msra.mxu0 %v6951
      %7026 = vmatprep.subr.mxu0 0.0
      %7027 = vmatpush1.msra.mxu0 %v6952
      %7028 = vmatprep.subr.mxu0 0.0
      %7029 = vmatpush1.msra.mxu0 %v6953
      %7030 = vmatprep.subr.mxu0 0.0
      %7031 = vmatpush1.msra.mxu0 %v6954
      %7032 = vmatprep.subr.mxu0 0.0
      %7033 = vmatpush1.msra.mxu0 %v6955
      %7034 = vmatprep.subr.mxu0 0.0
      %7035 = vmatpush1.msra.mxu0 %v6956
      %7036 = vmatprep.subr.mxu0 0.0
      %7037 = vmatpush1.msra.mxu0 %v6957
      %7038 = vmatprep.subr.mxu0 0.0
      %7039 = vmatpush1.msra.mxu0 %v6958
      %7040 = vmatprep.subr.mxu0 0.0
      %7041 = vmatpush1.msra.mxu0 0.0
      %7042 = vmatprep.subr.mxu0 0.0
      %7043 = vmatpush1.msra.mxu0 0.0
      %7044 = vmatprep.subr.mxu0 0.0
      %7045 = vmatpush1.msra.mxu0 0.0
      %7046 = vmatprep.subr.mxu0 0.0
      %7047 = vmatpush1.msra.mxu0 0.0
      %7048 = vmatprep.subr.mxu0 0.0
      %7049 = vmatpush1.msra.mxu0 0.0
      %7050 = vmatprep.subr.mxu0 0.0
      %7051 = vmatpush1.msra.mxu0 0.0
      %7052 = vmatprep.subr.mxu0 0.0
      %7053 = vmatpush1.msra.mxu0 0.0
      %7054 = vmatprep.subr.mxu0 0.0
      %7055 = vmatpush1.msra.mxu0 0.0
      %7056 = vmatprep.subr.mxu0 0.0
      %7057 = vmatpush1.msra.mxu0 0.0
      %7058 = vmatprep.subr.mxu0 0.0
      %7059 = vmatpush1.msra.mxu0 0.0
      %7060 = vmatprep.subr.mxu0 0.0
      %7061 = vmatpush1.msra.mxu0 0.0
      %7062 = vmatprep.subr.mxu0 0.0
      %7063 = vmatpush1.msra.mxu0 0.0
      %7064 = vmatprep.subr.mxu0 0.0
      %7065 = vmatpush1.msra.mxu0 0.0
      %7066 = vmatprep.subr.mxu0 0.0
      %7067 = vmatpush1.msra.mxu0 0.0
      %7068 = vmatprep.subr.mxu0 0.0
      %7069 = vmatpush1.msra.mxu0 0.0
      %7070 = vmatprep.subr.mxu0 0.0
      %7071 = vmatpush1.msra.mxu0 0.0
      %7072 = vmatprep.subr.mxu0 0.0
      %7073 = vmatpush1.msra.mxu0 0.0
      %7074 = vmatprep.subr.mxu0 0.0
      %7075 = vmatpush1.msra.mxu0 0.0
      %7076 = vmatprep.subr.mxu0 0.0
      %7077 = vmatpush1.msra.mxu0 0.0
      %7078 = vmatprep.subr.mxu0 0.0
      %7079 = vmatpush1.msra.mxu0 0.0
      %7080 = vmatprep.subr.mxu0 0.0
      %7081 = vmatpush1.msra.mxu0 0.0
      %7082 = vmatprep.subr.mxu0 0.0
      %7083 = vmatpush1.msra.mxu0 0.0
      %7084 = vmatprep.subr.mxu0 0.0
      %7085 = vmatpush1.msra.mxu0 0.0
      %7086 = vmatprep.subr.mxu0 0.0
      %7087 = vmatpush1.msra.mxu0 0.0
      %7088 = vmatprep.mubr.f32.mxu0 0.0
      %7089 = vmatmul.mubr.f32.gmra.mrb[0].mxu0 %v6977
      %v7090 = vpop.f32.mrb[0].mxu0
      %v7091 = vadd.f32 0.0, %v7090
      %v7092 = vpop.f32.mrb[0].mxu0
      %7093 = vmatprep.mubr.f32.mxu0 0.0
      %7094 = vmatmul.mubr.f32.gmra.mrb[0].mxu0 %v6980
      %v7095 = vpop.f32.mrb[0].mxu0
      %v7096 = vadd.f32 0.0, %v7095
      %v7097 = vpop.f32.mrb[0].mxu0
      %7098 = vmatprep.mubr.f32.mxu0 0.0
      %7099 = vmatmul.mubr.f32.gmra.mrb[0].mxu0 %v6983
      %v7100 = vpop.f32.mrb[0].mxu0
      %v7101 = vadd.f32 0.0, %v7100
      %v7102 = vpop.f32.mrb[0].mxu0
      %7103 = vmatprep.mubr.f32.mxu0 0.0
      %7104 = vmatmul.mubr.f32.gmra.mrb[0].mxu0 %v6986
      %v7105 = vpop.f32.mrb[0].mxu0
      %v7106 = vadd.f32 0.0, %v7105
      %v7107 = vpop.f32.mrb[0].mxu0
      %7108 = vmatprep.mubr.f32.mxu0 0.0
      %7109 = vmatmul.mubr.f32.gmra.mrb[0].mxu0 %v6989
      %v7110 = vpop.f32.mrb[0].mxu0
      %v7111 = vadd.f32 0.0, %v7110
      %v7112 = vpop.f32.mrb[0].mxu0
      %7113 = vmatprep.mubr.f32.mxu0 0.0
      %7114 = vmatmul.mubr.f32.gmra.mrb[0].mxu0 %v6992
      %v7115 = vpop.f32.mrb[0].mxu0
      %v7116 = vadd.f32 0.0, %v7115
      %v7117 = vpop.f32.mrb[0].mxu0
      %7118 = vmatprep.mubr.f32.mxu0 0.0
      %7119 = vmatmul.mubr.f32.gmra.mrb[0].mxu0 %v6995
      %v7120 = vpop.f32.mrb[0].mxu0
      %v7121 = vadd.f32 0.0, %v7120
      %v7122 = vpop.f32.mrb[0].mxu0
      %7123 = vmatprep.mubr.f32.mxu0 0.0
      %7124 = vmatmul.mubr.f32.gmra.mrb[0].mxu0 %v6998
      %v7125 = vpop.f32.mrb[0].mxu0
      %v7126 = vadd.f32 0.0, %v7125
      %v7127 = vpop.f32.mrb[0].mxu0
      %7128 = vmatprep.mubr.f32.mxu0 0.0
      %7129 = vmatmul.mubr.f32.gmra.mrb[0].mxu0 %v7001
      %v7130 = vpop.f32.mrb[0].mxu0
      %v7131 = vadd.f32 0.0, %v7130
      %v7132 = vpop.f32.mrb[0].mxu0
      %7133 = vmatprep.mubr.f32.mxu0 0.0
      %7134 = vmatmul.mubr.f32.gmra.mrb[0].mxu0 %v7004
      %v7135 = vpop.f32.mrb[0].mxu0
      %v7136 = vadd.f32 0.0, %v7135
      %v7137 = vpop.f32.mrb[0].mxu0
      %7138 = vmatprep.mubr.f32.mxu0 0.0
      %7139 = vmatmul.mubr.f32.gmra.mrb[0].mxu0 %v7007
      %v7140 = vpop.f32.mrb[0].mxu0
      %v7141 = vadd.f32 0.0, %v7140
      %v7142 = vpop.f32.mrb[0].mxu0
      %7143 = vmatprep.mubr.f32.mxu0 0.0
      %7144 = vmatmul.mubr.f32.gmra.mrb[0].mxu0 %v7010
      %v7145 = vpop.f32.mrb[0].mxu0
      %v7146 = vadd.f32 0.0, %v7145
      %v7147 = vpop.f32.mrb[0].mxu0
      %7148 = vmatprep.mubr.f32.mxu0 0.0
      %7149 = vmatmul.mubr.f32.gmra.mrb[0].mxu0 %v7013
      %v7150 = vpop.f32.mrb[0].mxu0
      %v7151 = vadd.f32 0.0, %v7150
      %v7152 = vpop.f32.mrb[0].mxu0
      %7153 = vmatprep.mubr.f32.mxu0 0.0
      %7154 = vmatmul.mubr.f32.gmra.mrb[0].mxu0 %v7016
      %v7155 = vpop.f32.mrb[0].mxu0
      %v7156 = vadd.f32 0.0, %v7155
      %v7157 = vpop.f32.mrb[0].mxu0
      %7158 = vmatprep.mubr.f32.mxu0 0.0
      %7159 = vmatmul.mubr.f32.gmra.mrb[0].mxu0 %v7019
      %v7160 = vpop.f32.mrb[0].mxu0
      %v7161 = vadd.f32 0.0, %v7160
      %v7162 = vpop.f32.mrb[0].mxu0
      %7163 = vmatprep.mubr.f32.mxu0 0.0
      %7164 = vmatmul.mubr.f32.gmra.mrb[0].mxu0 %v7022
      %v7165 = vpop.f32.mrb[0].mxu0
      %v7166 = vadd.f32 0.0, %v7165
      %v7167 = vpop.f32.mrb[0].mxu0
      %7168 = vdwg.mxu0
      %v7169 = vadd.f32 %v6628, %v7091
      %v7170 = vadd.f32 %v6629, %v7096
      %v7171 = vadd.f32 %v6630, %v7101
      %v7172 = vadd.f32 %v6631, %v7106
      %v7173 = vadd.f32 %v6632, %v7111
      %v7174 = vadd.f32 %v6633, %v7116
      %v7175 = vadd.f32 %v6634, %v7121
      %v7176 = vadd.f32 %v6635, %v7126
      %v7177 = vadd.f32 %v6636, %v7131
      %v7178 = vadd.f32 %v6637, %v7136
      %v7179 = vadd.f32 %v6638, %v7141
      %v7180 = vadd.f32 %v6639, %v7146
      %v7181 = vadd.f32 %v6640, %v7151
      %v7182 = vadd.f32 %v6641, %v7156
      %v7183 = vadd.f32 %v6642, %v7161
      %v7184 = vadd.f32 %v6643, %v7166
      %s7185 = scalar_lea.vmem %s18, 1152
      %v7186 = vld [vmem:[%s7185] sm:$0xff]
      %v7187 = vld [vmem:[%s7185 + $0x8] sm:$0xff]
      %v7188 = vld [vmem:[%s7185 + $0x10] sm:$0xff]
      %v7189 = vld [vmem:[%s7185 + $0x18] sm:$0xff]
      %v7190 = vld [vmem:[%s7185 + $0x20] sm:$0xff]
      %v7191 = vld [vmem:[%s7185 + $0x28] sm:$0xff]
      %v7192 = vld [vmem:[%s7185 + $0x30] sm:$0xff]
      %v7193 = vld [vmem:[%s7185 + $0x38] sm:$0xff]
      %v7194 = vld [vmem:[%s7185 + $0x40] sm:$0xff]
      %v7195 = vld [vmem:[%s7185 + $0x48] sm:$0xff]
      %v7196 = vld [vmem:[%s7185 + $0x50] sm:$0xff]
      %v7197 = vld [vmem:[%s7185 + $0x58] sm:$0xff]
      %v7198 = vld [vmem:[%s7185 + $0x60] sm:$0xff]
      %v7199 = vld [vmem:[%s7185 + $0x68] sm:$0xff]
      %v7200 = vld [vmem:[%s7185 + $0x70] sm:$0xff]
      %v7201 = vld [vmem:[%s7185 + $0x78] sm:$0xff]
      %v7203 = vsel %vm4153, %v7186, 0
      %v7206 = vsel %vm4153, %v7187, 0
      %v7209 = vsel %vm4153, %v7188, 0
      %v7212 = vsel %vm4153, %v7189, 0
      %v7215 = vsel %vm4153, %v7190, 0
      %v7218 = vsel %vm4153, %v7191, 0
      %v7221 = vsel %vm4153, %v7192, 0
      %v7224 = vsel %vm4153, %v7193, 0
      %v7227 = vsel %vm4153, %v7194, 0
      %v7230 = vsel %vm4153, %v7195, 0
      %v7233 = vsel %vm4153, %v7196, 0
      %v7236 = vsel %vm4153, %v7197, 0
      %v7239 = vsel %vm4153, %v7198, 0
      %v7242 = vsel %vm4153, %v7199, 0
      %v7245 = vsel %vm4153, %v7200, 0
      %v7248 = vsel %vm4153, %v7201, 0
      %7250 = vmatprep.subr.mxu0 0.0
      %7251 = vmatpush1.msra.mxu0 %v6951
      %7252 = vmatprep.subr.mxu0 0.0
      %7253 = vmatpush1.msra.mxu0 %v6952
      %7254 = vmatprep.subr.mxu0 0.0
      %7255 = vmatpush1.msra.mxu0 %v6953
      %7256 = vmatprep.subr.mxu0 0.0
      %7257 = vmatpush1.msra.mxu0 %v6954
      %7258 = vmatprep.subr.mxu0 0.0
      %7259 = vmatpush1.msra.mxu0 %v6955
      %7260 = vmatprep.subr.mxu0 0.0
      %7261 = vmatpush1.msra.mxu0 %v6956
      %7262 = vmatprep.subr.mxu0 0.0
      %7263 = vmatpush1.msra.mxu0 %v6957
      %7264 = vmatprep.subr.mxu0 0.0
      %7265 = vmatpush1.msra.mxu0 %v6958
      %7266 = vmatprep.subr.mxu0 0.0
      %7267 = vmatpush1.msra.mxu0 0.0
      %7268 = vmatprep.subr.mxu0 0.0
      %7269 = vmatpush1.msra.mxu0 0.0
      %7270 = vmatprep.subr.mxu0 0.0
      %7271 = vmatpush1.msra.mxu0 0.0
      %7272 = vmatprep.subr.mxu0 0.0
      %7273 = vmatpush1.msra.mxu0 0.0
      %7274 = vmatprep.subr.mxu0 0.0
      %7275 = vmatpush1.msra.mxu0 0.0
      %7276 = vmatprep.subr.mxu0 0.0
      %7277 = vmatpush1.msra.mxu0 0.0
      %7278 = vmatprep.subr.mxu0 0.0
      %7279 = vmatpush1.msra.mxu0 0.0
      %7280 = vmatprep.subr.mxu0 0.0
      %7281 = vmatpush1.msra.mxu0 0.0
      %7282 = vmatprep.subr.mxu0 0.0
      %7283 = vmatpush1.msra.mxu0 0.0
      %7284 = vmatprep.subr.mxu0 0.0
      %7285 = vmatpush1.msra.mxu0 0.0
      %7286 = vmatprep.subr.mxu0 0.0
      %7287 = vmatpush1.msra.mxu0 0.0
      %7288 = vmatprep.subr.mxu0 0.0
      %7289 = vmatpush1.msra.mxu0 0.0
      %7290 = vmatprep.subr.mxu0 0.0
      %7291 = vmatpush1.msra.mxu0 0.0
      %7292 = vmatprep.subr.mxu0 0.0
      %7293 = vmatpush1.msra.mxu0 0.0
      %7294 = vmatprep.subr.mxu0 0.0
      %7295 = vmatpush1.msra.mxu0 0.0
      %7296 = vmatprep.subr.mxu0 0.0
      %7297 = vmatpush1.msra.mxu0 0.0
      %7298 = vmatprep.subr.mxu0 0.0
      %7299 = vmatpush1.msra.mxu0 0.0
      %7300 = vmatprep.subr.mxu0 0.0
      %7301 = vmatpush1.msra.mxu0 0.0
      %7302 = vmatprep.subr.mxu0 0.0
      %7303 = vmatpush1.msra.mxu0 0.0
      %7304 = vmatprep.subr.mxu0 0.0
      %7305 = vmatpush1.msra.mxu0 0.0
      %7306 = vmatprep.subr.mxu0 0.0
      %7307 = vmatpush1.msra.mxu0 0.0
      %7308 = vmatprep.subr.mxu0 0.0
      %7309 = vmatpush1.msra.mxu0 0.0
      %7310 = vmatprep.subr.mxu0 0.0
      %7311 = vmatpush1.msra.mxu0 0.0
      %7312 = vmatprep.subr.mxu0 0.0
      %7313 = vmatpush1.msra.mxu0 0.0
      %7314 = vmatprep.mubr.f32.mxu0 0.0
      %7315 = vmatmul.mubr.f32.gmra.mrb[0].mxu0 %v7203
      %v7316 = vpop.f32.mrb[0].mxu0
      %v7317 = vadd.f32 0.0, %v7316
      %v7318 = vpop.f32.mrb[0].mxu0
      %7319 = vmatprep.mubr.f32.mxu0 0.0
      %7320 = vmatmul.mubr.f32.gmra.mrb[0].mxu0 %v7206
      %v7321 = vpop.f32.mrb[0].mxu0
      %v7322 = vadd.f32 0.0, %v7321
      %v7323 = vpop.f32.mrb[0].mxu0
      %7324 = vmatprep.mubr.f32.mxu0 0.0
      %7325 = vmatmul.mubr.f32.gmra.mrb[0].mxu0 %v7209
      %v7326 = vpop.f32.mrb[0].mxu0
      %v7327 = vadd.f32 0.0, %v7326
      %v7328 = vpop.f32.mrb[0].mxu0
      %7329 = vmatprep.mubr.f32.mxu0 0.0
      %7330 = vmatmul.mubr.f32.gmra.mrb[0].mxu0 %v7212
      %v7331 = vpop.f32.mrb[0].mxu0
      %v7332 = vadd.f32 0.0, %v7331
      %v7333 = vpop.f32.mrb[0].mxu0
      %7334 = vmatprep.mubr.f32.mxu0 0.0
      %7335 = vmatmul.mubr.f32.gmra.mrb[0].mxu0 %v7215
      %v7336 = vpop.f32.mrb[0].mxu0
      %v7337 = vadd.f32 0.0, %v7336
      %v7338 = vpop.f32.mrb[0].mxu0
      %7339 = vmatprep.mubr.f32.mxu0 0.0
      %7340 = vmatmul.mubr.f32.gmra.mrb[0].mxu0 %v7218
      %v7341 = vpop.f32.mrb[0].mxu0
      %v7342 = vadd.f32 0.0, %v7341
      %v7343 = vpop.f32.mrb[0].mxu0
      %7344 = vmatprep.mubr.f32.mxu0 0.0
      %7345 = vmatmul.mubr.f32.gmra.mrb[0].mxu0 %v7221
      %v7346 = vpop.f32.mrb[0].mxu0
      %v7347 = vadd.f32 0.0, %v7346
      %v7348 = vpop.f32.mrb[0].mxu0
      %7349 = vmatprep.mubr.f32.mxu0 0.0
      %7350 = vmatmul.mubr.f32.gmra.mrb[0].mxu0 %v7224
      %v7351 = vpop.f32.mrb[0].mxu0
      %v7352 = vadd.f32 0.0, %v7351
      %v7353 = vpop.f32.mrb[0].mxu0
      %7354 = vmatprep.mubr.f32.mxu0 0.0
      %7355 = vmatmul.mubr.f32.gmra.mrb[0].mxu0 %v7227
      %v7356 = vpop.f32.mrb[0].mxu0
      %v7357 = vadd.f32 0.0, %v7356
      %v7358 = vpop.f32.mrb[0].mxu0
      %7359 = vmatprep.mubr.f32.mxu0 0.0
      %7360 = vmatmul.mubr.f32.gmra.mrb[0].mxu0 %v7230
      %v7361 = vpop.f32.mrb[0].mxu0
      %v7362 = vadd.f32 0.0, %v7361
      %v7363 = vpop.f32.mrb[0].mxu0
      %7364 = vmatprep.mubr.f32.mxu0 0.0
      %7365 = vmatmul.mubr.f32.gmra.mrb[0].mxu0 %v7233
      %v7366 = vpop.f32.mrb[0].mxu0
      %v7367 = vadd.f32 0.0, %v7366
      %v7368 = vpop.f32.mrb[0].mxu0
      %7369 = vmatprep.mubr.f32.mxu0 0.0
      %7370 = vmatmul.mubr.f32.gmra.mrb[0].mxu0 %v7236
      %v7371 = vpop.f32.mrb[0].mxu0
      %v7372 = vadd.f32 0.0, %v7371
      %v7373 = vpop.f32.mrb[0].mxu0
      %7374 = vmatprep.mubr.f32.mxu0 0.0
      %7375 = vmatmul.mubr.f32.gmra.mrb[0].mxu0 %v7239
      %v7376 = vpop.f32.mrb[0].mxu0
      %v7377 = vadd.f32 0.0, %v7376
      %v7378 = vpop.f32.mrb[0].mxu0
      %7379 = vmatprep.mubr.f32.mxu0 0.0
      %7380 = vmatmul.mubr.f32.gmra.mrb[0].mxu0 %v7242
      %v7381 = vpop.f32.mrb[0].mxu0
      %v7382 = vadd.f32 0.0, %v7381
      %v7383 = vpop.f32.mrb[0].mxu0
      %7384 = vmatprep.mubr.f32.mxu0 0.0
      %7385 = vmatmul.mubr.f32.gmra.mrb[0].mxu0 %v7245
      %v7386 = vpop.f32.mrb[0].mxu0
      %v7387 = vadd.f32 0.0, %v7386
      %v7388 = vpop.f32.mrb[0].mxu0
      %7389 = vmatprep.mubr.f32.mxu0 0.0
      %7390 = vmatmul.mubr.f32.gmra.mrb[0].mxu0 %v7248
      %v7391 = vpop.f32.mrb[0].mxu0
      %v7392 = vadd.f32 0.0, %v7391
      %v7393 = vpop.f32.mrb[0].mxu0
      %7394 = vdwg.mxu0
      %7411 = vrot.lane.b32.xlu0 %v7317, 127
      %v7412 = vpop.permute.xlu0 %7411
      %7413 = vrot.lane.b32.xlu0 %v7322, 127
      %v7414 = vpop.permute.xlu0 %7413
      %7415 = vrot.lane.b32.xlu0 %v7327, 127
      %v7416 = vpop.permute.xlu0 %7415
      %7417 = vrot.lane.b32.xlu0 %v7332, 127
      %v7418 = vpop.permute.xlu0 %7417
      %7419 = vrot.lane.b32.xlu0 %v7337, 127
      %v7420 = vpop.permute.xlu0 %7419
      %7421 = vrot.lane.b32.xlu0 %v7342, 127
      %v7422 = vpop.permute.xlu0 %7421
      %7423 = vrot.lane.b32.xlu0 %v7347, 127
      %v7424 = vpop.permute.xlu0 %7423
      %7425 = vrot.lane.b32.xlu0 %v7352, 127
      %v7426 = vpop.permute.xlu0 %7425
      %7427 = vrot.lane.b32.xlu0 %v7357, 127
      %v7428 = vpop.permute.xlu0 %7427
      %7429 = vrot.lane.b32.xlu0 %v7362, 127
      %v7430 = vpop.permute.xlu0 %7429
      %7431 = vrot.lane.b32.xlu0 %v7367, 127
      %v7432 = vpop.permute.xlu0 %7431
      %7433 = vrot.lane.b32.xlu0 %v7372, 127
      %v7434 = vpop.permute.xlu0 %7433
      %7435 = vrot.lane.b32.xlu0 %v7377, 127
      %v7436 = vpop.permute.xlu0 %7435
      %7437 = vrot.lane.b32.xlu0 %v7382, 127
      %v7438 = vpop.permute.xlu0 %7437
      %7439 = vrot.lane.b32.xlu0 %v7387, 127
      %v7440 = vpop.permute.xlu0 %7439
      %7441 = vrot.lane.b32.xlu0 %v7392, 127
      %v7442 = vpop.permute.xlu0 %7441
      %v7459 = vadd.f32 %v7169, %v7412
      %v7460 = vadd.f32 %v7170, %v7414
      %v7461 = vadd.f32 %v7171, %v7416
      %v7462 = vadd.f32 %v7172, %v7418
      %v7463 = vadd.f32 %v7173, %v7420
      %v7464 = vadd.f32 %v7174, %v7422
      %v7465 = vadd.f32 %v7175, %v7424
      %v7466 = vadd.f32 %v7176, %v7426
      %v7467 = vadd.f32 %v7177, %v7428
      %v7468 = vadd.f32 %v7178, %v7430
      %v7469 = vadd.f32 %v7179, %v7432
      %v7470 = vadd.f32 %v7180, %v7434
      %v7471 = vadd.f32 %v7181, %v7436
      %v7472 = vadd.f32 %v7182, %v7438
      %v7473 = vadd.f32 %v7183, %v7440
      %v7474 = vadd.f32 %v7184, %v7442
      %s7475 = scalar_lea.vmem %s18, 1280
      %v7476 = vld [vmem:[%s7475] sm:$0xff]
      %v7477 = vld [vmem:[%s7475 + $0x8] sm:$0xff]
      %v7478 = vld [vmem:[%s7475 + $0x10] sm:$0xff]
      %v7479 = vld [vmem:[%s7475 + $0x18] sm:$0xff]
      %v7480 = vld [vmem:[%s7475 + $0x20] sm:$0xff]
      %v7481 = vld [vmem:[%s7475 + $0x28] sm:$0xff]
      %v7482 = vld [vmem:[%s7475 + $0x30] sm:$0xff]
      %v7483 = vld [vmem:[%s7475 + $0x38] sm:$0xff]
      %v7484 = vld [vmem:[%s7475 + $0x40] sm:$0xff]
      %v7485 = vld [vmem:[%s7475 + $0x48] sm:$0xff]
      %v7486 = vld [vmem:[%s7475 + $0x50] sm:$0xff]
      %v7487 = vld [vmem:[%s7475 + $0x58] sm:$0xff]
      %v7488 = vld [vmem:[%s7475 + $0x60] sm:$0xff]
      %v7489 = vld [vmem:[%s7475 + $0x68] sm:$0xff]
      %v7490 = vld [vmem:[%s7475 + $0x70] sm:$0xff]
      %v7491 = vld [vmem:[%s7475 + $0x78] sm:$0xff]
      %v7493 = vsel %vm4153, %v7476, 0
      %v7496 = vsel %vm4153, %v7477, 0
      %v7499 = vsel %vm4153, %v7478, 0
      %v7502 = vsel %vm4153, %v7479, 0
      %v7505 = vsel %vm4153, %v7480, 0
      %v7508 = vsel %vm4153, %v7481, 0
      %v7511 = vsel %vm4153, %v7482, 0
      %v7514 = vsel %vm4153, %v7483, 0
      %v7517 = vsel %vm4153, %v7484, 0
      %v7520 = vsel %vm4153, %v7485, 0
      %v7523 = vsel %vm4153, %v7486, 0
      %v7526 = vsel %vm4153, %v7487, 0
      %v7529 = vsel %vm4153, %v7488, 0
      %v7532 = vsel %vm4153, %v7489, 0
      %v7535 = vsel %vm4153, %v7490, 0
      %v7538 = vsel %vm4153, %v7491, 0
      %7540 = vmatprep.subr.mxu0 0.0
      %7541 = vmatpush1.msra.mxu0 %v6951
      %7542 = vmatprep.subr.mxu0 0.0
      %7543 = vmatpush1.msra.mxu0 %v6952
      %7544 = vmatprep.subr.mxu0 0.0
      %7545 = vmatpush1.msra.mxu0 %v6953
      %7546 = vmatprep.subr.mxu0 0.0
      %7547 = vmatpush1.msra.mxu0 %v6954
      %7548 = vmatprep.subr.mxu0 0.0
      %7549 = vmatpush1.msra.mxu0 %v6955
      %7550 = vmatprep.subr.mxu0 0.0
      %7551 = vmatpush1.msra.mxu0 %v6956
      %7552 = vmatprep.subr.mxu0 0.0
      %7553 = vmatpush1.msra.mxu0 %v6957
      %7554 = vmatprep.subr.mxu0 0.0
      %7555 = vmatpush1.msra.mxu0 %v6958
      %7556 = vmatprep.subr.mxu0 0.0
      %7557 = vmatpush1.msra.mxu0 0.0
      %7558 = vmatprep.subr.mxu0 0.0
      %7559 = vmatpush1.msra.mxu0 0.0
      %7560 = vmatprep.subr.mxu0 0.0
      %7561 = vmatpush1.msra.mxu0 0.0
      %7562 = vmatprep.subr.mxu0 0.0
      %7563 = vmatpush1.msra.mxu0 0.0
      %7564 = vmatprep.subr.mxu0 0.0
      %7565 = vmatpush1.msra.mxu0 0.0
      %7566 = vmatprep.subr.mxu0 0.0
      %7567 = vmatpush1.msra.mxu0 0.0
      %7568 = vmatprep.subr.mxu0 0.0
      %7569 = vmatpush1.msra.mxu0 0.0
      %7570 = vmatprep.subr.mxu0 0.0
      %7571 = vmatpush1.msra.mxu0 0.0
      %7572 = vmatprep.subr.mxu0 0.0
      %7573 = vmatpush1.msra.mxu0 0.0
      %7574 = vmatprep.subr.mxu0 0.0
      %7575 = vmatpush1.msra.mxu0 0.0
      %7576 = vmatprep.subr.mxu0 0.0
      %7577 = vmatpush1.msra.mxu0 0.0
      %7578 = vmatprep.subr.mxu0 0.0
      %7579 = vmatpush1.msra.mxu0 0.0
      %7580 = vmatprep.subr.mxu0 0.0
      %7581 = vmatpush1.msra.mxu0 0.0
      %7582 = vmatprep.subr.mxu0 0.0
      %7583 = vmatpush1.msra.mxu0 0.0
      %7584 = vmatprep.subr.mxu0 0.0
      %7585 = vmatpush1.msra.mxu0 0.0
      %7586 = vmatprep.subr.mxu0 0.0
      %7587 = vmatpush1.msra.mxu0 0.0
      %7588 = vmatprep.subr.mxu0 0.0
      %7589 = vmatpush1.msra.mxu0 0.0
      %7590 = vmatprep.subr.mxu0 0.0
      %7591 = vmatpush1.msra.mxu0 0.0
      %7592 = vmatprep.subr.mxu0 0.0
      %7593 = vmatpush1.msra.mxu0 0.0
      %7594 = vmatprep.subr.mxu0 0.0
      %7595 = vmatpush1.msra.mxu0 0.0
      %7596 = vmatprep.subr.mxu0 0.0
      %7597 = vmatpush1.msra.mxu0 0.0
      %7598 = vmatprep.subr.mxu0 0.0
      %7599 = vmatpush1.msra.mxu0 0.0
      %7600 = vmatprep.subr.mxu0 0.0
      %7601 = vmatpush1.msra.mxu0 0.0
      %7602 = vmatprep.subr.mxu0 0.0
      %7603 = vmatpush1.msra.mxu0 0.0
      %7604 = vmatprep.mubr.f32.mxu0 0.0
      %7605 = vmatmul.mubr.f32.gmra.mrb[0].mxu0 %v7493
      %v7606 = vpop.f32.mrb[0].mxu0
      %v7607 = vadd.f32 0.0, %v7606
      %v7608 = vpop.f32.mrb[0].mxu0
      %7609 = vmatprep.mubr.f32.mxu0 0.0
      %7610 = vmatmul.mubr.f32.gmra.mrb[0].mxu0 %v7496
      %v7611 = vpop.f32.mrb[0].mxu0
      %v7612 = vadd.f32 0.0, %v7611
      %v7613 = vpop.f32.mrb[0].mxu0
      %7614 = vmatprep.mubr.f32.mxu0 0.0
      %7615 = vmatmul.mubr.f32.gmra.mrb[0].mxu0 %v7499
      %v7616 = vpop.f32.mrb[0].mxu0
      %v7617 = vadd.f32 0.0, %v7616
      %v7618 = vpop.f32.mrb[0].mxu0
      %7619 = vmatprep.mubr.f32.mxu0 0.0
      %7620 = vmatmul.mubr.f32.gmra.mrb[0].mxu0 %v7502
      %v7621 = vpop.f32.mrb[0].mxu0
      %v7622 = vadd.f32 0.0, %v7621
      %v7623 = vpop.f32.mrb[0].mxu0
      %7624 = vmatprep.mubr.f32.mxu0 0.0
      %7625 = vmatmul.mubr.f32.gmra.mrb[0].mxu0 %v7505
      %v7626 = vpop.f32.mrb[0].mxu0
      %v7627 = vadd.f32 0.0, %v7626
      %v7628 = vpop.f32.mrb[0].mxu0
      %7629 = vmatprep.mubr.f32.mxu0 0.0
      %7630 = vmatmul.mubr.f32.gmra.mrb[0].mxu0 %v7508
      %v7631 = vpop.f32.mrb[0].mxu0
      %v7632 = vadd.f32 0.0, %v7631
      %v7633 = vpop.f32.mrb[0].mxu0
      %7634 = vmatprep.mubr.f32.mxu0 0.0
      %7635 = vmatmul.mubr.f32.gmra.mrb[0].mxu0 %v7511
      %v7636 = vpop.f32.mrb[0].mxu0
      %v7637 = vadd.f32 0.0, %v7636
      %v7638 = vpop.f32.mrb[0].mxu0
      %7639 = vmatprep.mubr.f32.mxu0 0.0
      %7640 = vmatmul.mubr.f32.gmra.mrb[0].mxu0 %v7514
      %v7641 = vpop.f32.mrb[0].mxu0
      %v7642 = vadd.f32 0.0, %v7641
      %v7643 = vpop.f32.mrb[0].mxu0
      %7644 = vmatprep.mubr.f32.mxu0 0.0
      %7645 = vmatmul.mubr.f32.gmra.mrb[0].mxu0 %v7517
      %v7646 = vpop.f32.mrb[0].mxu0
      %v7647 = vadd.f32 0.0, %v7646
      %v7648 = vpop.f32.mrb[0].mxu0
      %7649 = vmatprep.mubr.f32.mxu0 0.0
      %7650 = vmatmul.mubr.f32.gmra.mrb[0].mxu0 %v7520
      %v7651 = vpop.f32.mrb[0].mxu0
      %v7652 = vadd.f32 0.0, %v7651
      %v7653 = vpop.f32.mrb[0].mxu0
      %7654 = vmatprep.mubr.f32.mxu0 0.0
      %7655 = vmatmul.mubr.f32.gmra.mrb[0].mxu0 %v7523
      %v7656 = vpop.f32.mrb[0].mxu0
      %v7657 = vadd.f32 0.0, %v7656
      %v7658 = vpop.f32.mrb[0].mxu0
      %7659 = vmatprep.mubr.f32.mxu0 0.0
      %7660 = vmatmul.mubr.f32.gmra.mrb[0].mxu0 %v7526
      %v7661 = vpop.f32.mrb[0].mxu0
      %v7662 = vadd.f32 0.0, %v7661
      %v7663 = vpop.f32.mrb[0].mxu0
      %7664 = vmatprep.mubr.f32.mxu0 0.0
      %7665 = vmatmul.mubr.f32.gmra.mrb[0].mxu0 %v7529
      %v7666 = vpop.f32.mrb[0].mxu0
      %v7667 = vadd.f32 0.0, %v7666
      %v7668 = vpop.f32.mrb[0].mxu0
      %7669 = vmatprep.mubr.f32.mxu0 0.0
      %7670 = vmatmul.mubr.f32.gmra.mrb[0].mxu0 %v7532
      %v7671 = vpop.f32.mrb[0].mxu0
      %v7672 = vadd.f32 0.0, %v7671
      %v7673 = vpop.f32.mrb[0].mxu0
      %7674 = vmatprep.mubr.f32.mxu0 0.0
      %7675 = vmatmul.mubr.f32.gmra.mrb[0].mxu0 %v7535
      %v7676 = vpop.f32.mrb[0].mxu0
      %v7677 = vadd.f32 0.0, %v7676
      %v7678 = vpop.f32.mrb[0].mxu0
      %7679 = vmatprep.mubr.f32.mxu0 0.0
      %7680 = vmatmul.mubr.f32.gmra.mrb[0].mxu0 %v7538
      %v7681 = vpop.f32.mrb[0].mxu0
      %v7682 = vadd.f32 0.0, %v7681
      %v7683 = vpop.f32.mrb[0].mxu0
      %7684 = vdwg.mxu0
      %7701 = vrot.lane.b32.xlu0 %v7607, 126
      %v7702 = vpop.permute.xlu0 %7701
      %7703 = vrot.lane.b32.xlu0 %v7612, 126
      %v7704 = vpop.permute.xlu0 %7703
      %7705 = vrot.lane.b32.xlu0 %v7617, 126
      %v7706 = vpop.permute.xlu0 %7705
      %7707 = vrot.lane.b32.xlu0 %v7622, 126
      %v7708 = vpop.permute.xlu0 %7707
      %7709 = vrot.lane.b32.xlu0 %v7627, 126
      %v7710 = vpop.permute.xlu0 %7709
      %7711 = vrot.lane.b32.xlu0 %v7632, 126
      %v7712 = vpop.permute.xlu0 %7711
      %7713 = vrot.lane.b32.xlu0 %v7637, 126
      %v7714 = vpop.permute.xlu0 %7713
      %7715 = vrot.lane.b32.xlu0 %v7642, 126
      %v7716 = vpop.permute.xlu0 %7715
      %7717 = vrot.lane.b32.xlu0 %v7647, 126
      %v7718 = vpop.permute.xlu0 %7717
      %7719 = vrot.lane.b32.xlu0 %v7652, 126
      %v7720 = vpop.permute.xlu0 %7719
      %7721 = vrot.lane.b32.xlu0 %v7657, 126
      %v7722 = vpop.permute.xlu0 %7721
      %7723 = vrot.lane.b32.xlu0 %v7662, 126
      %v7724 = vpop.permute.xlu0 %7723
      %7725 = vrot.lane.b32.xlu0 %v7667, 126
      %v7726 = vpop.permute.xlu0 %7725
      %7727 = vrot.lane.b32.xlu0 %v7672, 126
      %v7728 = vpop.permute.xlu0 %7727
      %7729 = vrot.lane.b32.xlu0 %v7677, 126
      %v7730 = vpop.permute.xlu0 %7729
      %7731 = vrot.lane.b32.xlu0 %v7682, 126
      %v7732 = vpop.permute.xlu0 %7731
      %v7749 = vadd.f32 %v7459, %v7702
      %v7750 = vadd.f32 %v7460, %v7704
      %v7751 = vadd.f32 %v7461, %v7706
      %v7752 = vadd.f32 %v7462, %v7708
      %v7753 = vadd.f32 %v7463, %v7710
      %v7754 = vadd.f32 %v7464, %v7712
      %v7755 = vadd.f32 %v7465, %v7714
      %v7756 = vadd.f32 %v7466, %v7716
      %v7757 = vadd.f32 %v7467, %v7718
      %v7758 = vadd.f32 %v7468, %v7720
      %v7759 = vadd.f32 %v7469, %v7722
      %v7760 = vadd.f32 %v7470, %v7724
      %v7761 = vadd.f32 %v7471, %v7726
      %v7762 = vadd.f32 %v7472, %v7728
      %v7763 = vadd.f32 %v7473, %v7730
      %v7764 = vadd.f32 %v7474, %v7732
      %s7765 = scalar_lea.vmem %s18, 1408
      %v7766 = vld [vmem:[%s7765] sm:$0xff]
      %v7767 = vld [vmem:[%s7765 + $0x8] sm:$0xff]
      %v7768 = vld [vmem:[%s7765 + $0x10] sm:$0xff]
      %v7769 = vld [vmem:[%s7765 + $0x18] sm:$0xff]
      %v7770 = vld [vmem:[%s7765 + $0x20] sm:$0xff]
      %v7771 = vld [vmem:[%s7765 + $0x28] sm:$0xff]
      %v7772 = vld [vmem:[%s7765 + $0x30] sm:$0xff]
      %v7773 = vld [vmem:[%s7765 + $0x38] sm:$0xff]
      %v7774 = vld [vmem:[%s7765 + $0x40] sm:$0xff]
      %v7775 = vld [vmem:[%s7765 + $0x48] sm:$0xff]
      %v7776 = vld [vmem:[%s7765 + $0x50] sm:$0xff]
      %v7777 = vld [vmem:[%s7765 + $0x58] sm:$0xff]
      %v7778 = vld [vmem:[%s7765 + $0x60] sm:$0xff]
      %v7779 = vld [vmem:[%s7765 + $0x68] sm:$0xff]
      %v7780 = vld [vmem:[%s7765 + $0x70] sm:$0xff]
      %v7781 = vld [vmem:[%s7765 + $0x78] sm:$0xff]
      %v7783 = vsel %vm4153, %v7766, 0
      %v7786 = vsel %vm4153, %v7767, 0
      %v7789 = vsel %vm4153, %v7768, 0
      %v7792 = vsel %vm4153, %v7769, 0
      %v7795 = vsel %vm4153, %v7770, 0
      %v7798 = vsel %vm4153, %v7771, 0
      %v7801 = vsel %vm4153, %v7772, 0
      %v7804 = vsel %vm4153, %v7773, 0
      %v7807 = vsel %vm4153, %v7774, 0
      %v7810 = vsel %vm4153, %v7775, 0
      %v7813 = vsel %vm4153, %v7776, 0
      %v7816 = vsel %vm4153, %v7777, 0
      %v7819 = vsel %vm4153, %v7778, 0
      %v7822 = vsel %vm4153, %v7779, 0
      %v7825 = vsel %vm4153, %v7780, 0
      %v7828 = vsel %vm4153, %v7781, 0
      %7830 = vmatprep.subr.mxu0 0.0
      %7831 = vmatpush1.msra.mxu0 %v6951
      %7832 = vmatprep.subr.mxu0 0.0
      %7833 = vmatpush1.msra.mxu0 %v6952
      %7834 = vmatprep.subr.mxu0 0.0
      %7835 = vmatpush1.msra.mxu0 %v6953
      %7836 = vmatprep.subr.mxu0 0.0
      %7837 = vmatpush1.msra.mxu0 %v6954
      %7838 = vmatprep.subr.mxu0 0.0
      %7839 = vmatpush1.msra.mxu0 %v6955
      %7840 = vmatprep.subr.mxu0 0.0
      %7841 = vmatpush1.msra.mxu0 %v6956
      %7842 = vmatprep.subr.mxu0 0.0
      %7843 = vmatpush1.msra.mxu0 %v6957
      %7844 = vmatprep.subr.mxu0 0.0
      %7845 = vmatpush1.msra.mxu0 %v6958
      %7846 = vmatprep.subr.mxu0 0.0
      %7847 = vmatpush1.msra.mxu0 0.0
      %7848 = vmatprep.subr.mxu0 0.0
      %7849 = vmatpush1.msra.mxu0 0.0
      %7850 = vmatprep.subr.mxu0 0.0
      %7851 = vmatpush1.msra.mxu0 0.0
      %7852 = vmatprep.subr.mxu0 0.0
      %7853 = vmatpush1.msra.mxu0 0.0
      %7854 = vmatprep.subr.mxu0 0.0
      %7855 = vmatpush1.msra.mxu0 0.0
      %7856 = vmatprep.subr.mxu0 0.0
      %7857 = vmatpush1.msra.mxu0 0.0
      %7858 = vmatprep.subr.mxu0 0.0
      %7859 = vmatpush1.msra.mxu0 0.0
      %7860 = vmatprep.subr.mxu0 0.0
      %7861 = vmatpush1.msra.mxu0 0.0
      %7862 = vmatprep.subr.mxu0 0.0
      %7863 = vmatpush1.msra.mxu0 0.0
      %7864 = vmatprep.subr.mxu0 0.0
      %7865 = vmatpush1.msra.mxu0 0.0
      %7866 = vmatprep.subr.mxu0 0.0
      %7867 = vmatpush1.msra.mxu0 0.0
      %7868 = vmatprep.subr.mxu0 0.0
      %7869 = vmatpush1.msra.mxu0 0.0
      %7870 = vmatprep.subr.mxu0 0.0
      %7871 = vmatpush1.msra.mxu0 0.0
      %7872 = vmatprep.subr.mxu0 0.0
      %7873 = vmatpush1.msra.mxu0 0.0
      %7874 = vmatprep.subr.mxu0 0.0
      %7875 = vmatpush1.msra.mxu0 0.0
      %7876 = vmatprep.subr.mxu0 0.0
      %7877 = vmatpush1.msra.mxu0 0.0
      %7878 = vmatprep.subr.mxu0 0.0
      %7879 = vmatpush1.msra.mxu0 0.0
      %7880 = vmatprep.subr.mxu0 0.0
      %7881 = vmatpush1.msra.mxu0 0.0
      %7882 = vmatprep.subr.mxu0 0.0
      %7883 = vmatpush1.msra.mxu0 0.0
      %7884 = vmatprep.subr.mxu0 0.0
      %7885 = vmatpush1.msra.mxu0 0.0
      %7886 = vmatprep.subr.mxu0 0.0
      %7887 = vmatpush1.msra.mxu0 0.0
      %7888 = vmatprep.subr.mxu0 0.0
      %7889 = vmatpush1.msra.mxu0 0.0
      %7890 = vmatprep.subr.mxu0 0.0
      %7891 = vmatpush1.msra.mxu0 0.0
      %7892 = vmatprep.subr.mxu0 0.0
      %7893 = vmatpush1.msra.mxu0 0.0
      %7894 = vmatprep.mubr.f32.mxu0 0.0
      %7895 = vmatmul.mubr.f32.gmra.mrb[0].mxu0 %v7783
      %v7896 = vpop.f32.mrb[0].mxu0
      %v7897 = vadd.f32 0.0, %v7896
      %v7898 = vpop.f32.mrb[0].mxu0
      %7899 = vmatprep.mubr.f32.mxu0 0.0
      %7900 = vmatmul.mubr.f32.gmra.mrb[0].mxu0 %v7786
      %v7901 = vpop.f32.mrb[0].mxu0
      %v7902 = vadd.f32 0.0, %v7901
      %v7903 = vpop.f32.mrb[0].mxu0
      %7904 = vmatprep.mubr.f32.mxu0 0.0
      %7905 = vmatmul.mubr.f32.gmra.mrb[0].mxu0 %v7789
      %v7906 = vpop.f32.mrb[0].mxu0
      %v7907 = vadd.f32 0.0, %v7906
      %v7908 = vpop.f32.mrb[0].mxu0
      %7909 = vmatprep.mubr.f32.mxu0 0.0
      %7910 = vmatmul.mubr.f32.gmra.mrb[0].mxu0 %v7792
      %v7911 = vpop.f32.mrb[0].mxu0
      %v7912 = vadd.f32 0.0, %v7911
      %v7913 = vpop.f32.mrb[0].mxu0
      %7914 = vmatprep.mubr.f32.mxu0 0.0
      %7915 = vmatmul.mubr.f32.gmra.mrb[0].mxu0 %v7795
      %v7916 = vpop.f32.mrb[0].mxu0
      %v7917 = vadd.f32 0.0, %v7916
      %v7918 = vpop.f32.mrb[0].mxu0
      %7919 = vmatprep.mubr.f32.mxu0 0.0
      %7920 = vmatmul.mubr.f32.gmra.mrb[0].mxu0 %v7798
      %v7921 = vpop.f32.mrb[0].mxu0
      %v7922 = vadd.f32 0.0, %v7921
      %v7923 = vpop.f32.mrb[0].mxu0
      %7924 = vmatprep.mubr.f32.mxu0 0.0
      %7925 = vmatmul.mubr.f32.gmra.mrb[0].mxu0 %v7801
      %v7926 = vpop.f32.mrb[0].mxu0
      %v7927 = vadd.f32 0.0, %v7926
      %v7928 = vpop.f32.mrb[0].mxu0
      %7929 = vmatprep.mubr.f32.mxu0 0.0
      %7930 = vmatmul.mubr.f32.gmra.mrb[0].mxu0 %v7804
      %v7931 = vpop.f32.mrb[0].mxu0
      %v7932 = vadd.f32 0.0, %v7931
      %v7933 = vpop.f32.mrb[0].mxu0
      %7934 = vmatprep.mubr.f32.mxu0 0.0
      %7935 = vmatmul.mubr.f32.gmra.mrb[0].mxu0 %v7807
      %v7936 = vpop.f32.mrb[0].mxu0
      %v7937 = vadd.f32 0.0, %v7936
      %v7938 = vpop.f32.mrb[0].mxu0
      %7939 = vmatprep.mubr.f32.mxu0 0.0
      %7940 = vmatmul.mubr.f32.gmra.mrb[0].mxu0 %v7810
      %v7941 = vpop.f32.mrb[0].mxu0
      %v7942 = vadd.f32 0.0, %v7941
      %v7943 = vpop.f32.mrb[0].mxu0
      %7944 = vmatprep.mubr.f32.mxu0 0.0
      %7945 = vmatmul.mubr.f32.gmra.mrb[0].mxu0 %v7813
      %v7946 = vpop.f32.mrb[0].mxu0
      %v7947 = vadd.f32 0.0, %v7946
      %v7948 = vpop.f32.mrb[0].mxu0
      %7949 = vmatprep.mubr.f32.mxu0 0.0
      %7950 = vmatmul.mubr.f32.gmra.mrb[0].mxu0 %v7816
      %v7951 = vpop.f32.mrb[0].mxu0
      %v7952 = vadd.f32 0.0, %v7951
      %v7953 = vpop.f32.mrb[0].mxu0
      %7954 = vmatprep.mubr.f32.mxu0 0.0
      %7955 = vmatmul.mubr.f32.gmra.mrb[0].mxu0 %v7819
      %v7956 = vpop.f32.mrb[0].mxu0
      %v7957 = vadd.f32 0.0, %v7956
      %v7958 = vpop.f32.mrb[0].mxu0
      %7959 = vmatprep.mubr.f32.mxu0 0.0
      %7960 = vmatmul.mubr.f32.gmra.mrb[0].mxu0 %v7822
      %v7961 = vpop.f32.mrb[0].mxu0
      %v7962 = vadd.f32 0.0, %v7961
      %v7963 = vpop.f32.mrb[0].mxu0
      %7964 = vmatprep.mubr.f32.mxu0 0.0
      %7965 = vmatmul.mubr.f32.gmra.mrb[0].mxu0 %v7825
      %v7966 = vpop.f32.mrb[0].mxu0
      %v7967 = vadd.f32 0.0, %v7966
      %v7968 = vpop.f32.mrb[0].mxu0
      %7969 = vmatprep.mubr.f32.mxu0 0.0
      %7970 = vmatmul.mubr.f32.gmra.mrb[0].mxu0 %v7828
      %v7971 = vpop.f32.mrb[0].mxu0
      %v7972 = vadd.f32 0.0, %v7971
      %v7973 = vpop.f32.mrb[0].mxu0
      %7974 = vdwg.mxu0
      %7991 = vrot.lane.b32.xlu0 %v7897, 125
      %v7992 = vpop.permute.xlu0 %7991
      %7993 = vrot.lane.b32.xlu0 %v7902, 125
      %v7994 = vpop.permute.xlu0 %7993
      %7995 = vrot.lane.b32.xlu0 %v7907, 125
      %v7996 = vpop.permute.xlu0 %7995
      %7997 = vrot.lane.b32.xlu0 %v7912, 125
      %v7998 = vpop.permute.xlu0 %7997
      %7999 = vrot.lane.b32.xlu0 %v7917, 125
      %v8000 = vpop.permute.xlu0 %7999
      %8001 = vrot.lane.b32.xlu0 %v7922, 125
      %v8002 = vpop.permute.xlu0 %8001
      %8003 = vrot.lane.b32.xlu0 %v7927, 125
      %v8004 = vpop.permute.xlu0 %8003
      %8005 = vrot.lane.b32.xlu0 %v7932, 125
      %v8006 = vpop.permute.xlu0 %8005
      %8007 = vrot.lane.b32.xlu0 %v7937, 125
      %v8008 = vpop.permute.xlu0 %8007
      %8009 = vrot.lane.b32.xlu0 %v7942, 125
      %v8010 = vpop.permute.xlu0 %8009
      %8011 = vrot.lane.b32.xlu0 %v7947, 125
      %v8012 = vpop.permute.xlu0 %8011
      %8013 = vrot.lane.b32.xlu0 %v7952, 125
      %v8014 = vpop.permute.xlu0 %8013
      %8015 = vrot.lane.b32.xlu0 %v7957, 125
      %v8016 = vpop.permute.xlu0 %8015
      %8017 = vrot.lane.b32.xlu0 %v7962, 125
      %v8018 = vpop.permute.xlu0 %8017
      %8019 = vrot.lane.b32.xlu0 %v7967, 125
      %v8020 = vpop.permute.xlu0 %8019
      %8021 = vrot.lane.b32.xlu0 %v7972, 125
      %v8022 = vpop.permute.xlu0 %8021
      %v8039 = vadd.f32 %v7749, %v7992
      %v8040 = vadd.f32 %v7750, %v7994
      %v8041 = vadd.f32 %v7751, %v7996
      %v8042 = vadd.f32 %v7752, %v7998
      %v8043 = vadd.f32 %v7753, %v8000
      %v8044 = vadd.f32 %v7754, %v8002
      %v8045 = vadd.f32 %v7755, %v8004
      %v8046 = vadd.f32 %v7756, %v8006
      %v8047 = vadd.f32 %v7757, %v8008
      %v8048 = vadd.f32 %v7758, %v8010
      %v8049 = vadd.f32 %v7759, %v8012
      %v8050 = vadd.f32 %v7760, %v8014
      %v8051 = vadd.f32 %v7761, %v8016
      %v8052 = vadd.f32 %v7762, %v8018
      %v8053 = vadd.f32 %v7763, %v8020
      %v8054 = vadd.f32 %v7764, %v8022
      %s8055 = scalar_lea.vmem [#allocation6], 512
      %v8056 = vld [vmem:[%s8055] sm:$0xff]
      %v8057 = vld [vmem:[%s8055 + $0x8] sm:$0xff]
      %v8058 = vld [vmem:[%s8055 + $0x10] sm:$0xff]
      %v8059 = vld [vmem:[%s8055 + $0x18] sm:$0xff]
      %v8060 = vld [vmem:[%s8055 + $0x20] sm:$0xff]
      %v8061 = vld [vmem:[%s8055 + $0x28] sm:$0xff]
      %v8062 = vld [vmem:[%s8055 + $0x30] sm:$0xff]
      %v8063 = vld [vmem:[%s8055 + $0x38] sm:$0xff]
      %v8064 = vld [vmem:[%s8055 + $0x40] sm:$0xff]
      %v8065 = vld [vmem:[%s8055 + $0x48] sm:$0xff]
      %v8066 = vld [vmem:[%s8055 + $0x50] sm:$0xff]
      %v8067 = vld [vmem:[%s8055 + $0x58] sm:$0xff]
      %v8068 = vld [vmem:[%s8055 + $0x60] sm:$0xff]
      %v8069 = vld [vmem:[%s8055 + $0x68] sm:$0xff]
      %v8070 = vld [vmem:[%s8055 + $0x70] sm:$0xff]
      %v8071 = vld [vmem:[%s8055 + $0x78] sm:$0xff]
      %8088 = vrot.lane.b32.xlu0 %v8056, 127
      %v8089 = vpop.permute.xlu0 %8088
      %8090 = vrot.lane.b32.xlu0 %v8057, 127
      %v8091 = vpop.permute.xlu0 %8090
      %8092 = vrot.lane.b32.xlu0 %v8058, 127
      %v8093 = vpop.permute.xlu0 %8092
      %8094 = vrot.lane.b32.xlu0 %v8059, 127
      %v8095 = vpop.permute.xlu0 %8094
      %8096 = vrot.lane.b32.xlu0 %v8060, 127
      %v8097 = vpop.permute.xlu0 %8096
      %8098 = vrot.lane.b32.xlu0 %v8061, 127
      %v8099 = vpop.permute.xlu0 %8098
      %8100 = vrot.lane.b32.xlu0 %v8062, 127
      %v8101 = vpop.permute.xlu0 %8100
      %8102 = vrot.lane.b32.xlu0 %v8063, 127
      %v8103 = vpop.permute.xlu0 %8102
      %8104 = vrot.lane.b32.xlu0 %v8064, 127
      %v8105 = vpop.permute.xlu0 %8104
      %8106 = vrot.lane.b32.xlu0 %v8065, 127
      %v8107 = vpop.permute.xlu0 %8106
      %8108 = vrot.lane.b32.xlu0 %v8066, 127
      %v8109 = vpop.permute.xlu0 %8108
      %8110 = vrot.lane.b32.xlu0 %v8067, 127
      %v8111 = vpop.permute.xlu0 %8110
      %8112 = vrot.lane.b32.xlu0 %v8068, 127
      %v8113 = vpop.permute.xlu0 %8112
      %8114 = vrot.lane.b32.xlu0 %v8069, 127
      %v8115 = vpop.permute.xlu0 %8114
      %8116 = vrot.lane.b32.xlu0 %v8070, 127
      %v8117 = vpop.permute.xlu0 %8116
      %8118 = vrot.lane.b32.xlu0 %v8071, 127
      %v8119 = vpop.permute.xlu0 %8118
      %8136 = vmatprep.subr.mxu0 0.0
      %8137 = vmatpush1.msra.mxu0 %v6645
      %8138 = vmatprep.subr.mxu0 0.0
      %8139 = vmatpush1.msra.mxu0 %v6646
      %8140 = vmatprep.subr.mxu0 0.0
      %8141 = vmatpush1.msra.mxu0 %v6647
      %8142 = vmatprep.subr.mxu0 0.0
      %8143 = vmatpush1.msra.mxu0 %v6648
      %8144 = vmatprep.subr.mxu0 0.0
      %8145 = vmatpush1.msra.mxu0 %v6649
      %8146 = vmatprep.subr.mxu0 0.0
      %8147 = vmatpush1.msra.mxu0 %v6650
      %8148 = vmatprep.subr.mxu0 0.0
      %8149 = vmatpush1.msra.mxu0 %v6651
      %8150 = vmatprep.subr.mxu0 0.0
      %8151 = vmatpush1.msra.mxu0 %v6652
      %8152 = vmatprep.subr.mxu0 0.0
      %8153 = vmatpush1.msra.mxu0 %v6653
      %8154 = vmatprep.subr.mxu0 0.0
      %8155 = vmatpush1.msra.mxu0 %v6654
      %8156 = vmatprep.subr.mxu0 0.0
      %8157 = vmatpush1.msra.mxu0 %v6655
      %8158 = vmatprep.subr.mxu0 0.0
      %8159 = vmatpush1.msra.mxu0 %v6656
      %8160 = vmatprep.subr.mxu0 0.0
      %8161 = vmatpush1.msra.mxu0 %v6657
      %8162 = vmatprep.subr.mxu0 0.0
      %8163 = vmatpush1.msra.mxu0 %v6658
      %8164 = vmatprep.subr.mxu0 0.0
      %8165 = vmatpush1.msra.mxu0 %v6659
      %8166 = vmatprep.subr.mxu0 0.0
      %8167 = vmatpush1.msra.mxu0 %v6660
      %8168 = vmatprep.subr.mxu0 0.0
      %8169 = vmatpush1.msra.mxu0 %v6678
      %8170 = vmatprep.subr.mxu0 0.0
      %8171 = vmatpush1.msra.mxu0 %v6680
      %8172 = vmatprep.subr.mxu0 0.0
      %8173 = vmatpush1.msra.mxu0 %v6682
      %8174 = vmatprep.subr.mxu0 0.0
      %8175 = vmatpush1.msra.mxu0 %v6684
      %8176 = vmatprep.subr.mxu0 0.0
      %8177 = vmatpush1.msra.mxu0 %v6686
      %8178 = vmatprep.subr.mxu0 0.0
      %8179 = vmatpush1.msra.mxu0 %v6688
      %8180 = vmatprep.subr.mxu0 0.0
      %8181 = vmatpush1.msra.mxu0 %v6690
      %8182 = vmatprep.subr.mxu0 0.0
      %8183 = vmatpush1.msra.mxu0 %v6692
      %8184 = vmatprep.subr.mxu0 0.0
      %8185 = vmatpush1.msra.mxu0 %v6694
      %8186 = vmatprep.subr.mxu0 0.0
      %8187 = vmatpush1.msra.mxu0 %v6696
      %8188 = vmatprep.subr.mxu0 0.0
      %8189 = vmatpush1.msra.mxu0 %v6698
      %8190 = vmatprep.subr.mxu0 0.0
      %8191 = vmatpush1.msra.mxu0 %v6700
      %8192 = vmatprep.subr.mxu0 0.0
      %8193 = vmatpush1.msra.mxu0 %v6702
      %8194 = vmatprep.subr.mxu0 0.0
      %8195 = vmatpush1.msra.mxu0 %v6704
      %8196 = vmatprep.subr.mxu0 0.0
      %8197 = vmatpush1.msra.mxu0 %v6706
      %8198 = vmatprep.subr.mxu0 0.0
      %8199 = vmatpush1.msra.mxu0 %v6708
      %8200 = vmatprep.mubr.f32.mxu0 %v3824
      %8201 = vmatmul.mubr.f32.gmra.mrb[0].mxu0 %v3823
      %v8202 = vpop.f32.mrb[0].mxu0
      %v8203 = vadd.f32 %v3866, %v8202
      %v8204 = vpop.f32.mrb[0].mxu0
      %8205 = vmatprep.mubr.f32.mxu0 %v3828
      %8206 = vmatmul.mubr.f32.gmra.mrb[0].mxu0 %v3827
      %v8207 = vpop.f32.mrb[0].mxu0
      %v8208 = vadd.f32 %v3871, %v8207
      %v8209 = vpop.f32.mrb[0].mxu0
      %8210 = vmatprep.mubr.f32.mxu0 %v3832
      %8211 = vmatmul.mubr.f32.gmra.mrb[0].mxu0 %v3831
      %v8212 = vpop.f32.mrb[0].mxu0
      %v8213 = vadd.f32 %v3876, %v8212
      %v8214 = vpop.f32.mrb[0].mxu0
      %8215 = vmatprep.mubr.f32.mxu0 %v3836
      %8216 = vmatmul.mubr.f32.gmra.mrb[0].mxu0 %v3835
      %v8217 = vpop.f32.mrb[0].mxu0
      %v8218 = vadd.f32 %v3881, %v8217
      %v8219 = vpop.f32.mrb[0].mxu0
      %8220 = vmatprep.mubr.f32.mxu0 %v3840
      %8221 = vmatmul.mubr.f32.gmra.mrb[0].mxu0 %v3839
      %v8222 = vpop.f32.mrb[0].mxu0
      %v8223 = vadd.f32 %v3886, %v8222
      %v8224 = vpop.f32.mrb[0].mxu0
      %8225 = vmatprep.mubr.f32.mxu0 %v3844
      %8226 = vmatmul.mubr.f32.gmra.mrb[0].mxu0 %v3843
      %v8227 = vpop.f32.mrb[0].mxu0
      %v8228 = vadd.f32 %v3891, %v8227
      %v8229 = vpop.f32.mrb[0].mxu0
      %8230 = vmatprep.mubr.f32.mxu0 %v3848
      %8231 = vmatmul.mubr.f32.gmra.mrb[0].mxu0 %v3847
      %v8232 = vpop.f32.mrb[0].mxu0
      %v8233 = vadd.f32 %v3896, %v8232
      %v8234 = vpop.f32.mrb[0].mxu0
      %8235 = vmatprep.mubr.f32.mxu0 %v3852
      %8236 = vmatmul.mubr.f32.gmra.mrb[0].mxu0 %v3851
      %v8237 = vpop.f32.mrb[0].mxu0
      %v8238 = vadd.f32 %v3901, %v8237
      %v8239 = vpop.f32.mrb[0].mxu0
      %8240 = vdwg.mxu0
      %8241 = vmatprep.subr.mxu0 0.0
      %8242 = vmatpush1.msra.mxu0 %v8056
      %8243 = vmatprep.subr.mxu0 0.0
      %8244 = vmatpush1.msra.mxu0 %v8057
      %8245 = vmatprep.subr.mxu0 0.0
      %8246 = vmatpush1.msra.mxu0 %v8058
      %8247 = vmatprep.subr.mxu0 0.0
      %8248 = vmatpush1.msra.mxu0 %v8059
      %8249 = vmatprep.subr.mxu0 0.0
      %8250 = vmatpush1.msra.mxu0 %v8060
      %8251 = vmatprep.subr.mxu0 0.0
      %8252 = vmatpush1.msra.mxu0 %v8061
      %8253 = vmatprep.subr.mxu0 0.0
      %8254 = vmatpush1.msra.mxu0 %v8062
      %8255 = vmatprep.subr.mxu0 0.0
      %8256 = vmatpush1.msra.mxu0 %v8063
      %8257 = vmatprep.subr.mxu0 0.0
      %8258 = vmatpush1.msra.mxu0 %v8064
      %8259 = vmatprep.subr.mxu0 0.0
      %8260 = vmatpush1.msra.mxu0 %v8065
      %8261 = vmatprep.subr.mxu0 0.0
      %8262 = vmatpush1.msra.mxu0 %v8066
      %8263 = vmatprep.subr.mxu0 0.0
      %8264 = vmatpush1.msra.mxu0 %v8067
      %8265 = vmatprep.subr.mxu0 0.0
      %8266 = vmatpush1.msra.mxu0 %v8068
      %8267 = vmatprep.subr.mxu0 0.0
      %8268 = vmatpush1.msra.mxu0 %v8069
      %8269 = vmatprep.subr.mxu0 0.0
      %8270 = vmatpush1.msra.mxu0 %v8070
      %8271 = vmatprep.subr.mxu0 0.0
      %8272 = vmatpush1.msra.mxu0 %v8071
      %8273 = vmatprep.subr.mxu0 0.0
      %8274 = vmatpush1.msra.mxu0 %v8089
      %8275 = vmatprep.subr.mxu0 0.0
      %8276 = vmatpush1.msra.mxu0 %v8091
      %8277 = vmatprep.subr.mxu0 0.0
      %8278 = vmatpush1.msra.mxu0 %v8093
      %8279 = vmatprep.subr.mxu0 0.0
      %8280 = vmatpush1.msra.mxu0 %v8095
      %8281 = vmatprep.subr.mxu0 0.0
      %8282 = vmatpush1.msra.mxu0 %v8097
      %8283 = vmatprep.subr.mxu0 0.0
      %8284 = vmatpush1.msra.mxu0 %v8099
      %8285 = vmatprep.subr.mxu0 0.0
      %8286 = vmatpush1.msra.mxu0 %v8101
      %8287 = vmatprep.subr.mxu0 0.0
      %8288 = vmatpush1.msra.mxu0 %v8103
      %8289 = vmatprep.subr.mxu0 0.0
      %8290 = vmatpush1.msra.mxu0 %v8105
      %8291 = vmatprep.subr.mxu0 0.0
      %8292 = vmatpush1.msra.mxu0 %v8107
      %8293 = vmatprep.subr.mxu0 0.0
      %8294 = vmatpush1.msra.mxu0 %v8109
      %8295 = vmatprep.subr.mxu0 0.0
      %8296 = vmatpush1.msra.mxu0 %v8111
      %8297 = vmatprep.subr.mxu0 0.0
      %8298 = vmatpush1.msra.mxu0 %v8113
      %8299 = vmatprep.subr.mxu0 0.0
      %8300 = vmatpush1.msra.mxu0 %v8115
      %8301 = vmatprep.subr.mxu0 0.0
      %8302 = vmatpush1.msra.mxu0 %v8117
      %8303 = vmatprep.subr.mxu0 0.0
      %8304 = vmatpush1.msra.mxu0 %v8119
      %8305 = vmatprep.mubr.f32.mxu0 %v3826
      %8306 = vmatmul.mubr.f32.gmra.mrb[0].mxu0 %v3825
      %v8307 = vpop.f32.mrb[0].mxu0
      %v8308 = vadd.f32 %v8203, %v8307
      %v8309 = vpop.f32.mrb[0].mxu0
      %8310 = vmatprep.mubr.f32.mxu0 %v3830
      %8311 = vmatmul.mubr.f32.gmra.mrb[0].mxu0 %v3829
      %v8312 = vpop.f32.mrb[0].mxu0
      %v8313 = vadd.f32 %v8208, %v8312
      %v8314 = vpop.f32.mrb[0].mxu0
      %8315 = vmatprep.mubr.f32.mxu0 %v3834
      %8316 = vmatmul.mubr.f32.gmra.mrb[0].mxu0 %v3833
      %v8317 = vpop.f32.mrb[0].mxu0
      %v8318 = vadd.f32 %v8213, %v8317
      %v8319 = vpop.f32.mrb[0].mxu0
      %8320 = vmatprep.mubr.f32.mxu0 %v3838
      %8321 = vmatmul.mubr.f32.gmra.mrb[0].mxu0 %v3837
      %v8322 = vpop.f32.mrb[0].mxu0
      %v8323 = vadd.f32 %v8218, %v8322
      %v8324 = vpop.f32.mrb[0].mxu0
      %8325 = vmatprep.mubr.f32.mxu0 %v3842
      %8326 = vmatmul.mubr.f32.gmra.mrb[0].mxu0 %v3841
      %v8327 = vpop.f32.mrb[0].mxu0
      %v8328 = vadd.f32 %v8223, %v8327
      %v8329 = vpop.f32.mrb[0].mxu0
      %8330 = vmatprep.mubr.f32.mxu0 %v3846
      %8331 = vmatmul.mubr.f32.gmra.mrb[0].mxu0 %v3845
      %v8332 = vpop.f32.mrb[0].mxu0
      %v8333 = vadd.f32 %v8228, %v8332
      %v8334 = vpop.f32.mrb[0].mxu0
      %8335 = vmatprep.mubr.f32.mxu0 %v3850
      %8336 = vmatmul.mubr.f32.gmra.mrb[0].mxu0 %v3849
      %v8337 = vpop.f32.mrb[0].mxu0
      %v8338 = vadd.f32 %v8233, %v8337
      %v8339 = vpop.f32.mrb[0].mxu0
      %8340 = vmatprep.mubr.f32.mxu0 %v3854
      %8341 = vmatmul.mubr.f32.gmra.mrb[0].mxu0 %v3853
      %v8342 = vpop.f32.mrb[0].mxu0
      %v8343 = vadd.f32 %v8238, %v8342
      %v8344 = vpop.f32.mrb[0].mxu0
      %8345 = vdwg.mxu0
      %vm8346 = vcmp.ge.f32.partialorder %v8308, 0.0
      %vm8347 = vcmp.ge.f32.partialorder %v8313, 0.0
      %vm8348 = vcmp.ge.f32.partialorder %v8318, 0.0
      %vm8349 = vcmp.ge.f32.partialorder %v8323, 0.0
      %vm8350 = vcmp.ge.f32.partialorder %v8328, 0.0
      %vm8351 = vcmp.ge.f32.partialorder %v8333, 0.0
      %vm8352 = vcmp.ge.f32.partialorder %v8338, 0.0
      %vm8353 = vcmp.ge.f32.partialorder %v8343, 0.0
      %v8354 = vmul.f32 %v8308, 0.2
      %v8355 = vmul.f32 %v8313, 0.2
      %v8356 = vmul.f32 %v8318, 0.2
      %v8357 = vmul.f32 %v8323, 0.2
      %v8358 = vmul.f32 %v8328, 0.2
      %v8359 = vmul.f32 %v8333, 0.2
      %v8360 = vmul.f32 %v8338, 0.2
      %v8361 = vmul.f32 %v8343, 0.2
      %v8362 = vsel %vm8346, %v8308, %v8354
      %v8363 = vsel %vm8347, %v8313, %v8355
      %v8364 = vsel %vm8348, %v8318, %v8356
      %v8365 = vsel %vm8349, %v8323, %v8357
      %v8366 = vsel %vm8350, %v8328, %v8358
      %v8367 = vsel %vm8351, %v8333, %v8359
      %v8368 = vsel %vm8352, %v8338, %v8360
      %v8369 = vsel %vm8353, %v8343, %v8361
      %s8370 = scalar_lea.vmem %s18, 1536
      %v8371 = vld [vmem:[%s8370] sm:$0xff]
      %v8372 = vld [vmem:[%s8370 + $0x8] sm:$0xff]
      %v8373 = vld [vmem:[%s8370 + $0x10] sm:$0xff]
      %v8374 = vld [vmem:[%s8370 + $0x18] sm:$0xff]
      %v8375 = vld [vmem:[%s8370 + $0x20] sm:$0xff]
      %v8376 = vld [vmem:[%s8370 + $0x28] sm:$0xff]
      %v8377 = vld [vmem:[%s8370 + $0x30] sm:$0xff]
      %v8378 = vld [vmem:[%s8370 + $0x38] sm:$0xff]
      %v8379 = vld [vmem:[%s8370 + $0x40] sm:$0xff]
      %v8380 = vld [vmem:[%s8370 + $0x48] sm:$0xff]
      %v8381 = vld [vmem:[%s8370 + $0x50] sm:$0xff]
      %v8382 = vld [vmem:[%s8370 + $0x58] sm:$0xff]
      %v8383 = vld [vmem:[%s8370 + $0x60] sm:$0xff]
      %v8384 = vld [vmem:[%s8370 + $0x68] sm:$0xff]
      %v8385 = vld [vmem:[%s8370 + $0x70] sm:$0xff]
      %v8386 = vld [vmem:[%s8370 + $0x78] sm:$0xff]
      %v8388 = vsel %vm4153, %v8371, 0
      %v8391 = vsel %vm4153, %v8372, 0
      %v8394 = vsel %vm4153, %v8373, 0
      %v8397 = vsel %vm4153, %v8374, 0
      %v8400 = vsel %vm4153, %v8375, 0
      %v8403 = vsel %vm4153, %v8376, 0
      %v8406 = vsel %vm4153, %v8377, 0
      %v8409 = vsel %vm4153, %v8378, 0
      %v8412 = vsel %vm4153, %v8379, 0
      %v8415 = vsel %vm4153, %v8380, 0
      %v8418 = vsel %vm4153, %v8381, 0
      %v8421 = vsel %vm4153, %v8382, 0
      %v8424 = vsel %vm4153, %v8383, 0
      %v8427 = vsel %vm4153, %v8384, 0
      %v8430 = vsel %vm4153, %v8385, 0
      %v8433 = vsel %vm4153, %v8386, 0
      %8435 = vmatprep.subr.mxu0 0.0
      %8436 = vmatpush1.msra.mxu0 %v8362
      %8437 = vmatprep.subr.mxu0 0.0
      %8438 = vmatpush1.msra.mxu0 %v8363
      %8439 = vmatprep.subr.mxu0 0.0
      %8440 = vmatpush1.msra.mxu0 %v8364
      %8441 = vmatprep.subr.mxu0 0.0
      %8442 = vmatpush1.msra.mxu0 %v8365
      %8443 = vmatprep.subr.mxu0 0.0
      %8444 = vmatpush1.msra.mxu0 %v8366
      %8445 = vmatprep.subr.mxu0 0.0
      %8446 = vmatpush1.msra.mxu0 %v8367
      %8447 = vmatprep.subr.mxu0 0.0
      %8448 = vmatpush1.msra.mxu0 %v8368
      %8449 = vmatprep.subr.mxu0 0.0
      %8450 = vmatpush1.msra.mxu0 %v8369
      %8451 = vmatprep.subr.mxu0 0.0
      %8452 = vmatpush1.msra.mxu0 0.0
      %8453 = vmatprep.subr.mxu0 0.0
      %8454 = vmatpush1.msra.mxu0 0.0
      %8455 = vmatprep.subr.mxu0 0.0
      %8456 = vmatpush1.msra.mxu0 0.0
      %8457 = vmatprep.subr.mxu0 0.0
      %8458 = vmatpush1.msra.mxu0 0.0
      %8459 = vmatprep.subr.mxu0 0.0
      %8460 = vmatpush1.msra.mxu0 0.0
      %8461 = vmatprep.subr.mxu0 0.0
      %8462 = vmatpush1.msra.mxu0 0.0
      %8463 = vmatprep.subr.mxu0 0.0
      %8464 = vmatpush1.msra.mxu0 0.0
      %8465 = vmatprep.subr.mxu0 0.0
      %8466 = vmatpush1.msra.mxu0 0.0
      %8467 = vmatprep.subr.mxu0 0.0
      %8468 = vmatpush1.msra.mxu0 0.0
      %8469 = vmatprep.subr.mxu0 0.0
      %8470 = vmatpush1.msra.mxu0 0.0
      %8471 = vmatprep.subr.mxu0 0.0
      %8472 = vmatpush1.msra.mxu0 0.0
      %8473 = vmatprep.subr.mxu0 0.0
      %8474 = vmatpush1.msra.mxu0 0.0
      %8475 = vmatprep.subr.mxu0 0.0
      %8476 = vmatpush1.msra.mxu0 0.0
      %8477 = vmatprep.subr.mxu0 0.0
      %8478 = vmatpush1.msra.mxu0 0.0
      %8479 = vmatprep.subr.mxu0 0.0
      %8480 = vmatpush1.msra.mxu0 0.0
      %8481 = vmatprep.subr.mxu0 0.0
      %8482 = vmatpush1.msra.mxu0 0.0
      %8483 = vmatprep.subr.mxu0 0.0
      %8484 = vmatpush1.msra.mxu0 0.0
      %8485 = vmatprep.subr.mxu0 0.0
      %8486 = vmatpush1.msra.mxu0 0.0
      %8487 = vmatprep.subr.mxu0 0.0
      %8488 = vmatpush1.msra.mxu0 0.0
      %8489 = vmatprep.subr.mxu0 0.0
      %8490 = vmatpush1.msra.mxu0 0.0
      %8491 = vmatprep.subr.mxu0 0.0
      %8492 = vmatpush1.msra.mxu0 0.0
      %8493 = vmatprep.subr.mxu0 0.0
      %8494 = vmatpush1.msra.mxu0 0.0
      %8495 = vmatprep.subr.mxu0 0.0
      %8496 = vmatpush1.msra.mxu0 0.0
      %8497 = vmatprep.subr.mxu0 0.0
      %8498 = vmatpush1.msra.mxu0 0.0
      %8499 = vmatprep.mubr.f32.mxu0 0.0
      %8500 = vmatmul.mubr.f32.gmra.mrb[0].mxu0 %v8388
      %v8501 = vpop.f32.mrb[0].mxu0
      %v8502 = vadd.f32 0.0, %v8501
      %v8503 = vpop.f32.mrb[0].mxu0
      %8504 = vmatprep.mubr.f32.mxu0 0.0
      %8505 = vmatmul.mubr.f32.gmra.mrb[0].mxu0 %v8391
      %v8506 = vpop.f32.mrb[0].mxu0
      %v8507 = vadd.f32 0.0, %v8506
      %v8508 = vpop.f32.mrb[0].mxu0
      %8509 = vmatprep.mubr.f32.mxu0 0.0
      %8510 = vmatmul.mubr.f32.gmra.mrb[0].mxu0 %v8394
      %v8511 = vpop.f32.mrb[0].mxu0
      %v8512 = vadd.f32 0.0, %v8511
      %v8513 = vpop.f32.mrb[0].mxu0
      %8514 = vmatprep.mubr.f32.mxu0 0.0
      %8515 = vmatmul.mubr.f32.gmra.mrb[0].mxu0 %v8397
      %v8516 = vpop.f32.mrb[0].mxu0
      %v8517 = vadd.f32 0.0, %v8516
      %v8518 = vpop.f32.mrb[0].mxu0
      %8519 = vmatprep.mubr.f32.mxu0 0.0
      %8520 = vmatmul.mubr.f32.gmra.mrb[0].mxu0 %v8400
      %v8521 = vpop.f32.mrb[0].mxu0
      %v8522 = vadd.f32 0.0, %v8521
      %v8523 = vpop.f32.mrb[0].mxu0
      %8524 = vmatprep.mubr.f32.mxu0 0.0
      %8525 = vmatmul.mubr.f32.gmra.mrb[0].mxu0 %v8403
      %v8526 = vpop.f32.mrb[0].mxu0
      %v8527 = vadd.f32 0.0, %v8526
      %v8528 = vpop.f32.mrb[0].mxu0
      %8529 = vmatprep.mubr.f32.mxu0 0.0
      %8530 = vmatmul.mubr.f32.gmra.mrb[0].mxu0 %v8406
      %v8531 = vpop.f32.mrb[0].mxu0
      %v8532 = vadd.f32 0.0, %v8531
      %v8533 = vpop.f32.mrb[0].mxu0
      %8534 = vmatprep.mubr.f32.mxu0 0.0
      %8535 = vmatmul.mubr.f32.gmra.mrb[0].mxu0 %v8409
      %v8536 = vpop.f32.mrb[0].mxu0
      %v8537 = vadd.f32 0.0, %v8536
      %v8538 = vpop.f32.mrb[0].mxu0
      %8539 = vmatprep.mubr.f32.mxu0 0.0
      %8540 = vmatmul.mubr.f32.gmra.mrb[0].mxu0 %v8412
      %v8541 = vpop.f32.mrb[0].mxu0
      %v8542 = vadd.f32 0.0, %v8541
      %v8543 = vpop.f32.mrb[0].mxu0
      %8544 = vmatprep.mubr.f32.mxu0 0.0
      %8545 = vmatmul.mubr.f32.gmra.mrb[0].mxu0 %v8415
      %v8546 = vpop.f32.mrb[0].mxu0
      %v8547 = vadd.f32 0.0, %v8546
      %v8548 = vpop.f32.mrb[0].mxu0
      %8549 = vmatprep.mubr.f32.mxu0 0.0
      %8550 = vmatmul.mubr.f32.gmra.mrb[0].mxu0 %v8418
      %v8551 = vpop.f32.mrb[0].mxu0
      %v8552 = vadd.f32 0.0, %v8551
      %v8553 = vpop.f32.mrb[0].mxu0
      %8554 = vmatprep.mubr.f32.mxu0 0.0
      %8555 = vmatmul.mubr.f32.gmra.mrb[0].mxu0 %v8421
      %v8556 = vpop.f32.mrb[0].mxu0
      %v8557 = vadd.f32 0.0, %v8556
      %v8558 = vpop.f32.mrb[0].mxu0
      %8559 = vmatprep.mubr.f32.mxu0 0.0
      %8560 = vmatmul.mubr.f32.gmra.mrb[0].mxu0 %v8424
      %v8561 = vpop.f32.mrb[0].mxu0
      %v8562 = vadd.f32 0.0, %v8561
      %v8563 = vpop.f32.mrb[0].mxu0
      %8564 = vmatprep.mubr.f32.mxu0 0.0
      %8565 = vmatmul.mubr.f32.gmra.mrb[0].mxu0 %v8427
      %v8566 = vpop.f32.mrb[0].mxu0
      %v8567 = vadd.f32 0.0, %v8566
      %v8568 = vpop.f32.mrb[0].mxu0
      %8569 = vmatprep.mubr.f32.mxu0 0.0
      %8570 = vmatmul.mubr.f32.gmra.mrb[0].mxu0 %v8430
      %v8571 = vpop.f32.mrb[0].mxu0
      %v8572 = vadd.f32 0.0, %v8571
      %v8573 = vpop.f32.mrb[0].mxu0
      %8574 = vmatprep.mubr.f32.mxu0 0.0
      %8575 = vmatmul.mubr.f32.gmra.mrb[0].mxu0 %v8433
      %v8576 = vpop.f32.mrb[0].mxu0
      %v8577 = vadd.f32 0.0, %v8576
      %v8578 = vpop.f32.mrb[0].mxu0
      %8579 = vdwg.mxu0
      %v8580 = vadd.f32 %v8039, %v8502
      %v8581 = vadd.f32 %v8040, %v8507
      %v8582 = vadd.f32 %v8041, %v8512
      %v8583 = vadd.f32 %v8042, %v8517
      %v8584 = vadd.f32 %v8043, %v8522
      %v8585 = vadd.f32 %v8044, %v8527
      %v8586 = vadd.f32 %v8045, %v8532
      %v8587 = vadd.f32 %v8046, %v8537
      %v8588 = vadd.f32 %v8047, %v8542
      %v8589 = vadd.f32 %v8048, %v8547
      %v8590 = vadd.f32 %v8049, %v8552
      %v8591 = vadd.f32 %v8050, %v8557
      %v8592 = vadd.f32 %v8051, %v8562
      %v8593 = vadd.f32 %v8052, %v8567
      %v8594 = vadd.f32 %v8053, %v8572
      %v8595 = vadd.f32 %v8054, %v8577
      %s8596 = scalar_lea.vmem %s18, 1664
      %v8597 = vld [vmem:[%s8596] sm:$0xff]
      %v8598 = vld [vmem:[%s8596 + $0x8] sm:$0xff]
      %v8599 = vld [vmem:[%s8596 + $0x10] sm:$0xff]
      %v8600 = vld [vmem:[%s8596 + $0x18] sm:$0xff]
      %v8601 = vld [vmem:[%s8596 + $0x20] sm:$0xff]
      %v8602 = vld [vmem:[%s8596 + $0x28] sm:$0xff]
      %v8603 = vld [vmem:[%s8596 + $0x30] sm:$0xff]
      %v8604 = vld [vmem:[%s8596 + $0x38] sm:$0xff]
      %v8605 = vld [vmem:[%s8596 + $0x40] sm:$0xff]
      %v8606 = vld [vmem:[%s8596 + $0x48] sm:$0xff]
      %v8607 = vld [vmem:[%s8596 + $0x50] sm:$0xff]
      %v8608 = vld [vmem:[%s8596 + $0x58] sm:$0xff]
      %v8609 = vld [vmem:[%s8596 + $0x60] sm:$0xff]
      %v8610 = vld [vmem:[%s8596 + $0x68] sm:$0xff]
      %v8611 = vld [vmem:[%s8596 + $0x70] sm:$0xff]
      %v8612 = vld [vmem:[%s8596 + $0x78] sm:$0xff]
      %v8614 = vsel %vm4153, %v8597, 0
      %v8617 = vsel %vm4153, %v8598, 0
      %v8620 = vsel %vm4153, %v8599, 0
      %v8623 = vsel %vm4153, %v8600, 0
      %v8626 = vsel %vm4153, %v8601, 0
      %v8629 = vsel %vm4153, %v8602, 0
      %v8632 = vsel %vm4153, %v8603, 0
      %v8635 = vsel %vm4153, %v8604, 0
      %v8638 = vsel %vm4153, %v8605, 0
      %v8641 = vsel %vm4153, %v8606, 0
      %v8644 = vsel %vm4153, %v8607, 0
      %v8647 = vsel %vm4153, %v8608, 0
      %v8650 = vsel %vm4153, %v8609, 0
      %v8653 = vsel %vm4153, %v8610, 0
      %v8656 = vsel %vm4153, %v8611, 0
      %v8659 = vsel %vm4153, %v8612, 0
      %8661 = vmatprep.subr.mxu0 0.0
      %8662 = vmatpush1.msra.mxu0 %v8362
      %8663 = vmatprep.subr.mxu0 0.0
      %8664 = vmatpush1.msra.mxu0 %v8363
      %8665 = vmatprep.subr.mxu0 0.0
      %8666 = vmatpush1.msra.mxu0 %v8364
      %8667 = vmatprep.subr.mxu0 0.0
      %8668 = vmatpush1.msra.mxu0 %v8365
      %8669 = vmatprep.subr.mxu0 0.0
      %8670 = vmatpush1.msra.mxu0 %v8366
      %8671 = vmatprep.subr.mxu0 0.0
      %8672 = vmatpush1.msra.mxu0 %v8367
      %8673 = vmatprep.subr.mxu0 0.0
      %8674 = vmatpush1.msra.mxu0 %v8368
      %8675 = vmatprep.subr.mxu0 0.0
      %8676 = vmatpush1.msra.mxu0 %v8369
      %8677 = vmatprep.subr.mxu0 0.0
      %8678 = vmatpush1.msra.mxu0 0.0
      %8679 = vmatprep.subr.mxu0 0.0
      %8680 = vmatpush1.msra.mxu0 0.0
      %8681 = vmatprep.subr.mxu0 0.0
      %8682 = vmatpush1.msra.mxu0 0.0
      %8683 = vmatprep.subr.mxu0 0.0
      %8684 = vmatpush1.msra.mxu0 0.0
      %8685 = vmatprep.subr.mxu0 0.0
      %8686 = vmatpush1.msra.mxu0 0.0
      %8687 = vmatprep.subr.mxu0 0.0
      %8688 = vmatpush1.msra.mxu0 0.0
      %8689 = vmatprep.subr.mxu0 0.0
      %8690 = vmatpush1.msra.mxu0 0.0
      %8691 = vmatprep.subr.mxu0 0.0
      %8692 = vmatpush1.msra.mxu0 0.0
      %8693 = vmatprep.subr.mxu0 0.0
      %8694 = vmatpush1.msra.mxu0 0.0
      %8695 = vmatprep.subr.mxu0 0.0
      %8696 = vmatpush1.msra.mxu0 0.0
      %8697 = vmatprep.subr.mxu0 0.0
      %8698 = vmatpush1.msra.mxu0 0.0
      %8699 = vmatprep.subr.mxu0 0.0
      %8700 = vmatpush1.msra.mxu0 0.0
      %8701 = vmatprep.subr.mxu0 0.0
      %8702 = vmatpush1.msra.mxu0 0.0
      %8703 = vmatprep.subr.mxu0 0.0
      %8704 = vmatpush1.msra.mxu0 0.0
      %8705 = vmatprep.subr.mxu0 0.0
      %8706 = vmatpush1.msra.mxu0 0.0
      %8707 = vmatprep.subr.mxu0 0.0
      %8708 = vmatpush1.msra.mxu0 0.0
      %8709 = vmatprep.subr.mxu0 0.0
      %8710 = vmatpush1.msra.mxu0 0.0
      %8711 = vmatprep.subr.mxu0 0.0
      %8712 = vmatpush1.msra.mxu0 0.0
      %8713 = vmatprep.subr.mxu0 0.0
      %8714 = vmatpush1.msra.mxu0 0.0
      %8715 = vmatprep.subr.mxu0 0.0
      %8716 = vmatpush1.msra.mxu0 0.0
      %8717 = vmatprep.subr.mxu0 0.0
      %8718 = vmatpush1.msra.mxu0 0.0
      %8719 = vmatprep.subr.mxu0 0.0
      %8720 = vmatpush1.msra.mxu0 0.0
      %8721 = vmatprep.subr.mxu0 0.0
      %8722 = vmatpush1.msra.mxu0 0.0
      %8723 = vmatprep.subr.mxu0 0.0
      %8724 = vmatpush1.msra.mxu0 0.0
      %8725 = vmatprep.mubr.f32.mxu0 0.0
      %8726 = vmatmul.mubr.f32.gmra.mrb[0].mxu0 %v8614
      %v8727 = vpop.f32.mrb[0].mxu0
      %v8728 = vadd.f32 0.0, %v8727
      %v8729 = vpop.f32.mrb[0].mxu0
      %8730 = vmatprep.mubr.f32.mxu0 0.0
      %8731 = vmatmul.mubr.f32.gmra.mrb[0].mxu0 %v8617
      %v8732 = vpop.f32.mrb[0].mxu0
      %v8733 = vadd.f32 0.0, %v8732
      %v8734 = vpop.f32.mrb[0].mxu0
      %8735 = vmatprep.mubr.f32.mxu0 0.0
      %8736 = vmatmul.mubr.f32.gmra.mrb[0].mxu0 %v8620
      %v8737 = vpop.f32.mrb[0].mxu0
      %v8738 = vadd.f32 0.0, %v8737
      %v8739 = vpop.f32.mrb[0].mxu0
      %8740 = vmatprep.mubr.f32.mxu0 0.0
      %8741 = vmatmul.mubr.f32.gmra.mrb[0].mxu0 %v8623
      %v8742 = vpop.f32.mrb[0].mxu0
      %v8743 = vadd.f32 0.0, %v8742
      %v8744 = vpop.f32.mrb[0].mxu0
      %8745 = vmatprep.mubr.f32.mxu0 0.0
      %8746 = vmatmul.mubr.f32.gmra.mrb[0].mxu0 %v8626
      %v8747 = vpop.f32.mrb[0].mxu0
      %v8748 = vadd.f32 0.0, %v8747
      %v8749 = vpop.f32.mrb[0].mxu0
      %8750 = vmatprep.mubr.f32.mxu0 0.0
      %8751 = vmatmul.mubr.f32.gmra.mrb[0].mxu0 %v8629
      %v8752 = vpop.f32.mrb[0].mxu0
      %v8753 = vadd.f32 0.0, %v8752
      %v8754 = vpop.f32.mrb[0].mxu0
      %8755 = vmatprep.mubr.f32.mxu0 0.0
      %8756 = vmatmul.mubr.f32.gmra.mrb[0].mxu0 %v8632
      %v8757 = vpop.f32.mrb[0].mxu0
      %v8758 = vadd.f32 0.0, %v8757
      %v8759 = vpop.f32.mrb[0].mxu0
      %8760 = vmatprep.mubr.f32.mxu0 0.0
      %8761 = vmatmul.mubr.f32.gmra.mrb[0].mxu0 %v8635
      %v8762 = vpop.f32.mrb[0].mxu0
      %v8763 = vadd.f32 0.0, %v8762
      %v8764 = vpop.f32.mrb[0].mxu0
      %8765 = vmatprep.mubr.f32.mxu0 0.0
      %8766 = vmatmul.mubr.f32.gmra.mrb[0].mxu0 %v8638
      %v8767 = vpop.f32.mrb[0].mxu0
      %v8768 = vadd.f32 0.0, %v8767
      %v8769 = vpop.f32.mrb[0].mxu0
      %8770 = vmatprep.mubr.f32.mxu0 0.0
      %8771 = vmatmul.mubr.f32.gmra.mrb[0].mxu0 %v8641
      %v8772 = vpop.f32.mrb[0].mxu0
      %v8773 = vadd.f32 0.0, %v8772
      %v8774 = vpop.f32.mrb[0].mxu0
      %8775 = vmatprep.mubr.f32.mxu0 0.0
      %8776 = vmatmul.mubr.f32.gmra.mrb[0].mxu0 %v8644
      %v8777 = vpop.f32.mrb[0].mxu0
      %v8778 = vadd.f32 0.0, %v8777
      %v8779 = vpop.f32.mrb[0].mxu0
      %8780 = vmatprep.mubr.f32.mxu0 0.0
      %8781 = vmatmul.mubr.f32.gmra.mrb[0].mxu0 %v8647
      %v8782 = vpop.f32.mrb[0].mxu0
      %v8783 = vadd.f32 0.0, %v8782
      %v8784 = vpop.f32.mrb[0].mxu0
      %8785 = vmatprep.mubr.f32.mxu0 0.0
      %8786 = vmatmul.mubr.f32.gmra.mrb[0].mxu0 %v8650
      %v8787 = vpop.f32.mrb[0].mxu0
      %v8788 = vadd.f32 0.0, %v8787
      %v8789 = vpop.f32.mrb[0].mxu0
      %8790 = vmatprep.mubr.f32.mxu0 0.0
      %8791 = vmatmul.mubr.f32.gmra.mrb[0].mxu0 %v8653
      %v8792 = vpop.f32.mrb[0].mxu0
      %v8793 = vadd.f32 0.0, %v8792
      %v8794 = vpop.f32.mrb[0].mxu0
      %8795 = vmatprep.mubr.f32.mxu0 0.0
      %8796 = vmatmul.mubr.f32.gmra.mrb[0].mxu0 %v8656
      %v8797 = vpop.f32.mrb[0].mxu0
      %v8798 = vadd.f32 0.0, %v8797
      %v8799 = vpop.f32.mrb[0].mxu0
      %8800 = vmatprep.mubr.f32.mxu0 0.0
      %8801 = vmatmul.mubr.f32.gmra.mrb[0].mxu0 %v8659
      %v8802 = vpop.f32.mrb[0].mxu0
      %v8803 = vadd.f32 0.0, %v8802
      %v8804 = vpop.f32.mrb[0].mxu0
      %8805 = vdwg.mxu0
      %8822 = vrot.lane.b32.xlu0 %v8728, 127
      %v8823 = vpop.permute.xlu0 %8822
      %8824 = vrot.lane.b32.xlu0 %v8733, 127
      %v8825 = vpop.permute.xlu0 %8824
      %8826 = vrot.lane.b32.xlu0 %v8738, 127
      %v8827 = vpop.permute.xlu0 %8826
      %8828 = vrot.lane.b32.xlu0 %v8743, 127
      %v8829 = vpop.permute.xlu0 %8828
      %8830 = vrot.lane.b32.xlu0 %v8748, 127
      %v8831 = vpop.permute.xlu0 %8830
      %8832 = vrot.lane.b32.xlu0 %v8753, 127
      %v8833 = vpop.permute.xlu0 %8832
      %8834 = vrot.lane.b32.xlu0 %v8758, 127
      %v8835 = vpop.permute.xlu0 %8834
      %8836 = vrot.lane.b32.xlu0 %v8763, 127
      %v8837 = vpop.permute.xlu0 %8836
      %8838 = vrot.lane.b32.xlu0 %v8768, 127
      %v8839 = vpop.permute.xlu0 %8838
      %8840 = vrot.lane.b32.xlu0 %v8773, 127
      %v8841 = vpop.permute.xlu0 %8840
      %8842 = vrot.lane.b32.xlu0 %v8778, 127
      %v8843 = vpop.permute.xlu0 %8842
      %8844 = vrot.lane.b32.xlu0 %v8783, 127
      %v8845 = vpop.permute.xlu0 %8844
      %8846 = vrot.lane.b32.xlu0 %v8788, 127
      %v8847 = vpop.permute.xlu0 %8846
      %8848 = vrot.lane.b32.xlu0 %v8793, 127
      %v8849 = vpop.permute.xlu0 %8848
      %8850 = vrot.lane.b32.xlu0 %v8798, 127
      %v8851 = vpop.permute.xlu0 %8850
      %8852 = vrot.lane.b32.xlu0 %v8803, 127
      %v8853 = vpop.permute.xlu0 %8852
      %v8870 = vadd.f32 %v8580, %v8823
      %v8871 = vadd.f32 %v8581, %v8825
      %v8872 = vadd.f32 %v8582, %v8827
      %v8873 = vadd.f32 %v8583, %v8829
      %v8874 = vadd.f32 %v8584, %v8831
      %v8875 = vadd.f32 %v8585, %v8833
      %v8876 = vadd.f32 %v8586, %v8835
      %v8877 = vadd.f32 %v8587, %v8837
      %v8878 = vadd.f32 %v8588, %v8839
      %v8879 = vadd.f32 %v8589, %v8841
      %v8880 = vadd.f32 %v8590, %v8843
      %v8881 = vadd.f32 %v8591, %v8845
      %v8882 = vadd.f32 %v8592, %v8847
      %v8883 = vadd.f32 %v8593, %v8849
      %v8884 = vadd.f32 %v8594, %v8851
      %v8885 = vadd.f32 %v8595, %v8853
      %s8886 = scalar_lea.vmem %s18, 1792
      %v8887 = vld [vmem:[%s8886] sm:$0xff]
      %v8888 = vld [vmem:[%s8886 + $0x8] sm:$0xff]
      %v8889 = vld [vmem:[%s8886 + $0x10] sm:$0xff]
      %v8890 = vld [vmem:[%s8886 + $0x18] sm:$0xff]
      %v8891 = vld [vmem:[%s8886 + $0x20] sm:$0xff]
      %v8892 = vld [vmem:[%s8886 + $0x28] sm:$0xff]
      %v8893 = vld [vmem:[%s8886 + $0x30] sm:$0xff]
      %v8894 = vld [vmem:[%s8886 + $0x38] sm:$0xff]
      %v8895 = vld [vmem:[%s8886 + $0x40] sm:$0xff]
      %v8896 = vld [vmem:[%s8886 + $0x48] sm:$0xff]
      %v8897 = vld [vmem:[%s8886 + $0x50] sm:$0xff]
      %v8898 = vld [vmem:[%s8886 + $0x58] sm:$0xff]
      %v8899 = vld [vmem:[%s8886 + $0x60] sm:$0xff]
      %v8900 = vld [vmem:[%s8886 + $0x68] sm:$0xff]
      %v8901 = vld [vmem:[%s8886 + $0x70] sm:$0xff]
      %v8902 = vld [vmem:[%s8886 + $0x78] sm:$0xff]
      %v8904 = vsel %vm4153, %v8887, 0
      %v8907 = vsel %vm4153, %v8888, 0
      %v8910 = vsel %vm4153, %v8889, 0
      %v8913 = vsel %vm4153, %v8890, 0
      %v8916 = vsel %vm4153, %v8891, 0
      %v8919 = vsel %vm4153, %v8892, 0
      %v8922 = vsel %vm4153, %v8893, 0
      %v8925 = vsel %vm4153, %v8894, 0
      %v8928 = vsel %vm4153, %v8895, 0
      %v8931 = vsel %vm4153, %v8896, 0
      %v8934 = vsel %vm4153, %v8897, 0
      %v8937 = vsel %vm4153, %v8898, 0
      %v8940 = vsel %vm4153, %v8899, 0
      %v8943 = vsel %vm4153, %v8900, 0
      %v8946 = vsel %vm4153, %v8901, 0
      %v8949 = vsel %vm4153, %v8902, 0
      %8951 = vmatprep.subr.mxu0 0.0
      %8952 = vmatpush1.msra.mxu0 %v8362
      %8953 = vmatprep.subr.mxu0 0.0
      %8954 = vmatpush1.msra.mxu0 %v8363
      %8955 = vmatprep.subr.mxu0 0.0
      %8956 = vmatpush1.msra.mxu0 %v8364
      %8957 = vmatprep.subr.mxu0 0.0
      %8958 = vmatpush1.msra.mxu0 %v8365
      %8959 = vmatprep.subr.mxu0 0.0
      %8960 = vmatpush1.msra.mxu0 %v8366
      %8961 = vmatprep.subr.mxu0 0.0
      %8962 = vmatpush1.msra.mxu0 %v8367
      %8963 = vmatprep.subr.mxu0 0.0
      %8964 = vmatpush1.msra.mxu0 %v8368
      %8965 = vmatprep.subr.mxu0 0.0
      %8966 = vmatpush1.msra.mxu0 %v8369
      %8967 = vmatprep.subr.mxu0 0.0
      %8968 = vmatpush1.msra.mxu0 0.0
      %8969 = vmatprep.subr.mxu0 0.0
      %8970 = vmatpush1.msra.mxu0 0.0
      %8971 = vmatprep.subr.mxu0 0.0
      %8972 = vmatpush1.msra.mxu0 0.0
      %8973 = vmatprep.subr.mxu0 0.0
      %8974 = vmatpush1.msra.mxu0 0.0
      %8975 = vmatprep.subr.mxu0 0.0
      %8976 = vmatpush1.msra.mxu0 0.0
      %8977 = vmatprep.subr.mxu0 0.0
      %8978 = vmatpush1.msra.mxu0 0.0
      %8979 = vmatprep.subr.mxu0 0.0
      %8980 = vmatpush1.msra.mxu0 0.0
      %8981 = vmatprep.subr.mxu0 0.0
      %8982 = vmatpush1.msra.mxu0 0.0
      %8983 = vmatprep.subr.mxu0 0.0
      %8984 = vmatpush1.msra.mxu0 0.0
      %8985 = vmatprep.subr.mxu0 0.0
      %8986 = vmatpush1.msra.mxu0 0.0
      %8987 = vmatprep.subr.mxu0 0.0
      %8988 = vmatpush1.msra.mxu0 0.0
      %8989 = vmatprep.subr.mxu0 0.0
      %8990 = vmatpush1.msra.mxu0 0.0
      %8991 = vmatprep.subr.mxu0 0.0
      %8992 = vmatpush1.msra.mxu0 0.0
      %8993 = vmatprep.subr.mxu0 0.0
      %8994 = vmatpush1.msra.mxu0 0.0
      %8995 = vmatprep.subr.mxu0 0.0
      %8996 = vmatpush1.msra.mxu0 0.0
      %8997 = vmatprep.subr.mxu0 0.0
      %8998 = vmatpush1.msra.mxu0 0.0
      %8999 = vmatprep.subr.mxu0 0.0
      %9000 = vmatpush1.msra.mxu0 0.0
      %9001 = vmatprep.subr.mxu0 0.0
      %9002 = vmatpush1.msra.mxu0 0.0
      %9003 = vmatprep.subr.mxu0 0.0
      %9004 = vmatpush1.msra.mxu0 0.0
      %9005 = vmatprep.subr.mxu0 0.0
      %9006 = vmatpush1.msra.mxu0 0.0
      %9007 = vmatprep.subr.mxu0 0.0
      %9008 = vmatpush1.msra.mxu0 0.0
      %9009 = vmatprep.subr.mxu0 0.0
      %9010 = vmatpush1.msra.mxu0 0.0
      %9011 = vmatprep.subr.mxu0 0.0
      %9012 = vmatpush1.msra.mxu0 0.0
      %9013 = vmatprep.subr.mxu0 0.0
      %9014 = vmatpush1.msra.mxu0 0.0
      %9015 = vmatprep.mubr.f32.mxu0 0.0
      %9016 = vmatmul.mubr.f32.gmra.mrb[0].mxu0 %v8904
      %v9017 = vpop.f32.mrb[0].mxu0
      %v9018 = vadd.f32 0.0, %v9017
      %v9019 = vpop.f32.mrb[0].mxu0
      %9020 = vmatprep.mubr.f32.mxu0 0.0
      %9021 = vmatmul.mubr.f32.gmra.mrb[0].mxu0 %v8907
      %v9022 = vpop.f32.mrb[0].mxu0
      %v9023 = vadd.f32 0.0, %v9022
      %v9024 = vpop.f32.mrb[0].mxu0
      %9025 = vmatprep.mubr.f32.mxu0 0.0
      %9026 = vmatmul.mubr.f32.gmra.mrb[0].mxu0 %v8910
      %v9027 = vpop.f32.mrb[0].mxu0
      %v9028 = vadd.f32 0.0, %v9027
      %v9029 = vpop.f32.mrb[0].mxu0
      %9030 = vmatprep.mubr.f32.mxu0 0.0
      %9031 = vmatmul.mubr.f32.gmra.mrb[0].mxu0 %v8913
      %v9032 = vpop.f32.mrb[0].mxu0
      %v9033 = vadd.f32 0.0, %v9032
      %v9034 = vpop.f32.mrb[0].mxu0
      %9035 = vmatprep.mubr.f32.mxu0 0.0
      %9036 = vmatmul.mubr.f32.gmra.mrb[0].mxu0 %v8916
      %v9037 = vpop.f32.mrb[0].mxu0
      %v9038 = vadd.f32 0.0, %v9037
      %v9039 = vpop.f32.mrb[0].mxu0
      %9040 = vmatprep.mubr.f32.mxu0 0.0
      %9041 = vmatmul.mubr.f32.gmra.mrb[0].mxu0 %v8919
      %v9042 = vpop.f32.mrb[0].mxu0
      %v9043 = vadd.f32 0.0, %v9042
      %v9044 = vpop.f32.mrb[0].mxu0
      %9045 = vmatprep.mubr.f32.mxu0 0.0
      %9046 = vmatmul.mubr.f32.gmra.mrb[0].mxu0 %v8922
      %v9047 = vpop.f32.mrb[0].mxu0
      %v9048 = vadd.f32 0.0, %v9047
      %v9049 = vpop.f32.mrb[0].mxu0
      %9050 = vmatprep.mubr.f32.mxu0 0.0
      %9051 = vmatmul.mubr.f32.gmra.mrb[0].mxu0 %v8925
      %v9052 = vpop.f32.mrb[0].mxu0
      %v9053 = vadd.f32 0.0, %v9052
      %v9054 = vpop.f32.mrb[0].mxu0
      %9055 = vmatprep.mubr.f32.mxu0 0.0
      %9056 = vmatmul.mubr.f32.gmra.mrb[0].mxu0 %v8928
      %v9057 = vpop.f32.mrb[0].mxu0
      %v9058 = vadd.f32 0.0, %v9057
      %v9059 = vpop.f32.mrb[0].mxu0
      %9060 = vmatprep.mubr.f32.mxu0 0.0
      %9061 = vmatmul.mubr.f32.gmra.mrb[0].mxu0 %v8931
      %v9062 = vpop.f32.mrb[0].mxu0
      %v9063 = vadd.f32 0.0, %v9062
      %v9064 = vpop.f32.mrb[0].mxu0
      %9065 = vmatprep.mubr.f32.mxu0 0.0
      %9066 = vmatmul.mubr.f32.gmra.mrb[0].mxu0 %v8934
      %v9067 = vpop.f32.mrb[0].mxu0
      %v9068 = vadd.f32 0.0, %v9067
      %v9069 = vpop.f32.mrb[0].mxu0
      %9070 = vmatprep.mubr.f32.mxu0 0.0
      %9071 = vmatmul.mubr.f32.gmra.mrb[0].mxu0 %v8937
      %v9072 = vpop.f32.mrb[0].mxu0
      %v9073 = vadd.f32 0.0, %v9072
      %v9074 = vpop.f32.mrb[0].mxu0
      %9075 = vmatprep.mubr.f32.mxu0 0.0
      %9076 = vmatmul.mubr.f32.gmra.mrb[0].mxu0 %v8940
      %v9077 = vpop.f32.mrb[0].mxu0
      %v9078 = vadd.f32 0.0, %v9077
      %v9079 = vpop.f32.mrb[0].mxu0
      %9080 = vmatprep.mubr.f32.mxu0 0.0
      %9081 = vmatmul.mubr.f32.gmra.mrb[0].mxu0 %v8943
      %v9082 = vpop.f32.mrb[0].mxu0
      %v9083 = vadd.f32 0.0, %v9082
      %v9084 = vpop.f32.mrb[0].mxu0
      %9085 = vmatprep.mubr.f32.mxu0 0.0
      %9086 = vmatmul.mubr.f32.gmra.mrb[0].mxu0 %v8946
      %v9087 = vpop.f32.mrb[0].mxu0
      %v9088 = vadd.f32 0.0, %v9087
      %v9089 = vpop.f32.mrb[0].mxu0
      %9090 = vmatprep.mubr.f32.mxu0 0.0
      %9091 = vmatmul.mubr.f32.gmra.mrb[0].mxu0 %v8949
      %v9092 = vpop.f32.mrb[0].mxu0
      %v9093 = vadd.f32 0.0, %v9092
      %v9094 = vpop.f32.mrb[0].mxu0
      %9095 = vdwg.mxu0
      %9112 = vrot.lane.b32.xlu0 %v9018, 126
      %v9113 = vpop.permute.xlu0 %9112
      %9114 = vrot.lane.b32.xlu0 %v9023, 126
      %v9115 = vpop.permute.xlu0 %9114
      %9116 = vrot.lane.b32.xlu0 %v9028, 126
      %v9117 = vpop.permute.xlu0 %9116
      %9118 = vrot.lane.b32.xlu0 %v9033, 126
      %v9119 = vpop.permute.xlu0 %9118
      %9120 = vrot.lane.b32.xlu0 %v9038, 126
      %v9121 = vpop.permute.xlu0 %9120
      %9122 = vrot.lane.b32.xlu0 %v9043, 126
      %v9123 = vpop.permute.xlu0 %9122
      %9124 = vrot.lane.b32.xlu0 %v9048, 126
      %v9125 = vpop.permute.xlu0 %9124
      %9126 = vrot.lane.b32.xlu0 %v9053, 126
      %v9127 = vpop.permute.xlu0 %9126
      %9128 = vrot.lane.b32.xlu0 %v9058, 126
      %v9129 = vpop.permute.xlu0 %9128
      %9130 = vrot.lane.b32.xlu0 %v9063, 126
      %v9131 = vpop.permute.xlu0 %9130
      %9132 = vrot.lane.b32.xlu0 %v9068, 126
      %v9133 = vpop.permute.xlu0 %9132
      %9134 = vrot.lane.b32.xlu0 %v9073, 126
      %v9135 = vpop.permute.xlu0 %9134
      %9136 = vrot.lane.b32.xlu0 %v9078, 126
      %v9137 = vpop.permute.xlu0 %9136
      %9138 = vrot.lane.b32.xlu0 %v9083, 126
      %v9139 = vpop.permute.xlu0 %9138
      %9140 = vrot.lane.b32.xlu0 %v9088, 126
      %v9141 = vpop.permute.xlu0 %9140
      %9142 = vrot.lane.b32.xlu0 %v9093, 126
      %v9143 = vpop.permute.xlu0 %9142
      %v9160 = vadd.f32 %v8870, %v9113
      %v9161 = vadd.f32 %v8871, %v9115
      %v9162 = vadd.f32 %v8872, %v9117
      %v9163 = vadd.f32 %v8873, %v9119
      %v9164 = vadd.f32 %v8874, %v9121
      %v9165 = vadd.f32 %v8875, %v9123
      %v9166 = vadd.f32 %v8876, %v9125
      %v9167 = vadd.f32 %v8877, %v9127
      %v9168 = vadd.f32 %v8878, %v9129
      %v9169 = vadd.f32 %v8879, %v9131
      %v9170 = vadd.f32 %v8880, %v9133
      %v9171 = vadd.f32 %v8881, %v9135
      %v9172 = vadd.f32 %v8882, %v9137
      %v9173 = vadd.f32 %v8883, %v9139
      %v9174 = vadd.f32 %v8884, %v9141
      %v9175 = vadd.f32 %v8885, %v9143
      %s9176 = scalar_lea.vmem %s18, 1920
      %v9177 = vld [vmem:[%s9176] sm:$0xff]
      %v9178 = vld [vmem:[%s9176 + $0x8] sm:$0xff]
      %v9179 = vld [vmem:[%s9176 + $0x10] sm:$0xff]
      %v9180 = vld [vmem:[%s9176 + $0x18] sm:$0xff]
      %v9181 = vld [vmem:[%s9176 + $0x20] sm:$0xff]
      %v9182 = vld [vmem:[%s9176 + $0x28] sm:$0xff]
      %v9183 = vld [vmem:[%s9176 + $0x30] sm:$0xff]
      %v9184 = vld [vmem:[%s9176 + $0x38] sm:$0xff]
      %v9185 = vld [vmem:[%s9176 + $0x40] sm:$0xff]
      %v9186 = vld [vmem:[%s9176 + $0x48] sm:$0xff]
      %v9187 = vld [vmem:[%s9176 + $0x50] sm:$0xff]
      %v9188 = vld [vmem:[%s9176 + $0x58] sm:$0xff]
      %v9189 = vld [vmem:[%s9176 + $0x60] sm:$0xff]
      %v9190 = vld [vmem:[%s9176 + $0x68] sm:$0xff]
      %v9191 = vld [vmem:[%s9176 + $0x70] sm:$0xff]
      %v9192 = vld [vmem:[%s9176 + $0x78] sm:$0xff]
      %v9194 = vsel %vm4153, %v9177, 0
      %v9197 = vsel %vm4153, %v9178, 0
      %v9200 = vsel %vm4153, %v9179, 0
      %v9203 = vsel %vm4153, %v9180, 0
      %v9206 = vsel %vm4153, %v9181, 0
      %v9209 = vsel %vm4153, %v9182, 0
      %v9212 = vsel %vm4153, %v9183, 0
      %v9215 = vsel %vm4153, %v9184, 0
      %v9218 = vsel %vm4153, %v9185, 0
      %v9221 = vsel %vm4153, %v9186, 0
      %v9224 = vsel %vm4153, %v9187, 0
      %v9227 = vsel %vm4153, %v9188, 0
      %v9230 = vsel %vm4153, %v9189, 0
      %v9233 = vsel %vm4153, %v9190, 0
      %v9236 = vsel %vm4153, %v9191, 0
      %v9239 = vsel %vm4153, %v9192, 0
      %9241 = vmatprep.subr.mxu0 0.0
      %9242 = vmatpush1.msra.mxu0 %v8362
      %9243 = vmatprep.subr.mxu0 0.0
      %9244 = vmatpush1.msra.mxu0 %v8363
      %9245 = vmatprep.subr.mxu0 0.0
      %9246 = vmatpush1.msra.mxu0 %v8364
      %9247 = vmatprep.subr.mxu0 0.0
      %9248 = vmatpush1.msra.mxu0 %v8365
      %9249 = vmatprep.subr.mxu0 0.0
      %9250 = vmatpush1.msra.mxu0 %v8366
      %9251 = vmatprep.subr.mxu0 0.0
      %9252 = vmatpush1.msra.mxu0 %v8367
      %9253 = vmatprep.subr.mxu0 0.0
      %9254 = vmatpush1.msra.mxu0 %v8368
      %9255 = vmatprep.subr.mxu0 0.0
      %9256 = vmatpush1.msra.mxu0 %v8369
      %9257 = vmatprep.subr.mxu0 0.0
      %9258 = vmatpush1.msra.mxu0 0.0
      %9259 = vmatprep.subr.mxu0 0.0
      %9260 = vmatpush1.msra.mxu0 0.0
      %9261 = vmatprep.subr.mxu0 0.0
      %9262 = vmatpush1.msra.mxu0 0.0
      %9263 = vmatprep.subr.mxu0 0.0
      %9264 = vmatpush1.msra.mxu0 0.0
      %9265 = vmatprep.subr.mxu0 0.0
      %9266 = vmatpush1.msra.mxu0 0.0
      %9267 = vmatprep.subr.mxu0 0.0
      %9268 = vmatpush1.msra.mxu0 0.0
      %9269 = vmatprep.subr.mxu0 0.0
      %9270 = vmatpush1.msra.mxu0 0.0
      %9271 = vmatprep.subr.mxu0 0.0
      %9272 = vmatpush1.msra.mxu0 0.0
      %9273 = vmatprep.subr.mxu0 0.0
      %9274 = vmatpush1.msra.mxu0 0.0
      %9275 = vmatprep.subr.mxu0 0.0
      %9276 = vmatpush1.msra.mxu0 0.0
      %9277 = vmatprep.subr.mxu0 0.0
      %9278 = vmatpush1.msra.mxu0 0.0
      %9279 = vmatprep.subr.mxu0 0.0
      %9280 = vmatpush1.msra.mxu0 0.0
      %9281 = vmatprep.subr.mxu0 0.0
      %9282 = vmatpush1.msra.mxu0 0.0
      %9283 = vmatprep.subr.mxu0 0.0
      %9284 = vmatpush1.msra.mxu0 0.0
      %9285 = vmatprep.subr.mxu0 0.0
      %9286 = vmatpush1.msra.mxu0 0.0
      %9287 = vmatprep.subr.mxu0 0.0
      %9288 = vmatpush1.msra.mxu0 0.0
      %9289 = vmatprep.subr.mxu0 0.0
      %9290 = vmatpush1.msra.mxu0 0.0
      %9291 = vmatprep.subr.mxu0 0.0
      %9292 = vmatpush1.msra.mxu0 0.0
      %9293 = vmatprep.subr.mxu0 0.0
      %9294 = vmatpush1.msra.mxu0 0.0
      %9295 = vmatprep.subr.mxu0 0.0
      %9296 = vmatpush1.msra.mxu0 0.0
      %9297 = vmatprep.subr.mxu0 0.0
      %9298 = vmatpush1.msra.mxu0 0.0
      %9299 = vmatprep.subr.mxu0 0.0
      %9300 = vmatpush1.msra.mxu0 0.0
      %9301 = vmatprep.subr.mxu0 0.0
      %9302 = vmatpush1.msra.mxu0 0.0
      %9303 = vmatprep.subr.mxu0 0.0
      %9304 = vmatpush1.msra.mxu0 0.0
      %9305 = vmatprep.mubr.f32.mxu0 0.0
      %9306 = vmatmul.mubr.f32.gmra.mrb[0].mxu0 %v9194
      %v9307 = vpop.f32.mrb[0].mxu0
      %v9308 = vadd.f32 0.0, %v9307
      %v9309 = vpop.f32.mrb[0].mxu0
      %9310 = vmatprep.mubr.f32.mxu0 0.0
      %9311 = vmatmul.mubr.f32.gmra.mrb[0].mxu0 %v9197
      %v9312 = vpop.f32.mrb[0].mxu0
      %v9313 = vadd.f32 0.0, %v9312
      %v9314 = vpop.f32.mrb[0].mxu0
      %9315 = vmatprep.mubr.f32.mxu0 0.0
      %9316 = vmatmul.mubr.f32.gmra.mrb[0].mxu0 %v9200
      %v9317 = vpop.f32.mrb[0].mxu0
      %v9318 = vadd.f32 0.0, %v9317
      %v9319 = vpop.f32.mrb[0].mxu0
      %9320 = vmatprep.mubr.f32.mxu0 0.0
      %9321 = vmatmul.mubr.f32.gmra.mrb[0].mxu0 %v9203
      %v9322 = vpop.f32.mrb[0].mxu0
      %v9323 = vadd.f32 0.0, %v9322
      %v9324 = vpop.f32.mrb[0].mxu0
      %9325 = vmatprep.mubr.f32.mxu0 0.0
      %9326 = vmatmul.mubr.f32.gmra.mrb[0].mxu0 %v9206
      %v9327 = vpop.f32.mrb[0].mxu0
      %v9328 = vadd.f32 0.0, %v9327
      %v9329 = vpop.f32.mrb[0].mxu0
      %9330 = vmatprep.mubr.f32.mxu0 0.0
      %9331 = vmatmul.mubr.f32.gmra.mrb[0].mxu0 %v9209
      %v9332 = vpop.f32.mrb[0].mxu0
      %v9333 = vadd.f32 0.0, %v9332
      %v9334 = vpop.f32.mrb[0].mxu0
      %9335 = vmatprep.mubr.f32.mxu0 0.0
      %9336 = vmatmul.mubr.f32.gmra.mrb[0].mxu0 %v9212
      %v9337 = vpop.f32.mrb[0].mxu0
      %v9338 = vadd.f32 0.0, %v9337
      %v9339 = vpop.f32.mrb[0].mxu0
      %9340 = vmatprep.mubr.f32.mxu0 0.0
      %9341 = vmatmul.mubr.f32.gmra.mrb[0].mxu0 %v9215
      %v9342 = vpop.f32.mrb[0].mxu0
      %v9343 = vadd.f32 0.0, %v9342
      %v9344 = vpop.f32.mrb[0].mxu0
      %9345 = vmatprep.mubr.f32.mxu0 0.0
      %9346 = vmatmul.mubr.f32.gmra.mrb[0].mxu0 %v9218
      %v9347 = vpop.f32.mrb[0].mxu0
      %v9348 = vadd.f32 0.0, %v9347
      %v9349 = vpop.f32.mrb[0].mxu0
      %9350 = vmatprep.mubr.f32.mxu0 0.0
      %9351 = vmatmul.mubr.f32.gmra.mrb[0].mxu0 %v9221
      %v9352 = vpop.f32.mrb[0].mxu0
      %v9353 = vadd.f32 0.0, %v9352
      %v9354 = vpop.f32.mrb[0].mxu0
      %9355 = vmatprep.mubr.f32.mxu0 0.0
      %9356 = vmatmul.mubr.f32.gmra.mrb[0].mxu0 %v9224
      %v9357 = vpop.f32.mrb[0].mxu0
      %v9358 = vadd.f32 0.0, %v9357
      %v9359 = vpop.f32.mrb[0].mxu0
      %9360 = vmatprep.mubr.f32.mxu0 0.0
      %9361 = vmatmul.mubr.f32.gmra.mrb[0].mxu0 %v9227
      %v9362 = vpop.f32.mrb[0].mxu0
      %v9363 = vadd.f32 0.0, %v9362
      %v9364 = vpop.f32.mrb[0].mxu0
      %9365 = vmatprep.mubr.f32.mxu0 0.0
      %9366 = vmatmul.mubr.f32.gmra.mrb[0].mxu0 %v9230
      %v9367 = vpop.f32.mrb[0].mxu0
      %v9368 = vadd.f32 0.0, %v9367
      %v9369 = vpop.f32.mrb[0].mxu0
      %9370 = vmatprep.mubr.f32.mxu0 0.0
      %9371 = vmatmul.mubr.f32.gmra.mrb[0].mxu0 %v9233
      %v9372 = vpop.f32.mrb[0].mxu0
      %v9373 = vadd.f32 0.0, %v9372
      %v9374 = vpop.f32.mrb[0].mxu0
      %9375 = vmatprep.mubr.f32.mxu0 0.0
      %9376 = vmatmul.mubr.f32.gmra.mrb[0].mxu0 %v9236
      %v9377 = vpop.f32.mrb[0].mxu0
      %v9378 = vadd.f32 0.0, %v9377
      %v9379 = vpop.f32.mrb[0].mxu0
      %9380 = vmatprep.mubr.f32.mxu0 0.0
      %9381 = vmatmul.mubr.f32.gmra.mrb[0].mxu0 %v9239
      %v9382 = vpop.f32.mrb[0].mxu0
      %v9383 = vadd.f32 0.0, %v9382
      %v9384 = vpop.f32.mrb[0].mxu0
      %9385 = vdwg.mxu0
      %9402 = vrot.lane.b32.xlu0 %v9308, 125
      %v9403 = vpop.permute.xlu0 %9402
      %9404 = vrot.lane.b32.xlu0 %v9313, 125
      %v9405 = vpop.permute.xlu0 %9404
      %9406 = vrot.lane.b32.xlu0 %v9318, 125
      %v9407 = vpop.permute.xlu0 %9406
      %9408 = vrot.lane.b32.xlu0 %v9323, 125
      %v9409 = vpop.permute.xlu0 %9408
      %9410 = vrot.lane.b32.xlu0 %v9328, 125
      %v9411 = vpop.permute.xlu0 %9410
      %9412 = vrot.lane.b32.xlu0 %v9333, 125
      %v9413 = vpop.permute.xlu0 %9412
      %9414 = vrot.lane.b32.xlu0 %v9338, 125
      %v9415 = vpop.permute.xlu0 %9414
      %9416 = vrot.lane.b32.xlu0 %v9343, 125
      %v9417 = vpop.permute.xlu0 %9416
      %9418 = vrot.lane.b32.xlu0 %v9348, 125
      %v9419 = vpop.permute.xlu0 %9418
      %9420 = vrot.lane.b32.xlu0 %v9353, 125
      %v9421 = vpop.permute.xlu0 %9420
      %9422 = vrot.lane.b32.xlu0 %v9358, 125
      %v9423 = vpop.permute.xlu0 %9422
      %9424 = vrot.lane.b32.xlu0 %v9363, 125
      %v9425 = vpop.permute.xlu0 %9424
      %9426 = vrot.lane.b32.xlu0 %v9368, 125
      %v9427 = vpop.permute.xlu0 %9426
      %9428 = vrot.lane.b32.xlu0 %v9373, 125
      %v9429 = vpop.permute.xlu0 %9428
      %9430 = vrot.lane.b32.xlu0 %v9378, 125
      %v9431 = vpop.permute.xlu0 %9430
      %9432 = vrot.lane.b32.xlu0 %v9383, 125
      %v9433 = vpop.permute.xlu0 %9432
      %v9450 = vadd.f32 %v9160, %v9403
      %v9451 = vadd.f32 %v9161, %v9405
      %v9452 = vadd.f32 %v9162, %v9407
      %v9453 = vadd.f32 %v9163, %v9409
      %v9454 = vadd.f32 %v9164, %v9411
      %v9455 = vadd.f32 %v9165, %v9413
      %v9456 = vadd.f32 %v9166, %v9415
      %v9457 = vadd.f32 %v9167, %v9417
      %v9458 = vadd.f32 %v9168, %v9419
      %v9459 = vadd.f32 %v9169, %v9421
      %v9460 = vadd.f32 %v9170, %v9423
      %v9461 = vadd.f32 %v9171, %v9425
      %v9462 = vadd.f32 %v9172, %v9427
      %v9463 = vadd.f32 %v9173, %v9429
      %v9464 = vadd.f32 %v9174, %v9431
      %v9465 = vadd.f32 %v9175, %v9433
      %vm9466 = vcmp.ge.f32.partialorder %v9450, 0.0
      %vm9467 = vcmp.ge.f32.partialorder %v9451, 0.0
      %vm9468 = vcmp.ge.f32.partialorder %v9452, 0.0
      %vm9469 = vcmp.ge.f32.partialorder %v9453, 0.0
      %vm9470 = vcmp.ge.f32.partialorder %v9454, 0.0
      %vm9471 = vcmp.ge.f32.partialorder %v9455, 0.0
      %vm9472 = vcmp.ge.f32.partialorder %v9456, 0.0
      %vm9473 = vcmp.ge.f32.partialorder %v9457, 0.0
      %vm9474 = vcmp.ge.f32.partialorder %v9458, 0.0
      %vm9475 = vcmp.ge.f32.partialorder %v9459, 0.0
      %vm9476 = vcmp.ge.f32.partialorder %v9460, 0.0
      %vm9477 = vcmp.ge.f32.partialorder %v9461, 0.0
      %vm9478 = vcmp.ge.f32.partialorder %v9462, 0.0
      %vm9479 = vcmp.ge.f32.partialorder %v9463, 0.0
      %vm9480 = vcmp.ge.f32.partialorder %v9464, 0.0
      %vm9481 = vcmp.ge.f32.partialorder %v9465, 0.0
      %v9482 = vmul.f32 %v9450, 0.2
      %v9483 = vmul.f32 %v9451, 0.2
      %v9484 = vmul.f32 %v9452, 0.2
      %v9485 = vmul.f32 %v9453, 0.2
      %v9486 = vmul.f32 %v9454, 0.2
      %v9487 = vmul.f32 %v9455, 0.2
      %v9488 = vmul.f32 %v9456, 0.2
      %v9489 = vmul.f32 %v9457, 0.2
      %v9490 = vmul.f32 %v9458, 0.2
      %v9491 = vmul.f32 %v9459, 0.2
      %v9492 = vmul.f32 %v9460, 0.2
      %v9493 = vmul.f32 %v9461, 0.2
      %v9494 = vmul.f32 %v9462, 0.2
      %v9495 = vmul.f32 %v9463, 0.2
      %v9496 = vmul.f32 %v9464, 0.2
      %v9497 = vmul.f32 %v9465, 0.2
      %v9498 = vsel %vm9466, %v9450, %v9482
      %v9499 = vsel %vm9467, %v9451, %v9483
      %v9500 = vsel %vm9468, %v9452, %v9484
      %v9501 = vsel %vm9469, %v9453, %v9485
      %v9502 = vsel %vm9470, %v9454, %v9486
      %v9503 = vsel %vm9471, %v9455, %v9487
      %v9504 = vsel %vm9472, %v9456, %v9488
      %v9505 = vsel %vm9473, %v9457, %v9489
      %v9506 = vsel %vm9474, %v9458, %v9490
      %v9507 = vsel %vm9475, %v9459, %v9491
      %v9508 = vsel %vm9476, %v9460, %v9492
      %v9509 = vsel %vm9477, %v9461, %v9493
      %v9510 = vsel %vm9478, %v9462, %v9494
      %v9511 = vsel %vm9479, %v9463, %v9495
      %v9512 = vsel %vm9480, %v9464, %v9496
      %v9513 = vsel %vm9481, %v9465, %v9497
      %v9514 = vld [vmem:[%s20] sm:$0xff]
      %v9515 = vld [vmem:[%s20 + $0x8] sm:$0xff]
      %v9516 = vld [vmem:[%s20 + $0x10] sm:$0xff]
      %v9517 = vld [vmem:[%s20 + $0x18] sm:$0xff]
      %v9518 = vld [vmem:[%s20 + $0x20] sm:$0xff]
      %v9519 = vld [vmem:[%s20 + $0x28] sm:$0xff]
      %v9520 = vld [vmem:[%s20 + $0x30] sm:$0xff]
      %v9521 = vld [vmem:[%s20 + $0x38] sm:$0xff]
      %v9522 = vld [vmem:[%s20 + $0x40] sm:$0xff]
      %v9523 = vld [vmem:[%s20 + $0x48] sm:$0xff]
      %v9524 = vld [vmem:[%s20 + $0x50] sm:$0xff]
      %v9525 = vld [vmem:[%s20 + $0x58] sm:$0xff]
      %v9526 = vld [vmem:[%s20 + $0x60] sm:$0xff]
      %v9527 = vld [vmem:[%s20 + $0x68] sm:$0xff]
      %v9528 = vld [vmem:[%s20 + $0x70] sm:$0xff]
      %v9529 = vld [vmem:[%s20 + $0x78] sm:$0xff]
      %v9530 = vmul.f32 %v9498, %v9514
      %v9531 = vmul.f32 %v9499, %v9515
      %v9532 = vmul.f32 %v9500, %v9516
      %v9533 = vmul.f32 %v9501, %v9517
      %v9534 = vmul.f32 %v9502, %v9518
      %v9535 = vmul.f32 %v9503, %v9519
      %v9536 = vmul.f32 %v9504, %v9520
      %v9537 = vmul.f32 %v9505, %v9521
      %v9538 = vmul.f32 %v9506, %v9522
      %v9539 = vmul.f32 %v9507, %v9523
      %v9540 = vmul.f32 %v9508, %v9524
      %v9541 = vmul.f32 %v9509, %v9525
      %v9542 = vmul.f32 %v9510, %v9526
      %v9543 = vmul.f32 %v9511, %v9527
      %v9544 = vmul.f32 %v9512, %v9528
      %v9545 = vmul.f32 %v9513, %v9529
      %vm9546 = vcmask 7168
      %v9547 = vsel %vm9546, %v9530, 0.0
      %v9548 = vsel %vm9546, %v9531, 0.0
      %v9549 = vadd.f32 %v9547, %v9548
      %v9550 = vsel %vm9546, %v9532, 0.0
      %v9551 = vadd.f32 %v9549, %v9550
      %v9552 = vsel %vm9546, %v9533, 0.0
      %v9553 = vadd.f32 %v9551, %v9552
      %v9554 = vsel %vm9546, %v9534, 0.0
      %v9555 = vadd.f32 %v9553, %v9554
      %v9556 = vsel %vm9546, %v9535, 0.0
      %v9557 = vadd.f32 %v9555, %v9556
      %v9558 = vsel %vm9546, %v9536, 0.0
      %v9559 = vadd.f32 %v9557, %v9558
      %v9560 = vsel %vm9546, %v9537, 0.0
      %v9561 = vadd.f32 %v9559, %v9560
      %v9562 = vsel %vm9546, %v9538, 0.0
      %v9563 = vadd.f32 %v9561, %v9562
      %v9564 = vsel %vm9546, %v9539, 0.0
      %v9565 = vadd.f32 %v9563, %v9564
      %v9566 = vsel %vm9546, %v9540, 0.0
      %v9567 = vadd.f32 %v9565, %v9566
      %v9568 = vsel %vm9546, %v9541, 0.0
      %v9569 = vadd.f32 %v9567, %v9568
      %v9570 = vsel %vm9546, %v9542, 0.0
      %v9571 = vadd.f32 %v9569, %v9570
      %v9572 = vsel %vm9546, %v9543, 0.0
      %v9573 = vadd.f32 %v9571, %v9572
      %v9574 = vsel %vm9546, %v9544, 0.0
      %v9575 = vadd.f32 %v9573, %v9574
      %v9576 = vsel %vm9546, %v9545, 0.0
      %v9577 = vadd.f32 %v9575, %v9576
      %v9578 = vrot.slane %v9577, 4
      %v9579 = vadd.f32 %v9577, %v9578
      %v9580 = vrot.slane %v9579, 2
      %v9581 = vadd.f32 %v9579, %v9580
      %v9582 = vrot.slane %v9581, 1
      %v9583 = vadd.f32 %v9581, %v9582
      %v9584 = vld [vmem:[#allocation7] sm:$0x1]
      %v9585 = vadd.f32 %v9583, %v9584
      %v9586 = vsub.f32 0.0, %v9585
      %v9587 = vmul.f32 %v9586, 1.442695
      %v9588 = vpow.pop %v9587
      %v9589 = vadd.f32 %v9588, 1.0
      %v9590 = vrcp.pop %v9589
      %v9591 = vmul.f32 1.0, %v9590
      %s9593 = vtos %v9591
      %v9594 = vstv %s9593
      %9596 = vst [vmem:[%s683] sm:$0xff] %v9594
      %p9597 = scmp.lt.s32.totalorder %s35, 1
      %s9598 = scalar_select %p9597, %s35, 1
      %s9599 = smul.addr %s9598, 8
      %s9600 = scalar_lea.vmem %s22, %s9599
      // Predicated region
      $region144: #{discriminator_forward.1} parent=107 // pred_check
        %p9601 = pneg %p520
      $region145: #{discriminator_forward.1} parent=107 // pred_check_branch
        %9603 = sbr.rel (%p9601) target = $region147
      $region146: #{discriminator_forward.1} parent=107 // pred_region
        _
      $region147: #{discriminator_forward.1} parent=107 // pred_fallthru
        _
    $region108: #{discriminator_forward.1} parent=5 // pred_fallthru
      _
    %p9604 = scmp.le.s32.totalorder 2, %s30
    // Predicated region
    $region148: #{discriminator_forward.1} parent=5 // pred_check
      %p9605 = pneg %p9604
    $region149: #{discriminator_forward.1} parent=5 // pred_check_branch
      %9607 = sbr.rel (%p9605) target = $region151
    $region150: #{discriminator_forward.1} parent=5 // pred_region
      %s9608 = ssub.s32 %s30, 2
      // Predicated region
      $region152: #{discriminator_forward.1} parent=150 // pred_check
        %p9609 = pneg %p526
      $region153: #{discriminator_forward.1} parent=150 // pred_check_branch
        %9611 = sbr.rel (%p9609) target = $region155
      $region154: #{discriminator_forward.1} parent=150 // pred_region
        %p9612 = scmp.lt.s32.totalorder %s36, 1
        %s9613 = scalar_select %p9612, %s36, 1
        %s9614 = smul.addr %s9613, 8
        %s9615 = scalar_lea.vmem %s22, %s9614
      $region155: #{discriminator_forward.1} parent=150 // pred_fallthru
        _
    $region151: #{discriminator_forward.1} parent=5 // pred_fallthru
      _
  $region6: #{discriminator_forward.1} parent=0 // loop_footer
    %s34 = sadd.s32 1, %s30
  $region7: #{discriminator_forward.1} parent=0 // loop_footer_branch
    %29 = sbr.rel target = $region3
  $region8: #{discriminator_forward.1} parent=0 // loop_exit
    _

</llo_original>
